<compile_context>
chip_gen: v7x
topology: tpu7x:2x2x1
jax: 0.10.0
libtpu: 0.0.40
codegen_flags: <defaults>
</compile_context>

<pallas_src>
import functools

import jax
import jax.numpy as jnp
from jax import lax
from jax.experimental import pallas as pl
from jax.experimental.pallas import tpu as pltpu

TILE_B = 128                   # max batch tile (sublane dim of in-kernel tensors)
COMPUTE_DTYPE = jnp.bfloat16   # MXU input dtype; accumulation stays f32


# ------------------------------- fused kernel --------------------------------

def _convnet_kernel(x_ref, band1_ref, b1p_ref, band2_ref, b2p_ref,
                    wfc1_ref, bfc1_ref, wfc2_ref, bfc2_ref,
                    out_ref, lhs2_ref):
    # One batch tile of TB samples.  Layouts (batch always on sublanes):
    #   x_ref    : (24, TB, 140)  bf16  rows=(oh, b), lanes = 28*kh + w  (host-expanded)
    #   conv1    : (24*TB, 768)   f32   lanes = parity*384 + w2*32 + c, ow = 2*w2+parity
    #   p1       : (12, TB, 384)  bf16  pooled conv1, lanes = w2*32 + c
    #   lhs2_ref : (8, TB, 1920)  bf16  rows=(y, b), lanes = kh*384 + w2*32 + c
    #   conv2    : (8*TB, 512)    f32   lanes = px*256 + x2*64 + d,     x = 2*x2+px
    #   p2       : (4, TB, 256)   bf16  pooled conv2, lanes = x2*64 + d
    # All reshapes only merge/split leading dims (lane dim untouched); all lane
    # slices are 128-aligned; all scratch writes are lane-aligned full-width stores.
    tb = x_ref.shape[1]
    f32 = jnp.float32
    cd = band1_ref.dtype                      # bf16 MXU compute dtype

    # ---- conv1: single MXU matmul, K = 5*28 = 140 (kh folded on the host) -------
    z1 = jnp.dot(x_ref[...].reshape(24 * tb, 140), band1_ref[...],
                 preferred_element_type=f32)                       # (24*tb, 768)

    # ---- 2x2 max-pool #1, then bias + ReLU (exactly commutes with the pool) -----
    z1 = z1.reshape(12, 2, tb, 768)                                # split oh -> (h2, i)
    z1 = jnp.maximum(z1[:, 0], z1[:, 1])                           # row pool (12, tb, 768)
    z1 = jnp.maximum(z1[:, :, :384], z1[:, :, 384:])               # column-parity pool
    p1 = jnp.maximum(z1 + b1p_ref[...], 0.0).astype(cd)            # (12, tb, 384)

    # ---- conv2: single banded MXU matmul, K = 5*384 = 1920 ----------------------
    for kh in range(5):        # five lane-aligned copies fold kh into K
        lhs2_ref[:, :, 384 * kh:384 * (kh + 1)] = p1[kh:kh + 8]
    z2 = jnp.dot(lhs2_ref[...].reshape(8 * tb, 1920), band2_ref[...],
                 preferred_element_type=f32)                       # (8*tb, 512)

    # ---- 2x2 max-pool #2, then bias + ReLU --------------------------------------
    z2 = z2.reshape(4, 2, tb, 512)                                 # split y -> (y2, i)
    z2 = jnp.maximum(z2[:, 0], z2[:, 1])                           # (4, tb, 512)
    z2 = jnp.maximum(z2[:, :, :256], z2[:, :, 256:])               # column-parity pool
    p2 = jnp.maximum(z2 + b2p_ref[...], 0.0).astype(cd)            # (4, tb, 256)

    # ---- fc1 (1024 -> 128) + ReLU: 4 K=256 matmuls, flatten folded into weight --
    accf = jnp.zeros((tb, 128), f32)
    for y2 in range(4):
        accf = accf + jnp.dot(p2[y2], wfc1_ref[y2], preferred_element_type=f32)
    hidden = jnp.maximum(accf + bfc1_ref[...], 0.0).astype(cd)

    # ---- fc2 (128 -> 128-padded output, lane-dense store) -----------------------
    out = jnp.dot(hidden, wfc2_ref[...], preferred_element_type=f32) + bfc2_ref[...]
    out_ref[...] = out.astype(out_ref.dtype)


# ------------------------------- parameters ----------------------------------

def init_params(key, output_dim):
    # PyTorch-convention shapes, U(-1/sqrt(fan_in), 1/sqrt(fan_in)) init.
    def uinit(k, shape, fan_in):
        bound = 1.0 / float(fan_in) ** 0.5
        return jax.random.uniform(k, shape, jnp.float32, -bound, bound)

    ks = jax.random.split(key, 8)
    return {
        "conv1_w": uinit(ks[0], (32, 1, 5, 5), 25),        # (cout, cin, kh, kw)
        "conv1_b": uinit(ks[1], (32,), 25),
        "conv2_w": uinit(ks[2], (64, 32, 5, 5), 800),
        "conv2_b": uinit(ks[3], (64,), 800),
        "fc1_w": uinit(ks[4], (128, 4 * 4 * 64), 1024),    # (out, in), (C,H,W) flatten
        "fc1_b": uinit(ks[5], (128,), 1024),
        "fc2_w": uinit(ks[6], (output_dim, 128), 128),
        "fc2_b": uinit(ks[7], (output_dim,), 128),
    }


def prepare_params(params, output_dim, compute_dtype=COMPUTE_DTYPE):
    """One-time conversion of PyTorch-layout params into the kernel layout."""
    w1 = params["conv1_w"]; b1 = params["conv1_b"]
    w2 = params["conv2_w"]; b2 = params["conv2_b"]
    wf1 = params["fc1_w"]; bf1 = params["fc1_b"]
    wf2 = params["fc2_w"]; bf2 = params["fc2_b"]

    # conv1 banded weight: rows = 28*kh + j, output lanes = parity*384 + w2*32 + c
    # (ow = 2*w2 + parity), band1[28*kh + j, lane(ow, c)] = w1[c, 0, kh, j - ow].
    w1t = jnp.transpose(w1[:, 0], (1, 2, 0))                        # (kh, kw, c)
    band1 = jnp.zeros((5, 28, 24, 32), jnp.float32)                 # (kh, j, ow, c)
    ow = jnp.arange(24)
    for kw in range(5):
        band1 = band1.at[:, ow + kw, ow, :].set(
            jnp.broadcast_to(w1t[:, kw, None, :], (5, 24, 32)))
    band1 = band1.reshape(5, 28, 12, 2, 32)                         # ow -> (w2, parity)
    band1 = jnp.transpose(band1, (0, 1, 3, 2, 4)).reshape(140, 768)
    b1p = jnp.tile(b1, 12).reshape(1, 384)                          # lanes = w2*32 + c

    # conv2 banded weight: rows = kh*384 + w2*32 + c, lanes = px*256 + x2*64 + d
    # (x = 2*x2 + px), band2[row, lane(x, d)] = w2[d, c, kh, w2 - x] inside the band.
    w2t = jnp.transpose(w2, (2, 3, 1, 0))                           # (kh, kw, c, d)
    band2 = jnp.zeros((5, 32, 12, 8, 64), jnp.float32)              # (kh, c, w2, x, d)
    xs = jnp.arange(8)
    for kw in range(5):
        band2 = band2.at[:, :, xs + kw, xs, :].set(
            jnp.broadcast_to(w2t[:, kw, :, None, :], (5, 32, 8, 64)))
    band2 = jnp.transpose(band2, (0, 2, 1, 3, 4))                   # (kh, w2, c, x, d)
    band2 = band2.reshape(5, 12, 32, 4, 2, 64)                      # x -> (x2, px)
    band2 = jnp.transpose(band2, (0, 1, 2, 4, 3, 5)).reshape(1920, 512)
    b2p = jnp.tile(b2, 4).reshape(1, 256)                           # lanes = x2*64 + d

    # fc1: fold PyTorch's (C, H, W) flatten into per-y2 blocks of (x2*64 + d, out).
    wfc1 = jnp.transpose(wf1.reshape(128, 64, 4, 4), (2, 3, 1, 0))  # (y2, x2, d, o)
    wfc1 = wfc1.reshape(4, 256, 128)

    # fc2: pad the output dim to a full 128-lane column block (sliced in wrapper).
    wfc2 = jnp.zeros((128, 128), jnp.float32).at[:, :output_dim].set(wf2.T)
    bfc2 = jnp.zeros((1, 128), jnp.float32).at[0, :output_dim].set(bf2)

    cd = compute_dtype
    return {
        "band1": band1.astype(cd), "b1p": b1p.astype(jnp.float32),
        "band2": band2.astype(cd), "b2p": b2p.astype(jnp.float32),
        "wfc1": wfc1.astype(cd), "bfc1": bf1.reshape(1, 128).astype(jnp.float32),
        "wfc2": wfc2.astype(cd), "bfc2": bfc2.astype(jnp.float32),
    }


# -------------------------------- forward ------------------------------------

def _round_up(v, m):
    return ((v + m - 1) // m) * m


def _tiling(n, tile_b=TILE_B):
    # tb multiple of 16 keeps every leading-dim reshape layout-free under bf16
    # sublane packing; >=2 grid tiles keeps both v7x TensorCores busy.
    tb = min(tile_b, max(16, _round_up((n + 1) // 2, 16)))
    n_tiles = max(2, _round_up(n, tb) // tb)
    return tb, n_tiles


@functools.partial(jax.jit, static_argnames=("output_dim",))
def convnet_forward(kparams, x_nchw, *, output_dim):
    # x_nchw: (N, 1, 28, 28) f32.
    # TODO(synk): dropout layers (dp1..dp3, p=0.5) are identity here (eval mode);
    # training-mode RNG masks are not reproduced.
    n = x_nchw.shape[0]
    tb, n_tiles = _tiling(n)
    n_pad = tb * n_tiles

    # Host-side layout: (H, batch, W) with batch padded; then the 5 conv1 kh-windows
    # are concatenated on the lane axis so the kernel's conv1 is one K=140 matmul.
    x = jnp.transpose(x_nchw[:, 0, :, :], (1, 0, 2))                # (28, N, 28)
    x = jnp.pad(x, ((0, 0), (0, n_pad - n), (0, 0)))
    x = jnp.concatenate([x[kh:kh + 24] for kh in range(5)], axis=-1)  # (24, n_pad, 140)
    x = x.astype(COMPUTE_DTYPE)

    flops = 2 * n_pad * (24 * 140 * 768      # conv1 banded matmul
                         + 8 * 1920 * 512    # conv2 banded matmul
                         + 1024 * 128        # fc1
                         + 128 * 128)        # fc2
    bytes_accessed = (
        x.size * x.dtype.itemsize
        + sum(v.size * v.dtype.itemsize for v in kparams.values())
        + n_pad * 128 * 4)

    out = pl.pallas_call(
        _convnet_kernel,
        out_shape=jax.ShapeDtypeStruct((n_pad, 128), jnp.float32),
        grid=(n_tiles,),
        in_specs=[
            pl.BlockSpec((24, tb, 140), lambda i: (0, i, 0)),       # expanded input tile
            pl.BlockSpec((140, 768), lambda i: (0, 0)),             # conv1 banded W
            pl.BlockSpec((1, 384), lambda i: (0, 0)),               # conv1 bias (pooled lanes)
            pl.BlockSpec((1920, 512), lambda i: (0, 0)),            # conv2 banded W
            pl.BlockSpec((1, 256), lambda i: (0, 0)),               # conv2 bias (pooled lanes)
            pl.BlockSpec((4, 256, 128), lambda i: (0, 0, 0)),       # fc1 W (per y2)
            pl.BlockSpec((1, 128), lambda i: (0, 0)),               # fc1 bias
            pl.BlockSpec((128, 128), lambda i: (0, 0)),             # fc2 W (padded)
            pl.BlockSpec((1, 128), lambda i: (0, 0)),               # fc2 bias (padded)
        ],
        out_specs=pl.BlockSpec((tb, 128), lambda i: (i, 0)),
        scratch_shapes=[
            pltpu.VMEM((8, tb, 1920), COMPUTE_DTYPE),               # conv2 K-folded lhs
        ],
        compiler_params=pltpu.CompilerParams(
            dimension_semantics=("parallel",),
            # Footprint at tb=128: ~6.5 MiB double-buffered pipeline blocks
            # + 3.75 MiB lhs2 scratch + ~14 MiB transient conv1 f32 values
            # => ~25 MiB; 48 MiB leaves headroom and fits v7x's 64 MiB VMEM.
            vmem_limit_bytes=48 * 1024 * 1024),
        cost_estimate=pl.CostEstimate(flops=flops, transcendentals=0,
                                      bytes_accessed=bytes_accessed),
    )(x, kparams["band1"], kparams["b1p"], kparams["band2"], kparams["b2p"],
      kparams["wfc1"], kparams["bfc1"], kparams["wfc2"], kparams["bfc2"])

    return out[:n, :output_dim]


# --------------------------- pure-JAX reference -------------------------------

def _reference_forward(params, x_nchw):
    """Reference forward with the same bf16 rounding points as the kernel."""
    bf = lambda a: a.astype(jnp.bfloat16).astype(jnp.float32)
    dn = ("NCHW", "OIHW", "NCHW")
    pool = lambda a: lax.reduce_window(a, -jnp.inf, lax.max,
                                       (1, 1, 2, 2), (1, 1, 2, 2), "VALID")
    y = lax.conv_general_dilated(bf(x_nchw), bf(params["conv1_w"]), (1, 1), "VALID",
                                 dimension_numbers=dn)
    y = jax.nn.relu(y + params["conv1_b"][None, :, None, None])
    y = bf(pool(y))
    y = lax.conv_general_dilated(y, bf(params["conv2_w"]), (1, 1), "VALID",
                                 dimension_numbers=dn)
    y = jax.nn.relu(y + params["conv2_b"][None, :, None, None])
    y = bf(pool(y)).reshape(x_nchw.shape[0], -1)          # (N, 64*4*4), (C,H,W) order
    y = bf(jax.nn.relu(y @ bf(params["fc1_w"]).T + params["fc1_b"]))
    return y @ bf(params["fc2_w"]).T + params["fc2_b"]


if __name__ == "__main__":
    output_dim = 10
    key = jax.random.PRNGKey(0)
    pkey, xkey = jax.random.split(key)

    params = init_params(pkey, output_dim)
    kparams = prepare_params(params, output_dim)

    # 28x28 single-channel input: two 5x5 valid convs + two 2x2 pools -> 4*4*64 -> fc.
    x = jax.random.normal(xkey, (2, 1, 28, 28), jnp.float32)

    out = jax.block_until_ready(convnet_forward(kparams, x, output_dim=output_dim))
    assert out.shape == (2, output_dim), out.shape

    ref = jax.block_until_ready(_reference_forward(params, x))
    err = float(jnp.max(jnp.abs(out - ref)))
    assert err < 3e-2, f"kernel/reference mismatch: max abs err {err}"
    print("KERNEL_OK")
</pallas_src>

<mosaic_0001>
module attributes {stable_mosaic.version = 11 : i64} {
  func.func @_convnet_kernel(%arg0: i32, %arg1: memref<24x16x140xbf16, #tpu.memory_space<vmem>>, %arg2: memref<140x768xbf16, #tpu.memory_space<vmem>>, %arg3: memref<1x384xf32, #tpu.memory_space<vmem>>, %arg4: memref<1920x512xbf16, #tpu.memory_space<vmem>>, %arg5: memref<1x256xf32, #tpu.memory_space<vmem>>, %arg6: memref<4x256x128xbf16, #tpu.memory_space<vmem>>, %arg7: memref<1x128xf32, #tpu.memory_space<vmem>>, %arg8: memref<128x128xbf16, #tpu.memory_space<vmem>>, %arg9: memref<1x128xf32, #tpu.memory_space<vmem>>, %arg10: memref<16x128xf32, #tpu.memory_space<vmem>>, %arg11: memref<8x16x1920xbf16, #tpu.memory_space<vmem>>) attributes {dimension_semantics = [#tpu.dimension_semantics<parallel>], iteration_bounds = array<i64: 2>, scalar_prefetch = 0 : i64, scratch_operands = 1 : i64, tpu.core_type = #tpu.core_type<tc>, window_params = [{transform_indices = @transform_0, window_bounds = array<i64: 24, 16, 140>}, {pipeline_mode = #tpu.pipeline_mode<synchronous>, transform_indices = @transform_1, window_bounds = array<i64: 140, 768>}, {pipeline_mode = #tpu.pipeline_mode<synchronous>, transform_indices = @transform_2, window_bounds = array<i64: 1, 384>}, {pipeline_mode = #tpu.pipeline_mode<synchronous>, transform_indices = @transform_3, window_bounds = array<i64: 1920, 512>}, {pipeline_mode = #tpu.pipeline_mode<synchronous>, transform_indices = @transform_4, window_bounds = array<i64: 1, 256>}, {pipeline_mode = #tpu.pipeline_mode<synchronous>, transform_indices = @transform_5, window_bounds = array<i64: 4, 256, 128>}, {pipeline_mode = #tpu.pipeline_mode<synchronous>, transform_indices = @transform_6, window_bounds = array<i64: 1, 128>}, {pipeline_mode = #tpu.pipeline_mode<synchronous>, transform_indices = @transform_7, window_bounds = array<i64: 128, 128>}, {pipeline_mode = #tpu.pipeline_mode<synchronous>, transform_indices = @transform_8, window_bounds = array<i64: 1, 128>}, {transform_indices = @transform_9, window_bounds = array<i64: 16, 128>}]} {
    %c0 = arith.constant 0 : index
    %c0_0 = arith.constant 0 : index
    %c0_1 = arith.constant 0 : index
    %0 = vector.load %arg1[%c0, %c0_0, %c0_1] : memref<24x16x140xbf16, #tpu.memory_space<vmem>>, vector<24x16x140xbf16>
    %1 = vector.shape_cast %0 : vector<24x16x140xbf16> to vector<384x140xbf16>
    %c0_2 = arith.constant 0 : index
    %c0_3 = arith.constant 0 : index
    %2 = vector.load %arg2[%c0_2, %c0_3] : memref<140x768xbf16, #tpu.memory_space<vmem>>, vector<140x768xbf16>
    %cst = arith.constant dense<0.000000e+00> : vector<384x768xf32>
    %3 = tpu.matmul %1, %2, %cst {dimension_numbers = #tpu.dot_dimension_numbers<[1], [0], [0], [1], [0, 0, 1, 1], [], []>} : vector<384x140xbf16>, vector<140x768xbf16>, vector<384x768xf32> -> vector<384x768xf32>
    %4 = vector.shape_cast %3 : vector<384x768xf32> to vector<12x2x16x768xf32>
    %5 = vector.extract_strided_slice %4 {offsets = [0, 0, 0, 0], sizes = [12, 1, 16, 768], strides = [1, 1, 1, 1]} : vector<12x2x16x768xf32> to vector<12x1x16x768xf32>
    %6 = vector.shape_cast %5 : vector<12x1x16x768xf32> to vector<12x16x768xf32>
    %7 = vector.extract_strided_slice %4 {offsets = [0, 1, 0, 0], sizes = [12, 1, 16, 768], strides = [1, 1, 1, 1]} : vector<12x2x16x768xf32> to vector<12x1x16x768xf32>
    %8 = vector.shape_cast %7 : vector<12x1x16x768xf32> to vector<12x16x768xf32>
    %9 = arith.maximumf %6, %8 : vector<12x16x768xf32>
    %10 = vector.extract_strided_slice %9 {offsets = [0, 0, 0], sizes = [12, 16, 384], strides = [1, 1, 1]} : vector<12x16x768xf32> to vector<12x16x384xf32>
    %11 = vector.extract_strided_slice %9 {offsets = [0, 0, 384], sizes = [12, 16, 384], strides = [1, 1, 1]} : vector<12x16x768xf32> to vector<12x16x384xf32>
    %12 = arith.maximumf %10, %11 : vector<12x16x384xf32>
    %c0_4 = arith.constant 0 : index
    %c0_5 = arith.constant 0 : index
    %13 = vector.load %arg3[%c0_4, %c0_5] : memref<1x384xf32, #tpu.memory_space<vmem>>, vector<1x384xf32>
    %14 = vector.shape_cast %13 : vector<1x384xf32> to vector<1x1x384xf32>
    %15 = vector.broadcast %14 : vector<1x1x384xf32> to vector<12x16x384xf32>
    %16 = arith.addf %12, %15 : vector<12x16x384xf32>
    %cst_6 = arith.constant 0.000000e+00 : f32
    %17 = vector.broadcast %cst_6 : f32 to vector<12x16x384xf32>
    %18 = arith.maximumf %16, %17 : vector<12x16x384xf32>
    %19 = arith.truncf %18 : vector<12x16x384xf32> to vector<12x16x384xbf16>
    %20 = vector.extract_strided_slice %19 {offsets = [0, 0, 0], sizes = [8, 16, 384], strides = [1, 1, 1]} : vector<12x16x384xbf16> to vector<8x16x384xbf16>
    %c0_7 = arith.constant 0 : index
    %c0_8 = arith.constant 0 : index
    %c0_9 = arith.constant 0 : index
    %21 = vector.load %arg11[%c0_7, %c0_8, %c0_9] : memref<8x16x1920xbf16, #tpu.memory_space<vmem>>, vector<8x16x384xbf16>
    tpu.vector_store %arg11[%c0_7, %c0_8, %c0_9], %20 {strides = array<i32>} : memref<8x16x1920xbf16, #tpu.memory_space<vmem>>, vector<8x16x384xbf16>,
    %22 = vector.extract_strided_slice %19 {offsets = [1, 0, 0], sizes = [8, 16, 384], strides = [1, 1, 1]} : vector<12x16x384xbf16> to vector<8x16x384xbf16>
    %c0_10 = arith.constant 0 : index
    %c0_11 = arith.constant 0 : index
    %c384 = arith.constant 384 : index
    %23 = vector.load %arg11[%c0_10, %c0_11, %c384] : memref<8x16x1920xbf16, #tpu.memory_space<vmem>>, vector<8x16x384xbf16>
    tpu.vector_store %arg11[%c0_10, %c0_11, %c384], %22 {strides = array<i32>} : memref<8x16x1920xbf16, #tpu.memory_space<vmem>>, vector<8x16x384xbf16>,
    %24 = vector.extract_strided_slice %19 {offsets = [2, 0, 0], sizes = [8, 16, 384], strides = [1, 1, 1]} : vector<12x16x384xbf16> to vector<8x16x384xbf16>
    %c0_12 = arith.constant 0 : index
    %c0_13 = arith.constant 0 : index
    %c768 = arith.constant 768 : index
    %25 = vector.load %arg11[%c0_12, %c0_13, %c768] : memref<8x16x1920xbf16, #tpu.memory_space<vmem>>, vector<8x16x384xbf16>
    tpu.vector_store %arg11[%c0_12, %c0_13, %c768], %24 {strides = array<i32>} : memref<8x16x1920xbf16, #tpu.memory_space<vmem>>, vector<8x16x384xbf16>,
    %26 = vector.extract_strided_slice %19 {offsets = [3, 0, 0], sizes = [8, 16, 384], strides = [1, 1, 1]} : vector<12x16x384xbf16> to vector<8x16x384xbf16>
    %c0_14 = arith.constant 0 : index
    %c0_15 = arith.constant 0 : index
    %c1152 = arith.constant 1152 : index
    %27 = vector.load %arg11[%c0_14, %c0_15, %c1152] : memref<8x16x1920xbf16, #tpu.memory_space<vmem>>, vector<8x16x384xbf16>
    tpu.vector_store %arg11[%c0_14, %c0_15, %c1152], %26 {strides = array<i32>} : memref<8x16x1920xbf16, #tpu.memory_space<vmem>>, vector<8x16x384xbf16>,
    %28 = vector.extract_strided_slice %19 {offsets = [4, 0, 0], sizes = [8, 16, 384], strides = [1, 1, 1]} : vector<12x16x384xbf16> to vector<8x16x384xbf16>
    %c0_16 = arith.constant 0 : index
    %c0_17 = arith.constant 0 : index
    %c1536 = arith.constant 1536 : index
    %29 = vector.load %arg11[%c0_16, %c0_17, %c1536] : memref<8x16x1920xbf16, #tpu.memory_space<vmem>>, vector<8x16x384xbf16>
    tpu.vector_store %arg11[%c0_16, %c0_17, %c1536], %28 {strides = array<i32>} : memref<8x16x1920xbf16, #tpu.memory_space<vmem>>, vector<8x16x384xbf16>,
    %c0_18 = arith.constant 0 : index
    %c0_19 = arith.constant 0 : index
    %c0_20 = arith.constant 0 : index
    %30 = vector.load %arg11[%c0_18, %c0_19, %c0_20] : memref<8x16x1920xbf16, #tpu.memory_space<vmem>>, vector<8x16x1920xbf16>
    %31 = vector.shape_cast %30 : vector<8x16x1920xbf16> to vector<128x1920xbf16>
    %c0_21 = arith.constant 0 : index
    %c0_22 = arith.constant 0 : index
    %32 = vector.load %arg4[%c0_21, %c0_22] : memref<1920x512xbf16, #tpu.memory_space<vmem>>, vector<1920x512xbf16>
    %cst_23 = arith.constant dense<0.000000e+00> : vector<128x512xf32>
    %33 = tpu.matmul %31, %32, %cst_23 {dimension_numbers = #tpu.dot_dimension_numbers<[1], [0], [0], [1], [0, 0, 1, 1], [], []>} : vector<128x1920xbf16>, vector<1920x512xbf16>, vector<128x512xf32> -> vector<128x512xf32>
    %34 = vector.shape_cast %33 : vector<128x512xf32> to vector<4x2x16x512xf32>
    %35 = vector.extract_strided_slice %34 {offsets = [0, 0, 0, 0], sizes = [4, 1, 16, 512], strides = [1, 1, 1, 1]} : vector<4x2x16x512xf32> to vector<4x1x16x512xf32>
    %36 = vector.shape_cast %35 : vector<4x1x16x512xf32> to vector<4x16x512xf32>
    %37 = vector.extract_strided_slice %34 {offsets = [0, 1, 0, 0], sizes = [4, 1, 16, 512], strides = [1, 1, 1, 1]} : vector<4x2x16x512xf32> to vector<4x1x16x512xf32>
    %38 = vector.shape_cast %37 : vector<4x1x16x512xf32> to vector<4x16x512xf32>
    %39 = arith.maximumf %36, %38 : vector<4x16x512xf32>
    %40 = vector.extract_strided_slice %39 {offsets = [0, 0, 0], sizes = [4, 16, 256], strides = [1, 1, 1]} : vector<4x16x512xf32> to vector<4x16x256xf32>
    %41 = vector.extract_strided_slice %39 {offsets = [0, 0, 256], sizes = [4, 16, 256], strides = [1, 1, 1]} : vector<4x16x512xf32> to vector<4x16x256xf32>
    %42 = arith.maximumf %40, %41 : vector<4x16x256xf32>
    %c0_24 = arith.constant 0 : index
    %c0_25 = arith.constant 0 : index
    %43 = vector.load %arg5[%c0_24, %c0_25] : memref<1x256xf32, #tpu.memory_space<vmem>>, vector<1x256xf32>
    %44 = vector.shape_cast %43 : vector<1x256xf32> to vector<1x1x256xf32>
    %45 = vector.broadcast %44 : vector<1x1x256xf32> to vector<4x16x256xf32>
    %46 = arith.addf %42, %45 : vector<4x16x256xf32>
    %cst_26 = arith.constant 0.000000e+00 : f32
    %47 = vector.broadcast %cst_26 : f32 to vector<4x16x256xf32>
    %48 = arith.maximumf %46, %47 : vector<4x16x256xf32>
    %49 = arith.truncf %48 : vector<4x16x256xf32> to vector<4x16x256xbf16>
    %cst_27 = arith.constant 0.000000e+00 : f32
    %50 = vector.broadcast %cst_27 : f32 to vector<16x128xf32>
    %51 = vector.extract_strided_slice %49 {offsets = [0, 0, 0], sizes = [1, 16, 256], strides = [1, 1, 1]} : vector<4x16x256xbf16> to vector<1x16x256xbf16>
    %52 = vector.shape_cast %51 : vector<1x16x256xbf16> to vector<16x256xbf16>
    %c0_28 = arith.constant 0 : index
    %c0_29 = arith.constant 0 : index
    %c0_30 = arith.constant 0 : index
    %53 = vector.load %arg6[%c0_28, %c0_29, %c0_30] : memref<4x256x128xbf16, #tpu.memory_space<vmem>>, vector<1x256x128xbf16>
    %54 = vector.shape_cast %53 : vector<1x256x128xbf16> to vector<256x128xbf16>
    %cst_31 = arith.constant dense<0.000000e+00> : vector<16x128xf32>
    %55 = tpu.matmul %52, %54, %cst_31 {dimension_numbers = #tpu.dot_dimension_numbers<[1], [0], [0], [1], [0, 0, 1, 1], [], []>} : vector<16x256xbf16>, vector<256x128xbf16>, vector<16x128xf32> -> vector<16x128xf32>
    %56 = arith.addf %50, %55 : vector<16x128xf32>
    %57 = vector.extract_strided_slice %49 {offsets = [1, 0, 0], sizes = [1, 16, 256], strides = [1, 1, 1]} : vector<4x16x256xbf16> to vector<1x16x256xbf16>
    %58 = vector.shape_cast %57 : vector<1x16x256xbf16> to vector<16x256xbf16>
    %c1 = arith.constant 1 : index
    %c0_32 = arith.constant 0 : index
    %c0_33 = arith.constant 0 : index
    %59 = vector.load %arg6[%c1, %c0_32, %c0_33] : memref<4x256x128xbf16, #tpu.memory_space<vmem>>, vector<1x256x128xbf16>
    %60 = vector.shape_cast %59 : vector<1x256x128xbf16> to vector<256x128xbf16>
    %cst_34 = arith.constant dense<0.000000e+00> : vector<16x128xf32>
    %61 = tpu.matmul %58, %60, %cst_34 {dimension_numbers = #tpu.dot_dimension_numbers<[1], [0], [0], [1], [0, 0, 1, 1], [], []>} : vector<16x256xbf16>, vector<256x128xbf16>, vector<16x128xf32> -> vector<16x128xf32>
    %62 = arith.addf %56, %61 : vector<16x128xf32>
    %63 = vector.extract_strided_slice %49 {offsets = [2, 0, 0], sizes = [1, 16, 256], strides = [1, 1, 1]} : vector<4x16x256xbf16> to vector<1x16x256xbf16>
    %64 = vector.shape_cast %63 : vector<1x16x256xbf16> to vector<16x256xbf16>
    %c2 = arith.constant 2 : index
    %c0_35 = arith.constant 0 : index
    %c0_36 = arith.constant 0 : index
    %65 = vector.load %arg6[%c2, %c0_35, %c0_36] : memref<4x256x128xbf16, #tpu.memory_space<vmem>>, vector<1x256x128xbf16>
    %66 = vector.shape_cast %65 : vector<1x256x128xbf16> to vector<256x128xbf16>
    %cst_37 = arith.constant dense<0.000000e+00> : vector<16x128xf32>
    %67 = tpu.matmul %64, %66, %cst_37 {dimension_numbers = #tpu.dot_dimension_numbers<[1], [0], [0], [1], [0, 0, 1, 1], [], []>} : vector<16x256xbf16>, vector<256x128xbf16>, vector<16x128xf32> -> vector<16x128xf32>
    %68 = arith.addf %62, %67 : vector<16x128xf32>
    %69 = vector.extract_strided_slice %49 {offsets = [3, 0, 0], sizes = [1, 16, 256], strides = [1, 1, 1]} : vector<4x16x256xbf16> to vector<1x16x256xbf16>
    %70 = vector.shape_cast %69 : vector<1x16x256xbf16> to vector<16x256xbf16>
    %c3 = arith.constant 3 : index
    %c0_38 = arith.constant 0 : index
    %c0_39 = arith.constant 0 : index
    %71 = vector.load %arg6[%c3, %c0_38, %c0_39] : memref<4x256x128xbf16, #tpu.memory_space<vmem>>, vector<1x256x128xbf16>
    %72 = vector.shape_cast %71 : vector<1x256x128xbf16> to vector<256x128xbf16>
    %cst_40 = arith.constant dense<0.000000e+00> : vector<16x128xf32>
    %73 = tpu.matmul %70, %72, %cst_40 {dimension_numbers = #tpu.dot_dimension_numbers<[1], [0], [0], [1], [0, 0, 1, 1], [], []>} : vector<16x256xbf16>, vector<256x128xbf16>, vector<16x128xf32> -> vector<16x128xf32>
    %74 = arith.addf %68, %73 : vector<16x128xf32>
    %c0_41 = arith.constant 0 : index
    %c0_42 = arith.constant 0 : index
    %75 = vector.load %arg7[%c0_41, %c0_42] : memref<1x128xf32, #tpu.memory_space<vmem>>, vector<1x128xf32>
    %76 = vector.broadcast %75 : vector<1x128xf32> to vector<16x128xf32>
    %77 = arith.addf %74, %76 : vector<16x128xf32>
    %cst_43 = arith.constant 0.000000e+00 : f32
    %78 = vector.broadcast %cst_43 : f32 to vector<16x128xf32>
    %79 = arith.maximumf %77, %78 : vector<16x128xf32>
    %80 = arith.truncf %79 : vector<16x128xf32> to vector<16x128xbf16>
    %c0_44 = arith.constant 0 : index
    %c0_45 = arith.constant 0 : index
    %81 = vector.load %arg8[%c0_44, %c0_45] : memref<128x128xbf16, #tpu.memory_space<vmem>>, vector<128x128xbf16>
    %cst_46 = arith.constant dense<0.000000e+00> : vector<16x128xf32>
    %82 = tpu.matmul %80, %81, %cst_46 {dimension_numbers = #tpu.dot_dimension_numbers<[1], [0], [0], [1], [0, 0, 1, 1], [], []>} : vector<16x128xbf16>, vector<128x128xbf16>, vector<16x128xf32> -> vector<16x128xf32>
    %c0_47 = arith.constant 0 : index
    %c0_48 = arith.constant 0 : index
    %83 = vector.load %arg9[%c0_47, %c0_48] : memref<1x128xf32, #tpu.memory_space<vmem>>, vector<1x128xf32>
    %84 = vector.broadcast %83 : vector<1x128xf32> to vector<16x128xf32>
    %85 = arith.addf %82, %84 : vector<16x128xf32>
    %c0_49 = arith.constant 0 : index
    %c0_50 = arith.constant 0 : index
    %86 = vector.load %arg10[%c0_49, %c0_50] : memref<16x128xf32, #tpu.memory_space<vmem>>, vector<16x128xf32>
    tpu.vector_store %arg10[%c0_49, %c0_50], %85 {strides = array<i32>} : memref<16x128xf32, #tpu.memory_space<vmem>>, vector<16x128xf32>,
    return
  }
  func.func @transform_0(%arg0: i32) -> (i32, i32, i32) {
    %c0_i32 = arith.constant 0 : i32
    %c0_i32_0 = arith.constant 0 : i32
    %c0_i32_1 = arith.constant 0 : i32
    return %c0_i32, %arg0, %c0_i32_0 : i32, i32, i32
  }
  func.func @transform_1(%arg0: i32) -> (i32, i32) {
    %c0_i32 = arith.constant 0 : i32
    %c0_i32_0 = arith.constant 0 : i32
    %c0_i32_1 = arith.constant 0 : i32
    return %c0_i32, %c0_i32_0 : i32, i32
  }
  func.func @transform_2(%arg0: i32) -> (i32, i32) {
    %c0_i32 = arith.constant 0 : i32
    %c0_i32_0 = arith.constant 0 : i32
    %c0_i32_1 = arith.constant 0 : i32
    return %c0_i32, %c0_i32_0 : i32, i32
  }
  func.func @transform_3(%arg0: i32) -> (i32, i32) {
    %c0_i32 = arith.constant 0 : i32
    %c0_i32_0 = arith.constant 0 : i32
    %c0_i32_1 = arith.constant 0 : i32
    return %c0_i32, %c0_i32_0 : i32, i32
  }
  func.func @transform_4(%arg0: i32) -> (i32, i32) {
    %c0_i32 = arith.constant 0 : i32
    %c0_i32_0 = arith.constant 0 : i32
    %c0_i32_1 = arith.constant 0 : i32
    return %c0_i32, %c0_i32_0 : i32, i32
  }
  func.func @transform_5(%arg0: i32) -> (i32, i32, i32) {
    %c0_i32 = arith.constant 0 : i32
    %c0_i32_0 = arith.constant 0 : i32
    %c0_i32_1 = arith.constant 0 : i32
    %c0_i32_2 = arith.constant 0 : i32
    return %c0_i32, %c0_i32_0, %c0_i32_1 : i32, i32, i32
  }
  func.func @transform_6(%arg0: i32) -> (i32, i32) {
    %c0_i32 = arith.constant 0 : i32
    %c0_i32_0 = arith.constant 0 : i32
    %c0_i32_1 = arith.constant 0 : i32
    return %c0_i32, %c0_i32_0 : i32, i32
  }
  func.func @transform_7(%arg0: i32) -> (i32, i32) {
    %c0_i32 = arith.constant 0 : i32
    %c0_i32_0 = arith.constant 0 : i32
    %c0_i32_1 = arith.constant 0 : i32
    return %c0_i32, %c0_i32_0 : i32, i32
  }
  func.func @transform_8(%arg0: i32) -> (i32, i32) {
    %c0_i32 = arith.constant 0 : i32
    %c0_i32_0 = arith.constant 0 : i32
    %c0_i32_1 = arith.constant 0 : i32
    return %c0_i32, %c0_i32_0 : i32, i32
  }
  func.func @transform_9(%arg0: i32) -> (i32, i32) {
    %c0_i32 = arith.constant 0 : i32
    %c0_i32_0 = arith.constant 0 : i32
    return %arg0, %c0_i32 : i32, i32
  }
}

</mosaic_0001>

<llo_original>
// kernel: convnet_forward.1
$region0: #{convnet_forward.1}
  #allocation0 [shape = 'u32[]', space=smem, size = 0x4, offset = 0x4, fixed_abs, tag = 'smem constant byte address 0x4 - core index']
  #allocation1 [shape = 'u32[144,128]{1,0:T(1,128)}', space=vmem, size = 0x12000, scoped, tag = 'internal scratch']
  #allocation2 [shape = 'bf16[8,16,1920]{2,1,0:T(16,128)(2,1)}', space=vmem, size = 0x78000, scoped, tag = 'scratch operand']
  %s0 = inlined_call_operand.vmem [shape: bf16[24,32,140], index: 0, kind: input, shape index: {}]
  %s1 = inlined_call_operand.vmem [shape: bf16[140,768], index: 1, kind: input, shape index: {}]
  %s2 = inlined_call_operand.vmem [shape: f32[1,384], index: 2, kind: input, shape index: {}]
  %s3 = inlined_call_operand.vmem [shape: bf16[1920,512], index: 3, kind: input, shape index: {}]
  %s4 = inlined_call_operand.vmem [shape: f32[1,256], index: 4, kind: input, shape index: {}]
  %s5 = inlined_call_operand.vmem [shape: bf16[4,256,128], index: 5, kind: input, shape index: {}]
  %s6 = inlined_call_operand.vmem [shape: f32[1,128], index: 6, kind: input, shape index: {}]
  %s7 = inlined_call_operand.vmem [shape: bf16[128,128], index: 7, kind: input, shape index: {}]
  %s8 = inlined_call_operand.vmem [shape: f32[1,128], index: 8, kind: input, shape index: {}]
  %s9 = inlined_call_operand.vmem [shape: f32[32,128], index: 9, kind: output, shape index: {}]
  %s10 = sld [smem:[#allocation0]]
  $region107: #{convnet_forward.1} parent=0
    _
  %s12 = ssub.s32 1, %s10
  %s13 = scalar_select 0, %s12, %s10
  $region1: #{convnet_forward.1} parent=0
    #allocation3 [shape = 'u8[393216]{0}', space=vmem, size = 0x60000, scoped, tag = 'input window, operand 0']
    loop: start=0, step=1, limit=4
    $region2: #{convnet_forward.1} parent=1 // loop_pre_header
      _
    $region3: #{convnet_forward.1} parent=1 // loop_header
      %s15 = sphi 0, %s19
      %p16 = scmp.ge.s32.totalorder %s15, 4
      %s25 = sphi 0, %s27
      %s28 = sphi 0, %s25
      %s29 = sphi 0, %s28
      %s45 = sphi 0, %s29
      %s49 = sphi 0, %s49
      %s51 = sphi 0, %s49
      %s52 = sphi 0, %s51
      %s66 = sphi 0, %s52
      %s70 = sphi 0, %s70
      %s72 = sphi 0, %s70
      %s73 = sphi 0, %s72
      %s87 = sphi 0, %s73
      %s91 = sphi 0, %s91
      %s93 = sphi 0, %s91
      %s94 = sphi 0, %s93
      %s108 = sphi 0, %s94
      %s112 = sphi 0, %s112
      %s114 = sphi 0, %s112
      %s115 = sphi 0, %s114
      %s129 = sphi 0, %s115
      %s133 = sphi 0, %s133
      %s135 = sphi 0, %s133
      %s136 = sphi 0, %s135
      %s150 = sphi 0, %s136
      %s154 = sphi 0, %s154
      %s156 = sphi 0, %s154
      %s157 = sphi 0, %s156
      %s171 = sphi 0, %s157
      %s175 = sphi 0, %s175
      %s177 = sphi 0, %s175
      %s178 = sphi 0, %s177
      %s192 = sphi 0, %s178
      %s196 = sphi 0, %s196
      %s198 = sphi 0, %s196
      %s199 = sphi 0, %s198
      %s213 = sphi 0, %s199
      %s219 = sphi 0, %s221
      %s222 = sphi 0, %s219
      %s223 = sphi 0, %s222
      %s239 = sphi 0, %s223
    $region4: #{convnet_forward.1} parent=1 // loop_header_branch
      %18 = sbr.rel (%p16) target = $region8
    $region5: #{convnet_forward.1} parent=1 // loop_body
      %s20 = ssub.s32 %s15, 1
      %s21 = ssub.s32 %s15, 2
      %s22 = sadd.s32 %s15, 1
      %s23 = ssub.s32 %s15, %s22
      %p24 = scmp.eq.s32.totalorder %s23, 0
      %s26 = sadd.s32 %s25, 1
      %s27 = scalar_select %p24, %s25, %s26
      %p30 = pneg %p24
      %p31 = scmp.eq.s32.totalorder %s15, 1
      %p32 = por %p30, %p31
      %p33 = scmp.ne.s32.totalorder %s25, %s28
      %p34 = scmp.eq.s32.totalorder %s15, 0
      %p35 = por %p33, %p34
      %p36 = scmp.ne.s32.totalorder %s25, %s28
      %p37 = scmp.eq.s32.totalorder %s20, 1
      %p38 = por %p36, %p37
      %p39 = scmp.ne.s32.totalorder %s28, %s29
      %p40 = scmp.eq.s32.totalorder %s20, 0
      %p41 = por %p39, %p40
      %p42 = scmp.ne.s32.totalorder %s28, %s29
      %p43 = scmp.eq.s32.totalorder %s21, 1
      %p44 = por %p42, %p43
      %p46 = scmp.ne.s32.totalorder %s29, %s45
      %p47 = scmp.eq.s32.totalorder %s21, 0
      %p48 = por %p46, %p47
      %s50 = sadd.s32 %s49, 1
      %p53 = scmp.eq.s32.totalorder %s15, 1
      %p54 = scmp.ne.s32.totalorder %s49, %s51
      %p55 = scmp.eq.s32.totalorder %s15, 0
      %p56 = por %p54, %p55
      %p57 = scmp.ne.s32.totalorder %s49, %s51
      %p58 = scmp.eq.s32.totalorder %s20, 1
      %p59 = por %p57, %p58
      %p60 = scmp.ne.s32.totalorder %s51, %s52
      %p61 = scmp.eq.s32.totalorder %s20, 0
      %p62 = por %p60, %p61
      %p63 = scmp.ne.s32.totalorder %s51, %s52
      %p64 = scmp.eq.s32.totalorder %s21, 1
      %p65 = por %p63, %p64
      %p67 = scmp.ne.s32.totalorder %s52, %s66
      %p68 = scmp.eq.s32.totalorder %s21, 0
      %p69 = por %p67, %p68
      %s71 = sadd.s32 %s70, 1
      %p74 = scmp.eq.s32.totalorder %s15, 1
      %p75 = scmp.ne.s32.totalorder %s70, %s72
      %p76 = scmp.eq.s32.totalorder %s15, 0
      %p77 = por %p75, %p76
      %p78 = scmp.ne.s32.totalorder %s70, %s72
      %p79 = scmp.eq.s32.totalorder %s20, 1
      %p80 = por %p78, %p79
      %p81 = scmp.ne.s32.totalorder %s72, %s73
      %p82 = scmp.eq.s32.totalorder %s20, 0
      %p83 = por %p81, %p82
      %p84 = scmp.ne.s32.totalorder %s72, %s73
      %p85 = scmp.eq.s32.totalorder %s21, 1
      %p86 = por %p84, %p85
      %p88 = scmp.ne.s32.totalorder %s73, %s87
      %p89 = scmp.eq.s32.totalorder %s21, 0
      %p90 = por %p88, %p89
      %s92 = sadd.s32 %s91, 1
      %p95 = scmp.eq.s32.totalorder %s15, 1
      %p96 = scmp.ne.s32.totalorder %s91, %s93
      %p97 = scmp.eq.s32.totalorder %s15, 0
      %p98 = por %p96, %p97
      %p99 = scmp.ne.s32.totalorder %s91, %s93
      %p100 = scmp.eq.s32.totalorder %s20, 1
      %p101 = por %p99, %p100
      %p102 = scmp.ne.s32.totalorder %s93, %s94
      %p103 = scmp.eq.s32.totalorder %s20, 0
      %p104 = por %p102, %p103
      %p105 = scmp.ne.s32.totalorder %s93, %s94
      %p106 = scmp.eq.s32.totalorder %s21, 1
      %p107 = por %p105, %p106
      %p109 = scmp.ne.s32.totalorder %s94, %s108
      %p110 = scmp.eq.s32.totalorder %s21, 0
      %p111 = por %p109, %p110
      %s113 = sadd.s32 %s112, 1
      %p116 = scmp.eq.s32.totalorder %s15, 1
      %p117 = scmp.ne.s32.totalorder %s112, %s114
      %p118 = scmp.eq.s32.totalorder %s15, 0
      %p119 = por %p117, %p118
      %p120 = scmp.ne.s32.totalorder %s112, %s114
      %p121 = scmp.eq.s32.totalorder %s20, 1
      %p122 = por %p120, %p121
      %p123 = scmp.ne.s32.totalorder %s114, %s115
      %p124 = scmp.eq.s32.totalorder %s20, 0
      %p125 = por %p123, %p124
      %p126 = scmp.ne.s32.totalorder %s114, %s115
      %p127 = scmp.eq.s32.totalorder %s21, 1
      %p128 = por %p126, %p127
      %p130 = scmp.ne.s32.totalorder %s115, %s129
      %p131 = scmp.eq.s32.totalorder %s21, 0
      %p132 = por %p130, %p131
      %s134 = sadd.s32 %s133, 1
      %p137 = scmp.eq.s32.totalorder %s15, 1
      %p138 = scmp.ne.s32.totalorder %s133, %s135
      %p139 = scmp.eq.s32.totalorder %s15, 0
      %p140 = por %p138, %p139
      %p141 = scmp.ne.s32.totalorder %s133, %s135
      %p142 = scmp.eq.s32.totalorder %s20, 1
      %p143 = por %p141, %p142
      %p144 = scmp.ne.s32.totalorder %s135, %s136
      %p145 = scmp.eq.s32.totalorder %s20, 0
      %p146 = por %p144, %p145
      %p147 = scmp.ne.s32.totalorder %s135, %s136
      %p148 = scmp.eq.s32.totalorder %s21, 1
      %p149 = por %p147, %p148
      %p151 = scmp.ne.s32.totalorder %s136, %s150
      %p152 = scmp.eq.s32.totalorder %s21, 0
      %p153 = por %p151, %p152
      %s155 = sadd.s32 %s154, 1
      %p158 = scmp.eq.s32.totalorder %s15, 1
      %p159 = scmp.ne.s32.totalorder %s154, %s156
      %p160 = scmp.eq.s32.totalorder %s15, 0
      %p161 = por %p159, %p160
      %p162 = scmp.ne.s32.totalorder %s154, %s156
      %p163 = scmp.eq.s32.totalorder %s20, 1
      %p164 = por %p162, %p163
      %p165 = scmp.ne.s32.totalorder %s156, %s157
      %p166 = scmp.eq.s32.totalorder %s20, 0
      %p167 = por %p165, %p166
      %p168 = scmp.ne.s32.totalorder %s156, %s157
      %p169 = scmp.eq.s32.totalorder %s21, 1
      %p170 = por %p168, %p169
      %p172 = scmp.ne.s32.totalorder %s157, %s171
      %p173 = scmp.eq.s32.totalorder %s21, 0
      %p174 = por %p172, %p173
      %s176 = sadd.s32 %s175, 1
      %p179 = scmp.eq.s32.totalorder %s15, 1
      %p180 = scmp.ne.s32.totalorder %s175, %s177
      %p181 = scmp.eq.s32.totalorder %s15, 0
      %p182 = por %p180, %p181
      %p183 = scmp.ne.s32.totalorder %s175, %s177
      %p184 = scmp.eq.s32.totalorder %s20, 1
      %p185 = por %p183, %p184
      %p186 = scmp.ne.s32.totalorder %s177, %s178
      %p187 = scmp.eq.s32.totalorder %s20, 0
      %p188 = por %p186, %p187
      %p189 = scmp.ne.s32.totalorder %s177, %s178
      %p190 = scmp.eq.s32.totalorder %s21, 1
      %p191 = por %p189, %p190
      %p193 = scmp.ne.s32.totalorder %s178, %s192
      %p194 = scmp.eq.s32.totalorder %s21, 0
      %p195 = por %p193, %p194
      %s197 = sadd.s32 %s196, 1
      %p200 = scmp.eq.s32.totalorder %s15, 1
      %p201 = scmp.ne.s32.totalorder %s196, %s198
      %p202 = scmp.eq.s32.totalorder %s15, 0
      %p203 = por %p201, %p202
      %p204 = scmp.ne.s32.totalorder %s196, %s198
      %p205 = scmp.eq.s32.totalorder %s20, 1
      %p206 = por %p204, %p205
      %p207 = scmp.ne.s32.totalorder %s198, %s199
      %p208 = scmp.eq.s32.totalorder %s20, 0
      %p209 = por %p207, %p208
      %p210 = scmp.ne.s32.totalorder %s198, %s199
      %p211 = scmp.eq.s32.totalorder %s21, 1
      %p212 = por %p210, %p211
      %p214 = scmp.ne.s32.totalorder %s199, %s213
      %p215 = scmp.eq.s32.totalorder %s21, 0
      %p216 = por %p214, %p215
      %s217 = ssub.s32 %s15, %s22
      %p218 = scmp.eq.s32.totalorder %s217, 0
      %s220 = sadd.s32 %s219, 1
      %s221 = scalar_select %p218, %s219, %s220
      %p224 = pneg %p218
      %p225 = scmp.eq.s32.totalorder %s15, 1
      %p226 = por %p224, %p225
      %p227 = scmp.ne.s32.totalorder %s219, %s222
      %p228 = scmp.eq.s32.totalorder %s15, 0
      %p229 = por %p227, %p228
      %p230 = scmp.ne.s32.totalorder %s219, %s222
      %p231 = scmp.eq.s32.totalorder %s20, 1
      %p232 = por %p230, %p231
      %p233 = scmp.ne.s32.totalorder %s222, %s223
      %p234 = scmp.eq.s32.totalorder %s20, 0
      %p235 = por %p233, %p234
      %p236 = scmp.ne.s32.totalorder %s222, %s223
      %p237 = scmp.eq.s32.totalorder %s21, 1
      %p238 = por %p236, %p237
      %p240 = scmp.ne.s32.totalorder %s223, %s239
      %p241 = scmp.eq.s32.totalorder %s21, 0
      %p242 = por %p240, %p241
      %p243 = scmp.le.s32.totalorder 1, %s15
      %p244 = scmp.lt.s32.totalorder %s15, 3
      %p245 = pnand %p243, %p244
      %p246 = pneg %p245
      // Predicated region
      $region9: #{convnet_forward.1} parent=5 // pred_check
        _
      $region10: #{convnet_forward.1} parent=5 // pred_check_branch
        %248 = sbr.rel (%p245) target = $region12
      $region11: #{convnet_forward.1} parent=5 // pred_region
        %s249 = ssub.s32 %s15, 1
        // Predicated region
        $region13: #{convnet_forward.1} parent=11 // pred_check
          %p250 = pneg %p62
        $region14: #{convnet_forward.1} parent=11 // pred_check_branch
          %252 = sbr.rel (%p250) target = $region16
        $region15: #{convnet_forward.1} parent=11 // pred_region
          _
        $region16: #{convnet_forward.1} parent=11 // pred_fallthru
          _
        // Predicated region
        $region17: #{convnet_forward.1} parent=11 // pred_check
          %p253 = pneg %p83
        $region18: #{convnet_forward.1} parent=11 // pred_check_branch
          %255 = sbr.rel (%p253) target = $region20
        $region19: #{convnet_forward.1} parent=11 // pred_region
          _
        $region20: #{convnet_forward.1} parent=11 // pred_fallthru
          _
        // Predicated region
        $region21: #{convnet_forward.1} parent=11 // pred_check
          %p256 = pneg %p104
        $region22: #{convnet_forward.1} parent=11 // pred_check_branch
          %258 = sbr.rel (%p256) target = $region24
        $region23: #{convnet_forward.1} parent=11 // pred_region
          _
        $region24: #{convnet_forward.1} parent=11 // pred_fallthru
          _
        // Predicated region
        $region25: #{convnet_forward.1} parent=11 // pred_check
          %p259 = pneg %p125
        $region26: #{convnet_forward.1} parent=11 // pred_check_branch
          %261 = sbr.rel (%p259) target = $region28
        $region27: #{convnet_forward.1} parent=11 // pred_region
          _
        $region28: #{convnet_forward.1} parent=11 // pred_fallthru
          _
        // Predicated region
        $region29: #{convnet_forward.1} parent=11 // pred_check
          %p262 = pneg %p146
        $region30: #{convnet_forward.1} parent=11 // pred_check_branch
          %264 = sbr.rel (%p262) target = $region32
        $region31: #{convnet_forward.1} parent=11 // pred_region
          _
        $region32: #{convnet_forward.1} parent=11 // pred_fallthru
          _
        // Predicated region
        $region33: #{convnet_forward.1} parent=11 // pred_check
          %p265 = pneg %p167
        $region34: #{convnet_forward.1} parent=11 // pred_check_branch
          %267 = sbr.rel (%p265) target = $region36
        $region35: #{convnet_forward.1} parent=11 // pred_region
          _
        $region36: #{convnet_forward.1} parent=11 // pred_fallthru
          _
        // Predicated region
        $region37: #{convnet_forward.1} parent=11 // pred_check
          %p268 = pneg %p188
        $region38: #{convnet_forward.1} parent=11 // pred_check_branch
          %270 = sbr.rel (%p268) target = $region40
        $region39: #{convnet_forward.1} parent=11 // pred_region
          _
        $region40: #{convnet_forward.1} parent=11 // pred_fallthru
          _
        // Predicated region
        $region41: #{convnet_forward.1} parent=11 // pred_check
          %p271 = pneg %p209
        $region42: #{convnet_forward.1} parent=11 // pred_check_branch
          %273 = sbr.rel (%p271) target = $region44
        $region43: #{convnet_forward.1} parent=11 // pred_region
          _
        $region44: #{convnet_forward.1} parent=11 // pred_fallthru
          _
      $region12: #{convnet_forward.1} parent=5 // pred_fallthru
        _
      %p274 = scmp.lt.s32.totalorder %s15, 2
      // Predicated region
      $region45: #{convnet_forward.1} parent=5 // pred_check
        %p275 = pneg %p274
      $region46: #{convnet_forward.1} parent=5 // pred_check_branch
        %277 = sbr.rel (%p275) target = $region48
      $region47: #{convnet_forward.1} parent=5 // pred_region
        // Predicated region
        $region49: #{convnet_forward.1} parent=47 // pred_check
          %p278 = pneg %p35
        $region50: #{convnet_forward.1} parent=47 // pred_check_branch
          %280 = sbr.rel (%p278) target = $region52
        $region51: #{convnet_forward.1} parent=47 // pred_region
          %s281 = sand.u32 %s25, 1
          %s282 = sand.u32 %s25, 1
          %s283 = smul.addr %s282, 384
          %s284 = scalar_lea.vmem [#allocation3], %s283
          %s285 = smul.u32 2, %s15
          %s286 = smul.addr %s285, 2
          %s287 = smul.addr %s286, 4
          %s288 = scalar_lea.vmem %s0, %s287
          // Predicated region
          $region53: #{convnet_forward.1} parent=51 // pred_check
            _
          $region54: #{convnet_forward.1} parent=51 // pred_check_branch
            %290 = sbr.rel (0) target = $region56
          $region55: #{convnet_forward.1} parent=51 // pred_region
            // Predicated region
            $region57: #{convnet_forward.1} parent=55 // pred_check
              _
            $region58: #{convnet_forward.1} parent=55 // pred_check_branch
              %292 = sbr.rel (0) target = $region60
            $region59: #{convnet_forward.1} parent=55 // pred_region
              // Predicated region
              $region72: #{convnet_forward.1} parent=59 // pred_check
                _
              $region73: #{convnet_forward.1} parent=59 // pred_check_branch
                %401 = sbr.rel (0) target = $region75
              $region74: #{convnet_forward.1} parent=59 // pred_region
                loop: start=0, step=1, limit=1
                $region76: #{convnet_forward.1} parent=74 // loop_pre_header
                  _
                $region77: #{convnet_forward.1} parent=74 // loop_header
                  %s403 = sphi 0, %s407
                  %p404 = scmp.ge.s32.totalorder %s403, 1
                  %s408 = sphi %s288, %s288
                  %s409 = sphi %s284, %s284
                $region78: #{convnet_forward.1} parent=74 // loop_header_branch
                  %406 = sbr.rel (%p404) target = $region82
                $region79: #{convnet_forward.1} parent=74 // loop_body
                  %v410 = vld [vmem:[%s408] sm:$0xff]
                  %411 = vst [vmem:[%s409] sm:$0xff] %v410
                  %v412 = vld [vmem:[%s408 + $0x8] sm:$0xff]
                  %413 = vst [vmem:[%s409 + $0x8] sm:$0xff] %v412
                  %v414 = vld [vmem:[%s408 + $0x20] sm:$0xff]
                  %415 = vst [vmem:[%s409 + $0x10] sm:$0xff] %v414
                  %v416 = vld [vmem:[%s408 + $0x28] sm:$0xff]
                  %417 = vst [vmem:[%s409 + $0x18] sm:$0xff] %v416
                  %v418 = vld [vmem:[%s408 + $0x40] sm:$0xff]
                  %419 = vst [vmem:[%s409 + $0x20] sm:$0xff] %v418
                  %v420 = vld [vmem:[%s408 + $0x48] sm:$0xff]
                  %421 = vst [vmem:[%s409 + $0x28] sm:$0xff] %v420
                  %v422 = vld [vmem:[%s408 + $0x60] sm:$0xff]
                  %423 = vst [vmem:[%s409 + $0x30] sm:$0xff] %v422
                  %v424 = vld [vmem:[%s408 + $0x68] sm:$0xff]
                  %425 = vst [vmem:[%s409 + $0x38] sm:$0xff] %v424
                  %v426 = vld [vmem:[%s408 + $0x80] sm:$0xff]
                  %427 = vst [vmem:[%s409 + $0x40] sm:$0xff] %v426
                  %v428 = vld [vmem:[%s408 + $0x88] sm:$0xff]
                  %429 = vst [vmem:[%s409 + $0x48] sm:$0xff] %v428
                  %v430 = vld [vmem:[%s408 + $0xa0] sm:$0xff]
                  %431 = vst [vmem:[%s409 + $0x50] sm:$0xff] %v430
                  %v432 = vld [vmem:[%s408 + $0xa8] sm:$0xff]
                  %433 = vst [vmem:[%s409 + $0x58] sm:$0xff] %v432
                  %v434 = vld [vmem:[%s408 + $0xc0] sm:$0xff]
                  %435 = vst [vmem:[%s409 + $0x60] sm:$0xff] %v434
                  %v436 = vld [vmem:[%s408 + $0xc8] sm:$0xff]
                  %437 = vst [vmem:[%s409 + $0x68] sm:$0xff] %v436
                  %v438 = vld [vmem:[%s408 + $0xe0] sm:$0xff]
                  %439 = vst [vmem:[%s409 + $0x70] sm:$0xff] %v438
                  %v440 = vld [vmem:[%s408 + $0xe8] sm:$0xff]
                  %441 = vst [vmem:[%s409 + $0x78] sm:$0xff] %v440
                  %v442 = vld [vmem:[%s408 + $0x100] sm:$0xff]
                  %443 = vst [vmem:[%s409 + $0x80] sm:$0xff] %v442
                  %v444 = vld [vmem:[%s408 + $0x108] sm:$0xff]
                  %445 = vst [vmem:[%s409 + $0x88] sm:$0xff] %v444
                  %v446 = vld [vmem:[%s408 + $0x120] sm:$0xff]
                  %447 = vst [vmem:[%s409 + $0x90] sm:$0xff] %v446
                  %v448 = vld [vmem:[%s408 + $0x128] sm:$0xff]
                  %449 = vst [vmem:[%s409 + $0x98] sm:$0xff] %v448
                  %v450 = vld [vmem:[%s408 + $0x140] sm:$0xff]
                  %451 = vst [vmem:[%s409 + $0xa0] sm:$0xff] %v450
                  %v452 = vld [vmem:[%s408 + $0x148] sm:$0xff]
                  %453 = vst [vmem:[%s409 + $0xa8] sm:$0xff] %v452
                  %v454 = vld [vmem:[%s408 + $0x160] sm:$0xff]
                  %455 = vst [vmem:[%s409 + $0xb0] sm:$0xff] %v454
                  %v456 = vld [vmem:[%s408 + $0x168] sm:$0xff]
                  %457 = vst [vmem:[%s409 + $0xb8] sm:$0xff] %v456
                  %v458 = vld [vmem:[%s408 + $0x180] sm:$0xff]
                  %459 = vst [vmem:[%s409 + $0xc0] sm:$0xff] %v458
                  %v460 = vld [vmem:[%s408 + $0x188] sm:$0xff]
                  %461 = vst [vmem:[%s409 + $0xc8] sm:$0xff] %v460
                  %v462 = vld [vmem:[%s408 + $0x1a0] sm:$0xff]
                  %463 = vst [vmem:[%s409 + $0xd0] sm:$0xff] %v462
                  %v464 = vld [vmem:[%s408 + $0x1a8] sm:$0xff]
                  %465 = vst [vmem:[%s409 + $0xd8] sm:$0xff] %v464
                  %v466 = vld [vmem:[%s408 + $0x1c0] sm:$0xff]
                  %467 = vst [vmem:[%s409 + $0xe0] sm:$0xff] %v466
                  %v468 = vld [vmem:[%s408 + $0x1c8] sm:$0xff]
                  %469 = vst [vmem:[%s409 + $0xe8] sm:$0xff] %v468
                  %v470 = vld [vmem:[%s408 + $0x1e0] sm:$0xff]
                  %471 = vst [vmem:[%s409 + $0xf0] sm:$0xff] %v470
                  %v472 = vld [vmem:[%s408 + $0x1e8] sm:$0xff]
                  %473 = vst [vmem:[%s409 + $0xf8] sm:$0xff] %v472
                  %v474 = vld [vmem:[%s408 + $0x200] sm:$0xff]
                  %475 = vst [vmem:[%s409 + $0x100] sm:$0xff] %v474
                  %v476 = vld [vmem:[%s408 + $0x208] sm:$0xff]
                  %477 = vst [vmem:[%s409 + $0x108] sm:$0xff] %v476
                  %v478 = vld [vmem:[%s408 + $0x220] sm:$0xff]
                  %479 = vst [vmem:[%s409 + $0x110] sm:$0xff] %v478
                  %v480 = vld [vmem:[%s408 + $0x228] sm:$0xff]
                  %481 = vst [vmem:[%s409 + $0x118] sm:$0xff] %v480
                  %v482 = vld [vmem:[%s408 + $0x240] sm:$0xff]
                  %483 = vst [vmem:[%s409 + $0x120] sm:$0xff] %v482
                  %v484 = vld [vmem:[%s408 + $0x248] sm:$0xff]
                  %485 = vst [vmem:[%s409 + $0x128] sm:$0xff] %v484
                  %v486 = vld [vmem:[%s408 + $0x260] sm:$0xff]
                  %487 = vst [vmem:[%s409 + $0x130] sm:$0xff] %v486
                  %v488 = vld [vmem:[%s408 + $0x268] sm:$0xff]
                  %489 = vst [vmem:[%s409 + $0x138] sm:$0xff] %v488
                  %v490 = vld [vmem:[%s408 + $0x280] sm:$0xff]
                  %491 = vst [vmem:[%s409 + $0x140] sm:$0xff] %v490
                  %v492 = vld [vmem:[%s408 + $0x288] sm:$0xff]
                  %493 = vst [vmem:[%s409 + $0x148] sm:$0xff] %v492
                  %v494 = vld [vmem:[%s408 + $0x2a0] sm:$0xff]
                  %495 = vst [vmem:[%s409 + $0x150] sm:$0xff] %v494
                  %v496 = vld [vmem:[%s408 + $0x2a8] sm:$0xff]
                  %497 = vst [vmem:[%s409 + $0x158] sm:$0xff] %v496
                  %v498 = vld [vmem:[%s408 + $0x2c0] sm:$0xff]
                  %499 = vst [vmem:[%s409 + $0x160] sm:$0xff] %v498
                  %v500 = vld [vmem:[%s408 + $0x2c8] sm:$0xff]
                  %501 = vst [vmem:[%s409 + $0x168] sm:$0xff] %v500
                  %v502 = vld [vmem:[%s408 + $0x2e0] sm:$0xff]
                  %503 = vst [vmem:[%s409 + $0x170] sm:$0xff] %v502
                  %v504 = vld [vmem:[%s408 + $0x2e8] sm:$0xff]
                  %505 = vst [vmem:[%s409 + $0x178] sm:$0xff] %v504
                $region80: #{convnet_forward.1} parent=74 // loop_footer
                  %s407 = sadd.s32 1, %s403
                $region81: #{convnet_forward.1} parent=74 // loop_footer_branch
                  %402 = sbr.rel target = $region77
                $region82: #{convnet_forward.1} parent=74 // loop_exit
                  _
              $region75: #{convnet_forward.1} parent=59 // pred_fallthru
                _
              // Predicated region
              $region83: #{convnet_forward.1} parent=59 // pred_check
                _
              $region84: #{convnet_forward.1} parent=59 // pred_check_branch
                %507 = sbr.rel target = $region86
              $region85: #{convnet_forward.1} parent=59 // pred_region
                _
              $region86: #{convnet_forward.1} parent=59 // pred_fallthru
                _
            $region60: #{convnet_forward.1} parent=55 // pred_fallthru
              _
            // Predicated region
            $region61: #{convnet_forward.1} parent=55 // pred_check
              _
            $region62: #{convnet_forward.1} parent=55 // pred_check_branch
              %294 = sbr.rel target = $region64
            $region63: #{convnet_forward.1} parent=55 // pred_region
              loop: start=0, step=1, limit=1
              $region65: #{convnet_forward.1} parent=63 // loop_pre_header
                _
              $region66: #{convnet_forward.1} parent=63 // loop_header
                %s297 = sphi 0, %s301
                %p298 = scmp.ge.s32.totalorder %s297, 1
                %s302 = sphi %s288, %s288
                %s303 = sphi %s284, %s284
              $region67: #{convnet_forward.1} parent=63 // loop_header_branch
                %300 = sbr.rel (%p298) target = $region71
              $region68: #{convnet_forward.1} parent=63 // loop_body
                %v304 = vld [vmem:[%s302] sm:$0xff]
                %305 = vst [vmem:[%s303] sm:$0xff] %v304
                %v306 = vld [vmem:[%s302 + $0x8] sm:$0xff]
                %307 = vst [vmem:[%s303 + $0x8] sm:$0xff] %v306
                %v308 = vld [vmem:[%s302 + $0x20] sm:$0xff]
                %309 = vst [vmem:[%s303 + $0x10] sm:$0xff] %v308
                %v310 = vld [vmem:[%s302 + $0x28] sm:$0xff]
                %311 = vst [vmem:[%s303 + $0x18] sm:$0xff] %v310
                %v312 = vld [vmem:[%s302 + $0x40] sm:$0xff]
                %313 = vst [vmem:[%s303 + $0x20] sm:$0xff] %v312
                %v314 = vld [vmem:[%s302 + $0x48] sm:$0xff]
                %315 = vst [vmem:[%s303 + $0x28] sm:$0xff] %v314
                %v316 = vld [vmem:[%s302 + $0x60] sm:$0xff]
                %317 = vst [vmem:[%s303 + $0x30] sm:$0xff] %v316
                %v318 = vld [vmem:[%s302 + $0x68] sm:$0xff]
                %319 = vst [vmem:[%s303 + $0x38] sm:$0xff] %v318
                %v320 = vld [vmem:[%s302 + $0x80] sm:$0xff]
                %321 = vst [vmem:[%s303 + $0x40] sm:$0xff] %v320
                %v322 = vld [vmem:[%s302 + $0x88] sm:$0xff]
                %323 = vst [vmem:[%s303 + $0x48] sm:$0xff] %v322
                %v324 = vld [vmem:[%s302 + $0xa0] sm:$0xff]
                %325 = vst [vmem:[%s303 + $0x50] sm:$0xff] %v324
                %v326 = vld [vmem:[%s302 + $0xa8] sm:$0xff]
                %327 = vst [vmem:[%s303 + $0x58] sm:$0xff] %v326
                %v328 = vld [vmem:[%s302 + $0xc0] sm:$0xff]
                %329 = vst [vmem:[%s303 + $0x60] sm:$0xff] %v328
                %v330 = vld [vmem:[%s302 + $0xc8] sm:$0xff]
                %331 = vst [vmem:[%s303 + $0x68] sm:$0xff] %v330
                %v332 = vld [vmem:[%s302 + $0xe0] sm:$0xff]
                %333 = vst [vmem:[%s303 + $0x70] sm:$0xff] %v332
                %v334 = vld [vmem:[%s302 + $0xe8] sm:$0xff]
                %335 = vst [vmem:[%s303 + $0x78] sm:$0xff] %v334
                %v336 = vld [vmem:[%s302 + $0x100] sm:$0xff]
                %337 = vst [vmem:[%s303 + $0x80] sm:$0xff] %v336
                %v338 = vld [vmem:[%s302 + $0x108] sm:$0xff]
                %339 = vst [vmem:[%s303 + $0x88] sm:$0xff] %v338
                %v340 = vld [vmem:[%s302 + $0x120] sm:$0xff]
                %341 = vst [vmem:[%s303 + $0x90] sm:$0xff] %v340
                %v342 = vld [vmem:[%s302 + $0x128] sm:$0xff]
                %343 = vst [vmem:[%s303 + $0x98] sm:$0xff] %v342
                %v344 = vld [vmem:[%s302 + $0x140] sm:$0xff]
                %345 = vst [vmem:[%s303 + $0xa0] sm:$0xff] %v344
                %v346 = vld [vmem:[%s302 + $0x148] sm:$0xff]
                %347 = vst [vmem:[%s303 + $0xa8] sm:$0xff] %v346
                %v348 = vld [vmem:[%s302 + $0x160] sm:$0xff]
                %349 = vst [vmem:[%s303 + $0xb0] sm:$0xff] %v348
                %v350 = vld [vmem:[%s302 + $0x168] sm:$0xff]
                %351 = vst [vmem:[%s303 + $0xb8] sm:$0xff] %v350
                %v352 = vld [vmem:[%s302 + $0x180] sm:$0xff]
                %353 = vst [vmem:[%s303 + $0xc0] sm:$0xff] %v352
                %v354 = vld [vmem:[%s302 + $0x188] sm:$0xff]
                %355 = vst [vmem:[%s303 + $0xc8] sm:$0xff] %v354
                %v356 = vld [vmem:[%s302 + $0x1a0] sm:$0xff]
                %357 = vst [vmem:[%s303 + $0xd0] sm:$0xff] %v356
                %v358 = vld [vmem:[%s302 + $0x1a8] sm:$0xff]
                %359 = vst [vmem:[%s303 + $0xd8] sm:$0xff] %v358
                %v360 = vld [vmem:[%s302 + $0x1c0] sm:$0xff]
                %361 = vst [vmem:[%s303 + $0xe0] sm:$0xff] %v360
                %v362 = vld [vmem:[%s302 + $0x1c8] sm:$0xff]
                %363 = vst [vmem:[%s303 + $0xe8] sm:$0xff] %v362
                %v364 = vld [vmem:[%s302 + $0x1e0] sm:$0xff]
                %365 = vst [vmem:[%s303 + $0xf0] sm:$0xff] %v364
                %v366 = vld [vmem:[%s302 + $0x1e8] sm:$0xff]
                %367 = vst [vmem:[%s303 + $0xf8] sm:$0xff] %v366
                %v368 = vld [vmem:[%s302 + $0x200] sm:$0xff]
                %369 = vst [vmem:[%s303 + $0x100] sm:$0xff] %v368
                %v370 = vld [vmem:[%s302 + $0x208] sm:$0xff]
                %371 = vst [vmem:[%s303 + $0x108] sm:$0xff] %v370
                %v372 = vld [vmem:[%s302 + $0x220] sm:$0xff]
                %373 = vst [vmem:[%s303 + $0x110] sm:$0xff] %v372
                %v374 = vld [vmem:[%s302 + $0x228] sm:$0xff]
                %375 = vst [vmem:[%s303 + $0x118] sm:$0xff] %v374
                %v376 = vld [vmem:[%s302 + $0x240] sm:$0xff]
                %377 = vst [vmem:[%s303 + $0x120] sm:$0xff] %v376
                %v378 = vld [vmem:[%s302 + $0x248] sm:$0xff]
                %379 = vst [vmem:[%s303 + $0x128] sm:$0xff] %v378
                %v380 = vld [vmem:[%s302 + $0x260] sm:$0xff]
                %381 = vst [vmem:[%s303 + $0x130] sm:$0xff] %v380
                %v382 = vld [vmem:[%s302 + $0x268] sm:$0xff]
                %383 = vst [vmem:[%s303 + $0x138] sm:$0xff] %v382
                %v384 = vld [vmem:[%s302 + $0x280] sm:$0xff]
                %385 = vst [vmem:[%s303 + $0x140] sm:$0xff] %v384
                %v386 = vld [vmem:[%s302 + $0x288] sm:$0xff]
                %387 = vst [vmem:[%s303 + $0x148] sm:$0xff] %v386
                %v388 = vld [vmem:[%s302 + $0x2a0] sm:$0xff]
                %389 = vst [vmem:[%s303 + $0x150] sm:$0xff] %v388
                %v390 = vld [vmem:[%s302 + $0x2a8] sm:$0xff]
                %391 = vst [vmem:[%s303 + $0x158] sm:$0xff] %v390
                %v392 = vld [vmem:[%s302 + $0x2c0] sm:$0xff]
                %393 = vst [vmem:[%s303 + $0x160] sm:$0xff] %v392
                %v394 = vld [vmem:[%s302 + $0x2c8] sm:$0xff]
                %395 = vst [vmem:[%s303 + $0x168] sm:$0xff] %v394
                %v396 = vld [vmem:[%s302 + $0x2e0] sm:$0xff]
                %397 = vst [vmem:[%s303 + $0x170] sm:$0xff] %v396
                %v398 = vld [vmem:[%s302 + $0x2e8] sm:$0xff]
                %399 = vst [vmem:[%s303 + $0x178] sm:$0xff] %v398
              $region69: #{convnet_forward.1} parent=63 // loop_footer
                %s301 = sadd.s32 1, %s297
              $region70: #{convnet_forward.1} parent=63 // loop_footer_branch
                %296 = sbr.rel target = $region66
              $region71: #{convnet_forward.1} parent=63 // loop_exit
                _
            $region64: #{convnet_forward.1} parent=55 // pred_fallthru
              _
          $region56: #{convnet_forward.1} parent=51 // pred_fallthru
            _
          %508 = vnop
        $region52: #{convnet_forward.1} parent=47 // pred_fallthru
          _
      $region48: #{convnet_forward.1} parent=5 // pred_fallthru
        _
      %p509 = scmp.le.s32.totalorder 1, %s15
      %p510 = scmp.lt.s32.totalorder %s15, 3
      %p511 = pnand %p509, %p510
      %p512 = pneg %p511
      // Predicated region
      $region87: #{convnet_forward.1} parent=5 // pred_check
        _
      $region88: #{convnet_forward.1} parent=5 // pred_check_branch
        %514 = sbr.rel (%p511) target = $region90
      $region89: #{convnet_forward.1} parent=5 // pred_region
        %s515 = ssub.s32 %s15, 1
        %s516 = sand.u32 %s28, 1
        %s517 = sand.u32 %s28, 1
        %s518 = smul.addr %s517, 384
        %s519 = scalar_lea.vmem [#allocation3], %s518
        // Predicated region
        $region91: #{convnet_forward.1} parent=89 // pred_check
          %p520 = pneg %p41
        $region92: #{convnet_forward.1} parent=89 // pred_check_branch
          %522 = sbr.rel (%p520) target = $region94
        $region93: #{convnet_forward.1} parent=89 // pred_region
          _
        $region94: #{convnet_forward.1} parent=89 // pred_fallthru
          _
        %s523 = sand.u32 %s28, 1
        %s524 = sand.u32 %s28, 1
        %s525 = smul.addr %s524, 384
        %s526 = scalar_lea.vmem [#allocation3], %s525
        %p527 = pneg %p41
        %p528 = pneg %p38
        %p529 = pneg %p62
        %p530 = pneg %p59
        %p531 = pneg %p83
        %p532 = pneg %p80
        %p533 = pneg %p104
        %p534 = pneg %p101
        %p535 = pneg %p125
        %p536 = pneg %p122
        %p537 = pneg %p146
        %p538 = pneg %p143
        %p539 = pneg %p167
        %p540 = pneg %p164
        %p541 = pneg %p188
        %p542 = pneg %p185
        %p543 = pneg %p209
        %p544 = pneg %p206
        %p545 = pneg %p235
        %p546 = pneg %p232
        %s547 = smul.u32 2, %s20
        %p548 = scmp.lt.s32.totalorder %s547, 3
        %s549 = scalar_select %p548, %s547, 3
        %s550 = smul.addr %s549, 8
        %s551 = scalar_lea.vmem %s9, %s550
        %s552 = smul.u32 2, %s20
        %s553 = smul.u32 2, %s20
        %p554 = scmp.lt.s32.totalorder %s553, 3
        %s555 = scalar_select %p554, %s553, 3
        %s556 = smul.addr %s555, 8
        %s557 = scalar_lea.vmem %s9, %s556
        %s558 = smul.u32 2, %s20
        %v560 = vld [vmem:[%s519] sm:$0xff]
        %v561 = vld [vmem:[%s519 + $0x8] sm:$0xff]
        %v562 = vld [vmem:[%s519 + $0x10] sm:$0xff]
        %v563 = vld [vmem:[%s519 + $0x18] sm:$0xff]
        %v564 = vld [vmem:[%s519 + $0x20] sm:$0xff]
        %v565 = vld [vmem:[%s519 + $0x28] sm:$0xff]
        %v566 = vld [vmem:[%s519 + $0x30] sm:$0xff]
        %v567 = vld [vmem:[%s519 + $0x38] sm:$0xff]
        %v568 = vld [vmem:[%s519 + $0x40] sm:$0xff]
        %v569 = vld [vmem:[%s519 + $0x48] sm:$0xff]
        %v570 = vld [vmem:[%s519 + $0x50] sm:$0xff]
        %v571 = vld [vmem:[%s519 + $0x58] sm:$0xff]
        %v572 = vld [vmem:[%s519 + $0x60] sm:$0xff]
        %v573 = vld [vmem:[%s519 + $0x68] sm:$0xff]
        %v574 = vld [vmem:[%s519 + $0x70] sm:$0xff]
        %v575 = vld [vmem:[%s519 + $0x78] sm:$0xff]
        %v576 = vld [vmem:[%s519 + $0x80] sm:$0xff]
        %v577 = vld [vmem:[%s519 + $0x88] sm:$0xff]
        %v578 = vld [vmem:[%s519 + $0x90] sm:$0xff]
        %v579 = vld [vmem:[%s519 + $0x98] sm:$0xff]
        %v580 = vld [vmem:[%s519 + $0xa0] sm:$0xff]
        %v581 = vld [vmem:[%s519 + $0xa8] sm:$0xff]
        %v582 = vld [vmem:[%s519 + $0xb0] sm:$0xff]
        %v583 = vld [vmem:[%s519 + $0xb8] sm:$0xff]
        %v584 = vld [vmem:[%s519 + $0xc0] sm:$0xff]
        %v585 = vld [vmem:[%s519 + $0xc8] sm:$0xff]
        %v586 = vld [vmem:[%s519 + $0xd0] sm:$0xff]
        %v587 = vld [vmem:[%s519 + $0xd8] sm:$0xff]
        %v588 = vld [vmem:[%s519 + $0xe0] sm:$0xff]
        %v589 = vld [vmem:[%s519 + $0xe8] sm:$0xff]
        %v590 = vld [vmem:[%s519 + $0xf0] sm:$0xff]
        %v591 = vld [vmem:[%s519 + $0xf8] sm:$0xff]
        %v592 = vld [vmem:[%s519 + $0x100] sm:$0xff]
        %v593 = vld [vmem:[%s519 + $0x108] sm:$0xff]
        %v594 = vld [vmem:[%s519 + $0x110] sm:$0xff]
        %v595 = vld [vmem:[%s519 + $0x118] sm:$0xff]
        %v596 = vld [vmem:[%s519 + $0x120] sm:$0xff]
        %v597 = vld [vmem:[%s519 + $0x128] sm:$0xff]
        %v598 = vld [vmem:[%s519 + $0x130] sm:$0xff]
        %v599 = vld [vmem:[%s519 + $0x138] sm:$0xff]
        %v600 = vld [vmem:[%s519 + $0x140] sm:$0xff]
        %v601 = vld [vmem:[%s519 + $0x148] sm:$0xff]
        %v602 = vld [vmem:[%s519 + $0x150] sm:$0xff]
        %v603 = vld [vmem:[%s519 + $0x158] sm:$0xff]
        %v604 = vld [vmem:[%s519 + $0x160] sm:$0xff]
        %v605 = vld [vmem:[%s519 + $0x168] sm:$0xff]
        %v606 = vld [vmem:[%s519 + $0x170] sm:$0xff]
        %v607 = vld [vmem:[%s519 + $0x178] sm:$0xff]
        %v608 = vld [vmem:[%s1] sm:$0xff]
        %v609 = vld [vmem:[%s1 + $0x8] sm:$0xff]
        %v610 = vld [vmem:[%s1 + $0x10] sm:$0xff]
        %v611 = vld [vmem:[%s1 + $0x18] sm:$0xff]
        %v612 = vld [vmem:[%s1 + $0x20] sm:$0xff]
        %v613 = vld [vmem:[%s1 + $0x28] sm:$0xff]
        %v614 = vld [vmem:[%s1 + $0x30] sm:$0xff]
        %v615 = vld [vmem:[%s1 + $0x38] sm:$0xff]
        %v616 = vld [vmem:[%s1 + $0x40] sm:$0xff]
        %v617 = vld [vmem:[%s1 + $0x48] sm:$0xff]
        %v618 = vld [vmem:[%s1 + $0x50] sm:$0xff]
        %v619 = vld [vmem:[%s1 + $0x58] sm:$0xff]
        %v620 = vld [vmem:[%s1 + $0x60] sm:$0xff]
        %v621 = vld [vmem:[%s1 + $0x68] sm:$0xff]
        %v622 = vld [vmem:[%s1 + $0x70] sm:$0xff]
        %v623 = vld [vmem:[%s1 + $0x78] sm:$0xff]
        %v624 = vld [vmem:[%s1 + $0x80] sm:$0xff]
        %v625 = vld [vmem:[%s1 + $0x88] sm:$0xff]
        %v626 = vld [vmem:[%s1 + $0x90] sm:$0xff]
        %v627 = vld [vmem:[%s1 + $0x98] sm:$0xff]
        %v628 = vld [vmem:[%s1 + $0xa0] sm:$0xff]
        %v629 = vld [vmem:[%s1 + $0xa8] sm:$0xff]
        %v630 = vld [vmem:[%s1 + $0xb0] sm:$0xff]
        %v631 = vld [vmem:[%s1 + $0xb8] sm:$0xff]
        %v632 = vld [vmem:[%s1 + $0xc0] sm:$0xff]
        %v633 = vld [vmem:[%s1 + $0xc8] sm:$0xff]
        %v634 = vld [vmem:[%s1 + $0xd0] sm:$0xff]
        %v635 = vld [vmem:[%s1 + $0xd8] sm:$0xff]
        %v636 = vld [vmem:[%s1 + $0xe0] sm:$0xff]
        %v637 = vld [vmem:[%s1 + $0xe8] sm:$0xff]
        %v638 = vld [vmem:[%s1 + $0xf0] sm:$0xff]
        %v639 = vld [vmem:[%s1 + $0xf8] sm:$0xff]
        %v640 = vld [vmem:[%s1 + $0x100] sm:$0xff]
        %v641 = vld [vmem:[%s1 + $0x108] sm:$0xff]
        %v642 = vld [vmem:[%s1 + $0x110] sm:$0xff]
        %v643 = vld [vmem:[%s1 + $0x118] sm:$0xff]
        %v644 = vld [vmem:[%s1 + $0x120] sm:$0xff]
        %v645 = vld [vmem:[%s1 + $0x128] sm:$0xff]
        %v646 = vld [vmem:[%s1 + $0x130] sm:$0xff]
        %v647 = vld [vmem:[%s1 + $0x138] sm:$0xff]
        %v648 = vld [vmem:[%s1 + $0x140] sm:$0xff]
        %v649 = vld [vmem:[%s1 + $0x148] sm:$0xff]
        %v650 = vld [vmem:[%s1 + $0x150] sm:$0xff]
        %v651 = vld [vmem:[%s1 + $0x158] sm:$0xff]
        %v652 = vld [vmem:[%s1 + $0x160] sm:$0xff]
        %v653 = vld [vmem:[%s1 + $0x168] sm:$0xff]
        %v654 = vld [vmem:[%s1 + $0x170] sm:$0xff]
        %v655 = vld [vmem:[%s1 + $0x178] sm:$0xff]
        %v656 = vld [vmem:[%s1 + $0x180] sm:$0xff]
        %v657 = vld [vmem:[%s1 + $0x188] sm:$0xff]
        %v658 = vld [vmem:[%s1 + $0x190] sm:$0xff]
        %v659 = vld [vmem:[%s1 + $0x198] sm:$0x33]
        %v660 = vld [vmem:[%s1 + $0x1a0] sm:$0x33]
        %v661 = vld [vmem:[%s1 + $0x1a8] sm:$0x33]
        %v710 = vunpack.c.l.b16 %v560
        %v711 = vunpack.c.h.b16 %v560
        %v712 = vunpack.c.l.b16 %v561
        %v713 = vunpack.c.h.b16 %v561
        %v714 = vunpack.c.l.b16 %v562
        %v715 = vunpack.c.h.b16 %v562
        %v716 = vunpack.c.l.b16 %v563
        %v717 = vunpack.c.h.b16 %v563
        %v718 = vunpack.c.l.b16 %v564
        %v719 = vunpack.c.h.b16 %v564
        %v720 = vunpack.c.l.b16 %v565
        %v721 = vunpack.c.h.b16 %v565
        %v722 = vunpack.c.l.b16 %v566
        %v723 = vunpack.c.h.b16 %v566
        %v724 = vunpack.c.l.b16 %v567
        %v725 = vunpack.c.h.b16 %v567
        %v726 = vunpack.c.l.b16 %v568
        %v727 = vunpack.c.h.b16 %v568
        %v728 = vunpack.c.l.b16 %v569
        %v729 = vunpack.c.h.b16 %v569
        %v730 = vunpack.c.l.b16 %v570
        %v731 = vunpack.c.h.b16 %v570
        %v732 = vunpack.c.l.b16 %v571
        %v733 = vunpack.c.h.b16 %v571
        %v734 = vunpack.c.l.b16 %v572
        %v735 = vunpack.c.h.b16 %v572
        %v736 = vunpack.c.l.b16 %v573
        %v737 = vunpack.c.h.b16 %v573
        %v738 = vunpack.c.l.b16 %v574
        %v739 = vunpack.c.h.b16 %v574
        %v740 = vunpack.c.l.b16 %v575
        %v741 = vunpack.c.h.b16 %v575
        %v742 = vunpack.c.l.b16 %v576
        %v743 = vunpack.c.h.b16 %v576
        %v744 = vunpack.c.l.b16 %v577
        %v745 = vunpack.c.h.b16 %v577
        %v746 = vunpack.c.l.b16 %v578
        %v747 = vunpack.c.h.b16 %v578
        %v748 = vunpack.c.l.b16 %v579
        %v749 = vunpack.c.h.b16 %v579
        %v750 = vunpack.c.l.b16 %v580
        %v751 = vunpack.c.h.b16 %v580
        %v752 = vunpack.c.l.b16 %v581
        %v753 = vunpack.c.h.b16 %v581
        %v754 = vunpack.c.l.b16 %v582
        %v755 = vunpack.c.h.b16 %v582
        %v756 = vunpack.c.l.b16 %v583
        %v757 = vunpack.c.h.b16 %v583
        %v758 = vunpack.c.l.b16 %v584
        %v759 = vunpack.c.h.b16 %v584
        %v760 = vunpack.c.l.b16 %v585
        %v761 = vunpack.c.h.b16 %v585
        %v762 = vunpack.c.l.b16 %v586
        %v763 = vunpack.c.h.b16 %v586
        %v764 = vunpack.c.l.b16 %v587
        %v765 = vunpack.c.h.b16 %v587
        %v766 = vunpack.c.l.b16 %v588
        %v767 = vunpack.c.h.b16 %v588
        %v768 = vunpack.c.l.b16 %v589
        %v769 = vunpack.c.h.b16 %v589
        %v770 = vunpack.c.l.b16 %v590
        %v771 = vunpack.c.h.b16 %v590
        %v772 = vunpack.c.l.b16 %v591
        %v773 = vunpack.c.h.b16 %v591
        %v774 = vunpack.c.l.b16 %v592
        %v775 = vunpack.c.h.b16 %v592
        %v776 = vunpack.c.l.b16 %v593
        %v777 = vunpack.c.h.b16 %v593
        %v778 = vunpack.c.l.b16 %v594
        %v779 = vunpack.c.h.b16 %v594
        %v780 = vunpack.c.l.b16 %v595
        %v781 = vunpack.c.h.b16 %v595
        %v782 = vunpack.c.l.b16 %v596
        %v783 = vunpack.c.h.b16 %v596
        %v784 = vunpack.c.l.b16 %v597
        %v785 = vunpack.c.h.b16 %v597
        %v786 = vunpack.c.l.b16 %v598
        %v787 = vunpack.c.h.b16 %v598
        %v788 = vunpack.c.l.b16 %v599
        %v789 = vunpack.c.h.b16 %v599
        %v790 = vunpack.c.l.b16 %v600
        %v791 = vunpack.c.h.b16 %v600
        %v792 = vunpack.c.l.b16 %v601
        %v793 = vunpack.c.h.b16 %v601
        %v794 = vunpack.c.l.b16 %v602
        %v795 = vunpack.c.h.b16 %v602
        %v796 = vunpack.c.l.b16 %v603
        %v797 = vunpack.c.h.b16 %v603
        %v798 = vunpack.c.l.b16 %v604
        %v799 = vunpack.c.h.b16 %v604
        %v800 = vunpack.c.l.b16 %v605
        %v801 = vunpack.c.h.b16 %v605
        %v802 = vunpack.c.l.b16 %v606
        %v803 = vunpack.c.h.b16 %v606
        %v804 = vunpack.c.l.b16 %v607
        %v805 = vunpack.c.h.b16 %v607
        %v806 = vpack.c.b16 %v712, %v710
        %v807 = vpack.c.b16 %v713, %v711
        %v808 = vpack.c.b16 %v716, %v714
        %v809 = vpack.c.b16 %v717, %v715
        %v810 = vpack.c.b16 %v720, %v718
        %v811 = vpack.c.b16 %v721, %v719
        %v812 = vpack.c.b16 %v724, %v722
        %v813 = vpack.c.b16 %v725, %v723
        %v814 = vpack.c.b16 %v728, %v726
        %v815 = vpack.c.b16 %v729, %v727
        %v816 = vpack.c.b16 %v732, %v730
        %v817 = vpack.c.b16 %v733, %v731
        %v818 = vpack.c.b16 %v736, %v734
        %v819 = vpack.c.b16 %v737, %v735
        %v820 = vpack.c.b16 %v740, %v738
        %v821 = vpack.c.b16 %v741, %v739
        %v822 = vpack.c.b16 %v744, %v742
        %v823 = vpack.c.b16 %v745, %v743
        %v824 = vpack.c.b16 %v748, %v746
        %v825 = vpack.c.b16 %v749, %v747
        %v826 = vpack.c.b16 %v752, %v750
        %v827 = vpack.c.b16 %v753, %v751
        %v828 = vpack.c.b16 %v756, %v754
        %v829 = vpack.c.b16 %v757, %v755
        %v830 = vpack.c.b16 %v760, %v758
        %v831 = vpack.c.b16 %v761, %v759
        %v832 = vpack.c.b16 %v764, %v762
        %v833 = vpack.c.b16 %v765, %v763
        %v834 = vpack.c.b16 %v768, %v766
        %v835 = vpack.c.b16 %v769, %v767
        %v836 = vpack.c.b16 %v772, %v770
        %v837 = vpack.c.b16 %v773, %v771
        %v838 = vpack.c.b16 %v776, %v774
        %v839 = vpack.c.b16 %v777, %v775
        %v840 = vpack.c.b16 %v780, %v778
        %v841 = vpack.c.b16 %v781, %v779
        %v842 = vpack.c.b16 %v784, %v782
        %v843 = vpack.c.b16 %v785, %v783
        %v844 = vpack.c.b16 %v788, %v786
        %v845 = vpack.c.b16 %v789, %v787
        %v846 = vpack.c.b16 %v792, %v790
        %v847 = vpack.c.b16 %v793, %v791
        %v848 = vpack.c.b16 %v796, %v794
        %v849 = vpack.c.b16 %v797, %v795
        %v850 = vpack.c.b16 %v800, %v798
        %v851 = vpack.c.b16 %v801, %v799
        %v852 = vpack.c.b16 %v804, %v802
        %v853 = vpack.c.b16 %v805, %v803
        %v932 = vunpack.c.l.b16 %v608
        %v933 = vunpack.c.h.b16 %v608
        %v934 = vunpack.c.l.b16 %v609
        %v935 = vunpack.c.h.b16 %v609
        %v936 = vunpack.c.l.b16 %v610
        %v937 = vunpack.c.h.b16 %v610
        %v938 = vunpack.c.l.b16 %v611
        %v939 = vunpack.c.h.b16 %v611
        %v940 = vunpack.c.l.b16 %v612
        %v941 = vunpack.c.h.b16 %v612
        %v942 = vunpack.c.l.b16 %v613
        %v943 = vunpack.c.h.b16 %v613
        %v944 = vunpack.c.l.b16 %v614
        %v945 = vunpack.c.h.b16 %v614
        %v946 = vunpack.c.l.b16 %v615
        %v947 = vunpack.c.h.b16 %v615
        %v948 = vunpack.c.l.b16 %v616
        %v949 = vunpack.c.h.b16 %v616
        %v950 = vunpack.c.l.b16 %v617
        %v951 = vunpack.c.h.b16 %v617
        %v952 = vunpack.c.l.b16 %v618
        %v953 = vunpack.c.h.b16 %v618
        %v954 = vunpack.c.l.b16 %v619
        %v955 = vunpack.c.h.b16 %v619
        %v956 = vunpack.c.l.b16 %v620
        %v957 = vunpack.c.h.b16 %v620
        %v958 = vunpack.c.l.b16 %v621
        %v959 = vunpack.c.h.b16 %v621
        %v960 = vunpack.c.l.b16 %v622
        %v961 = vunpack.c.h.b16 %v622
        %v962 = vunpack.c.l.b16 %v623
        %v963 = vunpack.c.h.b16 %v623
        %v964 = vunpack.c.l.b16 %v624
        %v965 = vunpack.c.h.b16 %v624
        %v966 = vunpack.c.l.b16 %v625
        %v967 = vunpack.c.h.b16 %v625
        %v968 = vunpack.c.l.b16 %v626
        %v969 = vunpack.c.h.b16 %v626
        %v970 = vunpack.c.l.b16 %v627
        %v971 = vunpack.c.h.b16 %v627
        %v972 = vunpack.c.l.b16 %v628
        %v973 = vunpack.c.h.b16 %v628
        %v974 = vunpack.c.l.b16 %v629
        %v975 = vunpack.c.h.b16 %v629
        %v976 = vunpack.c.l.b16 %v630
        %v977 = vunpack.c.h.b16 %v630
        %v978 = vunpack.c.l.b16 %v631
        %v979 = vunpack.c.h.b16 %v631
        %v980 = vunpack.c.l.b16 %v632
        %v981 = vunpack.c.h.b16 %v632
        %v982 = vunpack.c.l.b16 %v633
        %v983 = vunpack.c.h.b16 %v633
        %v984 = vunpack.c.l.b16 %v634
        %v985 = vunpack.c.h.b16 %v634
        %v986 = vunpack.c.l.b16 %v635
        %v987 = vunpack.c.h.b16 %v635
        %v988 = vunpack.c.l.b16 %v636
        %v989 = vunpack.c.h.b16 %v636
        %v990 = vunpack.c.l.b16 %v637
        %v991 = vunpack.c.h.b16 %v637
        %v992 = vunpack.c.l.b16 %v638
        %v993 = vunpack.c.h.b16 %v638
        %v994 = vunpack.c.l.b16 %v639
        %v995 = vunpack.c.h.b16 %v639
        %v996 = vunpack.c.l.b16 %v640
        %v997 = vunpack.c.h.b16 %v640
        %v998 = vunpack.c.l.b16 %v641
        %v999 = vunpack.c.h.b16 %v641
        %v1000 = vunpack.c.l.b16 %v642
        %v1001 = vunpack.c.h.b16 %v642
        %v1002 = vunpack.c.l.b16 %v643
        %v1003 = vunpack.c.h.b16 %v643
        %v1004 = vunpack.c.l.b16 %v644
        %v1005 = vunpack.c.h.b16 %v644
        %v1006 = vunpack.c.l.b16 %v645
        %v1007 = vunpack.c.h.b16 %v645
        %v1008 = vunpack.c.l.b16 %v646
        %v1009 = vunpack.c.h.b16 %v646
        %v1010 = vunpack.c.l.b16 %v647
        %v1011 = vunpack.c.h.b16 %v647
        %v1012 = vunpack.c.l.b16 %v648
        %v1013 = vunpack.c.h.b16 %v648
        %v1014 = vunpack.c.l.b16 %v649
        %v1015 = vunpack.c.h.b16 %v649
        %v1016 = vunpack.c.l.b16 %v650
        %v1017 = vunpack.c.h.b16 %v650
        %v1018 = vunpack.c.l.b16 %v651
        %v1019 = vunpack.c.h.b16 %v651
        %v1020 = vunpack.c.l.b16 %v652
        %v1021 = vunpack.c.h.b16 %v652
        %v1022 = vunpack.c.l.b16 %v653
        %v1023 = vunpack.c.h.b16 %v653
        %v1024 = vunpack.c.l.b16 %v654
        %v1025 = vunpack.c.h.b16 %v654
        %v1026 = vunpack.c.l.b16 %v655
        %v1027 = vunpack.c.h.b16 %v655
        %v1028 = vunpack.c.l.b16 %v656
        %v1029 = vunpack.c.h.b16 %v656
        %v1030 = vunpack.c.l.b16 %v657
        %v1031 = vunpack.c.h.b16 %v657
        %v1032 = vunpack.c.l.b16 %v658
        %v1033 = vunpack.c.h.b16 %v658
        %v1034 = vunpack.c.l.b16 %v659
        %v1035 = vunpack.c.h.b16 %v659
        %v1036 = vunpack.c.l.b16 %v660
        %v1037 = vunpack.c.h.b16 %v660
        %v1038 = vunpack.c.l.b16 %v661
        %v1039 = vunpack.c.h.b16 %v661
        %v1040 = vpack.c.b16 %v938, %v932
        %v1041 = vpack.c.b16 %v939, %v933
        %v1042 = vpack.c.b16 %v940, %v934
        %v1043 = vpack.c.b16 %v941, %v935
        %v1044 = vpack.c.b16 %v942, %v936
        %v1045 = vpack.c.b16 %v943, %v937
        %v1046 = vpack.c.b16 %v950, %v944
        %v1047 = vpack.c.b16 %v951, %v945
        %v1048 = vpack.c.b16 %v952, %v946
        %v1049 = vpack.c.b16 %v953, %v947
        %v1050 = vpack.c.b16 %v954, %v948
        %v1051 = vpack.c.b16 %v955, %v949
        %v1052 = vpack.c.b16 %v962, %v956
        %v1053 = vpack.c.b16 %v963, %v957
        %v1054 = vpack.c.b16 %v964, %v958
        %v1055 = vpack.c.b16 %v965, %v959
        %v1056 = vpack.c.b16 %v966, %v960
        %v1057 = vpack.c.b16 %v967, %v961
        %v1058 = vpack.c.b16 %v974, %v968
        %v1059 = vpack.c.b16 %v975, %v969
        %v1060 = vpack.c.b16 %v976, %v970
        %v1061 = vpack.c.b16 %v977, %v971
        %v1062 = vpack.c.b16 %v978, %v972
        %v1063 = vpack.c.b16 %v979, %v973
        %v1064 = vpack.c.b16 %v986, %v980
        %v1065 = vpack.c.b16 %v987, %v981
        %v1066 = vpack.c.b16 %v988, %v982
        %v1067 = vpack.c.b16 %v989, %v983
        %v1068 = vpack.c.b16 %v990, %v984
        %v1069 = vpack.c.b16 %v991, %v985
        %v1070 = vpack.c.b16 %v998, %v992
        %v1071 = vpack.c.b16 %v999, %v993
        %v1072 = vpack.c.b16 %v1000, %v994
        %v1073 = vpack.c.b16 %v1001, %v995
        %v1074 = vpack.c.b16 %v1002, %v996
        %v1075 = vpack.c.b16 %v1003, %v997
        %v1076 = vpack.c.b16 %v1010, %v1004
        %v1077 = vpack.c.b16 %v1011, %v1005
        %v1078 = vpack.c.b16 %v1012, %v1006
        %v1079 = vpack.c.b16 %v1013, %v1007
        %v1080 = vpack.c.b16 %v1014, %v1008
        %v1081 = vpack.c.b16 %v1015, %v1009
        %v1082 = vpack.c.b16 %v1022, %v1016
        %v1083 = vpack.c.b16 %v1023, %v1017
        %v1084 = vpack.c.b16 %v1024, %v1018
        %v1085 = vpack.c.b16 %v1025, %v1019
        %v1086 = vpack.c.b16 %v1026, %v1020
        %v1087 = vpack.c.b16 %v1027, %v1021
        %v1088 = vpack.c.b16 %v1034, %v1028
        %v1089 = vpack.c.b16 %v1035, %v1029
        %v1090 = vpack.c.b16 %v1036, %v1030
        %v1091 = vpack.c.b16 %v1037, %v1031
        %v1092 = vpack.c.b16 %v1038, %v1032
        %v1093 = vpack.c.b16 %v1039, %v1033
        %vm1142 = vcmask 97280
        %v1144 = vsel %vm1142, %v807, 0
        %v1147 = vsel %vm1142, %v809, 0
        %v1150 = vsel %vm1142, %v811, 0
        %v1153 = vsel %vm1142, %v813, 0
        %v1156 = vsel %vm1142, %v815, 0
        %v1159 = vsel %vm1142, %v817, 0
        %v1162 = vsel %vm1142, %v819, 0
        %v1165 = vsel %vm1142, %v821, 0
        %v1168 = vsel %vm1142, %v823, 0
        %v1171 = vsel %vm1142, %v825, 0
        %v1174 = vsel %vm1142, %v827, 0
        %v1177 = vsel %vm1142, %v829, 0
        %v1180 = vsel %vm1142, %v831, 0
        %v1183 = vsel %vm1142, %v833, 0
        %v1186 = vsel %vm1142, %v835, 0
        %v1189 = vsel %vm1142, %v837, 0
        %v1192 = vsel %vm1142, %v839, 0
        %v1195 = vsel %vm1142, %v841, 0
        %v1198 = vsel %vm1142, %v843, 0
        %v1201 = vsel %vm1142, %v845, 0
        %v1204 = vsel %vm1142, %v847, 0
        %v1207 = vsel %vm1142, %v849, 0
        %v1210 = vsel %vm1142, %v851, 0
        %v1213 = vsel %vm1142, %v853, 0
        %vm1215 = vcmask 1045504
        %v1217 = vsel %vm1215, %v1088, 0
        %v1220 = vsel %vm1215, %v1089, 0
        %v1223 = vsel %vm1215, %v1090, 0
        %v1226 = vsel %vm1215, %v1091, 0
        %v1229 = vsel %vm1215, %v1092, 0
        %v1232 = vsel %vm1215, %v1093, 0
        %1234 = vmatprep.subr.bf16.mxu0 %v1041
        %1235 = vmatpush1.bf16.msra.mxu0 %v1040
        %1236 = vmatprep.subr.bf16.mxu0 %v1047
        %1237 = vmatpush1.bf16.msra.mxu0 %v1046
        %1238 = vmatprep.subr.bf16.mxu0 %v1053
        %1239 = vmatpush1.bf16.msra.mxu0 %v1052
        %1240 = vmatprep.subr.bf16.mxu0 %v1059
        %1241 = vmatpush1.bf16.msra.mxu0 %v1058
        %1242 = vmatprep.subr.bf16.mxu0 %v1065
        %1243 = vmatpush1.bf16.msra.mxu0 %v1064
        %1244 = vmatprep.subr.bf16.mxu0 %v1071
        %1245 = vmatpush1.bf16.msra.mxu0 %v1070
        %1246 = vmatprep.subr.bf16.mxu0 %v1077
        %1247 = vmatpush1.bf16.msra.mxu0 %v1076
        %1248 = vmatprep.subr.bf16.mxu0 %v1083
        %1249 = vmatpush1.bf16.msra.mxu0 %v1082
        %1250 = vmatprep.subr.bf16.mxu0 %v1220
        %1251 = vmatpush1.bf16.msra.mxu0 %v1217
        %1252 = vmatprep.subr.bf16.mxu0 0
        %1253 = vmatpush1.bf16.msra.mxu0 0
        %1254 = vmatprep.subr.bf16.mxu0 0
        %1255 = vmatpush1.bf16.msra.mxu0 0
        %1256 = vmatprep.subr.bf16.mxu0 0
        %1257 = vmatpush1.bf16.msra.mxu0 0
        %1258 = vmatprep.subr.bf16.mxu0 0
        %1259 = vmatpush1.bf16.msra.mxu0 0
        %1260 = vmatprep.subr.bf16.mxu0 0
        %1261 = vmatpush1.bf16.msra.mxu0 0
        %1262 = vmatprep.subr.bf16.mxu0 0
        %1263 = vmatpush1.bf16.msra.mxu0 0
        %1264 = vmatprep.subr.bf16.mxu0 0
        %1265 = vmatpush1.bf16.msra.mxu0 0
        %1266 = vmatprep.mubr.bf16.mxu0 %v1144
        %1267 = vmatmul.mubr.bf16.gmra.mrb[0].mxu0 %v806
        %v1268 = vpop.f32.mrb[0].mxu0
        %v1269 = vadd.f32 0.0, %v1268
        %v1270 = vpop.f32.mrb[0].mxu0
        %v1271 = vadd.f32 0.0, %v1270
        %v1272 = vpop.f32.mrb[0].mxu0
        %v1273 = vadd.f32 0.0, %v1272
        %v1274 = vpop.f32.mrb[0].mxu0
        %v1275 = vadd.f32 0.0, %v1274
        %1276 = vmatprep.mubr.bf16.mxu0 %v1147
        %1277 = vmatmul.mubr.bf16.gmra.mrb[0].mxu0 %v808
        %v1278 = vpop.f32.mrb[0].mxu0
        %v1279 = vadd.f32 0.0, %v1278
        %v1280 = vpop.f32.mrb[0].mxu0
        %v1281 = vadd.f32 0.0, %v1280
        %v1282 = vpop.f32.mrb[0].mxu0
        %v1283 = vadd.f32 0.0, %v1282
        %v1284 = vpop.f32.mrb[0].mxu0
        %v1285 = vadd.f32 0.0, %v1284
        %1286 = vmatprep.mubr.bf16.mxu0 %v1150
        %1287 = vmatmul.mubr.bf16.gmra.mrb[0].mxu0 %v810
        %v1288 = vpop.f32.mrb[0].mxu0
        %v1289 = vadd.f32 0.0, %v1288
        %v1290 = vpop.f32.mrb[0].mxu0
        %v1291 = vadd.f32 0.0, %v1290
        %v1292 = vpop.f32.mrb[0].mxu0
        %v1293 = vadd.f32 0.0, %v1292
        %v1294 = vpop.f32.mrb[0].mxu0
        %v1295 = vadd.f32 0.0, %v1294
        %1296 = vmatprep.mubr.bf16.mxu0 %v1153
        %1297 = vmatmul.mubr.bf16.gmra.mrb[0].mxu0 %v812
        %v1298 = vpop.f32.mrb[0].mxu0
        %v1299 = vadd.f32 0.0, %v1298
        %v1300 = vpop.f32.mrb[0].mxu0
        %v1301 = vadd.f32 0.0, %v1300
        %v1302 = vpop.f32.mrb[0].mxu0
        %v1303 = vadd.f32 0.0, %v1302
        %v1304 = vpop.f32.mrb[0].mxu0
        %v1305 = vadd.f32 0.0, %v1304
        %1306 = vmatprep.mubr.bf16.mxu0 %v1156
        %1307 = vmatmul.mubr.bf16.gmra.mrb[0].mxu0 %v814
        %v1308 = vpop.f32.mrb[0].mxu0
        %v1309 = vadd.f32 0.0, %v1308
        %v1310 = vpop.f32.mrb[0].mxu0
        %v1311 = vadd.f32 0.0, %v1310
        %v1312 = vpop.f32.mrb[0].mxu0
        %v1313 = vadd.f32 0.0, %v1312
        %v1314 = vpop.f32.mrb[0].mxu0
        %v1315 = vadd.f32 0.0, %v1314
        %1316 = vmatprep.mubr.bf16.mxu0 %v1159
        %1317 = vmatmul.mubr.bf16.gmra.mrb[0].mxu0 %v816
        %v1318 = vpop.f32.mrb[0].mxu0
        %v1319 = vadd.f32 0.0, %v1318
        %v1320 = vpop.f32.mrb[0].mxu0
        %v1321 = vadd.f32 0.0, %v1320
        %v1322 = vpop.f32.mrb[0].mxu0
        %v1323 = vadd.f32 0.0, %v1322
        %v1324 = vpop.f32.mrb[0].mxu0
        %v1325 = vadd.f32 0.0, %v1324
        %1326 = vmatprep.mubr.bf16.mxu0 %v1162
        %1327 = vmatmul.mubr.bf16.gmra.mrb[0].mxu0 %v818
        %v1328 = vpop.f32.mrb[0].mxu0
        %v1329 = vadd.f32 0.0, %v1328
        %v1330 = vpop.f32.mrb[0].mxu0
        %v1331 = vadd.f32 0.0, %v1330
        %v1332 = vpop.f32.mrb[0].mxu0
        %v1333 = vadd.f32 0.0, %v1332
        %v1334 = vpop.f32.mrb[0].mxu0
        %v1335 = vadd.f32 0.0, %v1334
        %1336 = vmatprep.mubr.bf16.mxu0 %v1165
        %1337 = vmatmul.mubr.bf16.gmra.mrb[0].mxu0 %v820
        %v1338 = vpop.f32.mrb[0].mxu0
        %v1339 = vadd.f32 0.0, %v1338
        %v1340 = vpop.f32.mrb[0].mxu0
        %v1341 = vadd.f32 0.0, %v1340
        %v1342 = vpop.f32.mrb[0].mxu0
        %v1343 = vadd.f32 0.0, %v1342
        %v1344 = vpop.f32.mrb[0].mxu0
        %v1345 = vadd.f32 0.0, %v1344
        %1346 = vmatprep.mubr.bf16.mxu0 %v1168
        %1347 = vmatmul.mubr.bf16.gmra.mrb[0].mxu0 %v822
        %v1348 = vpop.f32.mrb[0].mxu0
        %v1349 = vadd.f32 0.0, %v1348
        %v1350 = vpop.f32.mrb[0].mxu0
        %v1351 = vadd.f32 0.0, %v1350
        %v1352 = vpop.f32.mrb[0].mxu0
        %v1353 = vadd.f32 0.0, %v1352
        %v1354 = vpop.f32.mrb[0].mxu0
        %v1355 = vadd.f32 0.0, %v1354
        %1356 = vmatprep.mubr.bf16.mxu0 %v1171
        %1357 = vmatmul.mubr.bf16.gmra.mrb[0].mxu0 %v824
        %v1358 = vpop.f32.mrb[0].mxu0
        %v1359 = vadd.f32 0.0, %v1358
        %v1360 = vpop.f32.mrb[0].mxu0
        %v1361 = vadd.f32 0.0, %v1360
        %v1362 = vpop.f32.mrb[0].mxu0
        %v1363 = vadd.f32 0.0, %v1362
        %v1364 = vpop.f32.mrb[0].mxu0
        %v1365 = vadd.f32 0.0, %v1364
        %1366 = vmatprep.mubr.bf16.mxu0 %v1174
        %1367 = vmatmul.mubr.bf16.gmra.mrb[0].mxu0 %v826
        %v1368 = vpop.f32.mrb[0].mxu0
        %v1369 = vadd.f32 0.0, %v1368
        %v1370 = vpop.f32.mrb[0].mxu0
        %v1371 = vadd.f32 0.0, %v1370
        %v1372 = vpop.f32.mrb[0].mxu0
        %v1373 = vadd.f32 0.0, %v1372
        %v1374 = vpop.f32.mrb[0].mxu0
        %v1375 = vadd.f32 0.0, %v1374
        %1376 = vmatprep.mubr.bf16.mxu0 %v1177
        %1377 = vmatmul.mubr.bf16.gmra.mrb[0].mxu0 %v828
        %v1378 = vpop.f32.mrb[0].mxu0
        %v1379 = vadd.f32 0.0, %v1378
        %v1380 = vpop.f32.mrb[0].mxu0
        %v1381 = vadd.f32 0.0, %v1380
        %v1382 = vpop.f32.mrb[0].mxu0
        %v1383 = vadd.f32 0.0, %v1382
        %v1384 = vpop.f32.mrb[0].mxu0
        %v1385 = vadd.f32 0.0, %v1384
        %1386 = vmatprep.mubr.bf16.mxu0 %v1180
        %1387 = vmatmul.mubr.bf16.gmra.mrb[0].mxu0 %v830
        %v1388 = vpop.f32.mrb[0].mxu0
        %v1389 = vadd.f32 0.0, %v1388
        %v1390 = vpop.f32.mrb[0].mxu0
        %v1391 = vadd.f32 0.0, %v1390
        %v1392 = vpop.f32.mrb[0].mxu0
        %v1393 = vadd.f32 0.0, %v1392
        %v1394 = vpop.f32.mrb[0].mxu0
        %v1395 = vadd.f32 0.0, %v1394
        %1396 = vmatprep.mubr.bf16.mxu0 %v1183
        %1397 = vmatmul.mubr.bf16.gmra.mrb[0].mxu0 %v832
        %v1398 = vpop.f32.mrb[0].mxu0
        %v1399 = vadd.f32 0.0, %v1398
        %v1400 = vpop.f32.mrb[0].mxu0
        %v1401 = vadd.f32 0.0, %v1400
        %v1402 = vpop.f32.mrb[0].mxu0
        %v1403 = vadd.f32 0.0, %v1402
        %v1404 = vpop.f32.mrb[0].mxu0
        %v1405 = vadd.f32 0.0, %v1404
        %1406 = vmatprep.mubr.bf16.mxu0 %v1186
        %1407 = vmatmul.mubr.bf16.gmra.mrb[0].mxu0 %v834
        %v1408 = vpop.f32.mrb[0].mxu0
        %v1409 = vadd.f32 0.0, %v1408
        %v1410 = vpop.f32.mrb[0].mxu0
        %v1411 = vadd.f32 0.0, %v1410
        %v1412 = vpop.f32.mrb[0].mxu0
        %v1413 = vadd.f32 0.0, %v1412
        %v1414 = vpop.f32.mrb[0].mxu0
        %v1415 = vadd.f32 0.0, %v1414
        %1416 = vmatprep.mubr.bf16.mxu0 %v1189
        %1417 = vmatmul.mubr.bf16.gmra.mrb[0].mxu0 %v836
        %v1418 = vpop.f32.mrb[0].mxu0
        %v1419 = vadd.f32 0.0, %v1418
        %v1420 = vpop.f32.mrb[0].mxu0
        %v1421 = vadd.f32 0.0, %v1420
        %v1422 = vpop.f32.mrb[0].mxu0
        %v1423 = vadd.f32 0.0, %v1422
        %v1424 = vpop.f32.mrb[0].mxu0
        %v1425 = vadd.f32 0.0, %v1424
        %1426 = vmatprep.mubr.bf16.mxu0 %v1192
        %1427 = vmatmul.mubr.bf16.gmra.mrb[0].mxu0 %v838
        %v1428 = vpop.f32.mrb[0].mxu0
        %v1429 = vadd.f32 0.0, %v1428
        %v1430 = vpop.f32.mrb[0].mxu0
        %v1431 = vadd.f32 0.0, %v1430
        %v1432 = vpop.f32.mrb[0].mxu0
        %v1433 = vadd.f32 0.0, %v1432
        %v1434 = vpop.f32.mrb[0].mxu0
        %v1435 = vadd.f32 0.0, %v1434
        %1436 = vmatprep.mubr.bf16.mxu0 %v1195
        %1437 = vmatmul.mubr.bf16.gmra.mrb[0].mxu0 %v840
        %v1438 = vpop.f32.mrb[0].mxu0
        %v1439 = vadd.f32 0.0, %v1438
        %v1440 = vpop.f32.mrb[0].mxu0
        %v1441 = vadd.f32 0.0, %v1440
        %v1442 = vpop.f32.mrb[0].mxu0
        %v1443 = vadd.f32 0.0, %v1442
        %v1444 = vpop.f32.mrb[0].mxu0
        %v1445 = vadd.f32 0.0, %v1444
        %1446 = vmatprep.mubr.bf16.mxu0 %v1198
        %1447 = vmatmul.mubr.bf16.gmra.mrb[0].mxu0 %v842
        %v1448 = vpop.f32.mrb[0].mxu0
        %v1449 = vadd.f32 0.0, %v1448
        %v1450 = vpop.f32.mrb[0].mxu0
        %v1451 = vadd.f32 0.0, %v1450
        %v1452 = vpop.f32.mrb[0].mxu0
        %v1453 = vadd.f32 0.0, %v1452
        %v1454 = vpop.f32.mrb[0].mxu0
        %v1455 = vadd.f32 0.0, %v1454
        %1456 = vmatprep.mubr.bf16.mxu0 %v1201
        %1457 = vmatmul.mubr.bf16.gmra.mrb[0].mxu0 %v844
        %v1458 = vpop.f32.mrb[0].mxu0
        %v1459 = vadd.f32 0.0, %v1458
        %v1460 = vpop.f32.mrb[0].mxu0
        %v1461 = vadd.f32 0.0, %v1460
        %v1462 = vpop.f32.mrb[0].mxu0
        %v1463 = vadd.f32 0.0, %v1462
        %v1464 = vpop.f32.mrb[0].mxu0
        %v1465 = vadd.f32 0.0, %v1464
        %1466 = vmatprep.mubr.bf16.mxu0 %v1204
        %1467 = vmatmul.mubr.bf16.gmra.mrb[0].mxu0 %v846
        %v1468 = vpop.f32.mrb[0].mxu0
        %v1469 = vadd.f32 0.0, %v1468
        %v1470 = vpop.f32.mrb[0].mxu0
        %v1471 = vadd.f32 0.0, %v1470
        %v1472 = vpop.f32.mrb[0].mxu0
        %v1473 = vadd.f32 0.0, %v1472
        %v1474 = vpop.f32.mrb[0].mxu0
        %v1475 = vadd.f32 0.0, %v1474
        %1476 = vmatprep.mubr.bf16.mxu0 %v1207
        %1477 = vmatmul.mubr.bf16.gmra.mrb[0].mxu0 %v848
        %v1478 = vpop.f32.mrb[0].mxu0
        %v1479 = vadd.f32 0.0, %v1478
        %v1480 = vpop.f32.mrb[0].mxu0
        %v1481 = vadd.f32 0.0, %v1480
        %v1482 = vpop.f32.mrb[0].mxu0
        %v1483 = vadd.f32 0.0, %v1482
        %v1484 = vpop.f32.mrb[0].mxu0
        %v1485 = vadd.f32 0.0, %v1484
        %1486 = vmatprep.mubr.bf16.mxu0 %v1210
        %1487 = vmatmul.mubr.bf16.gmra.mrb[0].mxu0 %v850
        %v1488 = vpop.f32.mrb[0].mxu0
        %v1489 = vadd.f32 0.0, %v1488
        %v1490 = vpop.f32.mrb[0].mxu0
        %v1491 = vadd.f32 0.0, %v1490
        %v1492 = vpop.f32.mrb[0].mxu0
        %v1493 = vadd.f32 0.0, %v1492
        %v1494 = vpop.f32.mrb[0].mxu0
        %v1495 = vadd.f32 0.0, %v1494
        %1496 = vmatprep.mubr.bf16.mxu0 %v1213
        %1497 = vmatmul.mubr.bf16.gmra.mrb[0].mxu0 %v852
        %v1498 = vpop.f32.mrb[0].mxu0
        %v1499 = vadd.f32 0.0, %v1498
        %v1500 = vpop.f32.mrb[0].mxu0
        %v1501 = vadd.f32 0.0, %v1500
        %v1502 = vpop.f32.mrb[0].mxu0
        %v1503 = vadd.f32 0.0, %v1502
        %v1504 = vpop.f32.mrb[0].mxu0
        %v1505 = vadd.f32 0.0, %v1504
        %1506 = vdwg.mxu0
        %1507 = vmatprep.subr.bf16.mxu0 %v1043
        %1508 = vmatpush1.bf16.msra.mxu0 %v1042
        %1509 = vmatprep.subr.bf16.mxu0 %v1049
        %1510 = vmatpush1.bf16.msra.mxu0 %v1048
        %1511 = vmatprep.subr.bf16.mxu0 %v1055
        %1512 = vmatpush1.bf16.msra.mxu0 %v1054
        %1513 = vmatprep.subr.bf16.mxu0 %v1061
        %1514 = vmatpush1.bf16.msra.mxu0 %v1060
        %1515 = vmatprep.subr.bf16.mxu0 %v1067
        %1516 = vmatpush1.bf16.msra.mxu0 %v1066
        %1517 = vmatprep.subr.bf16.mxu0 %v1073
        %1518 = vmatpush1.bf16.msra.mxu0 %v1072
        %1519 = vmatprep.subr.bf16.mxu0 %v1079
        %1520 = vmatpush1.bf16.msra.mxu0 %v1078
        %1521 = vmatprep.subr.bf16.mxu0 %v1085
        %1522 = vmatpush1.bf16.msra.mxu0 %v1084
        %1523 = vmatprep.subr.bf16.mxu0 %v1226
        %1524 = vmatpush1.bf16.msra.mxu0 %v1223
        %1525 = vmatprep.subr.bf16.mxu0 0
        %1526 = vmatpush1.bf16.msra.mxu0 0
        %1527 = vmatprep.subr.bf16.mxu0 0
        %1528 = vmatpush1.bf16.msra.mxu0 0
        %1529 = vmatprep.subr.bf16.mxu0 0
        %1530 = vmatpush1.bf16.msra.mxu0 0
        %1531 = vmatprep.subr.bf16.mxu0 0
        %1532 = vmatpush1.bf16.msra.mxu0 0
        %1533 = vmatprep.subr.bf16.mxu0 0
        %1534 = vmatpush1.bf16.msra.mxu0 0
        %1535 = vmatprep.subr.bf16.mxu0 0
        %1536 = vmatpush1.bf16.msra.mxu0 0
        %1537 = vmatprep.subr.bf16.mxu0 0
        %1538 = vmatpush1.bf16.msra.mxu0 0
        %1539 = vmatprep.mubr.bf16.mxu0 %v1144
        %1540 = vmatmul.mubr.bf16.gmra.mrb[0].mxu0 %v806
        %v1541 = vpop.f32.mrb[0].mxu0
        %v1542 = vadd.f32 0.0, %v1541
        %v1543 = vpop.f32.mrb[0].mxu0
        %v1544 = vadd.f32 0.0, %v1543
        %v1545 = vpop.f32.mrb[0].mxu0
        %v1546 = vadd.f32 0.0, %v1545
        %v1547 = vpop.f32.mrb[0].mxu0
        %v1548 = vadd.f32 0.0, %v1547
        %1549 = vmatprep.mubr.bf16.mxu0 %v1147
        %1550 = vmatmul.mubr.bf16.gmra.mrb[0].mxu0 %v808
        %v1551 = vpop.f32.mrb[0].mxu0
        %v1552 = vadd.f32 0.0, %v1551
        %v1553 = vpop.f32.mrb[0].mxu0
        %v1554 = vadd.f32 0.0, %v1553
        %v1555 = vpop.f32.mrb[0].mxu0
        %v1556 = vadd.f32 0.0, %v1555
        %v1557 = vpop.f32.mrb[0].mxu0
        %v1558 = vadd.f32 0.0, %v1557
        %1559 = vmatprep.mubr.bf16.mxu0 %v1150
        %1560 = vmatmul.mubr.bf16.gmra.mrb[0].mxu0 %v810
        %v1561 = vpop.f32.mrb[0].mxu0
        %v1562 = vadd.f32 0.0, %v1561
        %v1563 = vpop.f32.mrb[0].mxu0
        %v1564 = vadd.f32 0.0, %v1563
        %v1565 = vpop.f32.mrb[0].mxu0
        %v1566 = vadd.f32 0.0, %v1565
        %v1567 = vpop.f32.mrb[0].mxu0
        %v1568 = vadd.f32 0.0, %v1567
        %1569 = vmatprep.mubr.bf16.mxu0 %v1153
        %1570 = vmatmul.mubr.bf16.gmra.mrb[0].mxu0 %v812
        %v1571 = vpop.f32.mrb[0].mxu0
        %v1572 = vadd.f32 0.0, %v1571
        %v1573 = vpop.f32.mrb[0].mxu0
        %v1574 = vadd.f32 0.0, %v1573
        %v1575 = vpop.f32.mrb[0].mxu0
        %v1576 = vadd.f32 0.0, %v1575
        %v1577 = vpop.f32.mrb[0].mxu0
        %v1578 = vadd.f32 0.0, %v1577
        %1579 = vmatprep.mubr.bf16.mxu0 %v1156
        %1580 = vmatmul.mubr.bf16.gmra.mrb[0].mxu0 %v814
        %v1581 = vpop.f32.mrb[0].mxu0
        %v1582 = vadd.f32 0.0, %v1581
        %v1583 = vpop.f32.mrb[0].mxu0
        %v1584 = vadd.f32 0.0, %v1583
        %v1585 = vpop.f32.mrb[0].mxu0
        %v1586 = vadd.f32 0.0, %v1585
        %v1587 = vpop.f32.mrb[0].mxu0
        %v1588 = vadd.f32 0.0, %v1587
        %1589 = vmatprep.mubr.bf16.mxu0 %v1159
        %1590 = vmatmul.mubr.bf16.gmra.mrb[0].mxu0 %v816
        %v1591 = vpop.f32.mrb[0].mxu0
        %v1592 = vadd.f32 0.0, %v1591
        %v1593 = vpop.f32.mrb[0].mxu0
        %v1594 = vadd.f32 0.0, %v1593
        %v1595 = vpop.f32.mrb[0].mxu0
        %v1596 = vadd.f32 0.0, %v1595
        %v1597 = vpop.f32.mrb[0].mxu0
        %v1598 = vadd.f32 0.0, %v1597
        %1599 = vmatprep.mubr.bf16.mxu0 %v1162
        %1600 = vmatmul.mubr.bf16.gmra.mrb[0].mxu0 %v818
        %v1601 = vpop.f32.mrb[0].mxu0
        %v1602 = vadd.f32 0.0, %v1601
        %v1603 = vpop.f32.mrb[0].mxu0
        %v1604 = vadd.f32 0.0, %v1603
        %v1605 = vpop.f32.mrb[0].mxu0
        %v1606 = vadd.f32 0.0, %v1605
        %v1607 = vpop.f32.mrb[0].mxu0
        %v1608 = vadd.f32 0.0, %v1607
        %1609 = vmatprep.mubr.bf16.mxu0 %v1165
        %1610 = vmatmul.mubr.bf16.gmra.mrb[0].mxu0 %v820
        %v1611 = vpop.f32.mrb[0].mxu0
        %v1612 = vadd.f32 0.0, %v1611
        %v1613 = vpop.f32.mrb[0].mxu0
        %v1614 = vadd.f32 0.0, %v1613
        %v1615 = vpop.f32.mrb[0].mxu0
        %v1616 = vadd.f32 0.0, %v1615
        %v1617 = vpop.f32.mrb[0].mxu0
        %v1618 = vadd.f32 0.0, %v1617
        %1619 = vmatprep.mubr.bf16.mxu0 %v1168
        %1620 = vmatmul.mubr.bf16.gmra.mrb[0].mxu0 %v822
        %v1621 = vpop.f32.mrb[0].mxu0
        %v1622 = vadd.f32 0.0, %v1621
        %v1623 = vpop.f32.mrb[0].mxu0
        %v1624 = vadd.f32 0.0, %v1623
        %v1625 = vpop.f32.mrb[0].mxu0
        %v1626 = vadd.f32 0.0, %v1625
        %v1627 = vpop.f32.mrb[0].mxu0
        %v1628 = vadd.f32 0.0, %v1627
        %1629 = vmatprep.mubr.bf16.mxu0 %v1171
        %1630 = vmatmul.mubr.bf16.gmra.mrb[0].mxu0 %v824
        %v1631 = vpop.f32.mrb[0].mxu0
        %v1632 = vadd.f32 0.0, %v1631
        %v1633 = vpop.f32.mrb[0].mxu0
        %v1634 = vadd.f32 0.0, %v1633
        %v1635 = vpop.f32.mrb[0].mxu0
        %v1636 = vadd.f32 0.0, %v1635
        %v1637 = vpop.f32.mrb[0].mxu0
        %v1638 = vadd.f32 0.0, %v1637
        %1639 = vmatprep.mubr.bf16.mxu0 %v1174
        %1640 = vmatmul.mubr.bf16.gmra.mrb[0].mxu0 %v826
        %v1641 = vpop.f32.mrb[0].mxu0
        %v1642 = vadd.f32 0.0, %v1641
        %v1643 = vpop.f32.mrb[0].mxu0
        %v1644 = vadd.f32 0.0, %v1643
        %v1645 = vpop.f32.mrb[0].mxu0
        %v1646 = vadd.f32 0.0, %v1645
        %v1647 = vpop.f32.mrb[0].mxu0
        %v1648 = vadd.f32 0.0, %v1647
        %1649 = vmatprep.mubr.bf16.mxu0 %v1177
        %1650 = vmatmul.mubr.bf16.gmra.mrb[0].mxu0 %v828
        %v1651 = vpop.f32.mrb[0].mxu0
        %v1652 = vadd.f32 0.0, %v1651
        %v1653 = vpop.f32.mrb[0].mxu0
        %v1654 = vadd.f32 0.0, %v1653
        %v1655 = vpop.f32.mrb[0].mxu0
        %v1656 = vadd.f32 0.0, %v1655
        %v1657 = vpop.f32.mrb[0].mxu0
        %v1658 = vadd.f32 0.0, %v1657
        %1659 = vmatprep.mubr.bf16.mxu0 %v1180
        %1660 = vmatmul.mubr.bf16.gmra.mrb[0].mxu0 %v830
        %v1661 = vpop.f32.mrb[0].mxu0
        %v1662 = vadd.f32 0.0, %v1661
        %v1663 = vpop.f32.mrb[0].mxu0
        %v1664 = vadd.f32 0.0, %v1663
        %v1665 = vpop.f32.mrb[0].mxu0
        %v1666 = vadd.f32 0.0, %v1665
        %v1667 = vpop.f32.mrb[0].mxu0
        %v1668 = vadd.f32 0.0, %v1667
        %1669 = vmatprep.mubr.bf16.mxu0 %v1183
        %1670 = vmatmul.mubr.bf16.gmra.mrb[0].mxu0 %v832
        %v1671 = vpop.f32.mrb[0].mxu0
        %v1672 = vadd.f32 0.0, %v1671
        %v1673 = vpop.f32.mrb[0].mxu0
        %v1674 = vadd.f32 0.0, %v1673
        %v1675 = vpop.f32.mrb[0].mxu0
        %v1676 = vadd.f32 0.0, %v1675
        %v1677 = vpop.f32.mrb[0].mxu0
        %v1678 = vadd.f32 0.0, %v1677
        %1679 = vmatprep.mubr.bf16.mxu0 %v1186
        %1680 = vmatmul.mubr.bf16.gmra.mrb[0].mxu0 %v834
        %v1681 = vpop.f32.mrb[0].mxu0
        %v1682 = vadd.f32 0.0, %v1681
        %v1683 = vpop.f32.mrb[0].mxu0
        %v1684 = vadd.f32 0.0, %v1683
        %v1685 = vpop.f32.mrb[0].mxu0
        %v1686 = vadd.f32 0.0, %v1685
        %v1687 = vpop.f32.mrb[0].mxu0
        %v1688 = vadd.f32 0.0, %v1687
        %1689 = vmatprep.mubr.bf16.mxu0 %v1189
        %1690 = vmatmul.mubr.bf16.gmra.mrb[0].mxu0 %v836
        %v1691 = vpop.f32.mrb[0].mxu0
        %v1692 = vadd.f32 0.0, %v1691
        %v1693 = vpop.f32.mrb[0].mxu0
        %v1694 = vadd.f32 0.0, %v1693
        %v1695 = vpop.f32.mrb[0].mxu0
        %v1696 = vadd.f32 0.0, %v1695
        %v1697 = vpop.f32.mrb[0].mxu0
        %v1698 = vadd.f32 0.0, %v1697
        %1699 = vmatprep.mubr.bf16.mxu0 %v1192
        %1700 = vmatmul.mubr.bf16.gmra.mrb[0].mxu0 %v838
        %v1701 = vpop.f32.mrb[0].mxu0
        %v1702 = vadd.f32 0.0, %v1701
        %v1703 = vpop.f32.mrb[0].mxu0
        %v1704 = vadd.f32 0.0, %v1703
        %v1705 = vpop.f32.mrb[0].mxu0
        %v1706 = vadd.f32 0.0, %v1705
        %v1707 = vpop.f32.mrb[0].mxu0
        %v1708 = vadd.f32 0.0, %v1707
        %1709 = vmatprep.mubr.bf16.mxu0 %v1195
        %1710 = vmatmul.mubr.bf16.gmra.mrb[0].mxu0 %v840
        %v1711 = vpop.f32.mrb[0].mxu0
        %v1712 = vadd.f32 0.0, %v1711
        %v1713 = vpop.f32.mrb[0].mxu0
        %v1714 = vadd.f32 0.0, %v1713
        %v1715 = vpop.f32.mrb[0].mxu0
        %v1716 = vadd.f32 0.0, %v1715
        %v1717 = vpop.f32.mrb[0].mxu0
        %v1718 = vadd.f32 0.0, %v1717
        %1719 = vmatprep.mubr.bf16.mxu0 %v1198
        %1720 = vmatmul.mubr.bf16.gmra.mrb[0].mxu0 %v842
        %v1721 = vpop.f32.mrb[0].mxu0
        %v1722 = vadd.f32 0.0, %v1721
        %v1723 = vpop.f32.mrb[0].mxu0
        %v1724 = vadd.f32 0.0, %v1723
        %v1725 = vpop.f32.mrb[0].mxu0
        %v1726 = vadd.f32 0.0, %v1725
        %v1727 = vpop.f32.mrb[0].mxu0
        %v1728 = vadd.f32 0.0, %v1727
        %1729 = vmatprep.mubr.bf16.mxu0 %v1201
        %1730 = vmatmul.mubr.bf16.gmra.mrb[0].mxu0 %v844
        %v1731 = vpop.f32.mrb[0].mxu0
        %v1732 = vadd.f32 0.0, %v1731
        %v1733 = vpop.f32.mrb[0].mxu0
        %v1734 = vadd.f32 0.0, %v1733
        %v1735 = vpop.f32.mrb[0].mxu0
        %v1736 = vadd.f32 0.0, %v1735
        %v1737 = vpop.f32.mrb[0].mxu0
        %v1738 = vadd.f32 0.0, %v1737
        %1739 = vmatprep.mubr.bf16.mxu0 %v1204
        %1740 = vmatmul.mubr.bf16.gmra.mrb[0].mxu0 %v846
        %v1741 = vpop.f32.mrb[0].mxu0
        %v1742 = vadd.f32 0.0, %v1741
        %v1743 = vpop.f32.mrb[0].mxu0
        %v1744 = vadd.f32 0.0, %v1743
        %v1745 = vpop.f32.mrb[0].mxu0
        %v1746 = vadd.f32 0.0, %v1745
        %v1747 = vpop.f32.mrb[0].mxu0
        %v1748 = vadd.f32 0.0, %v1747
        %1749 = vmatprep.mubr.bf16.mxu0 %v1207
        %1750 = vmatmul.mubr.bf16.gmra.mrb[0].mxu0 %v848
        %v1751 = vpop.f32.mrb[0].mxu0
        %v1752 = vadd.f32 0.0, %v1751
        %v1753 = vpop.f32.mrb[0].mxu0
        %v1754 = vadd.f32 0.0, %v1753
        %v1755 = vpop.f32.mrb[0].mxu0
        %v1756 = vadd.f32 0.0, %v1755
        %v1757 = vpop.f32.mrb[0].mxu0
        %v1758 = vadd.f32 0.0, %v1757
        %1759 = vmatprep.mubr.bf16.mxu0 %v1210
        %1760 = vmatmul.mubr.bf16.gmra.mrb[0].mxu0 %v850
        %v1761 = vpop.f32.mrb[0].mxu0
        %v1762 = vadd.f32 0.0, %v1761
        %v1763 = vpop.f32.mrb[0].mxu0
        %v1764 = vadd.f32 0.0, %v1763
        %v1765 = vpop.f32.mrb[0].mxu0
        %v1766 = vadd.f32 0.0, %v1765
        %v1767 = vpop.f32.mrb[0].mxu0
        %v1768 = vadd.f32 0.0, %v1767
        %1769 = vmatprep.mubr.bf16.mxu0 %v1213
        %1770 = vmatmul.mubr.bf16.gmra.mrb[0].mxu0 %v852
        %v1771 = vpop.f32.mrb[0].mxu0
        %v1772 = vadd.f32 0.0, %v1771
        %v1773 = vpop.f32.mrb[0].mxu0
        %v1774 = vadd.f32 0.0, %v1773
        %v1775 = vpop.f32.mrb[0].mxu0
        %v1776 = vadd.f32 0.0, %v1775
        %v1777 = vpop.f32.mrb[0].mxu0
        %v1778 = vadd.f32 0.0, %v1777
        %1779 = vdwg.mxu0
        %1780 = vmatprep.subr.bf16.mxu0 %v1045
        %1781 = vmatpush1.bf16.msra.mxu0 %v1044
        %1782 = vmatprep.subr.bf16.mxu0 %v1051
        %1783 = vmatpush1.bf16.msra.mxu0 %v1050
        %1784 = vmatprep.subr.bf16.mxu0 %v1057
        %1785 = vmatpush1.bf16.msra.mxu0 %v1056
        %1786 = vmatprep.subr.bf16.mxu0 %v1063
        %1787 = vmatpush1.bf16.msra.mxu0 %v1062
        %1788 = vmatprep.subr.bf16.mxu0 %v1069
        %1789 = vmatpush1.bf16.msra.mxu0 %v1068
        %1790 = vmatprep.subr.bf16.mxu0 %v1075
        %1791 = vmatpush1.bf16.msra.mxu0 %v1074
        %1792 = vmatprep.subr.bf16.mxu0 %v1081
        %1793 = vmatpush1.bf16.msra.mxu0 %v1080
        %1794 = vmatprep.subr.bf16.mxu0 %v1087
        %1795 = vmatpush1.bf16.msra.mxu0 %v1086
        %1796 = vmatprep.subr.bf16.mxu0 %v1232
        %1797 = vmatpush1.bf16.msra.mxu0 %v1229
        %1798 = vmatprep.subr.bf16.mxu0 0
        %1799 = vmatpush1.bf16.msra.mxu0 0
        %1800 = vmatprep.subr.bf16.mxu0 0
        %1801 = vmatpush1.bf16.msra.mxu0 0
        %1802 = vmatprep.subr.bf16.mxu0 0
        %1803 = vmatpush1.bf16.msra.mxu0 0
        %1804 = vmatprep.subr.bf16.mxu0 0
        %1805 = vmatpush1.bf16.msra.mxu0 0
        %1806 = vmatprep.subr.bf16.mxu0 0
        %1807 = vmatpush1.bf16.msra.mxu0 0
        %1808 = vmatprep.subr.bf16.mxu0 0
        %1809 = vmatpush1.bf16.msra.mxu0 0
        %1810 = vmatprep.subr.bf16.mxu0 0
        %1811 = vmatpush1.bf16.msra.mxu0 0
        %1812 = vmatprep.mubr.bf16.mxu0 %v1144
        %1813 = vmatmul.mubr.bf16.gmra.mrb[0].mxu0 %v806
        %v1814 = vpop.f32.mrb[0].mxu0
        %v1815 = vadd.f32 0.0, %v1814
        %v1816 = vpop.f32.mrb[0].mxu0
        %v1817 = vadd.f32 0.0, %v1816
        %v1818 = vpop.f32.mrb[0].mxu0
        %v1819 = vadd.f32 0.0, %v1818
        %v1820 = vpop.f32.mrb[0].mxu0
        %v1821 = vadd.f32 0.0, %v1820
        %1822 = vmatprep.mubr.bf16.mxu0 %v1147
        %1823 = vmatmul.mubr.bf16.gmra.mrb[0].mxu0 %v808
        %v1824 = vpop.f32.mrb[0].mxu0
        %v1825 = vadd.f32 0.0, %v1824
        %v1826 = vpop.f32.mrb[0].mxu0
        %v1827 = vadd.f32 0.0, %v1826
        %v1828 = vpop.f32.mrb[0].mxu0
        %v1829 = vadd.f32 0.0, %v1828
        %v1830 = vpop.f32.mrb[0].mxu0
        %v1831 = vadd.f32 0.0, %v1830
        %1832 = vmatprep.mubr.bf16.mxu0 %v1150
        %1833 = vmatmul.mubr.bf16.gmra.mrb[0].mxu0 %v810
        %v1834 = vpop.f32.mrb[0].mxu0
        %v1835 = vadd.f32 0.0, %v1834
        %v1836 = vpop.f32.mrb[0].mxu0
        %v1837 = vadd.f32 0.0, %v1836
        %v1838 = vpop.f32.mrb[0].mxu0
        %v1839 = vadd.f32 0.0, %v1838
        %v1840 = vpop.f32.mrb[0].mxu0
        %v1841 = vadd.f32 0.0, %v1840
        %1842 = vmatprep.mubr.bf16.mxu0 %v1153
        %1843 = vmatmul.mubr.bf16.gmra.mrb[0].mxu0 %v812
        %v1844 = vpop.f32.mrb[0].mxu0
        %v1845 = vadd.f32 0.0, %v1844
        %v1846 = vpop.f32.mrb[0].mxu0
        %v1847 = vadd.f32 0.0, %v1846
        %v1848 = vpop.f32.mrb[0].mxu0
        %v1849 = vadd.f32 0.0, %v1848
        %v1850 = vpop.f32.mrb[0].mxu0
        %v1851 = vadd.f32 0.0, %v1850
        %1852 = vmatprep.mubr.bf16.mxu0 %v1156
        %1853 = vmatmul.mubr.bf16.gmra.mrb[0].mxu0 %v814
        %v1854 = vpop.f32.mrb[0].mxu0
        %v1855 = vadd.f32 0.0, %v1854
        %v1856 = vpop.f32.mrb[0].mxu0
        %v1857 = vadd.f32 0.0, %v1856
        %v1858 = vpop.f32.mrb[0].mxu0
        %v1859 = vadd.f32 0.0, %v1858
        %v1860 = vpop.f32.mrb[0].mxu0
        %v1861 = vadd.f32 0.0, %v1860
        %1862 = vmatprep.mubr.bf16.mxu0 %v1159
        %1863 = vmatmul.mubr.bf16.gmra.mrb[0].mxu0 %v816
        %v1864 = vpop.f32.mrb[0].mxu0
        %v1865 = vadd.f32 0.0, %v1864
        %v1866 = vpop.f32.mrb[0].mxu0
        %v1867 = vadd.f32 0.0, %v1866
        %v1868 = vpop.f32.mrb[0].mxu0
        %v1869 = vadd.f32 0.0, %v1868
        %v1870 = vpop.f32.mrb[0].mxu0
        %v1871 = vadd.f32 0.0, %v1870
        %1872 = vmatprep.mubr.bf16.mxu0 %v1162
        %1873 = vmatmul.mubr.bf16.gmra.mrb[0].mxu0 %v818
        %v1874 = vpop.f32.mrb[0].mxu0
        %v1875 = vadd.f32 0.0, %v1874
        %v1876 = vpop.f32.mrb[0].mxu0
        %v1877 = vadd.f32 0.0, %v1876
        %v1878 = vpop.f32.mrb[0].mxu0
        %v1879 = vadd.f32 0.0, %v1878
        %v1880 = vpop.f32.mrb[0].mxu0
        %v1881 = vadd.f32 0.0, %v1880
        %1882 = vmatprep.mubr.bf16.mxu0 %v1165
        %1883 = vmatmul.mubr.bf16.gmra.mrb[0].mxu0 %v820
        %v1884 = vpop.f32.mrb[0].mxu0
        %v1885 = vadd.f32 0.0, %v1884
        %v1886 = vpop.f32.mrb[0].mxu0
        %v1887 = vadd.f32 0.0, %v1886
        %v1888 = vpop.f32.mrb[0].mxu0
        %v1889 = vadd.f32 0.0, %v1888
        %v1890 = vpop.f32.mrb[0].mxu0
        %v1891 = vadd.f32 0.0, %v1890
        %1892 = vmatprep.mubr.bf16.mxu0 %v1168
        %1893 = vmatmul.mubr.bf16.gmra.mrb[0].mxu0 %v822
        %v1894 = vpop.f32.mrb[0].mxu0
        %v1895 = vadd.f32 0.0, %v1894
        %v1896 = vpop.f32.mrb[0].mxu0
        %v1897 = vadd.f32 0.0, %v1896
        %v1898 = vpop.f32.mrb[0].mxu0
        %v1899 = vadd.f32 0.0, %v1898
        %v1900 = vpop.f32.mrb[0].mxu0
        %v1901 = vadd.f32 0.0, %v1900
        %1902 = vmatprep.mubr.bf16.mxu0 %v1171
        %1903 = vmatmul.mubr.bf16.gmra.mrb[0].mxu0 %v824
        %v1904 = vpop.f32.mrb[0].mxu0
        %v1905 = vadd.f32 0.0, %v1904
        %v1906 = vpop.f32.mrb[0].mxu0
        %v1907 = vadd.f32 0.0, %v1906
        %v1908 = vpop.f32.mrb[0].mxu0
        %v1909 = vadd.f32 0.0, %v1908
        %v1910 = vpop.f32.mrb[0].mxu0
        %v1911 = vadd.f32 0.0, %v1910
        %1912 = vmatprep.mubr.bf16.mxu0 %v1174
        %1913 = vmatmul.mubr.bf16.gmra.mrb[0].mxu0 %v826
        %v1914 = vpop.f32.mrb[0].mxu0
        %v1915 = vadd.f32 0.0, %v1914
        %v1916 = vpop.f32.mrb[0].mxu0
        %v1917 = vadd.f32 0.0, %v1916
        %v1918 = vpop.f32.mrb[0].mxu0
        %v1919 = vadd.f32 0.0, %v1918
        %v1920 = vpop.f32.mrb[0].mxu0
        %v1921 = vadd.f32 0.0, %v1920
        %1922 = vmatprep.mubr.bf16.mxu0 %v1177
        %1923 = vmatmul.mubr.bf16.gmra.mrb[0].mxu0 %v828
        %v1924 = vpop.f32.mrb[0].mxu0
        %v1925 = vadd.f32 0.0, %v1924
        %v1926 = vpop.f32.mrb[0].mxu0
        %v1927 = vadd.f32 0.0, %v1926
        %v1928 = vpop.f32.mrb[0].mxu0
        %v1929 = vadd.f32 0.0, %v1928
        %v1930 = vpop.f32.mrb[0].mxu0
        %v1931 = vadd.f32 0.0, %v1930
        %1932 = vmatprep.mubr.bf16.mxu0 %v1180
        %1933 = vmatmul.mubr.bf16.gmra.mrb[0].mxu0 %v830
        %v1934 = vpop.f32.mrb[0].mxu0
        %v1935 = vadd.f32 0.0, %v1934
        %v1936 = vpop.f32.mrb[0].mxu0
        %v1937 = vadd.f32 0.0, %v1936
        %v1938 = vpop.f32.mrb[0].mxu0
        %v1939 = vadd.f32 0.0, %v1938
        %v1940 = vpop.f32.mrb[0].mxu0
        %v1941 = vadd.f32 0.0, %v1940
        %1942 = vmatprep.mubr.bf16.mxu0 %v1183
        %1943 = vmatmul.mubr.bf16.gmra.mrb[0].mxu0 %v832
        %v1944 = vpop.f32.mrb[0].mxu0
        %v1945 = vadd.f32 0.0, %v1944
        %v1946 = vpop.f32.mrb[0].mxu0
        %v1947 = vadd.f32 0.0, %v1946
        %v1948 = vpop.f32.mrb[0].mxu0
        %v1949 = vadd.f32 0.0, %v1948
        %v1950 = vpop.f32.mrb[0].mxu0
        %v1951 = vadd.f32 0.0, %v1950
        %1952 = vmatprep.mubr.bf16.mxu0 %v1186
        %1953 = vmatmul.mubr.bf16.gmra.mrb[0].mxu0 %v834
        %v1954 = vpop.f32.mrb[0].mxu0
        %v1955 = vadd.f32 0.0, %v1954
        %v1956 = vpop.f32.mrb[0].mxu0
        %v1957 = vadd.f32 0.0, %v1956
        %v1958 = vpop.f32.mrb[0].mxu0
        %v1959 = vadd.f32 0.0, %v1958
        %v1960 = vpop.f32.mrb[0].mxu0
        %v1961 = vadd.f32 0.0, %v1960
        %1962 = vmatprep.mubr.bf16.mxu0 %v1189
        %1963 = vmatmul.mubr.bf16.gmra.mrb[0].mxu0 %v836
        %v1964 = vpop.f32.mrb[0].mxu0
        %v1965 = vadd.f32 0.0, %v1964
        %v1966 = vpop.f32.mrb[0].mxu0
        %v1967 = vadd.f32 0.0, %v1966
        %v1968 = vpop.f32.mrb[0].mxu0
        %v1969 = vadd.f32 0.0, %v1968
        %v1970 = vpop.f32.mrb[0].mxu0
        %v1971 = vadd.f32 0.0, %v1970
        %1972 = vmatprep.mubr.bf16.mxu0 %v1192
        %1973 = vmatmul.mubr.bf16.gmra.mrb[0].mxu0 %v838
        %v1974 = vpop.f32.mrb[0].mxu0
        %v1975 = vadd.f32 0.0, %v1974
        %v1976 = vpop.f32.mrb[0].mxu0
        %v1977 = vadd.f32 0.0, %v1976
        %v1978 = vpop.f32.mrb[0].mxu0
        %v1979 = vadd.f32 0.0, %v1978
        %v1980 = vpop.f32.mrb[0].mxu0
        %v1981 = vadd.f32 0.0, %v1980
        %1982 = vmatprep.mubr.bf16.mxu0 %v1195
        %1983 = vmatmul.mubr.bf16.gmra.mrb[0].mxu0 %v840
        %v1984 = vpop.f32.mrb[0].mxu0
        %v1985 = vadd.f32 0.0, %v1984
        %v1986 = vpop.f32.mrb[0].mxu0
        %v1987 = vadd.f32 0.0, %v1986
        %v1988 = vpop.f32.mrb[0].mxu0
        %v1989 = vadd.f32 0.0, %v1988
        %v1990 = vpop.f32.mrb[0].mxu0
        %v1991 = vadd.f32 0.0, %v1990
        %1992 = vmatprep.mubr.bf16.mxu0 %v1198
        %1993 = vmatmul.mubr.bf16.gmra.mrb[0].mxu0 %v842
        %v1994 = vpop.f32.mrb[0].mxu0
        %v1995 = vadd.f32 0.0, %v1994
        %v1996 = vpop.f32.mrb[0].mxu0
        %v1997 = vadd.f32 0.0, %v1996
        %v1998 = vpop.f32.mrb[0].mxu0
        %v1999 = vadd.f32 0.0, %v1998
        %v2000 = vpop.f32.mrb[0].mxu0
        %v2001 = vadd.f32 0.0, %v2000
        %2002 = vmatprep.mubr.bf16.mxu0 %v1201
        %2003 = vmatmul.mubr.bf16.gmra.mrb[0].mxu0 %v844
        %v2004 = vpop.f32.mrb[0].mxu0
        %v2005 = vadd.f32 0.0, %v2004
        %v2006 = vpop.f32.mrb[0].mxu0
        %v2007 = vadd.f32 0.0, %v2006
        %v2008 = vpop.f32.mrb[0].mxu0
        %v2009 = vadd.f32 0.0, %v2008
        %v2010 = vpop.f32.mrb[0].mxu0
        %v2011 = vadd.f32 0.0, %v2010
        %2012 = vmatprep.mubr.bf16.mxu0 %v1204
        %2013 = vmatmul.mubr.bf16.gmra.mrb[0].mxu0 %v846
        %v2014 = vpop.f32.mrb[0].mxu0
        %v2015 = vadd.f32 0.0, %v2014
        %v2016 = vpop.f32.mrb[0].mxu0
        %v2017 = vadd.f32 0.0, %v2016
        %v2018 = vpop.f32.mrb[0].mxu0
        %v2019 = vadd.f32 0.0, %v2018
        %v2020 = vpop.f32.mrb[0].mxu0
        %v2021 = vadd.f32 0.0, %v2020
        %2022 = vmatprep.mubr.bf16.mxu0 %v1207
        %2023 = vmatmul.mubr.bf16.gmra.mrb[0].mxu0 %v848
        %v2024 = vpop.f32.mrb[0].mxu0
        %v2025 = vadd.f32 0.0, %v2024
        %v2026 = vpop.f32.mrb[0].mxu0
        %v2027 = vadd.f32 0.0, %v2026
        %v2028 = vpop.f32.mrb[0].mxu0
        %v2029 = vadd.f32 0.0, %v2028
        %v2030 = vpop.f32.mrb[0].mxu0
        %v2031 = vadd.f32 0.0, %v2030
        %2032 = vmatprep.mubr.bf16.mxu0 %v1210
        %2033 = vmatmul.mubr.bf16.gmra.mrb[0].mxu0 %v850
        %v2034 = vpop.f32.mrb[0].mxu0
        %v2035 = vadd.f32 0.0, %v2034
        %v2036 = vpop.f32.mrb[0].mxu0
        %v2037 = vadd.f32 0.0, %v2036
        %v2038 = vpop.f32.mrb[0].mxu0
        %v2039 = vadd.f32 0.0, %v2038
        %v2040 = vpop.f32.mrb[0].mxu0
        %v2041 = vadd.f32 0.0, %v2040
        %2042 = vmatprep.mubr.bf16.mxu0 %v1213
        %2043 = vmatmul.mubr.bf16.gmra.mrb[0].mxu0 %v852
        %v2044 = vpop.f32.mrb[0].mxu0
        %v2045 = vadd.f32 0.0, %v2044
        %v2046 = vpop.f32.mrb[0].mxu0
        %v2047 = vadd.f32 0.0, %v2046
        %v2048 = vpop.f32.mrb[0].mxu0
        %v2049 = vadd.f32 0.0, %v2048
        %v2050 = vpop.f32.mrb[0].mxu0
        %v2051 = vadd.f32 0.0, %v2050
        %2052 = vdwg.mxu0
        %v2053 = vmax.f32 %v1269, %v1279
        %v2054 = vmax.f32 %v1271, %v1281
        %v2055 = vmax.f32 %v1542, %v1552
        %v2056 = vmax.f32 %v1544, %v1554
        %v2057 = vmax.f32 %v1815, %v1825
        %v2058 = vmax.f32 %v1817, %v1827
        %v2059 = vmax.f32 %v1273, %v1283
        %v2060 = vmax.f32 %v1275, %v1285
        %v2061 = vmax.f32 %v1546, %v1556
        %v2062 = vmax.f32 %v1548, %v1558
        %v2063 = vmax.f32 %v1819, %v1829
        %v2064 = vmax.f32 %v1821, %v1831
        %v2065 = vmax.f32 %v1289, %v1299
        %v2066 = vmax.f32 %v1291, %v1301
        %v2067 = vmax.f32 %v1562, %v1572
        %v2068 = vmax.f32 %v1564, %v1574
        %v2069 = vmax.f32 %v1835, %v1845
        %v2070 = vmax.f32 %v1837, %v1847
        %v2071 = vmax.f32 %v1293, %v1303
        %v2072 = vmax.f32 %v1295, %v1305
        %v2073 = vmax.f32 %v1566, %v1576
        %v2074 = vmax.f32 %v1568, %v1578
        %v2075 = vmax.f32 %v1839, %v1849
        %v2076 = vmax.f32 %v1841, %v1851
        %v2077 = vmax.f32 %v1309, %v1319
        %v2078 = vmax.f32 %v1311, %v1321
        %v2079 = vmax.f32 %v1582, %v1592
        %v2080 = vmax.f32 %v1584, %v1594
        %v2081 = vmax.f32 %v1855, %v1865
        %v2082 = vmax.f32 %v1857, %v1867
        %v2083 = vmax.f32 %v1313, %v1323
        %v2084 = vmax.f32 %v1315, %v1325
        %v2085 = vmax.f32 %v1586, %v1596
        %v2086 = vmax.f32 %v1588, %v1598
        %v2087 = vmax.f32 %v1859, %v1869
        %v2088 = vmax.f32 %v1861, %v1871
        %v2089 = vmax.f32 %v1329, %v1339
        %v2090 = vmax.f32 %v1331, %v1341
        %v2091 = vmax.f32 %v1602, %v1612
        %v2092 = vmax.f32 %v1604, %v1614
        %v2093 = vmax.f32 %v1875, %v1885
        %v2094 = vmax.f32 %v1877, %v1887
        %v2095 = vmax.f32 %v1333, %v1343
        %v2096 = vmax.f32 %v1335, %v1345
        %v2097 = vmax.f32 %v1606, %v1616
        %v2098 = vmax.f32 %v1608, %v1618
        %v2099 = vmax.f32 %v1879, %v1889
        %v2100 = vmax.f32 %v1881, %v1891
        %v2101 = vmax.f32 %v1349, %v1359
        %v2102 = vmax.f32 %v1351, %v1361
        %v2103 = vmax.f32 %v1622, %v1632
        %v2104 = vmax.f32 %v1624, %v1634
        %v2105 = vmax.f32 %v1895, %v1905
        %v2106 = vmax.f32 %v1897, %v1907
        %v2107 = vmax.f32 %v1353, %v1363
        %v2108 = vmax.f32 %v1355, %v1365
        %v2109 = vmax.f32 %v1626, %v1636
        %v2110 = vmax.f32 %v1628, %v1638
        %v2111 = vmax.f32 %v1899, %v1909
        %v2112 = vmax.f32 %v1901, %v1911
        %v2113 = vmax.f32 %v1369, %v1379
        %v2114 = vmax.f32 %v1371, %v1381
        %v2115 = vmax.f32 %v1642, %v1652
        %v2116 = vmax.f32 %v1644, %v1654
        %v2117 = vmax.f32 %v1915, %v1925
        %v2118 = vmax.f32 %v1917, %v1927
        %v2119 = vmax.f32 %v1373, %v1383
        %v2120 = vmax.f32 %v1375, %v1385
        %v2121 = vmax.f32 %v1646, %v1656
        %v2122 = vmax.f32 %v1648, %v1658
        %v2123 = vmax.f32 %v1919, %v1929
        %v2124 = vmax.f32 %v1921, %v1931
        %v2125 = vmax.f32 %v1389, %v1399
        %v2126 = vmax.f32 %v1391, %v1401
        %v2127 = vmax.f32 %v1662, %v1672
        %v2128 = vmax.f32 %v1664, %v1674
        %v2129 = vmax.f32 %v1935, %v1945
        %v2130 = vmax.f32 %v1937, %v1947
        %v2131 = vmax.f32 %v1393, %v1403
        %v2132 = vmax.f32 %v1395, %v1405
        %v2133 = vmax.f32 %v1666, %v1676
        %v2134 = vmax.f32 %v1668, %v1678
        %v2135 = vmax.f32 %v1939, %v1949
        %v2136 = vmax.f32 %v1941, %v1951
        %v2137 = vmax.f32 %v1409, %v1419
        %v2138 = vmax.f32 %v1411, %v1421
        %v2139 = vmax.f32 %v1682, %v1692
        %v2140 = vmax.f32 %v1684, %v1694
        %v2141 = vmax.f32 %v1955, %v1965
        %v2142 = vmax.f32 %v1957, %v1967
        %v2143 = vmax.f32 %v1413, %v1423
        %v2144 = vmax.f32 %v1415, %v1425
        %v2145 = vmax.f32 %v1686, %v1696
        %v2146 = vmax.f32 %v1688, %v1698
        %v2147 = vmax.f32 %v1959, %v1969
        %v2148 = vmax.f32 %v1961, %v1971
        %v2149 = vmax.f32 %v1429, %v1439
        %v2150 = vmax.f32 %v1431, %v1441
        %v2151 = vmax.f32 %v1702, %v1712
        %v2152 = vmax.f32 %v1704, %v1714
        %v2153 = vmax.f32 %v1975, %v1985
        %v2154 = vmax.f32 %v1977, %v1987
        %v2155 = vmax.f32 %v1433, %v1443
        %v2156 = vmax.f32 %v1435, %v1445
        %v2157 = vmax.f32 %v1706, %v1716
        %v2158 = vmax.f32 %v1708, %v1718
        %v2159 = vmax.f32 %v1979, %v1989
        %v2160 = vmax.f32 %v1981, %v1991
        %v2161 = vmax.f32 %v1449, %v1459
        %v2162 = vmax.f32 %v1451, %v1461
        %v2163 = vmax.f32 %v1722, %v1732
        %v2164 = vmax.f32 %v1724, %v1734
        %v2165 = vmax.f32 %v1995, %v2005
        %v2166 = vmax.f32 %v1997, %v2007
        %v2167 = vmax.f32 %v1453, %v1463
        %v2168 = vmax.f32 %v1455, %v1465
        %v2169 = vmax.f32 %v1726, %v1736
        %v2170 = vmax.f32 %v1728, %v1738
        %v2171 = vmax.f32 %v1999, %v2009
        %v2172 = vmax.f32 %v2001, %v2011
        %v2173 = vmax.f32 %v1469, %v1479
        %v2174 = vmax.f32 %v1471, %v1481
        %v2175 = vmax.f32 %v1742, %v1752
        %v2176 = vmax.f32 %v1744, %v1754
        %v2177 = vmax.f32 %v2015, %v2025
        %v2178 = vmax.f32 %v2017, %v2027
        %v2179 = vmax.f32 %v1473, %v1483
        %v2180 = vmax.f32 %v1475, %v1485
        %v2181 = vmax.f32 %v1746, %v1756
        %v2182 = vmax.f32 %v1748, %v1758
        %v2183 = vmax.f32 %v2019, %v2029
        %v2184 = vmax.f32 %v2021, %v2031
        %v2185 = vmax.f32 %v1489, %v1499
        %v2186 = vmax.f32 %v1491, %v1501
        %v2187 = vmax.f32 %v1762, %v1772
        %v2188 = vmax.f32 %v1764, %v1774
        %v2189 = vmax.f32 %v2035, %v2045
        %v2190 = vmax.f32 %v2037, %v2047
        %v2191 = vmax.f32 %v1493, %v1503
        %v2192 = vmax.f32 %v1495, %v1505
        %v2193 = vmax.f32 %v1766, %v1776
        %v2194 = vmax.f32 %v1768, %v1778
        %v2195 = vmax.f32 %v2039, %v2049
        %v2196 = vmax.f32 %v2041, %v2051
        %v2197 = vmax.f32 %v2053, %v2056
        %v2198 = vmax.f32 %v2054, %v2057
        %v2199 = vmax.f32 %v2055, %v2058
        %v2200 = vmax.f32 %v2059, %v2062
        %v2201 = vmax.f32 %v2060, %v2063
        %v2202 = vmax.f32 %v2061, %v2064
        %v2203 = vmax.f32 %v2065, %v2068
        %v2204 = vmax.f32 %v2066, %v2069
        %v2205 = vmax.f32 %v2067, %v2070
        %v2206 = vmax.f32 %v2071, %v2074
        %v2207 = vmax.f32 %v2072, %v2075
        %v2208 = vmax.f32 %v2073, %v2076
        %v2209 = vmax.f32 %v2077, %v2080
        %v2210 = vmax.f32 %v2078, %v2081
        %v2211 = vmax.f32 %v2079, %v2082
        %v2212 = vmax.f32 %v2083, %v2086
        %v2213 = vmax.f32 %v2084, %v2087
        %v2214 = vmax.f32 %v2085, %v2088
        %v2215 = vmax.f32 %v2089, %v2092
        %v2216 = vmax.f32 %v2090, %v2093
        %v2217 = vmax.f32 %v2091, %v2094
        %v2218 = vmax.f32 %v2095, %v2098
        %v2219 = vmax.f32 %v2096, %v2099
        %v2220 = vmax.f32 %v2097, %v2100
        %v2221 = vmax.f32 %v2101, %v2104
        %v2222 = vmax.f32 %v2102, %v2105
        %v2223 = vmax.f32 %v2103, %v2106
        %v2224 = vmax.f32 %v2107, %v2110
        %v2225 = vmax.f32 %v2108, %v2111
        %v2226 = vmax.f32 %v2109, %v2112
        %v2227 = vmax.f32 %v2113, %v2116
        %v2228 = vmax.f32 %v2114, %v2117
        %v2229 = vmax.f32 %v2115, %v2118
        %v2230 = vmax.f32 %v2119, %v2122
        %v2231 = vmax.f32 %v2120, %v2123
        %v2232 = vmax.f32 %v2121, %v2124
        %v2233 = vmax.f32 %v2125, %v2128
        %v2234 = vmax.f32 %v2126, %v2129
        %v2235 = vmax.f32 %v2127, %v2130
        %v2236 = vmax.f32 %v2131, %v2134
        %v2237 = vmax.f32 %v2132, %v2135
        %v2238 = vmax.f32 %v2133, %v2136
        %v2239 = vmax.f32 %v2137, %v2140
        %v2240 = vmax.f32 %v2138, %v2141
        %v2241 = vmax.f32 %v2139, %v2142
        %v2242 = vmax.f32 %v2143, %v2146
        %v2243 = vmax.f32 %v2144, %v2147
        %v2244 = vmax.f32 %v2145, %v2148
        %v2245 = vmax.f32 %v2149, %v2152
        %v2246 = vmax.f32 %v2150, %v2153
        %v2247 = vmax.f32 %v2151, %v2154
        %v2248 = vmax.f32 %v2155, %v2158
        %v2249 = vmax.f32 %v2156, %v2159
        %v2250 = vmax.f32 %v2157, %v2160
        %v2251 = vmax.f32 %v2161, %v2164
        %v2252 = vmax.f32 %v2162, %v2165
        %v2253 = vmax.f32 %v2163, %v2166
        %v2254 = vmax.f32 %v2167, %v2170
        %v2255 = vmax.f32 %v2168, %v2171
        %v2256 = vmax.f32 %v2169, %v2172
        %v2257 = vmax.f32 %v2173, %v2176
        %v2258 = vmax.f32 %v2174, %v2177
        %v2259 = vmax.f32 %v2175, %v2178
        %v2260 = vmax.f32 %v2179, %v2182
        %v2261 = vmax.f32 %v2180, %v2183
        %v2262 = vmax.f32 %v2181, %v2184
        %v2263 = vmax.f32 %v2185, %v2188
        %v2264 = vmax.f32 %v2186, %v2189
        %v2265 = vmax.f32 %v2187, %v2190
        %v2266 = vmax.f32 %v2191, %v2194
        %v2267 = vmax.f32 %v2192, %v2195
        %v2268 = vmax.f32 %v2193, %v2196
        %v2269 = vld [vmem:[%s2] sm:$0x7]
        %v2271 = vlaneseq
        %v2272 = vshrl.u32 %v2271, 7
        %v2273 = vsub.s32 0, %v2272
        %v2274 = vrot.slane %v2269, %v2273
        %v2275 = vlaneseq
        %v2276 = vshrl.u32 %v2275, 7
        %v2277 = vsub.s32 1, %v2276
        %v2278 = vrot.slane %v2269, %v2277
        %v2279 = vlaneseq
        %v2280 = vshrl.u32 %v2279, 7
        %v2281 = vsub.s32 2, %v2280
        %v2282 = vrot.slane %v2269, %v2281
        %v2286 = vadd.f32 %v2197, %v2274
        %v2287 = vadd.f32 %v2198, %v2278
        %v2288 = vadd.f32 %v2199, %v2282
        %v2289 = vadd.f32 %v2200, %v2274
        %v2290 = vadd.f32 %v2201, %v2278
        %v2291 = vadd.f32 %v2202, %v2282
        %v2292 = vadd.f32 %v2203, %v2274
        %v2293 = vadd.f32 %v2204, %v2278
        %v2294 = vadd.f32 %v2205, %v2282
        %v2295 = vadd.f32 %v2206, %v2274
        %v2296 = vadd.f32 %v2207, %v2278
        %v2297 = vadd.f32 %v2208, %v2282
        %v2298 = vadd.f32 %v2209, %v2274
        %v2299 = vadd.f32 %v2210, %v2278
        %v2300 = vadd.f32 %v2211, %v2282
        %v2301 = vadd.f32 %v2212, %v2274
        %v2302 = vadd.f32 %v2213, %v2278
        %v2303 = vadd.f32 %v2214, %v2282
        %v2304 = vadd.f32 %v2215, %v2274
        %v2305 = vadd.f32 %v2216, %v2278
        %v2306 = vadd.f32 %v2217, %v2282
        %v2307 = vadd.f32 %v2218, %v2274
        %v2308 = vadd.f32 %v2219, %v2278
        %v2309 = vadd.f32 %v2220, %v2282
        %v2310 = vadd.f32 %v2221, %v2274
        %v2311 = vadd.f32 %v2222, %v2278
        %v2312 = vadd.f32 %v2223, %v2282
        %v2313 = vadd.f32 %v2224, %v2274
        %v2314 = vadd.f32 %v2225, %v2278
        %v2315 = vadd.f32 %v2226, %v2282
        %v2316 = vadd.f32 %v2227, %v2274
        %v2317 = vadd.f32 %v2228, %v2278
        %v2318 = vadd.f32 %v2229, %v2282
        %v2319 = vadd.f32 %v2230, %v2274
        %v2320 = vadd.f32 %v2231, %v2278
        %v2321 = vadd.f32 %v2232, %v2282
        %v2322 = vadd.f32 %v2233, %v2274
        %v2323 = vadd.f32 %v2234, %v2278
        %v2324 = vadd.f32 %v2235, %v2282
        %v2325 = vadd.f32 %v2236, %v2274
        %v2326 = vadd.f32 %v2237, %v2278
        %v2327 = vadd.f32 %v2238, %v2282
        %v2328 = vadd.f32 %v2239, %v2274
        %v2329 = vadd.f32 %v2240, %v2278
        %v2330 = vadd.f32 %v2241, %v2282
        %v2331 = vadd.f32 %v2242, %v2274
        %v2332 = vadd.f32 %v2243, %v2278
        %v2333 = vadd.f32 %v2244, %v2282
        %v2334 = vadd.f32 %v2245, %v2274
        %v2335 = vadd.f32 %v2246, %v2278
        %v2336 = vadd.f32 %v2247, %v2282
        %v2337 = vadd.f32 %v2248, %v2274
        %v2338 = vadd.f32 %v2249, %v2278
        %v2339 = vadd.f32 %v2250, %v2282
        %v2340 = vadd.f32 %v2251, %v2274
        %v2341 = vadd.f32 %v2252, %v2278
        %v2342 = vadd.f32 %v2253, %v2282
        %v2343 = vadd.f32 %v2254, %v2274
        %v2344 = vadd.f32 %v2255, %v2278
        %v2345 = vadd.f32 %v2256, %v2282
        %v2346 = vadd.f32 %v2257, %v2274
        %v2347 = vadd.f32 %v2258, %v2278
        %v2348 = vadd.f32 %v2259, %v2282
        %v2349 = vadd.f32 %v2260, %v2274
        %v2350 = vadd.f32 %v2261, %v2278
        %v2351 = vadd.f32 %v2262, %v2282
        %v2352 = vadd.f32 %v2263, %v2274
        %v2353 = vadd.f32 %v2264, %v2278
        %v2354 = vadd.f32 %v2265, %v2282
        %v2355 = vadd.f32 %v2266, %v2274
        %v2356 = vadd.f32 %v2267, %v2278
        %v2357 = vadd.f32 %v2268, %v2282
        %v2358 = vmax.f32 %v2286, 0.0
        %v2359 = vmax.f32 %v2287, 0.0
        %v2360 = vmax.f32 %v2288, 0.0
        %v2361 = vmax.f32 %v2289, 0.0
        %v2362 = vmax.f32 %v2290, 0.0
        %v2363 = vmax.f32 %v2291, 0.0
        %v2364 = vmax.f32 %v2292, 0.0
        %v2365 = vmax.f32 %v2293, 0.0
        %v2366 = vmax.f32 %v2294, 0.0
        %v2367 = vmax.f32 %v2295, 0.0
        %v2368 = vmax.f32 %v2296, 0.0
        %v2369 = vmax.f32 %v2297, 0.0
        %v2370 = vmax.f32 %v2298, 0.0
        %v2371 = vmax.f32 %v2299, 0.0
        %v2372 = vmax.f32 %v2300, 0.0
        %v2373 = vmax.f32 %v2301, 0.0
        %v2374 = vmax.f32 %v2302, 0.0
        %v2375 = vmax.f32 %v2303, 0.0
        %v2376 = vmax.f32 %v2304, 0.0
        %v2377 = vmax.f32 %v2305, 0.0
        %v2378 = vmax.f32 %v2306, 0.0
        %v2379 = vmax.f32 %v2307, 0.0
        %v2380 = vmax.f32 %v2308, 0.0
        %v2381 = vmax.f32 %v2309, 0.0
        %v2382 = vmax.f32 %v2310, 0.0
        %v2383 = vmax.f32 %v2311, 0.0
        %v2384 = vmax.f32 %v2312, 0.0
        %v2385 = vmax.f32 %v2313, 0.0
        %v2386 = vmax.f32 %v2314, 0.0
        %v2387 = vmax.f32 %v2315, 0.0
        %v2388 = vmax.f32 %v2316, 0.0
        %v2389 = vmax.f32 %v2317, 0.0
        %v2390 = vmax.f32 %v2318, 0.0
        %v2391 = vmax.f32 %v2319, 0.0
        %v2392 = vmax.f32 %v2320, 0.0
        %v2393 = vmax.f32 %v2321, 0.0
        %v2394 = vmax.f32 %v2322, 0.0
        %v2395 = vmax.f32 %v2323, 0.0
        %v2396 = vmax.f32 %v2324, 0.0
        %v2397 = vmax.f32 %v2325, 0.0
        %v2398 = vmax.f32 %v2326, 0.0
        %v2399 = vmax.f32 %v2327, 0.0
        %v2400 = vmax.f32 %v2328, 0.0
        %v2401 = vmax.f32 %v2329, 0.0
        %v2402 = vmax.f32 %v2330, 0.0
        %v2403 = vmax.f32 %v2331, 0.0
        %v2404 = vmax.f32 %v2332, 0.0
        %v2405 = vmax.f32 %v2333, 0.0
        %v2406 = vmax.f32 %v2334, 0.0
        %v2407 = vmax.f32 %v2335, 0.0
        %v2408 = vmax.f32 %v2336, 0.0
        %v2409 = vmax.f32 %v2337, 0.0
        %v2410 = vmax.f32 %v2338, 0.0
        %v2411 = vmax.f32 %v2339, 0.0
        %v2412 = vmax.f32 %v2340, 0.0
        %v2413 = vmax.f32 %v2341, 0.0
        %v2414 = vmax.f32 %v2342, 0.0
        %v2415 = vmax.f32 %v2343, 0.0
        %v2416 = vmax.f32 %v2344, 0.0
        %v2417 = vmax.f32 %v2345, 0.0
        %v2418 = vmax.f32 %v2346, 0.0
        %v2419 = vmax.f32 %v2347, 0.0
        %v2420 = vmax.f32 %v2348, 0.0
        %v2421 = vmax.f32 %v2349, 0.0
        %v2422 = vmax.f32 %v2350, 0.0
        %v2423 = vmax.f32 %v2351, 0.0
        %v2424 = vmax.f32 %v2352, 0.0
        %v2425 = vmax.f32 %v2353, 0.0
        %v2426 = vmax.f32 %v2354, 0.0
        %v2427 = vmax.f32 %v2355, 0.0
        %v2428 = vmax.f32 %v2356, 0.0
        %v2429 = vmax.f32 %v2357, 0.0
        %v2430 = vpack.c.bf16 %v2361, %v2358
        %v2431 = vpack.c.bf16 %v2362, %v2359
        %v2432 = vpack.c.bf16 %v2363, %v2360
        %v2433 = vpack.c.bf16 %v2367, %v2364
        %v2434 = vpack.c.bf16 %v2368, %v2365
        %v2435 = vpack.c.bf16 %v2369, %v2366
        %v2436 = vpack.c.bf16 %v2373, %v2370
        %v2437 = vpack.c.bf16 %v2374, %v2371
        %v2438 = vpack.c.bf16 %v2375, %v2372
        %v2439 = vpack.c.bf16 %v2379, %v2376
        %v2440 = vpack.c.bf16 %v2380, %v2377
        %v2441 = vpack.c.bf16 %v2381, %v2378
        %v2442 = vpack.c.bf16 %v2385, %v2382
        %v2443 = vpack.c.bf16 %v2386, %v2383
        %v2444 = vpack.c.bf16 %v2387, %v2384
        %v2445 = vpack.c.bf16 %v2391, %v2388
        %v2446 = vpack.c.bf16 %v2392, %v2389
        %v2447 = vpack.c.bf16 %v2393, %v2390
        %v2448 = vpack.c.bf16 %v2397, %v2394
        %v2449 = vpack.c.bf16 %v2398, %v2395
        %v2450 = vpack.c.bf16 %v2399, %v2396
        %v2451 = vpack.c.bf16 %v2403, %v2400
        %v2452 = vpack.c.bf16 %v2404, %v2401
        %v2453 = vpack.c.bf16 %v2405, %v2402
        %v2454 = vpack.c.bf16 %v2409, %v2406
        %v2455 = vpack.c.bf16 %v2410, %v2407
        %v2456 = vpack.c.bf16 %v2411, %v2408
        %v2457 = vpack.c.bf16 %v2415, %v2412
        %v2458 = vpack.c.bf16 %v2416, %v2413
        %v2459 = vpack.c.bf16 %v2417, %v2414
        %v2460 = vpack.c.bf16 %v2421, %v2418
        %v2461 = vpack.c.bf16 %v2422, %v2419
        %v2462 = vpack.c.bf16 %v2423, %v2420
        %v2463 = vpack.c.bf16 %v2427, %v2424
        %v2464 = vpack.c.bf16 %v2428, %v2425
        %v2465 = vpack.c.bf16 %v2429, %v2426
        %2466 = vst [vmem:[#allocation2] sm:$0xff] %v2430
        %2467 = vst [vmem:[#allocation2 + $0x8] sm:$0xff] %v2431
        %2468 = vst [vmem:[#allocation2 + $0x10] sm:$0xff] %v2432
        %2469 = vst [vmem:[#allocation2 + $0x78] sm:$0xff] %v2433
        %2470 = vst [vmem:[#allocation2 + $0x80] sm:$0xff] %v2434
        %2471 = vst [vmem:[#allocation2 + $0x88] sm:$0xff] %v2435
        %2472 = vst [vmem:[#allocation2 + $0xf0] sm:$0xff] %v2436
        %2473 = vst [vmem:[#allocation2 + $0xf8] sm:$0xff] %v2437
        %2474 = vst [vmem:[#allocation2 + $0x100] sm:$0xff] %v2438
        %2475 = vst [vmem:[#allocation2 + $0x168] sm:$0xff] %v2439
        %2476 = vst [vmem:[#allocation2 + $0x170] sm:$0xff] %v2440
        %2477 = vst [vmem:[#allocation2 + $0x178] sm:$0xff] %v2441
        %2478 = vst [vmem:[#allocation2 + $0x1e0] sm:$0xff] %v2442
        %2479 = vst [vmem:[#allocation2 + $0x1e8] sm:$0xff] %v2443
        %2480 = vst [vmem:[#allocation2 + $0x1f0] sm:$0xff] %v2444
        %2481 = vst [vmem:[#allocation2 + $0x258] sm:$0xff] %v2445
        %2482 = vst [vmem:[#allocation2 + $0x260] sm:$0xff] %v2446
        %2483 = vst [vmem:[#allocation2 + $0x268] sm:$0xff] %v2447
        %2484 = vst [vmem:[#allocation2 + $0x2d0] sm:$0xff] %v2448
        %2485 = vst [vmem:[#allocation2 + $0x2d8] sm:$0xff] %v2449
        %2486 = vst [vmem:[#allocation2 + $0x2e0] sm:$0xff] %v2450
        %2487 = vst [vmem:[#allocation2 + $0x348] sm:$0xff] %v2451
        %2488 = vst [vmem:[#allocation2 + $0x350] sm:$0xff] %v2452
        %2489 = vst [vmem:[#allocation2 + $0x358] sm:$0xff] %v2453
        %2490 = vst [vmem:[#allocation2 + $0x18] sm:$0xff] %v2433
        %2491 = vst [vmem:[#allocation2 + $0x20] sm:$0xff] %v2434
        %2492 = vst [vmem:[#allocation2 + $0x28] sm:$0xff] %v2435
        %2493 = vst [vmem:[#allocation2 + $0x90] sm:$0xff] %v2436
        %2494 = vst [vmem:[#allocation2 + $0x98] sm:$0xff] %v2437
        %2495 = vst [vmem:[#allocation2 + $0xa0] sm:$0xff] %v2438
        %2496 = vst [vmem:[#allocation2 + $0x108] sm:$0xff] %v2439
        %2497 = vst [vmem:[#allocation2 + $0x110] sm:$0xff] %v2440
        %2498 = vst [vmem:[#allocation2 + $0x118] sm:$0xff] %v2441
        %2499 = vst [vmem:[#allocation2 + $0x180] sm:$0xff] %v2442
        %2500 = vst [vmem:[#allocation2 + $0x188] sm:$0xff] %v2443
        %2501 = vst [vmem:[#allocation2 + $0x190] sm:$0xff] %v2444
        %2502 = vst [vmem:[#allocation2 + $0x1f8] sm:$0xff] %v2445
        %2503 = vst [vmem:[#allocation2 + $0x200] sm:$0xff] %v2446
        %2504 = vst [vmem:[#allocation2 + $0x208] sm:$0xff] %v2447
        %2505 = vst [vmem:[#allocation2 + $0x270] sm:$0xff] %v2448
        %2506 = vst [vmem:[#allocation2 + $0x278] sm:$0xff] %v2449
        %2507 = vst [vmem:[#allocation2 + $0x280] sm:$0xff] %v2450
        %2508 = vst [vmem:[#allocation2 + $0x2e8] sm:$0xff] %v2451
        %2509 = vst [vmem:[#allocation2 + $0x2f0] sm:$0xff] %v2452
        %2510 = vst [vmem:[#allocation2 + $0x2f8] sm:$0xff] %v2453
        %2511 = vst [vmem:[#allocation2 + $0x360] sm:$0xff] %v2454
        %2512 = vst [vmem:[#allocation2 + $0x368] sm:$0xff] %v2455
        %2513 = vst [vmem:[#allocation2 + $0x370] sm:$0xff] %v2456
        %2514 = vst [vmem:[#allocation2 + $0x30] sm:$0xff] %v2436
        %2515 = vst [vmem:[#allocation2 + $0x38] sm:$0xff] %v2437
        %2516 = vst [vmem:[#allocation2 + $0x40] sm:$0xff] %v2438
        %2517 = vst [vmem:[#allocation2 + $0xa8] sm:$0xff] %v2439
        %2518 = vst [vmem:[#allocation2 + $0xb0] sm:$0xff] %v2440
        %2519 = vst [vmem:[#allocation2 + $0xb8] sm:$0xff] %v2441
        %2520 = vst [vmem:[#allocation2 + $0x120] sm:$0xff] %v2442
        %2521 = vst [vmem:[#allocation2 + $0x128] sm:$0xff] %v2443
        %2522 = vst [vmem:[#allocation2 + $0x130] sm:$0xff] %v2444
        %2523 = vst [vmem:[#allocation2 + $0x198] sm:$0xff] %v2445
        %2524 = vst [vmem:[#allocation2 + $0x1a0] sm:$0xff] %v2446
        %2525 = vst [vmem:[#allocation2 + $0x1a8] sm:$0xff] %v2447
        %2526 = vst [vmem:[#allocation2 + $0x210] sm:$0xff] %v2448
        %2527 = vst [vmem:[#allocation2 + $0x218] sm:$0xff] %v2449
        %2528 = vst [vmem:[#allocation2 + $0x220] sm:$0xff] %v2450
        %2529 = vst [vmem:[#allocation2 + $0x288] sm:$0xff] %v2451
        %2530 = vst [vmem:[#allocation2 + $0x290] sm:$0xff] %v2452
        %2531 = vst [vmem:[#allocation2 + $0x298] sm:$0xff] %v2453
        %2532 = vst [vmem:[#allocation2 + $0x300] sm:$0xff] %v2454
        %2533 = vst [vmem:[#allocation2 + $0x308] sm:$0xff] %v2455
        %2534 = vst [vmem:[#allocation2 + $0x310] sm:$0xff] %v2456
        %2535 = vst [vmem:[#allocation2 + $0x378] sm:$0xff] %v2457
        %2536 = vst [vmem:[#allocation2 + $0x380] sm:$0xff] %v2458
        %2537 = vst [vmem:[#allocation2 + $0x388] sm:$0xff] %v2459
        %2538 = vst [vmem:[#allocation2 + $0x48] sm:$0xff] %v2439
        %2539 = vst [vmem:[#allocation2 + $0x50] sm:$0xff] %v2440
        %2540 = vst [vmem:[#allocation2 + $0x58] sm:$0xff] %v2441
        %2541 = vst [vmem:[#allocation2 + $0xc0] sm:$0xff] %v2442
        %2542 = vst [vmem:[#allocation2 + $0xc8] sm:$0xff] %v2443
        %2543 = vst [vmem:[#allocation2 + $0xd0] sm:$0xff] %v2444
        %2544 = vst [vmem:[#allocation2 + $0x138] sm:$0xff] %v2445
        %2545 = vst [vmem:[#allocation2 + $0x140] sm:$0xff] %v2446
        %2546 = vst [vmem:[#allocation2 + $0x148] sm:$0xff] %v2447
        %2547 = vst [vmem:[#allocation2 + $0x1b0] sm:$0xff] %v2448
        %2548 = vst [vmem:[#allocation2 + $0x1b8] sm:$0xff] %v2449
        %2549 = vst [vmem:[#allocation2 + $0x1c0] sm:$0xff] %v2450
        %2550 = vst [vmem:[#allocation2 + $0x228] sm:$0xff] %v2451
        %2551 = vst [vmem:[#allocation2 + $0x230] sm:$0xff] %v2452
        %2552 = vst [vmem:[#allocation2 + $0x238] sm:$0xff] %v2453
        %2553 = vst [vmem:[#allocation2 + $0x2a0] sm:$0xff] %v2454
        %2554 = vst [vmem:[#allocation2 + $0x2a8] sm:$0xff] %v2455
        %2555 = vst [vmem:[#allocation2 + $0x2b0] sm:$0xff] %v2456
        %2556 = vst [vmem:[#allocation2 + $0x318] sm:$0xff] %v2457
        %2557 = vst [vmem:[#allocation2 + $0x320] sm:$0xff] %v2458
        %2558 = vst [vmem:[#allocation2 + $0x328] sm:$0xff] %v2459
        %2559 = vst [vmem:[#allocation2 + $0x390] sm:$0xff] %v2460
        %2560 = vst [vmem:[#allocation2 + $0x398] sm:$0xff] %v2461
        %2561 = vst [vmem:[#allocation2 + $0x3a0] sm:$0xff] %v2462
        %2562 = vst [vmem:[#allocation2 + $0x60] sm:$0xff] %v2442
        %2563 = vst [vmem:[#allocation2 + $0x68] sm:$0xff] %v2443
        %2564 = vst [vmem:[#allocation2 + $0x70] sm:$0xff] %v2444
        %2565 = vst [vmem:[#allocation2 + $0xd8] sm:$0xff] %v2445
        %2566 = vst [vmem:[#allocation2 + $0xe0] sm:$0xff] %v2446
        %2567 = vst [vmem:[#allocation2 + $0xe8] sm:$0xff] %v2447
        %2568 = vst [vmem:[#allocation2 + $0x150] sm:$0xff] %v2448
        %2569 = vst [vmem:[#allocation2 + $0x158] sm:$0xff] %v2449
        %2570 = vst [vmem:[#allocation2 + $0x160] sm:$0xff] %v2450
        %2571 = vst [vmem:[#allocation2 + $0x1c8] sm:$0xff] %v2451
        %2572 = vst [vmem:[#allocation2 + $0x1d0] sm:$0xff] %v2452
        %2573 = vst [vmem:[#allocation2 + $0x1d8] sm:$0xff] %v2453
        %2574 = vst [vmem:[#allocation2 + $0x240] sm:$0xff] %v2454
        %2575 = vst [vmem:[#allocation2 + $0x248] sm:$0xff] %v2455
        %2576 = vst [vmem:[#allocation2 + $0x250] sm:$0xff] %v2456
        %2577 = vst [vmem:[#allocation2 + $0x2b8] sm:$0xff] %v2457
        %2578 = vst [vmem:[#allocation2 + $0x2c0] sm:$0xff] %v2458
        %2579 = vst [vmem:[#allocation2 + $0x2c8] sm:$0xff] %v2459
        %2580 = vst [vmem:[#allocation2 + $0x330] sm:$0xff] %v2460
        %2581 = vst [vmem:[#allocation2 + $0x338] sm:$0xff] %v2461
        %2582 = vst [vmem:[#allocation2 + $0x340] sm:$0xff] %v2462
        %2583 = vst [vmem:[#allocation2 + $0x3a8] sm:$0xff] %v2463
        %2584 = vst [vmem:[#allocation2 + $0x3b0] sm:$0xff] %v2464
        %2585 = vst [vmem:[#allocation2 + $0x3b8] sm:$0xff] %v2465
        %v2586 = vld [vmem:[#allocation2] sm:$0xff]
        %v2587 = vld [vmem:[#allocation2 + $0x8] sm:$0xff]
        %v2588 = vld [vmem:[#allocation2 + $0x10] sm:$0xff]
        %v2589 = vld [vmem:[#allocation2 + $0x18] sm:$0xff]
        %v2590 = vld [vmem:[#allocation2 + $0x20] sm:$0xff]
        %v2591 = vld [vmem:[#allocation2 + $0x28] sm:$0xff]
        %v2592 = vld [vmem:[#allocation2 + $0x30] sm:$0xff]
        %v2593 = vld [vmem:[#allocation2 + $0x38] sm:$0xff]
        %v2594 = vld [vmem:[#allocation2 + $0x40] sm:$0xff]
        %v2595 = vld [vmem:[#allocation2 + $0x48] sm:$0xff]
        %v2596 = vld [vmem:[#allocation2 + $0x50] sm:$0xff]
        %v2597 = vld [vmem:[#allocation2 + $0x58] sm:$0xff]
        %v2598 = vld [vmem:[#allocation2 + $0x60] sm:$0xff]
        %v2599 = vld [vmem:[#allocation2 + $0x68] sm:$0xff]
        %v2600 = vld [vmem:[#allocation2 + $0x70] sm:$0xff]
        %v2601 = vld [vmem:[#allocation2 + $0x78] sm:$0xff]
        %v2602 = vld [vmem:[#allocation2 + $0x80] sm:$0xff]
        %v2603 = vld [vmem:[#allocation2 + $0x88] sm:$0xff]
        %v2604 = vld [vmem:[#allocation2 + $0x90] sm:$0xff]
        %v2605 = vld [vmem:[#allocation2 + $0x98] sm:$0xff]
        %v2606 = vld [vmem:[#allocation2 + $0xa0] sm:$0xff]
        %v2607 = vld [vmem:[#allocation2 + $0xa8] sm:$0xff]
        %v2608 = vld [vmem:[#allocation2 + $0xb0] sm:$0xff]
        %v2609 = vld [vmem:[#allocation2 + $0xb8] sm:$0xff]
        %v2610 = vld [vmem:[#allocation2 + $0xc0] sm:$0xff]
        %v2611 = vld [vmem:[#allocation2 + $0xc8] sm:$0xff]
        %v2612 = vld [vmem:[#allocation2 + $0xd0] sm:$0xff]
        %v2613 = vld [vmem:[#allocation2 + $0xd8] sm:$0xff]
        %v2614 = vld [vmem:[#allocation2 + $0xe0] sm:$0xff]
        %v2615 = vld [vmem:[#allocation2 + $0xe8] sm:$0xff]
        %v2616 = vld [vmem:[#allocation2 + $0xf0] sm:$0xff]
        %v2617 = vld [vmem:[#allocation2 + $0xf8] sm:$0xff]
        %v2618 = vld [vmem:[#allocation2 + $0x100] sm:$0xff]
        %v2619 = vld [vmem:[#allocation2 + $0x108] sm:$0xff]
        %v2620 = vld [vmem:[#allocation2 + $0x110] sm:$0xff]
        %v2621 = vld [vmem:[#allocation2 + $0x118] sm:$0xff]
        %v2622 = vld [vmem:[#allocation2 + $0x120] sm:$0xff]
        %v2623 = vld [vmem:[#allocation2 + $0x128] sm:$0xff]
        %v2624 = vld [vmem:[#allocation2 + $0x130] sm:$0xff]
        %v2625 = vld [vmem:[#allocation2 + $0x138] sm:$0xff]
        %v2626 = vld [vmem:[#allocation2 + $0x140] sm:$0xff]
        %v2627 = vld [vmem:[#allocation2 + $0x148] sm:$0xff]
        %v2628 = vld [vmem:[#allocation2 + $0x150] sm:$0xff]
        %v2629 = vld [vmem:[#allocation2 + $0x158] sm:$0xff]
        %v2630 = vld [vmem:[#allocation2 + $0x160] sm:$0xff]
        %v2631 = vld [vmem:[#allocation2 + $0x168] sm:$0xff]
        %v2632 = vld [vmem:[#allocation2 + $0x170] sm:$0xff]
        %v2633 = vld [vmem:[#allocation2 + $0x178] sm:$0xff]
        %v2634 = vld [vmem:[#allocation2 + $0x180] sm:$0xff]
        %v2635 = vld [vmem:[#allocation2 + $0x188] sm:$0xff]
        %v2636 = vld [vmem:[#allocation2 + $0x190] sm:$0xff]
        %v2637 = vld [vmem:[#allocation2 + $0x198] sm:$0xff]
        %v2638 = vld [vmem:[#allocation2 + $0x1a0] sm:$0xff]
        %v2639 = vld [vmem:[#allocation2 + $0x1a8] sm:$0xff]
        %v2640 = vld [vmem:[#allocation2 + $0x1b0] sm:$0xff]
        %v2641 = vld [vmem:[#allocation2 + $0x1b8] sm:$0xff]
        %v2642 = vld [vmem:[#allocation2 + $0x1c0] sm:$0xff]
        %v2643 = vld [vmem:[#allocation2 + $0x1c8] sm:$0xff]
        %v2644 = vld [vmem:[#allocation2 + $0x1d0] sm:$0xff]
        %v2645 = vld [vmem:[#allocation2 + $0x1d8] sm:$0xff]
        %v2646 = vld [vmem:[#allocation2 + $0x1e0] sm:$0xff]
        %v2647 = vld [vmem:[#allocation2 + $0x1e8] sm:$0xff]
        %v2648 = vld [vmem:[#allocation2 + $0x1f0] sm:$0xff]
        %v2649 = vld [vmem:[#allocation2 + $0x1f8] sm:$0xff]
        %v2650 = vld [vmem:[#allocation2 + $0x200] sm:$0xff]
        %v2651 = vld [vmem:[#allocation2 + $0x208] sm:$0xff]
        %v2652 = vld [vmem:[#allocation2 + $0x210] sm:$0xff]
        %v2653 = vld [vmem:[#allocation2 + $0x218] sm:$0xff]
        %v2654 = vld [vmem:[#allocation2 + $0x220] sm:$0xff]
        %v2655 = vld [vmem:[#allocation2 + $0x228] sm:$0xff]
        %v2656 = vld [vmem:[#allocation2 + $0x230] sm:$0xff]
        %v2657 = vld [vmem:[#allocation2 + $0x238] sm:$0xff]
        %v2658 = vld [vmem:[#allocation2 + $0x240] sm:$0xff]
        %v2659 = vld [vmem:[#allocation2 + $0x248] sm:$0xff]
        %v2660 = vld [vmem:[#allocation2 + $0x250] sm:$0xff]
        %v2661 = vld [vmem:[#allocation2 + $0x258] sm:$0xff]
        %v2662 = vld [vmem:[#allocation2 + $0x260] sm:$0xff]
        %v2663 = vld [vmem:[#allocation2 + $0x268] sm:$0xff]
        %v2664 = vld [vmem:[#allocation2 + $0x270] sm:$0xff]
        %v2665 = vld [vmem:[#allocation2 + $0x278] sm:$0xff]
        %v2666 = vld [vmem:[#allocation2 + $0x280] sm:$0xff]
        %v2667 = vld [vmem:[#allocation2 + $0x288] sm:$0xff]
        %v2668 = vld [vmem:[#allocation2 + $0x290] sm:$0xff]
        %v2669 = vld [vmem:[#allocation2 + $0x298] sm:$0xff]
        %v2670 = vld [vmem:[#allocation2 + $0x2a0] sm:$0xff]
        %v2671 = vld [vmem:[#allocation2 + $0x2a8] sm:$0xff]
        %v2672 = vld [vmem:[#allocation2 + $0x2b0] sm:$0xff]
        %v2673 = vld [vmem:[#allocation2 + $0x2b8] sm:$0xff]
        %v2674 = vld [vmem:[#allocation2 + $0x2c0] sm:$0xff]
        %v2675 = vld [vmem:[#allocation2 + $0x2c8] sm:$0xff]
        %v2676 = vld [vmem:[#allocation2 + $0x2d0] sm:$0xff]
        %v2677 = vld [vmem:[#allocation2 + $0x2d8] sm:$0xff]
        %v2678 = vld [vmem:[#allocation2 + $0x2e0] sm:$0xff]
        %v2679 = vld [vmem:[#allocation2 + $0x2e8] sm:$0xff]
        %v2680 = vld [vmem:[#allocation2 + $0x2f0] sm:$0xff]
        %v2681 = vld [vmem:[#allocation2 + $0x2f8] sm:$0xff]
        %v2682 = vld [vmem:[#allocation2 + $0x300] sm:$0xff]
        %v2683 = vld [vmem:[#allocation2 + $0x308] sm:$0xff]
        %v2684 = vld [vmem:[#allocation2 + $0x310] sm:$0xff]
        %v2685 = vld [vmem:[#allocation2 + $0x318] sm:$0xff]
        %v2686 = vld [vmem:[#allocation2 + $0x320] sm:$0xff]
        %v2687 = vld [vmem:[#allocation2 + $0x328] sm:$0xff]
        %v2688 = vld [vmem:[#allocation2 + $0x330] sm:$0xff]
        %v2689 = vld [vmem:[#allocation2 + $0x338] sm:$0xff]
        %v2690 = vld [vmem:[#allocation2 + $0x340] sm:$0xff]
        %v2691 = vld [vmem:[#allocation2 + $0x348] sm:$0xff]
        %v2692 = vld [vmem:[#allocation2 + $0x350] sm:$0xff]
        %v2693 = vld [vmem:[#allocation2 + $0x358] sm:$0xff]
        %v2694 = vld [vmem:[#allocation2 + $0x360] sm:$0xff]
        %v2695 = vld [vmem:[#allocation2 + $0x368] sm:$0xff]
        %v2696 = vld [vmem:[#allocation2 + $0x370] sm:$0xff]
        %v2697 = vld [vmem:[#allocation2 + $0x378] sm:$0xff]
        %v2698 = vld [vmem:[#allocation2 + $0x380] sm:$0xff]
        %v2699 = vld [vmem:[#allocation2 + $0x388] sm:$0xff]
        %v2700 = vld [vmem:[#allocation2 + $0x390] sm:$0xff]
        %v2701 = vld [vmem:[#allocation2 + $0x398] sm:$0xff]
        %v2702 = vld [vmem:[#allocation2 + $0x3a0] sm:$0xff]
        %v2703 = vld [vmem:[#allocation2 + $0x3a8] sm:$0xff]
        %v2704 = vld [vmem:[#allocation2 + $0x3b0] sm:$0xff]
        %v2705 = vld [vmem:[#allocation2 + $0x3b8] sm:$0xff]
        %v2706 = vld [vmem:[%s3] sm:$0xff]
        %v2707 = vld [vmem:[%s3 + $0x8] sm:$0xff]
        %v2708 = vld [vmem:[%s3 + $0x10] sm:$0xff]
        %v2709 = vld [vmem:[%s3 + $0x18] sm:$0xff]
        %v2710 = vld [vmem:[%s3 + $0x20] sm:$0xff]
        %v2711 = vld [vmem:[%s3 + $0x28] sm:$0xff]
        %v2712 = vld [vmem:[%s3 + $0x30] sm:$0xff]
        %v2713 = vld [vmem:[%s3 + $0x38] sm:$0xff]
        %v2714 = vld [vmem:[%s3 + $0x40] sm:$0xff]
        %v2715 = vld [vmem:[%s3 + $0x48] sm:$0xff]
        %v2716 = vld [vmem:[%s3 + $0x50] sm:$0xff]
        %v2717 = vld [vmem:[%s3 + $0x58] sm:$0xff]
        %v2718 = vld [vmem:[%s3 + $0x60] sm:$0xff]
        %v2719 = vld [vmem:[%s3 + $0x68] sm:$0xff]
        %v2720 = vld [vmem:[%s3 + $0x70] sm:$0xff]
        %v2721 = vld [vmem:[%s3 + $0x78] sm:$0xff]
        %v2722 = vld [vmem:[%s3 + $0x80] sm:$0xff]
        %v2723 = vld [vmem:[%s3 + $0x88] sm:$0xff]
        %v2724 = vld [vmem:[%s3 + $0x90] sm:$0xff]
        %v2725 = vld [vmem:[%s3 + $0x98] sm:$0xff]
        %v2726 = vld [vmem:[%s3 + $0xa0] sm:$0xff]
        %v2727 = vld [vmem:[%s3 + $0xa8] sm:$0xff]
        %v2728 = vld [vmem:[%s3 + $0xb0] sm:$0xff]
        %v2729 = vld [vmem:[%s3 + $0xb8] sm:$0xff]
        %v2730 = vld [vmem:[%s3 + $0xc0] sm:$0xff]
        %v2731 = vld [vmem:[%s3 + $0xc8] sm:$0xff]
        %v2732 = vld [vmem:[%s3 + $0xd0] sm:$0xff]
        %v2733 = vld [vmem:[%s3 + $0xd8] sm:$0xff]
        %v2734 = vld [vmem:[%s3 + $0xe0] sm:$0xff]
        %v2735 = vld [vmem:[%s3 + $0xe8] sm:$0xff]
        %v2736 = vld [vmem:[%s3 + $0xf0] sm:$0xff]
        %v2737 = vld [vmem:[%s3 + $0xf8] sm:$0xff]
        %v2738 = vld [vmem:[%s3 + $0x100] sm:$0xff]
        %v2739 = vld [vmem:[%s3 + $0x108] sm:$0xff]
        %v2740 = vld [vmem:[%s3 + $0x110] sm:$0xff]
        %v2741 = vld [vmem:[%s3 + $0x118] sm:$0xff]
        %v2742 = vld [vmem:[%s3 + $0x120] sm:$0xff]
        %v2743 = vld [vmem:[%s3 + $0x128] sm:$0xff]
        %v2744 = vld [vmem:[%s3 + $0x130] sm:$0xff]
        %v2745 = vld [vmem:[%s3 + $0x138] sm:$0xff]
        %v2746 = vld [vmem:[%s3 + $0x140] sm:$0xff]
        %v2747 = vld [vmem:[%s3 + $0x148] sm:$0xff]
        %v2748 = vld [vmem:[%s3 + $0x150] sm:$0xff]
        %v2749 = vld [vmem:[%s3 + $0x158] sm:$0xff]
        %v2750 = vld [vmem:[%s3 + $0x160] sm:$0xff]
        %v2751 = vld [vmem:[%s3 + $0x168] sm:$0xff]
        %v2752 = vld [vmem:[%s3 + $0x170] sm:$0xff]
        %v2753 = vld [vmem:[%s3 + $0x178] sm:$0xff]
        %v2754 = vld [vmem:[%s3 + $0x180] sm:$0xff]
        %v2755 = vld [vmem:[%s3 + $0x188] sm:$0xff]
        %v2756 = vld [vmem:[%s3 + $0x190] sm:$0xff]
        %v2757 = vld [vmem:[%s3 + $0x198] sm:$0xff]
        %v2758 = vld [vmem:[%s3 + $0x1a0] sm:$0xff]
        %v2759 = vld [vmem:[%s3 + $0x1a8] sm:$0xff]
        %v2760 = vld [vmem:[%s3 + $0x1b0] sm:$0xff]
        %v2761 = vld [vmem:[%s3 + $0x1b8] sm:$0xff]
        %v2762 = vld [vmem:[%s3 + $0x1c0] sm:$0xff]
        %v2763 = vld [vmem:[%s3 + $0x1c8] sm:$0xff]
        %v2764 = vld [vmem:[%s3 + $0x1d0] sm:$0xff]
        %v2765 = vld [vmem:[%s3 + $0x1d8] sm:$0xff]
        %v2766 = vld [vmem:[%s3 + $0x1e0] sm:$0xff]
        %v2767 = vld [vmem:[%s3 + $0x1e8] sm:$0xff]
        %v2768 = vld [vmem:[%s3 + $0x1f0] sm:$0xff]
        %v2769 = vld [vmem:[%s3 + $0x1f8] sm:$0xff]
        %v2770 = vld [vmem:[%s3 + $0x200] sm:$0xff]
        %v2771 = vld [vmem:[%s3 + $0x208] sm:$0xff]
        %v2772 = vld [vmem:[%s3 + $0x210] sm:$0xff]
        %v2773 = vld [vmem:[%s3 + $0x218] sm:$0xff]
        %v2774 = vld [vmem:[%s3 + $0x220] sm:$0xff]
        %v2775 = vld [vmem:[%s3 + $0x228] sm:$0xff]
        %v2776 = vld [vmem:[%s3 + $0x230] sm:$0xff]
        %v2777 = vld [vmem:[%s3 + $0x238] sm:$0xff]
        %v2778 = vld [vmem:[%s3 + $0x240] sm:$0xff]
        %v2779 = vld [vmem:[%s3 + $0x248] sm:$0xff]
        %v2780 = vld [vmem:[%s3 + $0x250] sm:$0xff]
        %v2781 = vld [vmem:[%s3 + $0x258] sm:$0xff]
        %v2782 = vld [vmem:[%s3 + $0x260] sm:$0xff]
        %v2783 = vld [vmem:[%s3 + $0x268] sm:$0xff]
        %v2784 = vld [vmem:[%s3 + $0x270] sm:$0xff]
        %v2785 = vld [vmem:[%s3 + $0x278] sm:$0xff]
        %v2786 = vld [vmem:[%s3 + $0x280] sm:$0xff]
        %v2787 = vld [vmem:[%s3 + $0x288] sm:$0xff]
        %v2788 = vld [vmem:[%s3 + $0x290] sm:$0xff]
        %v2789 = vld [vmem:[%s3 + $0x298] sm:$0xff]
        %v2790 = vld [vmem:[%s3 + $0x2a0] sm:$0xff]
        %v2791 = vld [vmem:[%s3 + $0x2a8] sm:$0xff]
        %v2792 = vld [vmem:[%s3 + $0x2b0] sm:$0xff]
        %v2793 = vld [vmem:[%s3 + $0x2b8] sm:$0xff]
        %v2794 = vld [vmem:[%s3 + $0x2c0] sm:$0xff]
        %v2795 = vld [vmem:[%s3 + $0x2c8] sm:$0xff]
        %v2796 = vld [vmem:[%s3 + $0x2d0] sm:$0xff]
        %v2797 = vld [vmem:[%s3 + $0x2d8] sm:$0xff]
        %v2798 = vld [vmem:[%s3 + $0x2e0] sm:$0xff]
        %v2799 = vld [vmem:[%s3 + $0x2e8] sm:$0xff]
        %v2800 = vld [vmem:[%s3 + $0x2f0] sm:$0xff]
        %v2801 = vld [vmem:[%s3 + $0x2f8] sm:$0xff]
        %v2802 = vld [vmem:[%s3 + $0x300] sm:$0xff]
        %v2803 = vld [vmem:[%s3 + $0x308] sm:$0xff]
        %v2804 = vld [vmem:[%s3 + $0x310] sm:$0xff]
        %v2805 = vld [vmem:[%s3 + $0x318] sm:$0xff]
        %v2806 = vld [vmem:[%s3 + $0x320] sm:$0xff]
        %v2807 = vld [vmem:[%s3 + $0x328] sm:$0xff]
        %v2808 = vld [vmem:[%s3 + $0x330] sm:$0xff]
        %v2809 = vld [vmem:[%s3 + $0x338] sm:$0xff]
        %v2810 = vld [vmem:[%s3 + $0x340] sm:$0xff]
        %v2811 = vld [vmem:[%s3 + $0x348] sm:$0xff]
        %v2812 = vld [vmem:[%s3 + $0x350] sm:$0xff]
        %v2813 = vld [vmem:[%s3 + $0x358] sm:$0xff]
        %v2814 = vld [vmem:[%s3 + $0x360] sm:$0xff]
        %v2815 = vld [vmem:[%s3 + $0x368] sm:$0xff]
        %v2816 = vld [vmem:[%s3 + $0x370] sm:$0xff]
        %v2817 = vld [vmem:[%s3 + $0x378] sm:$0xff]
        %v2818 = vld [vmem:[%s3 + $0x380] sm:$0xff]
        %v2819 = vld [vmem:[%s3 + $0x388] sm:$0xff]
        %v2820 = vld [vmem:[%s3 + $0x390] sm:$0xff]
        %v2821 = vld [vmem:[%s3 + $0x398] sm:$0xff]
        %v2822 = vld [vmem:[%s3 + $0x3a0] sm:$0xff]
        %v2823 = vld [vmem:[%s3 + $0x3a8] sm:$0xff]
        %v2824 = vld [vmem:[%s3 + $0x3b0] sm:$0xff]
        %v2825 = vld [vmem:[%s3 + $0x3b8] sm:$0xff]
        %v2826 = vld [vmem:[%s3 + $0x3c0] sm:$0xff]
        %v2827 = vld [vmem:[%s3 + $0x3c8] sm:$0xff]
        %v2828 = vld [vmem:[%s3 + $0x3d0] sm:$0xff]
        %v2829 = vld [vmem:[%s3 + $0x3d8] sm:$0xff]
        %v2830 = vld [vmem:[%s3 + $0x3e0] sm:$0xff]
        %v2831 = vld [vmem:[%s3 + $0x3e8] sm:$0xff]
        %v2832 = vld [vmem:[%s3 + $0x3f0] sm:$0xff]
        %v2833 = vld [vmem:[%s3 + $0x3f8] sm:$0xff]
        %v2834 = vld [vmem:[%s3 + $0x400] sm:$0xff]
        %v2835 = vld [vmem:[%s3 + $0x408] sm:$0xff]
        %v2836 = vld [vmem:[%s3 + $0x410] sm:$0xff]
        %v2837 = vld [vmem:[%s3 + $0x418] sm:$0xff]
        %v2838 = vld [vmem:[%s3 + $0x420] sm:$0xff]
        %v2839 = vld [vmem:[%s3 + $0x428] sm:$0xff]
        %v2840 = vld [vmem:[%s3 + $0x430] sm:$0xff]
        %v2841 = vld [vmem:[%s3 + $0x438] sm:$0xff]
        %v2842 = vld [vmem:[%s3 + $0x440] sm:$0xff]
        %v2843 = vld [vmem:[%s3 + $0x448] sm:$0xff]
        %v2844 = vld [vmem:[%s3 + $0x450] sm:$0xff]
        %v2845 = vld [vmem:[%s3 + $0x458] sm:$0xff]
        %v2846 = vld [vmem:[%s3 + $0x460] sm:$0xff]
        %v2847 = vld [vmem:[%s3 + $0x468] sm:$0xff]
        %v2848 = vld [vmem:[%s3 + $0x470] sm:$0xff]
        %v2849 = vld [vmem:[%s3 + $0x478] sm:$0xff]
        %v2850 = vld [vmem:[%s3 + $0x480] sm:$0xff]
        %v2851 = vld [vmem:[%s3 + $0x488] sm:$0xff]
        %v2852 = vld [vmem:[%s3 + $0x490] sm:$0xff]
        %v2853 = vld [vmem:[%s3 + $0x498] sm:$0xff]
        %v2854 = vld [vmem:[%s3 + $0x4a0] sm:$0xff]
        %v2855 = vld [vmem:[%s3 + $0x4a8] sm:$0xff]
        %v2856 = vld [vmem:[%s3 + $0x4b0] sm:$0xff]
        %v2857 = vld [vmem:[%s3 + $0x4b8] sm:$0xff]
        %v2858 = vld [vmem:[%s3 + $0x4c0] sm:$0xff]
        %v2859 = vld [vmem:[%s3 + $0x4c8] sm:$0xff]
        %v2860 = vld [vmem:[%s3 + $0x4d0] sm:$0xff]
        %v2861 = vld [vmem:[%s3 + $0x4d8] sm:$0xff]
        %v2862 = vld [vmem:[%s3 + $0x4e0] sm:$0xff]
        %v2863 = vld [vmem:[%s3 + $0x4e8] sm:$0xff]
        %v2864 = vld [vmem:[%s3 + $0x4f0] sm:$0xff]
        %v2865 = vld [vmem:[%s3 + $0x4f8] sm:$0xff]
        %v2866 = vld [vmem:[%s3 + $0x500] sm:$0xff]
        %v2867 = vld [vmem:[%s3 + $0x508] sm:$0xff]
        %v2868 = vld [vmem:[%s3 + $0x510] sm:$0xff]
        %v2869 = vld [vmem:[%s3 + $0x518] sm:$0xff]
        %v2870 = vld [vmem:[%s3 + $0x520] sm:$0xff]
        %v2871 = vld [vmem:[%s3 + $0x528] sm:$0xff]
        %v2872 = vld [vmem:[%s3 + $0x530] sm:$0xff]
        %v2873 = vld [vmem:[%s3 + $0x538] sm:$0xff]
        %v2874 = vld [vmem:[%s3 + $0x540] sm:$0xff]
        %v2875 = vld [vmem:[%s3 + $0x548] sm:$0xff]
        %v2876 = vld [vmem:[%s3 + $0x550] sm:$0xff]
        %v2877 = vld [vmem:[%s3 + $0x558] sm:$0xff]
        %v2878 = vld [vmem:[%s3 + $0x560] sm:$0xff]
        %v2879 = vld [vmem:[%s3 + $0x568] sm:$0xff]
        %v2880 = vld [vmem:[%s3 + $0x570] sm:$0xff]
        %v2881 = vld [vmem:[%s3 + $0x578] sm:$0xff]
        %v2882 = vld [vmem:[%s3 + $0x580] sm:$0xff]
        %v2883 = vld [vmem:[%s3 + $0x588] sm:$0xff]
        %v2884 = vld [vmem:[%s3 + $0x590] sm:$0xff]
        %v2885 = vld [vmem:[%s3 + $0x598] sm:$0xff]
        %v2886 = vld [vmem:[%s3 + $0x5a0] sm:$0xff]
        %v2887 = vld [vmem:[%s3 + $0x5a8] sm:$0xff]
        %v2888 = vld [vmem:[%s3 + $0x5b0] sm:$0xff]
        %v2889 = vld [vmem:[%s3 + $0x5b8] sm:$0xff]
        %v2890 = vld [vmem:[%s3 + $0x5c0] sm:$0xff]
        %v2891 = vld [vmem:[%s3 + $0x5c8] sm:$0xff]
        %v2892 = vld [vmem:[%s3 + $0x5d0] sm:$0xff]
        %v2893 = vld [vmem:[%s3 + $0x5d8] sm:$0xff]
        %v2894 = vld [vmem:[%s3 + $0x5e0] sm:$0xff]
        %v2895 = vld [vmem:[%s3 + $0x5e8] sm:$0xff]
        %v2896 = vld [vmem:[%s3 + $0x5f0] sm:$0xff]
        %v2897 = vld [vmem:[%s3 + $0x5f8] sm:$0xff]
        %v2898 = vld [vmem:[%s3 + $0x600] sm:$0xff]
        %v2899 = vld [vmem:[%s3 + $0x608] sm:$0xff]
        %v2900 = vld [vmem:[%s3 + $0x610] sm:$0xff]
        %v2901 = vld [vmem:[%s3 + $0x618] sm:$0xff]
        %v2902 = vld [vmem:[%s3 + $0x620] sm:$0xff]
        %v2903 = vld [vmem:[%s3 + $0x628] sm:$0xff]
        %v2904 = vld [vmem:[%s3 + $0x630] sm:$0xff]
        %v2905 = vld [vmem:[%s3 + $0x638] sm:$0xff]
        %v2906 = vld [vmem:[%s3 + $0x640] sm:$0xff]
        %v2907 = vld [vmem:[%s3 + $0x648] sm:$0xff]
        %v2908 = vld [vmem:[%s3 + $0x650] sm:$0xff]
        %v2909 = vld [vmem:[%s3 + $0x658] sm:$0xff]
        %v2910 = vld [vmem:[%s3 + $0x660] sm:$0xff]
        %v2911 = vld [vmem:[%s3 + $0x668] sm:$0xff]
        %v2912 = vld [vmem:[%s3 + $0x670] sm:$0xff]
        %v2913 = vld [vmem:[%s3 + $0x678] sm:$0xff]
        %v2914 = vld [vmem:[%s3 + $0x680] sm:$0xff]
        %v2915 = vld [vmem:[%s3 + $0x688] sm:$0xff]
        %v2916 = vld [vmem:[%s3 + $0x690] sm:$0xff]
        %v2917 = vld [vmem:[%s3 + $0x698] sm:$0xff]
        %v2918 = vld [vmem:[%s3 + $0x6a0] sm:$0xff]
        %v2919 = vld [vmem:[%s3 + $0x6a8] sm:$0xff]
        %v2920 = vld [vmem:[%s3 + $0x6b0] sm:$0xff]
        %v2921 = vld [vmem:[%s3 + $0x6b8] sm:$0xff]
        %v2922 = vld [vmem:[%s3 + $0x6c0] sm:$0xff]
        %v2923 = vld [vmem:[%s3 + $0x6c8] sm:$0xff]
        %v2924 = vld [vmem:[%s3 + $0x6d0] sm:$0xff]
        %v2925 = vld [vmem:[%s3 + $0x6d8] sm:$0xff]
        %v2926 = vld [vmem:[%s3 + $0x6e0] sm:$0xff]
        %v2927 = vld [vmem:[%s3 + $0x6e8] sm:$0xff]
        %v2928 = vld [vmem:[%s3 + $0x6f0] sm:$0xff]
        %v2929 = vld [vmem:[%s3 + $0x6f8] sm:$0xff]
        %v2930 = vld [vmem:[%s3 + $0x700] sm:$0xff]
        %v2931 = vld [vmem:[%s3 + $0x708] sm:$0xff]
        %v2932 = vld [vmem:[%s3 + $0x710] sm:$0xff]
        %v2933 = vld [vmem:[%s3 + $0x718] sm:$0xff]
        %v2934 = vld [vmem:[%s3 + $0x720] sm:$0xff]
        %v2935 = vld [vmem:[%s3 + $0x728] sm:$0xff]
        %v2936 = vld [vmem:[%s3 + $0x730] sm:$0xff]
        %v2937 = vld [vmem:[%s3 + $0x738] sm:$0xff]
        %v2938 = vld [vmem:[%s3 + $0x740] sm:$0xff]
        %v2939 = vld [vmem:[%s3 + $0x748] sm:$0xff]
        %v2940 = vld [vmem:[%s3 + $0x750] sm:$0xff]
        %v2941 = vld [vmem:[%s3 + $0x758] sm:$0xff]
        %v2942 = vld [vmem:[%s3 + $0x760] sm:$0xff]
        %v2943 = vld [vmem:[%s3 + $0x768] sm:$0xff]
        %v2944 = vld [vmem:[%s3 + $0x770] sm:$0xff]
        %v2945 = vld [vmem:[%s3 + $0x778] sm:$0xff]
        %v2946 = vld [vmem:[%s3 + $0x780] sm:$0xff]
        %v2947 = vld [vmem:[%s3 + $0x788] sm:$0xff]
        %v2948 = vld [vmem:[%s3 + $0x790] sm:$0xff]
        %v2949 = vld [vmem:[%s3 + $0x798] sm:$0xff]
        %v2950 = vld [vmem:[%s3 + $0x7a0] sm:$0xff]
        %v2951 = vld [vmem:[%s3 + $0x7a8] sm:$0xff]
        %v2952 = vld [vmem:[%s3 + $0x7b0] sm:$0xff]
        %v2953 = vld [vmem:[%s3 + $0x7b8] sm:$0xff]
        %v2954 = vld [vmem:[%s3 + $0x7c0] sm:$0xff]
        %v2955 = vld [vmem:[%s3 + $0x7c8] sm:$0xff]
        %v2956 = vld [vmem:[%s3 + $0x7d0] sm:$0xff]
        %v2957 = vld [vmem:[%s3 + $0x7d8] sm:$0xff]
        %v2958 = vld [vmem:[%s3 + $0x7e0] sm:$0xff]
        %v2959 = vld [vmem:[%s3 + $0x7e8] sm:$0xff]
        %v2960 = vld [vmem:[%s3 + $0x7f0] sm:$0xff]
        %v2961 = vld [vmem:[%s3 + $0x7f8] sm:$0xff]
        %v2962 = vld [vmem:[%s3 + $0x800] sm:$0xff]
        %v2963 = vld [vmem:[%s3 + $0x808] sm:$0xff]
        %v2964 = vld [vmem:[%s3 + $0x810] sm:$0xff]
        %v2965 = vld [vmem:[%s3 + $0x818] sm:$0xff]
        %v2966 = vld [vmem:[%s3 + $0x820] sm:$0xff]
        %v2967 = vld [vmem:[%s3 + $0x828] sm:$0xff]
        %v2968 = vld [vmem:[%s3 + $0x830] sm:$0xff]
        %v2969 = vld [vmem:[%s3 + $0x838] sm:$0xff]
        %v2970 = vld [vmem:[%s3 + $0x840] sm:$0xff]
        %v2971 = vld [vmem:[%s3 + $0x848] sm:$0xff]
        %v2972 = vld [vmem:[%s3 + $0x850] sm:$0xff]
        %v2973 = vld [vmem:[%s3 + $0x858] sm:$0xff]
        %v2974 = vld [vmem:[%s3 + $0x860] sm:$0xff]
        %v2975 = vld [vmem:[%s3 + $0x868] sm:$0xff]
        %v2976 = vld [vmem:[%s3 + $0x870] sm:$0xff]
        %v2977 = vld [vmem:[%s3 + $0x878] sm:$0xff]
        %v2978 = vld [vmem:[%s3 + $0x880] sm:$0xff]
        %v2979 = vld [vmem:[%s3 + $0x888] sm:$0xff]
        %v2980 = vld [vmem:[%s3 + $0x890] sm:$0xff]
        %v2981 = vld [vmem:[%s3 + $0x898] sm:$0xff]
        %v2982 = vld [vmem:[%s3 + $0x8a0] sm:$0xff]
        %v2983 = vld [vmem:[%s3 + $0x8a8] sm:$0xff]
        %v2984 = vld [vmem:[%s3 + $0x8b0] sm:$0xff]
        %v2985 = vld [vmem:[%s3 + $0x8b8] sm:$0xff]
        %v2986 = vld [vmem:[%s3 + $0x8c0] sm:$0xff]
        %v2987 = vld [vmem:[%s3 + $0x8c8] sm:$0xff]
        %v2988 = vld [vmem:[%s3 + $0x8d0] sm:$0xff]
        %v2989 = vld [vmem:[%s3 + $0x8d8] sm:$0xff]
        %v2990 = vld [vmem:[%s3 + $0x8e0] sm:$0xff]
        %v2991 = vld [vmem:[%s3 + $0x8e8] sm:$0xff]
        %v2992 = vld [vmem:[%s3 + $0x8f0] sm:$0xff]
        %v2993 = vld [vmem:[%s3 + $0x8f8] sm:$0xff]
        %v2994 = vld [vmem:[%s3 + $0x900] sm:$0xff]
        %v2995 = vld [vmem:[%s3 + $0x908] sm:$0xff]
        %v2996 = vld [vmem:[%s3 + $0x910] sm:$0xff]
        %v2997 = vld [vmem:[%s3 + $0x918] sm:$0xff]
        %v2998 = vld [vmem:[%s3 + $0x920] sm:$0xff]
        %v2999 = vld [vmem:[%s3 + $0x928] sm:$0xff]
        %v3000 = vld [vmem:[%s3 + $0x930] sm:$0xff]
        %v3001 = vld [vmem:[%s3 + $0x938] sm:$0xff]
        %v3002 = vld [vmem:[%s3 + $0x940] sm:$0xff]
        %v3003 = vld [vmem:[%s3 + $0x948] sm:$0xff]
        %v3004 = vld [vmem:[%s3 + $0x950] sm:$0xff]
        %v3005 = vld [vmem:[%s3 + $0x958] sm:$0xff]
        %v3006 = vld [vmem:[%s3 + $0x960] sm:$0xff]
        %v3007 = vld [vmem:[%s3 + $0x968] sm:$0xff]
        %v3008 = vld [vmem:[%s3 + $0x970] sm:$0xff]
        %v3009 = vld [vmem:[%s3 + $0x978] sm:$0xff]
        %v3010 = vld [vmem:[%s3 + $0x980] sm:$0xff]
        %v3011 = vld [vmem:[%s3 + $0x988] sm:$0xff]
        %v3012 = vld [vmem:[%s3 + $0x990] sm:$0xff]
        %v3013 = vld [vmem:[%s3 + $0x998] sm:$0xff]
        %v3014 = vld [vmem:[%s3 + $0x9a0] sm:$0xff]
        %v3015 = vld [vmem:[%s3 + $0x9a8] sm:$0xff]
        %v3016 = vld [vmem:[%s3 + $0x9b0] sm:$0xff]
        %v3017 = vld [vmem:[%s3 + $0x9b8] sm:$0xff]
        %v3018 = vld [vmem:[%s3 + $0x9c0] sm:$0xff]
        %v3019 = vld [vmem:[%s3 + $0x9c8] sm:$0xff]
        %v3020 = vld [vmem:[%s3 + $0x9d0] sm:$0xff]
        %v3021 = vld [vmem:[%s3 + $0x9d8] sm:$0xff]
        %v3022 = vld [vmem:[%s3 + $0x9e0] sm:$0xff]
        %v3023 = vld [vmem:[%s3 + $0x9e8] sm:$0xff]
        %v3024 = vld [vmem:[%s3 + $0x9f0] sm:$0xff]
        %v3025 = vld [vmem:[%s3 + $0x9f8] sm:$0xff]
        %v3026 = vld [vmem:[%s3 + $0xa00] sm:$0xff]
        %v3027 = vld [vmem:[%s3 + $0xa08] sm:$0xff]
        %v3028 = vld [vmem:[%s3 + $0xa10] sm:$0xff]
        %v3029 = vld [vmem:[%s3 + $0xa18] sm:$0xff]
        %v3030 = vld [vmem:[%s3 + $0xa20] sm:$0xff]
        %v3031 = vld [vmem:[%s3 + $0xa28] sm:$0xff]
        %v3032 = vld [vmem:[%s3 + $0xa30] sm:$0xff]
        %v3033 = vld [vmem:[%s3 + $0xa38] sm:$0xff]
        %v3034 = vld [vmem:[%s3 + $0xa40] sm:$0xff]
        %v3035 = vld [vmem:[%s3 + $0xa48] sm:$0xff]
        %v3036 = vld [vmem:[%s3 + $0xa50] sm:$0xff]
        %v3037 = vld [vmem:[%s3 + $0xa58] sm:$0xff]
        %v3038 = vld [vmem:[%s3 + $0xa60] sm:$0xff]
        %v3039 = vld [vmem:[%s3 + $0xa68] sm:$0xff]
        %v3040 = vld [vmem:[%s3 + $0xa70] sm:$0xff]
        %v3041 = vld [vmem:[%s3 + $0xa78] sm:$0xff]
        %v3042 = vld [vmem:[%s3 + $0xa80] sm:$0xff]
        %v3043 = vld [vmem:[%s3 + $0xa88] sm:$0xff]
        %v3044 = vld [vmem:[%s3 + $0xa90] sm:$0xff]
        %v3045 = vld [vmem:[%s3 + $0xa98] sm:$0xff]
        %v3046 = vld [vmem:[%s3 + $0xaa0] sm:$0xff]
        %v3047 = vld [vmem:[%s3 + $0xaa8] sm:$0xff]
        %v3048 = vld [vmem:[%s3 + $0xab0] sm:$0xff]
        %v3049 = vld [vmem:[%s3 + $0xab8] sm:$0xff]
        %v3050 = vld [vmem:[%s3 + $0xac0] sm:$0xff]
        %v3051 = vld [vmem:[%s3 + $0xac8] sm:$0xff]
        %v3052 = vld [vmem:[%s3 + $0xad0] sm:$0xff]
        %v3053 = vld [vmem:[%s3 + $0xad8] sm:$0xff]
        %v3054 = vld [vmem:[%s3 + $0xae0] sm:$0xff]
        %v3055 = vld [vmem:[%s3 + $0xae8] sm:$0xff]
        %v3056 = vld [vmem:[%s3 + $0xaf0] sm:$0xff]
        %v3057 = vld [vmem:[%s3 + $0xaf8] sm:$0xff]
        %v3058 = vld [vmem:[%s3 + $0xb00] sm:$0xff]
        %v3059 = vld [vmem:[%s3 + $0xb08] sm:$0xff]
        %v3060 = vld [vmem:[%s3 + $0xb10] sm:$0xff]
        %v3061 = vld [vmem:[%s3 + $0xb18] sm:$0xff]
        %v3062 = vld [vmem:[%s3 + $0xb20] sm:$0xff]
        %v3063 = vld [vmem:[%s3 + $0xb28] sm:$0xff]
        %v3064 = vld [vmem:[%s3 + $0xb30] sm:$0xff]
        %v3065 = vld [vmem:[%s3 + $0xb38] sm:$0xff]
        %v3066 = vld [vmem:[%s3 + $0xb40] sm:$0xff]
        %v3067 = vld [vmem:[%s3 + $0xb48] sm:$0xff]
        %v3068 = vld [vmem:[%s3 + $0xb50] sm:$0xff]
        %v3069 = vld [vmem:[%s3 + $0xb58] sm:$0xff]
        %v3070 = vld [vmem:[%s3 + $0xb60] sm:$0xff]
        %v3071 = vld [vmem:[%s3 + $0xb68] sm:$0xff]
        %v3072 = vld [vmem:[%s3 + $0xb70] sm:$0xff]
        %v3073 = vld [vmem:[%s3 + $0xb78] sm:$0xff]
        %v3074 = vld [vmem:[%s3 + $0xb80] sm:$0xff]
        %v3075 = vld [vmem:[%s3 + $0xb88] sm:$0xff]
        %v3076 = vld [vmem:[%s3 + $0xb90] sm:$0xff]
        %v3077 = vld [vmem:[%s3 + $0xb98] sm:$0xff]
        %v3078 = vld [vmem:[%s3 + $0xba0] sm:$0xff]
        %v3079 = vld [vmem:[%s3 + $0xba8] sm:$0xff]
        %v3080 = vld [vmem:[%s3 + $0xbb0] sm:$0xff]
        %v3081 = vld [vmem:[%s3 + $0xbb8] sm:$0xff]
        %v3082 = vld [vmem:[%s3 + $0xbc0] sm:$0xff]
        %v3083 = vld [vmem:[%s3 + $0xbc8] sm:$0xff]
        %v3084 = vld [vmem:[%s3 + $0xbd0] sm:$0xff]
        %v3085 = vld [vmem:[%s3 + $0xbd8] sm:$0xff]
        %v3086 = vld [vmem:[%s3 + $0xbe0] sm:$0xff]
        %v3087 = vld [vmem:[%s3 + $0xbe8] sm:$0xff]
        %v3088 = vld [vmem:[%s3 + $0xbf0] sm:$0xff]
        %v3089 = vld [vmem:[%s3 + $0xbf8] sm:$0xff]
        %v3090 = vld [vmem:[%s3 + $0xc00] sm:$0xff]
        %v3091 = vld [vmem:[%s3 + $0xc08] sm:$0xff]
        %v3092 = vld [vmem:[%s3 + $0xc10] sm:$0xff]
        %v3093 = vld [vmem:[%s3 + $0xc18] sm:$0xff]
        %v3094 = vld [vmem:[%s3 + $0xc20] sm:$0xff]
        %v3095 = vld [vmem:[%s3 + $0xc28] sm:$0xff]
        %v3096 = vld [vmem:[%s3 + $0xc30] sm:$0xff]
        %v3097 = vld [vmem:[%s3 + $0xc38] sm:$0xff]
        %v3098 = vld [vmem:[%s3 + $0xc40] sm:$0xff]
        %v3099 = vld [vmem:[%s3 + $0xc48] sm:$0xff]
        %v3100 = vld [vmem:[%s3 + $0xc50] sm:$0xff]
        %v3101 = vld [vmem:[%s3 + $0xc58] sm:$0xff]
        %v3102 = vld [vmem:[%s3 + $0xc60] sm:$0xff]
        %v3103 = vld [vmem:[%s3 + $0xc68] sm:$0xff]
        %v3104 = vld [vmem:[%s3 + $0xc70] sm:$0xff]
        %v3105 = vld [vmem:[%s3 + $0xc78] sm:$0xff]
        %v3106 = vld [vmem:[%s3 + $0xc80] sm:$0xff]
        %v3107 = vld [vmem:[%s3 + $0xc88] sm:$0xff]
        %v3108 = vld [vmem:[%s3 + $0xc90] sm:$0xff]
        %v3109 = vld [vmem:[%s3 + $0xc98] sm:$0xff]
        %v3110 = vld [vmem:[%s3 + $0xca0] sm:$0xff]
        %v3111 = vld [vmem:[%s3 + $0xca8] sm:$0xff]
        %v3112 = vld [vmem:[%s3 + $0xcb0] sm:$0xff]
        %v3113 = vld [vmem:[%s3 + $0xcb8] sm:$0xff]
        %v3114 = vld [vmem:[%s3 + $0xcc0] sm:$0xff]
        %v3115 = vld [vmem:[%s3 + $0xcc8] sm:$0xff]
        %v3116 = vld [vmem:[%s3 + $0xcd0] sm:$0xff]
        %v3117 = vld [vmem:[%s3 + $0xcd8] sm:$0xff]
        %v3118 = vld [vmem:[%s3 + $0xce0] sm:$0xff]
        %v3119 = vld [vmem:[%s3 + $0xce8] sm:$0xff]
        %v3120 = vld [vmem:[%s3 + $0xcf0] sm:$0xff]
        %v3121 = vld [vmem:[%s3 + $0xcf8] sm:$0xff]
        %v3122 = vld [vmem:[%s3 + $0xd00] sm:$0xff]
        %v3123 = vld [vmem:[%s3 + $0xd08] sm:$0xff]
        %v3124 = vld [vmem:[%s3 + $0xd10] sm:$0xff]
        %v3125 = vld [vmem:[%s3 + $0xd18] sm:$0xff]
        %v3126 = vld [vmem:[%s3 + $0xd20] sm:$0xff]
        %v3127 = vld [vmem:[%s3 + $0xd28] sm:$0xff]
        %v3128 = vld [vmem:[%s3 + $0xd30] sm:$0xff]
        %v3129 = vld [vmem:[%s3 + $0xd38] sm:$0xff]
        %v3130 = vld [vmem:[%s3 + $0xd40] sm:$0xff]
        %v3131 = vld [vmem:[%s3 + $0xd48] sm:$0xff]
        %v3132 = vld [vmem:[%s3 + $0xd50] sm:$0xff]
        %v3133 = vld [vmem:[%s3 + $0xd58] sm:$0xff]
        %v3134 = vld [vmem:[%s3 + $0xd60] sm:$0xff]
        %v3135 = vld [vmem:[%s3 + $0xd68] sm:$0xff]
        %v3136 = vld [vmem:[%s3 + $0xd70] sm:$0xff]
        %v3137 = vld [vmem:[%s3 + $0xd78] sm:$0xff]
        %v3138 = vld [vmem:[%s3 + $0xd80] sm:$0xff]
        %v3139 = vld [vmem:[%s3 + $0xd88] sm:$0xff]
        %v3140 = vld [vmem:[%s3 + $0xd90] sm:$0xff]
        %v3141 = vld [vmem:[%s3 + $0xd98] sm:$0xff]
        %v3142 = vld [vmem:[%s3 + $0xda0] sm:$0xff]
        %v3143 = vld [vmem:[%s3 + $0xda8] sm:$0xff]
        %v3144 = vld [vmem:[%s3 + $0xdb0] sm:$0xff]
        %v3145 = vld [vmem:[%s3 + $0xdb8] sm:$0xff]
        %v3146 = vld [vmem:[%s3 + $0xdc0] sm:$0xff]
        %v3147 = vld [vmem:[%s3 + $0xdc8] sm:$0xff]
        %v3148 = vld [vmem:[%s3 + $0xdd0] sm:$0xff]
        %v3149 = vld [vmem:[%s3 + $0xdd8] sm:$0xff]
        %v3150 = vld [vmem:[%s3 + $0xde0] sm:$0xff]
        %v3151 = vld [vmem:[%s3 + $0xde8] sm:$0xff]
        %v3152 = vld [vmem:[%s3 + $0xdf0] sm:$0xff]
        %v3153 = vld [vmem:[%s3 + $0xdf8] sm:$0xff]
        %v3154 = vld [vmem:[%s3 + $0xe00] sm:$0xff]
        %v3155 = vld [vmem:[%s3 + $0xe08] sm:$0xff]
        %v3156 = vld [vmem:[%s3 + $0xe10] sm:$0xff]
        %v3157 = vld [vmem:[%s3 + $0xe18] sm:$0xff]
        %v3158 = vld [vmem:[%s3 + $0xe20] sm:$0xff]
        %v3159 = vld [vmem:[%s3 + $0xe28] sm:$0xff]
        %v3160 = vld [vmem:[%s3 + $0xe30] sm:$0xff]
        %v3161 = vld [vmem:[%s3 + $0xe38] sm:$0xff]
        %v3162 = vld [vmem:[%s3 + $0xe40] sm:$0xff]
        %v3163 = vld [vmem:[%s3 + $0xe48] sm:$0xff]
        %v3164 = vld [vmem:[%s3 + $0xe50] sm:$0xff]
        %v3165 = vld [vmem:[%s3 + $0xe58] sm:$0xff]
        %v3166 = vld [vmem:[%s3 + $0xe60] sm:$0xff]
        %v3167 = vld [vmem:[%s3 + $0xe68] sm:$0xff]
        %v3168 = vld [vmem:[%s3 + $0xe70] sm:$0xff]
        %v3169 = vld [vmem:[%s3 + $0xe78] sm:$0xff]
        %v3170 = vld [vmem:[%s3 + $0xe80] sm:$0xff]
        %v3171 = vld [vmem:[%s3 + $0xe88] sm:$0xff]
        %v3172 = vld [vmem:[%s3 + $0xe90] sm:$0xff]
        %v3173 = vld [vmem:[%s3 + $0xe98] sm:$0xff]
        %v3174 = vld [vmem:[%s3 + $0xea0] sm:$0xff]
        %v3175 = vld [vmem:[%s3 + $0xea8] sm:$0xff]
        %v3176 = vld [vmem:[%s3 + $0xeb0] sm:$0xff]
        %v3177 = vld [vmem:[%s3 + $0xeb8] sm:$0xff]
        %v3178 = vld [vmem:[%s3 + $0xec0] sm:$0xff]
        %v3179 = vld [vmem:[%s3 + $0xec8] sm:$0xff]
        %v3180 = vld [vmem:[%s3 + $0xed0] sm:$0xff]
        %v3181 = vld [vmem:[%s3 + $0xed8] sm:$0xff]
        %v3182 = vld [vmem:[%s3 + $0xee0] sm:$0xff]
        %v3183 = vld [vmem:[%s3 + $0xee8] sm:$0xff]
        %v3184 = vld [vmem:[%s3 + $0xef0] sm:$0xff]
        %v3185 = vld [vmem:[%s3 + $0xef8] sm:$0xff]
        %v3666 = vunpack.c.l.b16 %v2706
        %v3667 = vunpack.c.h.b16 %v2706
        %v3668 = vunpack.c.l.b16 %v2707
        %v3669 = vunpack.c.h.b16 %v2707
        %v3670 = vunpack.c.l.b16 %v2708
        %v3671 = vunpack.c.h.b16 %v2708
        %v3672 = vunpack.c.l.b16 %v2709
        %v3673 = vunpack.c.h.b16 %v2709
        %v3674 = vunpack.c.l.b16 %v2710
        %v3675 = vunpack.c.h.b16 %v2710
        %v3676 = vunpack.c.l.b16 %v2711
        %v3677 = vunpack.c.h.b16 %v2711
        %v3678 = vunpack.c.l.b16 %v2712
        %v3679 = vunpack.c.h.b16 %v2712
        %v3680 = vunpack.c.l.b16 %v2713
        %v3681 = vunpack.c.h.b16 %v2713
        %v3682 = vunpack.c.l.b16 %v2714
        %v3683 = vunpack.c.h.b16 %v2714
        %v3684 = vunpack.c.l.b16 %v2715
        %v3685 = vunpack.c.h.b16 %v2715
        %v3686 = vunpack.c.l.b16 %v2716
        %v3687 = vunpack.c.h.b16 %v2716
        %v3688 = vunpack.c.l.b16 %v2717
        %v3689 = vunpack.c.h.b16 %v2717
        %v3690 = vunpack.c.l.b16 %v2718
        %v3691 = vunpack.c.h.b16 %v2718
        %v3692 = vunpack.c.l.b16 %v2719
        %v3693 = vunpack.c.h.b16 %v2719
        %v3694 = vunpack.c.l.b16 %v2720
        %v3695 = vunpack.c.h.b16 %v2720
        %v3696 = vunpack.c.l.b16 %v2721
        %v3697 = vunpack.c.h.b16 %v2721
        %v3698 = vunpack.c.l.b16 %v2722
        %v3699 = vunpack.c.h.b16 %v2722
        %v3700 = vunpack.c.l.b16 %v2723
        %v3701 = vunpack.c.h.b16 %v2723
        %v3702 = vunpack.c.l.b16 %v2724
        %v3703 = vunpack.c.h.b16 %v2724
        %v3704 = vunpack.c.l.b16 %v2725
        %v3705 = vunpack.c.h.b16 %v2725
        %v3706 = vunpack.c.l.b16 %v2726
        %v3707 = vunpack.c.h.b16 %v2726
        %v3708 = vunpack.c.l.b16 %v2727
        %v3709 = vunpack.c.h.b16 %v2727
        %v3710 = vunpack.c.l.b16 %v2728
        %v3711 = vunpack.c.h.b16 %v2728
        %v3712 = vunpack.c.l.b16 %v2729
        %v3713 = vunpack.c.h.b16 %v2729
        %v3714 = vunpack.c.l.b16 %v2730
        %v3715 = vunpack.c.h.b16 %v2730
        %v3716 = vunpack.c.l.b16 %v2731
        %v3717 = vunpack.c.h.b16 %v2731
        %v3718 = vunpack.c.l.b16 %v2732
        %v3719 = vunpack.c.h.b16 %v2732
        %v3720 = vunpack.c.l.b16 %v2733
        %v3721 = vunpack.c.h.b16 %v2733
        %v3722 = vunpack.c.l.b16 %v2734
        %v3723 = vunpack.c.h.b16 %v2734
        %v3724 = vunpack.c.l.b16 %v2735
        %v3725 = vunpack.c.h.b16 %v2735
        %v3726 = vunpack.c.l.b16 %v2736
        %v3727 = vunpack.c.h.b16 %v2736
        %v3728 = vunpack.c.l.b16 %v2737
        %v3729 = vunpack.c.h.b16 %v2737
        %v3730 = vunpack.c.l.b16 %v2738
        %v3731 = vunpack.c.h.b16 %v2738
        %v3732 = vunpack.c.l.b16 %v2739
        %v3733 = vunpack.c.h.b16 %v2739
        %v3734 = vunpack.c.l.b16 %v2740
        %v3735 = vunpack.c.h.b16 %v2740
        %v3736 = vunpack.c.l.b16 %v2741
        %v3737 = vunpack.c.h.b16 %v2741
        %v3738 = vunpack.c.l.b16 %v2742
        %v3739 = vunpack.c.h.b16 %v2742
        %v3740 = vunpack.c.l.b16 %v2743
        %v3741 = vunpack.c.h.b16 %v2743
        %v3742 = vunpack.c.l.b16 %v2744
        %v3743 = vunpack.c.h.b16 %v2744
        %v3744 = vunpack.c.l.b16 %v2745
        %v3745 = vunpack.c.h.b16 %v2745
        %v3746 = vunpack.c.l.b16 %v2746
        %v3747 = vunpack.c.h.b16 %v2746
        %v3748 = vunpack.c.l.b16 %v2747
        %v3749 = vunpack.c.h.b16 %v2747
        %v3750 = vunpack.c.l.b16 %v2748
        %v3751 = vunpack.c.h.b16 %v2748
        %v3752 = vunpack.c.l.b16 %v2749
        %v3753 = vunpack.c.h.b16 %v2749
        %v3754 = vunpack.c.l.b16 %v2750
        %v3755 = vunpack.c.h.b16 %v2750
        %v3756 = vunpack.c.l.b16 %v2751
        %v3757 = vunpack.c.h.b16 %v2751
        %v3758 = vunpack.c.l.b16 %v2752
        %v3759 = vunpack.c.h.b16 %v2752
        %v3760 = vunpack.c.l.b16 %v2753
        %v3761 = vunpack.c.h.b16 %v2753
        %v3762 = vunpack.c.l.b16 %v2754
        %v3763 = vunpack.c.h.b16 %v2754
        %v3764 = vunpack.c.l.b16 %v2755
        %v3765 = vunpack.c.h.b16 %v2755
        %v3766 = vunpack.c.l.b16 %v2756
        %v3767 = vunpack.c.h.b16 %v2756
        %v3768 = vunpack.c.l.b16 %v2757
        %v3769 = vunpack.c.h.b16 %v2757
        %v3770 = vunpack.c.l.b16 %v2758
        %v3771 = vunpack.c.h.b16 %v2758
        %v3772 = vunpack.c.l.b16 %v2759
        %v3773 = vunpack.c.h.b16 %v2759
        %v3774 = vunpack.c.l.b16 %v2760
        %v3775 = vunpack.c.h.b16 %v2760
        %v3776 = vunpack.c.l.b16 %v2761
        %v3777 = vunpack.c.h.b16 %v2761
        %v3778 = vunpack.c.l.b16 %v2762
        %v3779 = vunpack.c.h.b16 %v2762
        %v3780 = vunpack.c.l.b16 %v2763
        %v3781 = vunpack.c.h.b16 %v2763
        %v3782 = vunpack.c.l.b16 %v2764
        %v3783 = vunpack.c.h.b16 %v2764
        %v3784 = vunpack.c.l.b16 %v2765
        %v3785 = vunpack.c.h.b16 %v2765
        %v3786 = vunpack.c.l.b16 %v2766
        %v3787 = vunpack.c.h.b16 %v2766
        %v3788 = vunpack.c.l.b16 %v2767
        %v3789 = vunpack.c.h.b16 %v2767
        %v3790 = vunpack.c.l.b16 %v2768
        %v3791 = vunpack.c.h.b16 %v2768
        %v3792 = vunpack.c.l.b16 %v2769
        %v3793 = vunpack.c.h.b16 %v2769
        %v3794 = vunpack.c.l.b16 %v2770
        %v3795 = vunpack.c.h.b16 %v2770
        %v3796 = vunpack.c.l.b16 %v2771
        %v3797 = vunpack.c.h.b16 %v2771
        %v3798 = vunpack.c.l.b16 %v2772
        %v3799 = vunpack.c.h.b16 %v2772
        %v3800 = vunpack.c.l.b16 %v2773
        %v3801 = vunpack.c.h.b16 %v2773
        %v3802 = vunpack.c.l.b16 %v2774
        %v3803 = vunpack.c.h.b16 %v2774
        %v3804 = vunpack.c.l.b16 %v2775
        %v3805 = vunpack.c.h.b16 %v2775
        %v3806 = vunpack.c.l.b16 %v2776
        %v3807 = vunpack.c.h.b16 %v2776
        %v3808 = vunpack.c.l.b16 %v2777
        %v3809 = vunpack.c.h.b16 %v2777
        %v3810 = vunpack.c.l.b16 %v2778
        %v3811 = vunpack.c.h.b16 %v2778
        %v3812 = vunpack.c.l.b16 %v2779
        %v3813 = vunpack.c.h.b16 %v2779
        %v3814 = vunpack.c.l.b16 %v2780
        %v3815 = vunpack.c.h.b16 %v2780
        %v3816 = vunpack.c.l.b16 %v2781
        %v3817 = vunpack.c.h.b16 %v2781
        %v3818 = vunpack.c.l.b16 %v2782
        %v3819 = vunpack.c.h.b16 %v2782
        %v3820 = vunpack.c.l.b16 %v2783
        %v3821 = vunpack.c.h.b16 %v2783
        %v3822 = vunpack.c.l.b16 %v2784
        %v3823 = vunpack.c.h.b16 %v2784
        %v3824 = vunpack.c.l.b16 %v2785
        %v3825 = vunpack.c.h.b16 %v2785
        %v3826 = vunpack.c.l.b16 %v2786
        %v3827 = vunpack.c.h.b16 %v2786
        %v3828 = vunpack.c.l.b16 %v2787
        %v3829 = vunpack.c.h.b16 %v2787
        %v3830 = vunpack.c.l.b16 %v2788
        %v3831 = vunpack.c.h.b16 %v2788
        %v3832 = vunpack.c.l.b16 %v2789
        %v3833 = vunpack.c.h.b16 %v2789
        %v3834 = vunpack.c.l.b16 %v2790
        %v3835 = vunpack.c.h.b16 %v2790
        %v3836 = vunpack.c.l.b16 %v2791
        %v3837 = vunpack.c.h.b16 %v2791
        %v3838 = vunpack.c.l.b16 %v2792
        %v3839 = vunpack.c.h.b16 %v2792
        %v3840 = vunpack.c.l.b16 %v2793
        %v3841 = vunpack.c.h.b16 %v2793
        %v3842 = vunpack.c.l.b16 %v2794
        %v3843 = vunpack.c.h.b16 %v2794
        %v3844 = vunpack.c.l.b16 %v2795
        %v3845 = vunpack.c.h.b16 %v2795
        %v3846 = vunpack.c.l.b16 %v2796
        %v3847 = vunpack.c.h.b16 %v2796
        %v3848 = vunpack.c.l.b16 %v2797
        %v3849 = vunpack.c.h.b16 %v2797
        %v3850 = vunpack.c.l.b16 %v2798
        %v3851 = vunpack.c.h.b16 %v2798
        %v3852 = vunpack.c.l.b16 %v2799
        %v3853 = vunpack.c.h.b16 %v2799
        %v3854 = vunpack.c.l.b16 %v2800
        %v3855 = vunpack.c.h.b16 %v2800
        %v3856 = vunpack.c.l.b16 %v2801
        %v3857 = vunpack.c.h.b16 %v2801
        %v3858 = vunpack.c.l.b16 %v2802
        %v3859 = vunpack.c.h.b16 %v2802
        %v3860 = vunpack.c.l.b16 %v2803
        %v3861 = vunpack.c.h.b16 %v2803
        %v3862 = vunpack.c.l.b16 %v2804
        %v3863 = vunpack.c.h.b16 %v2804
        %v3864 = vunpack.c.l.b16 %v2805
        %v3865 = vunpack.c.h.b16 %v2805
        %v3866 = vunpack.c.l.b16 %v2806
        %v3867 = vunpack.c.h.b16 %v2806
        %v3868 = vunpack.c.l.b16 %v2807
        %v3869 = vunpack.c.h.b16 %v2807
        %v3870 = vunpack.c.l.b16 %v2808
        %v3871 = vunpack.c.h.b16 %v2808
        %v3872 = vunpack.c.l.b16 %v2809
        %v3873 = vunpack.c.h.b16 %v2809
        %v3874 = vunpack.c.l.b16 %v2810
        %v3875 = vunpack.c.h.b16 %v2810
        %v3876 = vunpack.c.l.b16 %v2811
        %v3877 = vunpack.c.h.b16 %v2811
        %v3878 = vunpack.c.l.b16 %v2812
        %v3879 = vunpack.c.h.b16 %v2812
        %v3880 = vunpack.c.l.b16 %v2813
        %v3881 = vunpack.c.h.b16 %v2813
        %v3882 = vunpack.c.l.b16 %v2814
        %v3883 = vunpack.c.h.b16 %v2814
        %v3884 = vunpack.c.l.b16 %v2815
        %v3885 = vunpack.c.h.b16 %v2815
        %v3886 = vunpack.c.l.b16 %v2816
        %v3887 = vunpack.c.h.b16 %v2816
        %v3888 = vunpack.c.l.b16 %v2817
        %v3889 = vunpack.c.h.b16 %v2817
        %v3890 = vunpack.c.l.b16 %v2818
        %v3891 = vunpack.c.h.b16 %v2818
        %v3892 = vunpack.c.l.b16 %v2819
        %v3893 = vunpack.c.h.b16 %v2819
        %v3894 = vunpack.c.l.b16 %v2820
        %v3895 = vunpack.c.h.b16 %v2820
        %v3896 = vunpack.c.l.b16 %v2821
        %v3897 = vunpack.c.h.b16 %v2821
        %v3898 = vunpack.c.l.b16 %v2822
        %v3899 = vunpack.c.h.b16 %v2822
        %v3900 = vunpack.c.l.b16 %v2823
        %v3901 = vunpack.c.h.b16 %v2823
        %v3902 = vunpack.c.l.b16 %v2824
        %v3903 = vunpack.c.h.b16 %v2824
        %v3904 = vunpack.c.l.b16 %v2825
        %v3905 = vunpack.c.h.b16 %v2825
        %v3906 = vunpack.c.l.b16 %v2826
        %v3907 = vunpack.c.h.b16 %v2826
        %v3908 = vunpack.c.l.b16 %v2827
        %v3909 = vunpack.c.h.b16 %v2827
        %v3910 = vunpack.c.l.b16 %v2828
        %v3911 = vunpack.c.h.b16 %v2828
        %v3912 = vunpack.c.l.b16 %v2829
        %v3913 = vunpack.c.h.b16 %v2829
        %v3914 = vunpack.c.l.b16 %v2830
        %v3915 = vunpack.c.h.b16 %v2830
        %v3916 = vunpack.c.l.b16 %v2831
        %v3917 = vunpack.c.h.b16 %v2831
        %v3918 = vunpack.c.l.b16 %v2832
        %v3919 = vunpack.c.h.b16 %v2832
        %v3920 = vunpack.c.l.b16 %v2833
        %v3921 = vunpack.c.h.b16 %v2833
        %v3922 = vunpack.c.l.b16 %v2834
        %v3923 = vunpack.c.h.b16 %v2834
        %v3924 = vunpack.c.l.b16 %v2835
        %v3925 = vunpack.c.h.b16 %v2835
        %v3926 = vunpack.c.l.b16 %v2836
        %v3927 = vunpack.c.h.b16 %v2836
        %v3928 = vunpack.c.l.b16 %v2837
        %v3929 = vunpack.c.h.b16 %v2837
        %v3930 = vunpack.c.l.b16 %v2838
        %v3931 = vunpack.c.h.b16 %v2838
        %v3932 = vunpack.c.l.b16 %v2839
        %v3933 = vunpack.c.h.b16 %v2839
        %v3934 = vunpack.c.l.b16 %v2840
        %v3935 = vunpack.c.h.b16 %v2840
        %v3936 = vunpack.c.l.b16 %v2841
        %v3937 = vunpack.c.h.b16 %v2841
        %v3938 = vunpack.c.l.b16 %v2842
        %v3939 = vunpack.c.h.b16 %v2842
        %v3940 = vunpack.c.l.b16 %v2843
        %v3941 = vunpack.c.h.b16 %v2843
        %v3942 = vunpack.c.l.b16 %v2844
        %v3943 = vunpack.c.h.b16 %v2844
        %v3944 = vunpack.c.l.b16 %v2845
        %v3945 = vunpack.c.h.b16 %v2845
        %v3946 = vunpack.c.l.b16 %v2846
        %v3947 = vunpack.c.h.b16 %v2846
        %v3948 = vunpack.c.l.b16 %v2847
        %v3949 = vunpack.c.h.b16 %v2847
        %v3950 = vunpack.c.l.b16 %v2848
        %v3951 = vunpack.c.h.b16 %v2848
        %v3952 = vunpack.c.l.b16 %v2849
        %v3953 = vunpack.c.h.b16 %v2849
        %v3954 = vunpack.c.l.b16 %v2850
        %v3955 = vunpack.c.h.b16 %v2850
        %v3956 = vunpack.c.l.b16 %v2851
        %v3957 = vunpack.c.h.b16 %v2851
        %v3958 = vunpack.c.l.b16 %v2852
        %v3959 = vunpack.c.h.b16 %v2852
        %v3960 = vunpack.c.l.b16 %v2853
        %v3961 = vunpack.c.h.b16 %v2853
        %v3962 = vunpack.c.l.b16 %v2854
        %v3963 = vunpack.c.h.b16 %v2854
        %v3964 = vunpack.c.l.b16 %v2855
        %v3965 = vunpack.c.h.b16 %v2855
        %v3966 = vunpack.c.l.b16 %v2856
        %v3967 = vunpack.c.h.b16 %v2856
        %v3968 = vunpack.c.l.b16 %v2857
        %v3969 = vunpack.c.h.b16 %v2857
        %v3970 = vunpack.c.l.b16 %v2858
        %v3971 = vunpack.c.h.b16 %v2858
        %v3972 = vunpack.c.l.b16 %v2859
        %v3973 = vunpack.c.h.b16 %v2859
        %v3974 = vunpack.c.l.b16 %v2860
        %v3975 = vunpack.c.h.b16 %v2860
        %v3976 = vunpack.c.l.b16 %v2861
        %v3977 = vunpack.c.h.b16 %v2861
        %v3978 = vunpack.c.l.b16 %v2862
        %v3979 = vunpack.c.h.b16 %v2862
        %v3980 = vunpack.c.l.b16 %v2863
        %v3981 = vunpack.c.h.b16 %v2863
        %v3982 = vunpack.c.l.b16 %v2864
        %v3983 = vunpack.c.h.b16 %v2864
        %v3984 = vunpack.c.l.b16 %v2865
        %v3985 = vunpack.c.h.b16 %v2865
        %v3986 = vunpack.c.l.b16 %v2866
        %v3987 = vunpack.c.h.b16 %v2866
        %v3988 = vunpack.c.l.b16 %v2867
        %v3989 = vunpack.c.h.b16 %v2867
        %v3990 = vunpack.c.l.b16 %v2868
        %v3991 = vunpack.c.h.b16 %v2868
        %v3992 = vunpack.c.l.b16 %v2869
        %v3993 = vunpack.c.h.b16 %v2869
        %v3994 = vunpack.c.l.b16 %v2870
        %v3995 = vunpack.c.h.b16 %v2870
        %v3996 = vunpack.c.l.b16 %v2871
        %v3997 = vunpack.c.h.b16 %v2871
        %v3998 = vunpack.c.l.b16 %v2872
        %v3999 = vunpack.c.h.b16 %v2872
        %v4000 = vunpack.c.l.b16 %v2873
        %v4001 = vunpack.c.h.b16 %v2873
        %v4002 = vunpack.c.l.b16 %v2874
        %v4003 = vunpack.c.h.b16 %v2874
        %v4004 = vunpack.c.l.b16 %v2875
        %v4005 = vunpack.c.h.b16 %v2875
        %v4006 = vunpack.c.l.b16 %v2876
        %v4007 = vunpack.c.h.b16 %v2876
        %v4008 = vunpack.c.l.b16 %v2877
        %v4009 = vunpack.c.h.b16 %v2877
        %v4010 = vunpack.c.l.b16 %v2878
        %v4011 = vunpack.c.h.b16 %v2878
        %v4012 = vunpack.c.l.b16 %v2879
        %v4013 = vunpack.c.h.b16 %v2879
        %v4014 = vunpack.c.l.b16 %v2880
        %v4015 = vunpack.c.h.b16 %v2880
        %v4016 = vunpack.c.l.b16 %v2881
        %v4017 = vunpack.c.h.b16 %v2881
        %v4018 = vunpack.c.l.b16 %v2882
        %v4019 = vunpack.c.h.b16 %v2882
        %v4020 = vunpack.c.l.b16 %v2883
        %v4021 = vunpack.c.h.b16 %v2883
        %v4022 = vunpack.c.l.b16 %v2884
        %v4023 = vunpack.c.h.b16 %v2884
        %v4024 = vunpack.c.l.b16 %v2885
        %v4025 = vunpack.c.h.b16 %v2885
        %v4026 = vunpack.c.l.b16 %v2886
        %v4027 = vunpack.c.h.b16 %v2886
        %v4028 = vunpack.c.l.b16 %v2887
        %v4029 = vunpack.c.h.b16 %v2887
        %v4030 = vunpack.c.l.b16 %v2888
        %v4031 = vunpack.c.h.b16 %v2888
        %v4032 = vunpack.c.l.b16 %v2889
        %v4033 = vunpack.c.h.b16 %v2889
        %v4034 = vunpack.c.l.b16 %v2890
        %v4035 = vunpack.c.h.b16 %v2890
        %v4036 = vunpack.c.l.b16 %v2891
        %v4037 = vunpack.c.h.b16 %v2891
        %v4038 = vunpack.c.l.b16 %v2892
        %v4039 = vunpack.c.h.b16 %v2892
        %v4040 = vunpack.c.l.b16 %v2893
        %v4041 = vunpack.c.h.b16 %v2893
        %v4042 = vunpack.c.l.b16 %v2894
        %v4043 = vunpack.c.h.b16 %v2894
        %v4044 = vunpack.c.l.b16 %v2895
        %v4045 = vunpack.c.h.b16 %v2895
        %v4046 = vunpack.c.l.b16 %v2896
        %v4047 = vunpack.c.h.b16 %v2896
        %v4048 = vunpack.c.l.b16 %v2897
        %v4049 = vunpack.c.h.b16 %v2897
        %v4050 = vunpack.c.l.b16 %v2898
        %v4051 = vunpack.c.h.b16 %v2898
        %v4052 = vunpack.c.l.b16 %v2899
        %v4053 = vunpack.c.h.b16 %v2899
        %v4054 = vunpack.c.l.b16 %v2900
        %v4055 = vunpack.c.h.b16 %v2900
        %v4056 = vunpack.c.l.b16 %v2901
        %v4057 = vunpack.c.h.b16 %v2901
        %v4058 = vunpack.c.l.b16 %v2902
        %v4059 = vunpack.c.h.b16 %v2902
        %v4060 = vunpack.c.l.b16 %v2903
        %v4061 = vunpack.c.h.b16 %v2903
        %v4062 = vunpack.c.l.b16 %v2904
        %v4063 = vunpack.c.h.b16 %v2904
        %v4064 = vunpack.c.l.b16 %v2905
        %v4065 = vunpack.c.h.b16 %v2905
        %v4066 = vunpack.c.l.b16 %v2906
        %v4067 = vunpack.c.h.b16 %v2906
        %v4068 = vunpack.c.l.b16 %v2907
        %v4069 = vunpack.c.h.b16 %v2907
        %v4070 = vunpack.c.l.b16 %v2908
        %v4071 = vunpack.c.h.b16 %v2908
        %v4072 = vunpack.c.l.b16 %v2909
        %v4073 = vunpack.c.h.b16 %v2909
        %v4074 = vunpack.c.l.b16 %v2910
        %v4075 = vunpack.c.h.b16 %v2910
        %v4076 = vunpack.c.l.b16 %v2911
        %v4077 = vunpack.c.h.b16 %v2911
        %v4078 = vunpack.c.l.b16 %v2912
        %v4079 = vunpack.c.h.b16 %v2912
        %v4080 = vunpack.c.l.b16 %v2913
        %v4081 = vunpack.c.h.b16 %v2913
        %v4082 = vunpack.c.l.b16 %v2914
        %v4083 = vunpack.c.h.b16 %v2914
        %v4084 = vunpack.c.l.b16 %v2915
        %v4085 = vunpack.c.h.b16 %v2915
        %v4086 = vunpack.c.l.b16 %v2916
        %v4087 = vunpack.c.h.b16 %v2916
        %v4088 = vunpack.c.l.b16 %v2917
        %v4089 = vunpack.c.h.b16 %v2917
        %v4090 = vunpack.c.l.b16 %v2918
        %v4091 = vunpack.c.h.b16 %v2918
        %v4092 = vunpack.c.l.b16 %v2919
        %v4093 = vunpack.c.h.b16 %v2919
        %v4094 = vunpack.c.l.b16 %v2920
        %v4095 = vunpack.c.h.b16 %v2920
        %v4096 = vunpack.c.l.b16 %v2921
        %v4097 = vunpack.c.h.b16 %v2921
        %v4098 = vunpack.c.l.b16 %v2922
        %v4099 = vunpack.c.h.b16 %v2922
        %v4100 = vunpack.c.l.b16 %v2923
        %v4101 = vunpack.c.h.b16 %v2923
        %v4102 = vunpack.c.l.b16 %v2924
        %v4103 = vunpack.c.h.b16 %v2924
        %v4104 = vunpack.c.l.b16 %v2925
        %v4105 = vunpack.c.h.b16 %v2925
        %v4106 = vunpack.c.l.b16 %v2926
        %v4107 = vunpack.c.h.b16 %v2926
        %v4108 = vunpack.c.l.b16 %v2927
        %v4109 = vunpack.c.h.b16 %v2927
        %v4110 = vunpack.c.l.b16 %v2928
        %v4111 = vunpack.c.h.b16 %v2928
        %v4112 = vunpack.c.l.b16 %v2929
        %v4113 = vunpack.c.h.b16 %v2929
        %v4114 = vunpack.c.l.b16 %v2930
        %v4115 = vunpack.c.h.b16 %v2930
        %v4116 = vunpack.c.l.b16 %v2931
        %v4117 = vunpack.c.h.b16 %v2931
        %v4118 = vunpack.c.l.b16 %v2932
        %v4119 = vunpack.c.h.b16 %v2932
        %v4120 = vunpack.c.l.b16 %v2933
        %v4121 = vunpack.c.h.b16 %v2933
        %v4122 = vunpack.c.l.b16 %v2934
        %v4123 = vunpack.c.h.b16 %v2934
        %v4124 = vunpack.c.l.b16 %v2935
        %v4125 = vunpack.c.h.b16 %v2935
        %v4126 = vunpack.c.l.b16 %v2936
        %v4127 = vunpack.c.h.b16 %v2936
        %v4128 = vunpack.c.l.b16 %v2937
        %v4129 = vunpack.c.h.b16 %v2937
        %v4130 = vunpack.c.l.b16 %v2938
        %v4131 = vunpack.c.h.b16 %v2938
        %v4132 = vunpack.c.l.b16 %v2939
        %v4133 = vunpack.c.h.b16 %v2939
        %v4134 = vunpack.c.l.b16 %v2940
        %v4135 = vunpack.c.h.b16 %v2940
        %v4136 = vunpack.c.l.b16 %v2941
        %v4137 = vunpack.c.h.b16 %v2941
        %v4138 = vunpack.c.l.b16 %v2942
        %v4139 = vunpack.c.h.b16 %v2942
        %v4140 = vunpack.c.l.b16 %v2943
        %v4141 = vunpack.c.h.b16 %v2943
        %v4142 = vunpack.c.l.b16 %v2944
        %v4143 = vunpack.c.h.b16 %v2944
        %v4144 = vunpack.c.l.b16 %v2945
        %v4145 = vunpack.c.h.b16 %v2945
        %v4146 = vunpack.c.l.b16 %v2946
        %v4147 = vunpack.c.h.b16 %v2946
        %v4148 = vunpack.c.l.b16 %v2947
        %v4149 = vunpack.c.h.b16 %v2947
        %v4150 = vunpack.c.l.b16 %v2948
        %v4151 = vunpack.c.h.b16 %v2948
        %v4152 = vunpack.c.l.b16 %v2949
        %v4153 = vunpack.c.h.b16 %v2949
        %v4154 = vunpack.c.l.b16 %v2950
        %v4155 = vunpack.c.h.b16 %v2950
        %v4156 = vunpack.c.l.b16 %v2951
        %v4157 = vunpack.c.h.b16 %v2951
        %v4158 = vunpack.c.l.b16 %v2952
        %v4159 = vunpack.c.h.b16 %v2952
        %v4160 = vunpack.c.l.b16 %v2953
        %v4161 = vunpack.c.h.b16 %v2953
        %v4162 = vunpack.c.l.b16 %v2954
        %v4163 = vunpack.c.h.b16 %v2954
        %v4164 = vunpack.c.l.b16 %v2955
        %v4165 = vunpack.c.h.b16 %v2955
        %v4166 = vunpack.c.l.b16 %v2956
        %v4167 = vunpack.c.h.b16 %v2956
        %v4168 = vunpack.c.l.b16 %v2957
        %v4169 = vunpack.c.h.b16 %v2957
        %v4170 = vunpack.c.l.b16 %v2958
        %v4171 = vunpack.c.h.b16 %v2958
        %v4172 = vunpack.c.l.b16 %v2959
        %v4173 = vunpack.c.h.b16 %v2959
        %v4174 = vunpack.c.l.b16 %v2960
        %v4175 = vunpack.c.h.b16 %v2960
        %v4176 = vunpack.c.l.b16 %v2961
        %v4177 = vunpack.c.h.b16 %v2961
        %v4178 = vunpack.c.l.b16 %v2962
        %v4179 = vunpack.c.h.b16 %v2962
        %v4180 = vunpack.c.l.b16 %v2963
        %v4181 = vunpack.c.h.b16 %v2963
        %v4182 = vunpack.c.l.b16 %v2964
        %v4183 = vunpack.c.h.b16 %v2964
        %v4184 = vunpack.c.l.b16 %v2965
        %v4185 = vunpack.c.h.b16 %v2965
        %v4186 = vunpack.c.l.b16 %v2966
        %v4187 = vunpack.c.h.b16 %v2966
        %v4188 = vunpack.c.l.b16 %v2967
        %v4189 = vunpack.c.h.b16 %v2967
        %v4190 = vunpack.c.l.b16 %v2968
        %v4191 = vunpack.c.h.b16 %v2968
        %v4192 = vunpack.c.l.b16 %v2969
        %v4193 = vunpack.c.h.b16 %v2969
        %v4194 = vunpack.c.l.b16 %v2970
        %v4195 = vunpack.c.h.b16 %v2970
        %v4196 = vunpack.c.l.b16 %v2971
        %v4197 = vunpack.c.h.b16 %v2971
        %v4198 = vunpack.c.l.b16 %v2972
        %v4199 = vunpack.c.h.b16 %v2972
        %v4200 = vunpack.c.l.b16 %v2973
        %v4201 = vunpack.c.h.b16 %v2973
        %v4202 = vunpack.c.l.b16 %v2974
        %v4203 = vunpack.c.h.b16 %v2974
        %v4204 = vunpack.c.l.b16 %v2975
        %v4205 = vunpack.c.h.b16 %v2975
        %v4206 = vunpack.c.l.b16 %v2976
        %v4207 = vunpack.c.h.b16 %v2976
        %v4208 = vunpack.c.l.b16 %v2977
        %v4209 = vunpack.c.h.b16 %v2977
        %v4210 = vunpack.c.l.b16 %v2978
        %v4211 = vunpack.c.h.b16 %v2978
        %v4212 = vunpack.c.l.b16 %v2979
        %v4213 = vunpack.c.h.b16 %v2979
        %v4214 = vunpack.c.l.b16 %v2980
        %v4215 = vunpack.c.h.b16 %v2980
        %v4216 = vunpack.c.l.b16 %v2981
        %v4217 = vunpack.c.h.b16 %v2981
        %v4218 = vunpack.c.l.b16 %v2982
        %v4219 = vunpack.c.h.b16 %v2982
        %v4220 = vunpack.c.l.b16 %v2983
        %v4221 = vunpack.c.h.b16 %v2983
        %v4222 = vunpack.c.l.b16 %v2984
        %v4223 = vunpack.c.h.b16 %v2984
        %v4224 = vunpack.c.l.b16 %v2985
        %v4225 = vunpack.c.h.b16 %v2985
        %v4226 = vunpack.c.l.b16 %v2986
        %v4227 = vunpack.c.h.b16 %v2986
        %v4228 = vunpack.c.l.b16 %v2987
        %v4229 = vunpack.c.h.b16 %v2987
        %v4230 = vunpack.c.l.b16 %v2988
        %v4231 = vunpack.c.h.b16 %v2988
        %v4232 = vunpack.c.l.b16 %v2989
        %v4233 = vunpack.c.h.b16 %v2989
        %v4234 = vunpack.c.l.b16 %v2990
        %v4235 = vunpack.c.h.b16 %v2990
        %v4236 = vunpack.c.l.b16 %v2991
        %v4237 = vunpack.c.h.b16 %v2991
        %v4238 = vunpack.c.l.b16 %v2992
        %v4239 = vunpack.c.h.b16 %v2992
        %v4240 = vunpack.c.l.b16 %v2993
        %v4241 = vunpack.c.h.b16 %v2993
        %v4242 = vunpack.c.l.b16 %v2994
        %v4243 = vunpack.c.h.b16 %v2994
        %v4244 = vunpack.c.l.b16 %v2995
        %v4245 = vunpack.c.h.b16 %v2995
        %v4246 = vunpack.c.l.b16 %v2996
        %v4247 = vunpack.c.h.b16 %v2996
        %v4248 = vunpack.c.l.b16 %v2997
        %v4249 = vunpack.c.h.b16 %v2997
        %v4250 = vunpack.c.l.b16 %v2998
        %v4251 = vunpack.c.h.b16 %v2998
        %v4252 = vunpack.c.l.b16 %v2999
        %v4253 = vunpack.c.h.b16 %v2999
        %v4254 = vunpack.c.l.b16 %v3000
        %v4255 = vunpack.c.h.b16 %v3000
        %v4256 = vunpack.c.l.b16 %v3001
        %v4257 = vunpack.c.h.b16 %v3001
        %v4258 = vunpack.c.l.b16 %v3002
        %v4259 = vunpack.c.h.b16 %v3002
        %v4260 = vunpack.c.l.b16 %v3003
        %v4261 = vunpack.c.h.b16 %v3003
        %v4262 = vunpack.c.l.b16 %v3004
        %v4263 = vunpack.c.h.b16 %v3004
        %v4264 = vunpack.c.l.b16 %v3005
        %v4265 = vunpack.c.h.b16 %v3005
        %v4266 = vunpack.c.l.b16 %v3006
        %v4267 = vunpack.c.h.b16 %v3006
        %v4268 = vunpack.c.l.b16 %v3007
        %v4269 = vunpack.c.h.b16 %v3007
        %v4270 = vunpack.c.l.b16 %v3008
        %v4271 = vunpack.c.h.b16 %v3008
        %v4272 = vunpack.c.l.b16 %v3009
        %v4273 = vunpack.c.h.b16 %v3009
        %v4274 = vunpack.c.l.b16 %v3010
        %v4275 = vunpack.c.h.b16 %v3010
        %v4276 = vunpack.c.l.b16 %v3011
        %v4277 = vunpack.c.h.b16 %v3011
        %v4278 = vunpack.c.l.b16 %v3012
        %v4279 = vunpack.c.h.b16 %v3012
        %v4280 = vunpack.c.l.b16 %v3013
        %v4281 = vunpack.c.h.b16 %v3013
        %v4282 = vunpack.c.l.b16 %v3014
        %v4283 = vunpack.c.h.b16 %v3014
        %v4284 = vunpack.c.l.b16 %v3015
        %v4285 = vunpack.c.h.b16 %v3015
        %v4286 = vunpack.c.l.b16 %v3016
        %v4287 = vunpack.c.h.b16 %v3016
        %v4288 = vunpack.c.l.b16 %v3017
        %v4289 = vunpack.c.h.b16 %v3017
        %v4290 = vunpack.c.l.b16 %v3018
        %v4291 = vunpack.c.h.b16 %v3018
        %v4292 = vunpack.c.l.b16 %v3019
        %v4293 = vunpack.c.h.b16 %v3019
        %v4294 = vunpack.c.l.b16 %v3020
        %v4295 = vunpack.c.h.b16 %v3020
        %v4296 = vunpack.c.l.b16 %v3021
        %v4297 = vunpack.c.h.b16 %v3021
        %v4298 = vunpack.c.l.b16 %v3022
        %v4299 = vunpack.c.h.b16 %v3022
        %v4300 = vunpack.c.l.b16 %v3023
        %v4301 = vunpack.c.h.b16 %v3023
        %v4302 = vunpack.c.l.b16 %v3024
        %v4303 = vunpack.c.h.b16 %v3024
        %v4304 = vunpack.c.l.b16 %v3025
        %v4305 = vunpack.c.h.b16 %v3025
        %v4306 = vunpack.c.l.b16 %v3026
        %v4307 = vunpack.c.h.b16 %v3026
        %v4308 = vunpack.c.l.b16 %v3027
        %v4309 = vunpack.c.h.b16 %v3027
        %v4310 = vunpack.c.l.b16 %v3028
        %v4311 = vunpack.c.h.b16 %v3028
        %v4312 = vunpack.c.l.b16 %v3029
        %v4313 = vunpack.c.h.b16 %v3029
        %v4314 = vunpack.c.l.b16 %v3030
        %v4315 = vunpack.c.h.b16 %v3030
        %v4316 = vunpack.c.l.b16 %v3031
        %v4317 = vunpack.c.h.b16 %v3031
        %v4318 = vunpack.c.l.b16 %v3032
        %v4319 = vunpack.c.h.b16 %v3032
        %v4320 = vunpack.c.l.b16 %v3033
        %v4321 = vunpack.c.h.b16 %v3033
        %v4322 = vunpack.c.l.b16 %v3034
        %v4323 = vunpack.c.h.b16 %v3034
        %v4324 = vunpack.c.l.b16 %v3035
        %v4325 = vunpack.c.h.b16 %v3035
        %v4326 = vunpack.c.l.b16 %v3036
        %v4327 = vunpack.c.h.b16 %v3036
        %v4328 = vunpack.c.l.b16 %v3037
        %v4329 = vunpack.c.h.b16 %v3037
        %v4330 = vunpack.c.l.b16 %v3038
        %v4331 = vunpack.c.h.b16 %v3038
        %v4332 = vunpack.c.l.b16 %v3039
        %v4333 = vunpack.c.h.b16 %v3039
        %v4334 = vunpack.c.l.b16 %v3040
        %v4335 = vunpack.c.h.b16 %v3040
        %v4336 = vunpack.c.l.b16 %v3041
        %v4337 = vunpack.c.h.b16 %v3041
        %v4338 = vunpack.c.l.b16 %v3042
        %v4339 = vunpack.c.h.b16 %v3042
        %v4340 = vunpack.c.l.b16 %v3043
        %v4341 = vunpack.c.h.b16 %v3043
        %v4342 = vunpack.c.l.b16 %v3044
        %v4343 = vunpack.c.h.b16 %v3044
        %v4344 = vunpack.c.l.b16 %v3045
        %v4345 = vunpack.c.h.b16 %v3045
        %v4346 = vunpack.c.l.b16 %v3046
        %v4347 = vunpack.c.h.b16 %v3046
        %v4348 = vunpack.c.l.b16 %v3047
        %v4349 = vunpack.c.h.b16 %v3047
        %v4350 = vunpack.c.l.b16 %v3048
        %v4351 = vunpack.c.h.b16 %v3048
        %v4352 = vunpack.c.l.b16 %v3049
        %v4353 = vunpack.c.h.b16 %v3049
        %v4354 = vunpack.c.l.b16 %v3050
        %v4355 = vunpack.c.h.b16 %v3050
        %v4356 = vunpack.c.l.b16 %v3051
        %v4357 = vunpack.c.h.b16 %v3051
        %v4358 = vunpack.c.l.b16 %v3052
        %v4359 = vunpack.c.h.b16 %v3052
        %v4360 = vunpack.c.l.b16 %v3053
        %v4361 = vunpack.c.h.b16 %v3053
        %v4362 = vunpack.c.l.b16 %v3054
        %v4363 = vunpack.c.h.b16 %v3054
        %v4364 = vunpack.c.l.b16 %v3055
        %v4365 = vunpack.c.h.b16 %v3055
        %v4366 = vunpack.c.l.b16 %v3056
        %v4367 = vunpack.c.h.b16 %v3056
        %v4368 = vunpack.c.l.b16 %v3057
        %v4369 = vunpack.c.h.b16 %v3057
        %v4370 = vunpack.c.l.b16 %v3058
        %v4371 = vunpack.c.h.b16 %v3058
        %v4372 = vunpack.c.l.b16 %v3059
        %v4373 = vunpack.c.h.b16 %v3059
        %v4374 = vunpack.c.l.b16 %v3060
        %v4375 = vunpack.c.h.b16 %v3060
        %v4376 = vunpack.c.l.b16 %v3061
        %v4377 = vunpack.c.h.b16 %v3061
        %v4378 = vunpack.c.l.b16 %v3062
        %v4379 = vunpack.c.h.b16 %v3062
        %v4380 = vunpack.c.l.b16 %v3063
        %v4381 = vunpack.c.h.b16 %v3063
        %v4382 = vunpack.c.l.b16 %v3064
        %v4383 = vunpack.c.h.b16 %v3064
        %v4384 = vunpack.c.l.b16 %v3065
        %v4385 = vunpack.c.h.b16 %v3065
        %v4386 = vunpack.c.l.b16 %v3066
        %v4387 = vunpack.c.h.b16 %v3066
        %v4388 = vunpack.c.l.b16 %v3067
        %v4389 = vunpack.c.h.b16 %v3067
        %v4390 = vunpack.c.l.b16 %v3068
        %v4391 = vunpack.c.h.b16 %v3068
        %v4392 = vunpack.c.l.b16 %v3069
        %v4393 = vunpack.c.h.b16 %v3069
        %v4394 = vunpack.c.l.b16 %v3070
        %v4395 = vunpack.c.h.b16 %v3070
        %v4396 = vunpack.c.l.b16 %v3071
        %v4397 = vunpack.c.h.b16 %v3071
        %v4398 = vunpack.c.l.b16 %v3072
        %v4399 = vunpack.c.h.b16 %v3072
        %v4400 = vunpack.c.l.b16 %v3073
        %v4401 = vunpack.c.h.b16 %v3073
        %v4402 = vunpack.c.l.b16 %v3074
        %v4403 = vunpack.c.h.b16 %v3074
        %v4404 = vunpack.c.l.b16 %v3075
        %v4405 = vunpack.c.h.b16 %v3075
        %v4406 = vunpack.c.l.b16 %v3076
        %v4407 = vunpack.c.h.b16 %v3076
        %v4408 = vunpack.c.l.b16 %v3077
        %v4409 = vunpack.c.h.b16 %v3077
        %v4410 = vunpack.c.l.b16 %v3078
        %v4411 = vunpack.c.h.b16 %v3078
        %v4412 = vunpack.c.l.b16 %v3079
        %v4413 = vunpack.c.h.b16 %v3079
        %v4414 = vunpack.c.l.b16 %v3080
        %v4415 = vunpack.c.h.b16 %v3080
        %v4416 = vunpack.c.l.b16 %v3081
        %v4417 = vunpack.c.h.b16 %v3081
        %v4418 = vunpack.c.l.b16 %v3082
        %v4419 = vunpack.c.h.b16 %v3082
        %v4420 = vunpack.c.l.b16 %v3083
        %v4421 = vunpack.c.h.b16 %v3083
        %v4422 = vunpack.c.l.b16 %v3084
        %v4423 = vunpack.c.h.b16 %v3084
        %v4424 = vunpack.c.l.b16 %v3085
        %v4425 = vunpack.c.h.b16 %v3085
        %v4426 = vunpack.c.l.b16 %v3086
        %v4427 = vunpack.c.h.b16 %v3086
        %v4428 = vunpack.c.l.b16 %v3087
        %v4429 = vunpack.c.h.b16 %v3087
        %v4430 = vunpack.c.l.b16 %v3088
        %v4431 = vunpack.c.h.b16 %v3088
        %v4432 = vunpack.c.l.b16 %v3089
        %v4433 = vunpack.c.h.b16 %v3089
        %v4434 = vunpack.c.l.b16 %v3090
        %v4435 = vunpack.c.h.b16 %v3090
        %v4436 = vunpack.c.l.b16 %v3091
        %v4437 = vunpack.c.h.b16 %v3091
        %v4438 = vunpack.c.l.b16 %v3092
        %v4439 = vunpack.c.h.b16 %v3092
        %v4440 = vunpack.c.l.b16 %v3093
        %v4441 = vunpack.c.h.b16 %v3093
        %v4442 = vunpack.c.l.b16 %v3094
        %v4443 = vunpack.c.h.b16 %v3094
        %v4444 = vunpack.c.l.b16 %v3095
        %v4445 = vunpack.c.h.b16 %v3095
        %v4446 = vunpack.c.l.b16 %v3096
        %v4447 = vunpack.c.h.b16 %v3096
        %v4448 = vunpack.c.l.b16 %v3097
        %v4449 = vunpack.c.h.b16 %v3097
        %v4450 = vunpack.c.l.b16 %v3098
        %v4451 = vunpack.c.h.b16 %v3098
        %v4452 = vunpack.c.l.b16 %v3099
        %v4453 = vunpack.c.h.b16 %v3099
        %v4454 = vunpack.c.l.b16 %v3100
        %v4455 = vunpack.c.h.b16 %v3100
        %v4456 = vunpack.c.l.b16 %v3101
        %v4457 = vunpack.c.h.b16 %v3101
        %v4458 = vunpack.c.l.b16 %v3102
        %v4459 = vunpack.c.h.b16 %v3102
        %v4460 = vunpack.c.l.b16 %v3103
        %v4461 = vunpack.c.h.b16 %v3103
        %v4462 = vunpack.c.l.b16 %v3104
        %v4463 = vunpack.c.h.b16 %v3104
        %v4464 = vunpack.c.l.b16 %v3105
        %v4465 = vunpack.c.h.b16 %v3105
        %v4466 = vunpack.c.l.b16 %v3106
        %v4467 = vunpack.c.h.b16 %v3106
        %v4468 = vunpack.c.l.b16 %v3107
        %v4469 = vunpack.c.h.b16 %v3107
        %v4470 = vunpack.c.l.b16 %v3108
        %v4471 = vunpack.c.h.b16 %v3108
        %v4472 = vunpack.c.l.b16 %v3109
        %v4473 = vunpack.c.h.b16 %v3109
        %v4474 = vunpack.c.l.b16 %v3110
        %v4475 = vunpack.c.h.b16 %v3110
        %v4476 = vunpack.c.l.b16 %v3111
        %v4477 = vunpack.c.h.b16 %v3111
        %v4478 = vunpack.c.l.b16 %v3112
        %v4479 = vunpack.c.h.b16 %v3112
        %v4480 = vunpack.c.l.b16 %v3113
        %v4481 = vunpack.c.h.b16 %v3113
        %v4482 = vunpack.c.l.b16 %v3114
        %v4483 = vunpack.c.h.b16 %v3114
        %v4484 = vunpack.c.l.b16 %v3115
        %v4485 = vunpack.c.h.b16 %v3115
        %v4486 = vunpack.c.l.b16 %v3116
        %v4487 = vunpack.c.h.b16 %v3116
        %v4488 = vunpack.c.l.b16 %v3117
        %v4489 = vunpack.c.h.b16 %v3117
        %v4490 = vunpack.c.l.b16 %v3118
        %v4491 = vunpack.c.h.b16 %v3118
        %v4492 = vunpack.c.l.b16 %v3119
        %v4493 = vunpack.c.h.b16 %v3119
        %v4494 = vunpack.c.l.b16 %v3120
        %v4495 = vunpack.c.h.b16 %v3120
        %v4496 = vunpack.c.l.b16 %v3121
        %v4497 = vunpack.c.h.b16 %v3121
        %v4498 = vunpack.c.l.b16 %v3122
        %v4499 = vunpack.c.h.b16 %v3122
        %v4500 = vunpack.c.l.b16 %v3123
        %v4501 = vunpack.c.h.b16 %v3123
        %v4502 = vunpack.c.l.b16 %v3124
        %v4503 = vunpack.c.h.b16 %v3124
        %v4504 = vunpack.c.l.b16 %v3125
        %v4505 = vunpack.c.h.b16 %v3125
        %v4506 = vunpack.c.l.b16 %v3126
        %v4507 = vunpack.c.h.b16 %v3126
        %v4508 = vunpack.c.l.b16 %v3127
        %v4509 = vunpack.c.h.b16 %v3127
        %v4510 = vunpack.c.l.b16 %v3128
        %v4511 = vunpack.c.h.b16 %v3128
        %v4512 = vunpack.c.l.b16 %v3129
        %v4513 = vunpack.c.h.b16 %v3129
        %v4514 = vunpack.c.l.b16 %v3130
        %v4515 = vunpack.c.h.b16 %v3130
        %v4516 = vunpack.c.l.b16 %v3131
        %v4517 = vunpack.c.h.b16 %v3131
        %v4518 = vunpack.c.l.b16 %v3132
        %v4519 = vunpack.c.h.b16 %v3132
        %v4520 = vunpack.c.l.b16 %v3133
        %v4521 = vunpack.c.h.b16 %v3133
        %v4522 = vunpack.c.l.b16 %v3134
        %v4523 = vunpack.c.h.b16 %v3134
        %v4524 = vunpack.c.l.b16 %v3135
        %v4525 = vunpack.c.h.b16 %v3135
        %v4526 = vunpack.c.l.b16 %v3136
        %v4527 = vunpack.c.h.b16 %v3136
        %v4528 = vunpack.c.l.b16 %v3137
        %v4529 = vunpack.c.h.b16 %v3137
        %v4530 = vunpack.c.l.b16 %v3138
        %v4531 = vunpack.c.h.b16 %v3138
        %v4532 = vunpack.c.l.b16 %v3139
        %v4533 = vunpack.c.h.b16 %v3139
        %v4534 = vunpack.c.l.b16 %v3140
        %v4535 = vunpack.c.h.b16 %v3140
        %v4536 = vunpack.c.l.b16 %v3141
        %v4537 = vunpack.c.h.b16 %v3141
        %v4538 = vunpack.c.l.b16 %v3142
        %v4539 = vunpack.c.h.b16 %v3142
        %v4540 = vunpack.c.l.b16 %v3143
        %v4541 = vunpack.c.h.b16 %v3143
        %v4542 = vunpack.c.l.b16 %v3144
        %v4543 = vunpack.c.h.b16 %v3144
        %v4544 = vunpack.c.l.b16 %v3145
        %v4545 = vunpack.c.h.b16 %v3145
        %v4546 = vunpack.c.l.b16 %v3146
        %v4547 = vunpack.c.h.b16 %v3146
        %v4548 = vunpack.c.l.b16 %v3147
        %v4549 = vunpack.c.h.b16 %v3147
        %v4550 = vunpack.c.l.b16 %v3148
        %v4551 = vunpack.c.h.b16 %v3148
        %v4552 = vunpack.c.l.b16 %v3149
        %v4553 = vunpack.c.h.b16 %v3149
        %v4554 = vunpack.c.l.b16 %v3150
        %v4555 = vunpack.c.h.b16 %v3150
        %v4556 = vunpack.c.l.b16 %v3151
        %v4557 = vunpack.c.h.b16 %v3151
        %v4558 = vunpack.c.l.b16 %v3152
        %v4559 = vunpack.c.h.b16 %v3152
        %v4560 = vunpack.c.l.b16 %v3153
        %v4561 = vunpack.c.h.b16 %v3153
        %v4562 = vunpack.c.l.b16 %v3154
        %v4563 = vunpack.c.h.b16 %v3154
        %v4564 = vunpack.c.l.b16 %v3155
        %v4565 = vunpack.c.h.b16 %v3155
        %v4566 = vunpack.c.l.b16 %v3156
        %v4567 = vunpack.c.h.b16 %v3156
        %v4568 = vunpack.c.l.b16 %v3157
        %v4569 = vunpack.c.h.b16 %v3157
        %v4570 = vunpack.c.l.b16 %v3158
        %v4571 = vunpack.c.h.b16 %v3158
        %v4572 = vunpack.c.l.b16 %v3159
        %v4573 = vunpack.c.h.b16 %v3159
        %v4574 = vunpack.c.l.b16 %v3160
        %v4575 = vunpack.c.h.b16 %v3160
        %v4576 = vunpack.c.l.b16 %v3161
        %v4577 = vunpack.c.h.b16 %v3161
        %v4578 = vunpack.c.l.b16 %v3162
        %v4579 = vunpack.c.h.b16 %v3162
        %v4580 = vunpack.c.l.b16 %v3163
        %v4581 = vunpack.c.h.b16 %v3163
        %v4582 = vunpack.c.l.b16 %v3164
        %v4583 = vunpack.c.h.b16 %v3164
        %v4584 = vunpack.c.l.b16 %v3165
        %v4585 = vunpack.c.h.b16 %v3165
        %v4586 = vunpack.c.l.b16 %v3166
        %v4587 = vunpack.c.h.b16 %v3166
        %v4588 = vunpack.c.l.b16 %v3167
        %v4589 = vunpack.c.h.b16 %v3167
        %v4590 = vunpack.c.l.b16 %v3168
        %v4591 = vunpack.c.h.b16 %v3168
        %v4592 = vunpack.c.l.b16 %v3169
        %v4593 = vunpack.c.h.b16 %v3169
        %v4594 = vunpack.c.l.b16 %v3170
        %v4595 = vunpack.c.h.b16 %v3170
        %v4596 = vunpack.c.l.b16 %v3171
        %v4597 = vunpack.c.h.b16 %v3171
        %v4598 = vunpack.c.l.b16 %v3172
        %v4599 = vunpack.c.h.b16 %v3172
        %v4600 = vunpack.c.l.b16 %v3173
        %v4601 = vunpack.c.h.b16 %v3173
        %v4602 = vunpack.c.l.b16 %v3174
        %v4603 = vunpack.c.h.b16 %v3174
        %v4604 = vunpack.c.l.b16 %v3175
        %v4605 = vunpack.c.h.b16 %v3175
        %v4606 = vunpack.c.l.b16 %v3176
        %v4607 = vunpack.c.h.b16 %v3176
        %v4608 = vunpack.c.l.b16 %v3177
        %v4609 = vunpack.c.h.b16 %v3177
        %v4610 = vunpack.c.l.b16 %v3178
        %v4611 = vunpack.c.h.b16 %v3178
        %v4612 = vunpack.c.l.b16 %v3179
        %v4613 = vunpack.c.h.b16 %v3179
        %v4614 = vunpack.c.l.b16 %v3180
        %v4615 = vunpack.c.h.b16 %v3180
        %v4616 = vunpack.c.l.b16 %v3181
        %v4617 = vunpack.c.h.b16 %v3181
        %v4618 = vunpack.c.l.b16 %v3182
        %v4619 = vunpack.c.h.b16 %v3182
        %v4620 = vunpack.c.l.b16 %v3183
        %v4621 = vunpack.c.h.b16 %v3183
        %v4622 = vunpack.c.l.b16 %v3184
        %v4623 = vunpack.c.h.b16 %v3184
        %v4624 = vunpack.c.l.b16 %v3185
        %v4625 = vunpack.c.h.b16 %v3185
        %v4626 = vpack.c.b16 %v3670, %v3666
        %v4627 = vpack.c.b16 %v3671, %v3667
        %v4628 = vpack.c.b16 %v3672, %v3668
        %v4629 = vpack.c.b16 %v3673, %v3669
        %v4630 = vpack.c.b16 %v3678, %v3674
        %v4631 = vpack.c.b16 %v3679, %v3675
        %v4632 = vpack.c.b16 %v3680, %v3676
        %v4633 = vpack.c.b16 %v3681, %v3677
        %v4634 = vpack.c.b16 %v3686, %v3682
        %v4635 = vpack.c.b16 %v3687, %v3683
        %v4636 = vpack.c.b16 %v3688, %v3684
        %v4637 = vpack.c.b16 %v3689, %v3685
        %v4638 = vpack.c.b16 %v3694, %v3690
        %v4639 = vpack.c.b16 %v3695, %v3691
        %v4640 = vpack.c.b16 %v3696, %v3692
        %v4641 = vpack.c.b16 %v3697, %v3693
        %v4642 = vpack.c.b16 %v3702, %v3698
        %v4643 = vpack.c.b16 %v3703, %v3699
        %v4644 = vpack.c.b16 %v3704, %v3700
        %v4645 = vpack.c.b16 %v3705, %v3701
        %v4646 = vpack.c.b16 %v3710, %v3706
        %v4647 = vpack.c.b16 %v3711, %v3707
        %v4648 = vpack.c.b16 %v3712, %v3708
        %v4649 = vpack.c.b16 %v3713, %v3709
        %v4650 = vpack.c.b16 %v3718, %v3714
        %v4651 = vpack.c.b16 %v3719, %v3715
        %v4652 = vpack.c.b16 %v3720, %v3716
        %v4653 = vpack.c.b16 %v3721, %v3717
        %v4654 = vpack.c.b16 %v3726, %v3722
        %v4655 = vpack.c.b16 %v3727, %v3723
        %v4656 = vpack.c.b16 %v3728, %v3724
        %v4657 = vpack.c.b16 %v3729, %v3725
        %v4658 = vpack.c.b16 %v3734, %v3730
        %v4659 = vpack.c.b16 %v3735, %v3731
        %v4660 = vpack.c.b16 %v3736, %v3732
        %v4661 = vpack.c.b16 %v3737, %v3733
        %v4662 = vpack.c.b16 %v3742, %v3738
        %v4663 = vpack.c.b16 %v3743, %v3739
        %v4664 = vpack.c.b16 %v3744, %v3740
        %v4665 = vpack.c.b16 %v3745, %v3741
        %v4666 = vpack.c.b16 %v3750, %v3746
        %v4667 = vpack.c.b16 %v3751, %v3747
        %v4668 = vpack.c.b16 %v3752, %v3748
        %v4669 = vpack.c.b16 %v3753, %v3749
        %v4670 = vpack.c.b16 %v3758, %v3754
        %v4671 = vpack.c.b16 %v3759, %v3755
        %v4672 = vpack.c.b16 %v3760, %v3756
        %v4673 = vpack.c.b16 %v3761, %v3757
        %v4674 = vpack.c.b16 %v3766, %v3762
        %v4675 = vpack.c.b16 %v3767, %v3763
        %v4676 = vpack.c.b16 %v3768, %v3764
        %v4677 = vpack.c.b16 %v3769, %v3765
        %v4678 = vpack.c.b16 %v3774, %v3770
        %v4679 = vpack.c.b16 %v3775, %v3771
        %v4680 = vpack.c.b16 %v3776, %v3772
        %v4681 = vpack.c.b16 %v3777, %v3773
        %v4682 = vpack.c.b16 %v3782, %v3778
        %v4683 = vpack.c.b16 %v3783, %v3779
        %v4684 = vpack.c.b16 %v3784, %v3780
        %v4685 = vpack.c.b16 %v3785, %v3781
        %v4686 = vpack.c.b16 %v3790, %v3786
        %v4687 = vpack.c.b16 %v3791, %v3787
        %v4688 = vpack.c.b16 %v3792, %v3788
        %v4689 = vpack.c.b16 %v3793, %v3789
        %v4690 = vpack.c.b16 %v3798, %v3794
        %v4691 = vpack.c.b16 %v3799, %v3795
        %v4692 = vpack.c.b16 %v3800, %v3796
        %v4693 = vpack.c.b16 %v3801, %v3797
        %v4694 = vpack.c.b16 %v3806, %v3802
        %v4695 = vpack.c.b16 %v3807, %v3803
        %v4696 = vpack.c.b16 %v3808, %v3804
        %v4697 = vpack.c.b16 %v3809, %v3805
        %v4698 = vpack.c.b16 %v3814, %v3810
        %v4699 = vpack.c.b16 %v3815, %v3811
        %v4700 = vpack.c.b16 %v3816, %v3812
        %v4701 = vpack.c.b16 %v3817, %v3813
        %v4702 = vpack.c.b16 %v3822, %v3818
        %v4703 = vpack.c.b16 %v3823, %v3819
        %v4704 = vpack.c.b16 %v3824, %v3820
        %v4705 = vpack.c.b16 %v3825, %v3821
        %v4706 = vpack.c.b16 %v3830, %v3826
        %v4707 = vpack.c.b16 %v3831, %v3827
        %v4708 = vpack.c.b16 %v3832, %v3828
        %v4709 = vpack.c.b16 %v3833, %v3829
        %v4710 = vpack.c.b16 %v3838, %v3834
        %v4711 = vpack.c.b16 %v3839, %v3835
        %v4712 = vpack.c.b16 %v3840, %v3836
        %v4713 = vpack.c.b16 %v3841, %v3837
        %v4714 = vpack.c.b16 %v3846, %v3842
        %v4715 = vpack.c.b16 %v3847, %v3843
        %v4716 = vpack.c.b16 %v3848, %v3844
        %v4717 = vpack.c.b16 %v3849, %v3845
        %v4718 = vpack.c.b16 %v3854, %v3850
        %v4719 = vpack.c.b16 %v3855, %v3851
        %v4720 = vpack.c.b16 %v3856, %v3852
        %v4721 = vpack.c.b16 %v3857, %v3853
        %v4722 = vpack.c.b16 %v3862, %v3858
        %v4723 = vpack.c.b16 %v3863, %v3859
        %v4724 = vpack.c.b16 %v3864, %v3860
        %v4725 = vpack.c.b16 %v3865, %v3861
        %v4726 = vpack.c.b16 %v3870, %v3866
        %v4727 = vpack.c.b16 %v3871, %v3867
        %v4728 = vpack.c.b16 %v3872, %v3868
        %v4729 = vpack.c.b16 %v3873, %v3869
        %v4730 = vpack.c.b16 %v3878, %v3874
        %v4731 = vpack.c.b16 %v3879, %v3875
        %v4732 = vpack.c.b16 %v3880, %v3876
        %v4733 = vpack.c.b16 %v3881, %v3877
        %v4734 = vpack.c.b16 %v3886, %v3882
        %v4735 = vpack.c.b16 %v3887, %v3883
        %v4736 = vpack.c.b16 %v3888, %v3884
        %v4737 = vpack.c.b16 %v3889, %v3885
        %v4738 = vpack.c.b16 %v3894, %v3890
        %v4739 = vpack.c.b16 %v3895, %v3891
        %v4740 = vpack.c.b16 %v3896, %v3892
        %v4741 = vpack.c.b16 %v3897, %v3893
        %v4742 = vpack.c.b16 %v3902, %v3898
        %v4743 = vpack.c.b16 %v3903, %v3899
        %v4744 = vpack.c.b16 %v3904, %v3900
        %v4745 = vpack.c.b16 %v3905, %v3901
        %v4746 = vpack.c.b16 %v3910, %v3906
        %v4747 = vpack.c.b16 %v3911, %v3907
        %v4748 = vpack.c.b16 %v3912, %v3908
        %v4749 = vpack.c.b16 %v3913, %v3909
        %v4750 = vpack.c.b16 %v3918, %v3914
        %v4751 = vpack.c.b16 %v3919, %v3915
        %v4752 = vpack.c.b16 %v3920, %v3916
        %v4753 = vpack.c.b16 %v3921, %v3917
        %v4754 = vpack.c.b16 %v3926, %v3922
        %v4755 = vpack.c.b16 %v3927, %v3923
        %v4756 = vpack.c.b16 %v3928, %v3924
        %v4757 = vpack.c.b16 %v3929, %v3925
        %v4758 = vpack.c.b16 %v3934, %v3930
        %v4759 = vpack.c.b16 %v3935, %v3931
        %v4760 = vpack.c.b16 %v3936, %v3932
        %v4761 = vpack.c.b16 %v3937, %v3933
        %v4762 = vpack.c.b16 %v3942, %v3938
        %v4763 = vpack.c.b16 %v3943, %v3939
        %v4764 = vpack.c.b16 %v3944, %v3940
        %v4765 = vpack.c.b16 %v3945, %v3941
        %v4766 = vpack.c.b16 %v3950, %v3946
        %v4767 = vpack.c.b16 %v3951, %v3947
        %v4768 = vpack.c.b16 %v3952, %v3948
        %v4769 = vpack.c.b16 %v3953, %v3949
        %v4770 = vpack.c.b16 %v3958, %v3954
        %v4771 = vpack.c.b16 %v3959, %v3955
        %v4772 = vpack.c.b16 %v3960, %v3956
        %v4773 = vpack.c.b16 %v3961, %v3957
        %v4774 = vpack.c.b16 %v3966, %v3962
        %v4775 = vpack.c.b16 %v3967, %v3963
        %v4776 = vpack.c.b16 %v3968, %v3964
        %v4777 = vpack.c.b16 %v3969, %v3965
        %v4778 = vpack.c.b16 %v3974, %v3970
        %v4779 = vpack.c.b16 %v3975, %v3971
        %v4780 = vpack.c.b16 %v3976, %v3972
        %v4781 = vpack.c.b16 %v3977, %v3973
        %v4782 = vpack.c.b16 %v3982, %v3978
        %v4783 = vpack.c.b16 %v3983, %v3979
        %v4784 = vpack.c.b16 %v3984, %v3980
        %v4785 = vpack.c.b16 %v3985, %v3981
        %v4786 = vpack.c.b16 %v3990, %v3986
        %v4787 = vpack.c.b16 %v3991, %v3987
        %v4788 = vpack.c.b16 %v3992, %v3988
        %v4789 = vpack.c.b16 %v3993, %v3989
        %v4790 = vpack.c.b16 %v3998, %v3994
        %v4791 = vpack.c.b16 %v3999, %v3995
        %v4792 = vpack.c.b16 %v4000, %v3996
        %v4793 = vpack.c.b16 %v4001, %v3997
        %v4794 = vpack.c.b16 %v4006, %v4002
        %v4795 = vpack.c.b16 %v4007, %v4003
        %v4796 = vpack.c.b16 %v4008, %v4004
        %v4797 = vpack.c.b16 %v4009, %v4005
        %v4798 = vpack.c.b16 %v4014, %v4010
        %v4799 = vpack.c.b16 %v4015, %v4011
        %v4800 = vpack.c.b16 %v4016, %v4012
        %v4801 = vpack.c.b16 %v4017, %v4013
        %v4802 = vpack.c.b16 %v4022, %v4018
        %v4803 = vpack.c.b16 %v4023, %v4019
        %v4804 = vpack.c.b16 %v4024, %v4020
        %v4805 = vpack.c.b16 %v4025, %v4021
        %v4806 = vpack.c.b16 %v4030, %v4026
        %v4807 = vpack.c.b16 %v4031, %v4027
        %v4808 = vpack.c.b16 %v4032, %v4028
        %v4809 = vpack.c.b16 %v4033, %v4029
        %v4810 = vpack.c.b16 %v4038, %v4034
        %v4811 = vpack.c.b16 %v4039, %v4035
        %v4812 = vpack.c.b16 %v4040, %v4036
        %v4813 = vpack.c.b16 %v4041, %v4037
        %v4814 = vpack.c.b16 %v4046, %v4042
        %v4815 = vpack.c.b16 %v4047, %v4043
        %v4816 = vpack.c.b16 %v4048, %v4044
        %v4817 = vpack.c.b16 %v4049, %v4045
        %v4818 = vpack.c.b16 %v4054, %v4050
        %v4819 = vpack.c.b16 %v4055, %v4051
        %v4820 = vpack.c.b16 %v4056, %v4052
        %v4821 = vpack.c.b16 %v4057, %v4053
        %v4822 = vpack.c.b16 %v4062, %v4058
        %v4823 = vpack.c.b16 %v4063, %v4059
        %v4824 = vpack.c.b16 %v4064, %v4060
        %v4825 = vpack.c.b16 %v4065, %v4061
        %v4826 = vpack.c.b16 %v4070, %v4066
        %v4827 = vpack.c.b16 %v4071, %v4067
        %v4828 = vpack.c.b16 %v4072, %v4068
        %v4829 = vpack.c.b16 %v4073, %v4069
        %v4830 = vpack.c.b16 %v4078, %v4074
        %v4831 = vpack.c.b16 %v4079, %v4075
        %v4832 = vpack.c.b16 %v4080, %v4076
        %v4833 = vpack.c.b16 %v4081, %v4077
        %v4834 = vpack.c.b16 %v4086, %v4082
        %v4835 = vpack.c.b16 %v4087, %v4083
        %v4836 = vpack.c.b16 %v4088, %v4084
        %v4837 = vpack.c.b16 %v4089, %v4085
        %v4838 = vpack.c.b16 %v4094, %v4090
        %v4839 = vpack.c.b16 %v4095, %v4091
        %v4840 = vpack.c.b16 %v4096, %v4092
        %v4841 = vpack.c.b16 %v4097, %v4093
        %v4842 = vpack.c.b16 %v4102, %v4098
        %v4843 = vpack.c.b16 %v4103, %v4099
        %v4844 = vpack.c.b16 %v4104, %v4100
        %v4845 = vpack.c.b16 %v4105, %v4101
        %v4846 = vpack.c.b16 %v4110, %v4106
        %v4847 = vpack.c.b16 %v4111, %v4107
        %v4848 = vpack.c.b16 %v4112, %v4108
        %v4849 = vpack.c.b16 %v4113, %v4109
        %v4850 = vpack.c.b16 %v4118, %v4114
        %v4851 = vpack.c.b16 %v4119, %v4115
        %v4852 = vpack.c.b16 %v4120, %v4116
        %v4853 = vpack.c.b16 %v4121, %v4117
        %v4854 = vpack.c.b16 %v4126, %v4122
        %v4855 = vpack.c.b16 %v4127, %v4123
        %v4856 = vpack.c.b16 %v4128, %v4124
        %v4857 = vpack.c.b16 %v4129, %v4125
        %v4858 = vpack.c.b16 %v4134, %v4130
        %v4859 = vpack.c.b16 %v4135, %v4131
        %v4860 = vpack.c.b16 %v4136, %v4132
        %v4861 = vpack.c.b16 %v4137, %v4133
        %v4862 = vpack.c.b16 %v4142, %v4138
        %v4863 = vpack.c.b16 %v4143, %v4139
        %v4864 = vpack.c.b16 %v4144, %v4140
        %v4865 = vpack.c.b16 %v4145, %v4141
        %v4866 = vpack.c.b16 %v4150, %v4146
        %v4867 = vpack.c.b16 %v4151, %v4147
        %v4868 = vpack.c.b16 %v4152, %v4148
        %v4869 = vpack.c.b16 %v4153, %v4149
        %v4870 = vpack.c.b16 %v4158, %v4154
        %v4871 = vpack.c.b16 %v4159, %v4155
        %v4872 = vpack.c.b16 %v4160, %v4156
        %v4873 = vpack.c.b16 %v4161, %v4157
        %v4874 = vpack.c.b16 %v4166, %v4162
        %v4875 = vpack.c.b16 %v4167, %v4163
        %v4876 = vpack.c.b16 %v4168, %v4164
        %v4877 = vpack.c.b16 %v4169, %v4165
        %v4878 = vpack.c.b16 %v4174, %v4170
        %v4879 = vpack.c.b16 %v4175, %v4171
        %v4880 = vpack.c.b16 %v4176, %v4172
        %v4881 = vpack.c.b16 %v4177, %v4173
        %v4882 = vpack.c.b16 %v4182, %v4178
        %v4883 = vpack.c.b16 %v4183, %v4179
        %v4884 = vpack.c.b16 %v4184, %v4180
        %v4885 = vpack.c.b16 %v4185, %v4181
        %v4886 = vpack.c.b16 %v4190, %v4186
        %v4887 = vpack.c.b16 %v4191, %v4187
        %v4888 = vpack.c.b16 %v4192, %v4188
        %v4889 = vpack.c.b16 %v4193, %v4189
        %v4890 = vpack.c.b16 %v4198, %v4194
        %v4891 = vpack.c.b16 %v4199, %v4195
        %v4892 = vpack.c.b16 %v4200, %v4196
        %v4893 = vpack.c.b16 %v4201, %v4197
        %v4894 = vpack.c.b16 %v4206, %v4202
        %v4895 = vpack.c.b16 %v4207, %v4203
        %v4896 = vpack.c.b16 %v4208, %v4204
        %v4897 = vpack.c.b16 %v4209, %v4205
        %v4898 = vpack.c.b16 %v4214, %v4210
        %v4899 = vpack.c.b16 %v4215, %v4211
        %v4900 = vpack.c.b16 %v4216, %v4212
        %v4901 = vpack.c.b16 %v4217, %v4213
        %v4902 = vpack.c.b16 %v4222, %v4218
        %v4903 = vpack.c.b16 %v4223, %v4219
        %v4904 = vpack.c.b16 %v4224, %v4220
        %v4905 = vpack.c.b16 %v4225, %v4221
        %v4906 = vpack.c.b16 %v4230, %v4226
        %v4907 = vpack.c.b16 %v4231, %v4227
        %v4908 = vpack.c.b16 %v4232, %v4228
        %v4909 = vpack.c.b16 %v4233, %v4229
        %v4910 = vpack.c.b16 %v4238, %v4234
        %v4911 = vpack.c.b16 %v4239, %v4235
        %v4912 = vpack.c.b16 %v4240, %v4236
        %v4913 = vpack.c.b16 %v4241, %v4237
        %v4914 = vpack.c.b16 %v4246, %v4242
        %v4915 = vpack.c.b16 %v4247, %v4243
        %v4916 = vpack.c.b16 %v4248, %v4244
        %v4917 = vpack.c.b16 %v4249, %v4245
        %v4918 = vpack.c.b16 %v4254, %v4250
        %v4919 = vpack.c.b16 %v4255, %v4251
        %v4920 = vpack.c.b16 %v4256, %v4252
        %v4921 = vpack.c.b16 %v4257, %v4253
        %v4922 = vpack.c.b16 %v4262, %v4258
        %v4923 = vpack.c.b16 %v4263, %v4259
        %v4924 = vpack.c.b16 %v4264, %v4260
        %v4925 = vpack.c.b16 %v4265, %v4261
        %v4926 = vpack.c.b16 %v4270, %v4266
        %v4927 = vpack.c.b16 %v4271, %v4267
        %v4928 = vpack.c.b16 %v4272, %v4268
        %v4929 = vpack.c.b16 %v4273, %v4269
        %v4930 = vpack.c.b16 %v4278, %v4274
        %v4931 = vpack.c.b16 %v4279, %v4275
        %v4932 = vpack.c.b16 %v4280, %v4276
        %v4933 = vpack.c.b16 %v4281, %v4277
        %v4934 = vpack.c.b16 %v4286, %v4282
        %v4935 = vpack.c.b16 %v4287, %v4283
        %v4936 = vpack.c.b16 %v4288, %v4284
        %v4937 = vpack.c.b16 %v4289, %v4285
        %v4938 = vpack.c.b16 %v4294, %v4290
        %v4939 = vpack.c.b16 %v4295, %v4291
        %v4940 = vpack.c.b16 %v4296, %v4292
        %v4941 = vpack.c.b16 %v4297, %v4293
        %v4942 = vpack.c.b16 %v4302, %v4298
        %v4943 = vpack.c.b16 %v4303, %v4299
        %v4944 = vpack.c.b16 %v4304, %v4300
        %v4945 = vpack.c.b16 %v4305, %v4301
        %v4946 = vpack.c.b16 %v4310, %v4306
        %v4947 = vpack.c.b16 %v4311, %v4307
        %v4948 = vpack.c.b16 %v4312, %v4308
        %v4949 = vpack.c.b16 %v4313, %v4309
        %v4950 = vpack.c.b16 %v4318, %v4314
        %v4951 = vpack.c.b16 %v4319, %v4315
        %v4952 = vpack.c.b16 %v4320, %v4316
        %v4953 = vpack.c.b16 %v4321, %v4317
        %v4954 = vpack.c.b16 %v4326, %v4322
        %v4955 = vpack.c.b16 %v4327, %v4323
        %v4956 = vpack.c.b16 %v4328, %v4324
        %v4957 = vpack.c.b16 %v4329, %v4325
        %v4958 = vpack.c.b16 %v4334, %v4330
        %v4959 = vpack.c.b16 %v4335, %v4331
        %v4960 = vpack.c.b16 %v4336, %v4332
        %v4961 = vpack.c.b16 %v4337, %v4333
        %v4962 = vpack.c.b16 %v4342, %v4338
        %v4963 = vpack.c.b16 %v4343, %v4339
        %v4964 = vpack.c.b16 %v4344, %v4340
        %v4965 = vpack.c.b16 %v4345, %v4341
        %v4966 = vpack.c.b16 %v4350, %v4346
        %v4967 = vpack.c.b16 %v4351, %v4347
        %v4968 = vpack.c.b16 %v4352, %v4348
        %v4969 = vpack.c.b16 %v4353, %v4349
        %v4970 = vpack.c.b16 %v4358, %v4354
        %v4971 = vpack.c.b16 %v4359, %v4355
        %v4972 = vpack.c.b16 %v4360, %v4356
        %v4973 = vpack.c.b16 %v4361, %v4357
        %v4974 = vpack.c.b16 %v4366, %v4362
        %v4975 = vpack.c.b16 %v4367, %v4363
        %v4976 = vpack.c.b16 %v4368, %v4364
        %v4977 = vpack.c.b16 %v4369, %v4365
        %v4978 = vpack.c.b16 %v4374, %v4370
        %v4979 = vpack.c.b16 %v4375, %v4371
        %v4980 = vpack.c.b16 %v4376, %v4372
        %v4981 = vpack.c.b16 %v4377, %v4373
        %v4982 = vpack.c.b16 %v4382, %v4378
        %v4983 = vpack.c.b16 %v4383, %v4379
        %v4984 = vpack.c.b16 %v4384, %v4380
        %v4985 = vpack.c.b16 %v4385, %v4381
        %v4986 = vpack.c.b16 %v4390, %v4386
        %v4987 = vpack.c.b16 %v4391, %v4387
        %v4988 = vpack.c.b16 %v4392, %v4388
        %v4989 = vpack.c.b16 %v4393, %v4389
        %v4990 = vpack.c.b16 %v4398, %v4394
        %v4991 = vpack.c.b16 %v4399, %v4395
        %v4992 = vpack.c.b16 %v4400, %v4396
        %v4993 = vpack.c.b16 %v4401, %v4397
        %v4994 = vpack.c.b16 %v4406, %v4402
        %v4995 = vpack.c.b16 %v4407, %v4403
        %v4996 = vpack.c.b16 %v4408, %v4404
        %v4997 = vpack.c.b16 %v4409, %v4405
        %v4998 = vpack.c.b16 %v4414, %v4410
        %v4999 = vpack.c.b16 %v4415, %v4411
        %v5000 = vpack.c.b16 %v4416, %v4412
        %v5001 = vpack.c.b16 %v4417, %v4413
        %v5002 = vpack.c.b16 %v4422, %v4418
        %v5003 = vpack.c.b16 %v4423, %v4419
        %v5004 = vpack.c.b16 %v4424, %v4420
        %v5005 = vpack.c.b16 %v4425, %v4421
        %v5006 = vpack.c.b16 %v4430, %v4426
        %v5007 = vpack.c.b16 %v4431, %v4427
        %v5008 = vpack.c.b16 %v4432, %v4428
        %v5009 = vpack.c.b16 %v4433, %v4429
        %v5010 = vpack.c.b16 %v4438, %v4434
        %v5011 = vpack.c.b16 %v4439, %v4435
        %v5012 = vpack.c.b16 %v4440, %v4436
        %v5013 = vpack.c.b16 %v4441, %v4437
        %v5014 = vpack.c.b16 %v4446, %v4442
        %v5015 = vpack.c.b16 %v4447, %v4443
        %v5016 = vpack.c.b16 %v4448, %v4444
        %v5017 = vpack.c.b16 %v4449, %v4445
        %v5018 = vpack.c.b16 %v4454, %v4450
        %v5019 = vpack.c.b16 %v4455, %v4451
        %v5020 = vpack.c.b16 %v4456, %v4452
        %v5021 = vpack.c.b16 %v4457, %v4453
        %v5022 = vpack.c.b16 %v4462, %v4458
        %v5023 = vpack.c.b16 %v4463, %v4459
        %v5024 = vpack.c.b16 %v4464, %v4460
        %v5025 = vpack.c.b16 %v4465, %v4461
        %v5026 = vpack.c.b16 %v4470, %v4466
        %v5027 = vpack.c.b16 %v4471, %v4467
        %v5028 = vpack.c.b16 %v4472, %v4468
        %v5029 = vpack.c.b16 %v4473, %v4469
        %v5030 = vpack.c.b16 %v4478, %v4474
        %v5031 = vpack.c.b16 %v4479, %v4475
        %v5032 = vpack.c.b16 %v4480, %v4476
        %v5033 = vpack.c.b16 %v4481, %v4477
        %v5034 = vpack.c.b16 %v4486, %v4482
        %v5035 = vpack.c.b16 %v4487, %v4483
        %v5036 = vpack.c.b16 %v4488, %v4484
        %v5037 = vpack.c.b16 %v4489, %v4485
        %v5038 = vpack.c.b16 %v4494, %v4490
        %v5039 = vpack.c.b16 %v4495, %v4491
        %v5040 = vpack.c.b16 %v4496, %v4492
        %v5041 = vpack.c.b16 %v4497, %v4493
        %v5042 = vpack.c.b16 %v4502, %v4498
        %v5043 = vpack.c.b16 %v4503, %v4499
        %v5044 = vpack.c.b16 %v4504, %v4500
        %v5045 = vpack.c.b16 %v4505, %v4501
        %v5046 = vpack.c.b16 %v4510, %v4506
        %v5047 = vpack.c.b16 %v4511, %v4507
        %v5048 = vpack.c.b16 %v4512, %v4508
        %v5049 = vpack.c.b16 %v4513, %v4509
        %v5050 = vpack.c.b16 %v4518, %v4514
        %v5051 = vpack.c.b16 %v4519, %v4515
        %v5052 = vpack.c.b16 %v4520, %v4516
        %v5053 = vpack.c.b16 %v4521, %v4517
        %v5054 = vpack.c.b16 %v4526, %v4522
        %v5055 = vpack.c.b16 %v4527, %v4523
        %v5056 = vpack.c.b16 %v4528, %v4524
        %v5057 = vpack.c.b16 %v4529, %v4525
        %v5058 = vpack.c.b16 %v4534, %v4530
        %v5059 = vpack.c.b16 %v4535, %v4531
        %v5060 = vpack.c.b16 %v4536, %v4532
        %v5061 = vpack.c.b16 %v4537, %v4533
        %v5062 = vpack.c.b16 %v4542, %v4538
        %v5063 = vpack.c.b16 %v4543, %v4539
        %v5064 = vpack.c.b16 %v4544, %v4540
        %v5065 = vpack.c.b16 %v4545, %v4541
        %v5066 = vpack.c.b16 %v4550, %v4546
        %v5067 = vpack.c.b16 %v4551, %v4547
        %v5068 = vpack.c.b16 %v4552, %v4548
        %v5069 = vpack.c.b16 %v4553, %v4549
        %v5070 = vpack.c.b16 %v4558, %v4554
        %v5071 = vpack.c.b16 %v4559, %v4555
        %v5072 = vpack.c.b16 %v4560, %v4556
        %v5073 = vpack.c.b16 %v4561, %v4557
        %v5074 = vpack.c.b16 %v4566, %v4562
        %v5075 = vpack.c.b16 %v4567, %v4563
        %v5076 = vpack.c.b16 %v4568, %v4564
        %v5077 = vpack.c.b16 %v4569, %v4565
        %v5078 = vpack.c.b16 %v4574, %v4570
        %v5079 = vpack.c.b16 %v4575, %v4571
        %v5080 = vpack.c.b16 %v4576, %v4572
        %v5081 = vpack.c.b16 %v4577, %v4573
        %v5082 = vpack.c.b16 %v4582, %v4578
        %v5083 = vpack.c.b16 %v4583, %v4579
        %v5084 = vpack.c.b16 %v4584, %v4580
        %v5085 = vpack.c.b16 %v4585, %v4581
        %v5086 = vpack.c.b16 %v4590, %v4586
        %v5087 = vpack.c.b16 %v4591, %v4587
        %v5088 = vpack.c.b16 %v4592, %v4588
        %v5089 = vpack.c.b16 %v4593, %v4589
        %v5090 = vpack.c.b16 %v4598, %v4594
        %v5091 = vpack.c.b16 %v4599, %v4595
        %v5092 = vpack.c.b16 %v4600, %v4596
        %v5093 = vpack.c.b16 %v4601, %v4597
        %v5094 = vpack.c.b16 %v4606, %v4602
        %v5095 = vpack.c.b16 %v4607, %v4603
        %v5096 = vpack.c.b16 %v4608, %v4604
        %v5097 = vpack.c.b16 %v4609, %v4605
        %v5098 = vpack.c.b16 %v4614, %v4610
        %v5099 = vpack.c.b16 %v4615, %v4611
        %v5100 = vpack.c.b16 %v4616, %v4612
        %v5101 = vpack.c.b16 %v4617, %v4613
        %v5102 = vpack.c.b16 %v4622, %v4618
        %v5103 = vpack.c.b16 %v4623, %v4619
        %v5104 = vpack.c.b16 %v4624, %v4620
        %v5105 = vpack.c.b16 %v4625, %v4621
        %5586 = vmatprep.subr.bf16.mxu0 %v4627
        %5587 = vmatpush1.bf16.msra.mxu0 %v4626
        %5588 = vmatprep.subr.bf16.mxu0 %v4631
        %5589 = vmatpush1.bf16.msra.mxu0 %v4630
        %5590 = vmatprep.subr.bf16.mxu0 %v4635
        %5591 = vmatpush1.bf16.msra.mxu0 %v4634
        %5592 = vmatprep.subr.bf16.mxu0 %v4639
        %5593 = vmatpush1.bf16.msra.mxu0 %v4638
        %5594 = vmatprep.subr.bf16.mxu0 %v4643
        %5595 = vmatpush1.bf16.msra.mxu0 %v4642
        %5596 = vmatprep.subr.bf16.mxu0 %v4647
        %5597 = vmatpush1.bf16.msra.mxu0 %v4646
        %5598 = vmatprep.subr.bf16.mxu0 %v4651
        %5599 = vmatpush1.bf16.msra.mxu0 %v4650
        %5600 = vmatprep.subr.bf16.mxu0 %v4655
        %5601 = vmatpush1.bf16.msra.mxu0 %v4654
        %5602 = vmatprep.subr.bf16.mxu0 %v4659
        %5603 = vmatpush1.bf16.msra.mxu0 %v4658
        %5604 = vmatprep.subr.bf16.mxu0 %v4663
        %5605 = vmatpush1.bf16.msra.mxu0 %v4662
        %5606 = vmatprep.subr.bf16.mxu0 %v4667
        %5607 = vmatpush1.bf16.msra.mxu0 %v4666
        %5608 = vmatprep.subr.bf16.mxu0 %v4671
        %5609 = vmatpush1.bf16.msra.mxu0 %v4670
        %5610 = vmatprep.subr.bf16.mxu0 %v4675
        %5611 = vmatpush1.bf16.msra.mxu0 %v4674
        %5612 = vmatprep.subr.bf16.mxu0 %v4679
        %5613 = vmatpush1.bf16.msra.mxu0 %v4678
        %5614 = vmatprep.subr.bf16.mxu0 %v4683
        %5615 = vmatpush1.bf16.msra.mxu0 %v4682
        %5616 = vmatprep.subr.bf16.mxu0 %v4687
        %5617 = vmatpush1.bf16.msra.mxu0 %v4686
        %5618 = vmatprep.mubr.bf16.mxu0 %v2587
        %5619 = vmatmul.mubr.bf16.gmra.mrb[0].mxu0 %v2586
        %v5620 = vpop.f32.mrb[0].mxu0
        %v5621 = vadd.f32 0.0, %v5620
        %v5622 = vpop.f32.mrb[0].mxu0
        %v5623 = vadd.f32 0.0, %v5622
        %v5624 = vpop.f32.mrb[0].mxu0
        %v5625 = vadd.f32 0.0, %v5624
        %v5626 = vpop.f32.mrb[0].mxu0
        %v5627 = vadd.f32 0.0, %v5626
        %5628 = vmatprep.mubr.bf16.mxu0 %v2602
        %5629 = vmatmul.mubr.bf16.gmra.mrb[0].mxu0 %v2601
        %v5630 = vpop.f32.mrb[0].mxu0
        %v5631 = vadd.f32 0.0, %v5630
        %v5632 = vpop.f32.mrb[0].mxu0
        %v5633 = vadd.f32 0.0, %v5632
        %v5634 = vpop.f32.mrb[0].mxu0
        %v5635 = vadd.f32 0.0, %v5634
        %v5636 = vpop.f32.mrb[0].mxu0
        %v5637 = vadd.f32 0.0, %v5636
        %5638 = vmatprep.mubr.bf16.mxu0 %v2617
        %5639 = vmatmul.mubr.bf16.gmra.mrb[0].mxu0 %v2616
        %v5640 = vpop.f32.mrb[0].mxu0
        %v5641 = vadd.f32 0.0, %v5640
        %v5642 = vpop.f32.mrb[0].mxu0
        %v5643 = vadd.f32 0.0, %v5642
        %v5644 = vpop.f32.mrb[0].mxu0
        %v5645 = vadd.f32 0.0, %v5644
        %v5646 = vpop.f32.mrb[0].mxu0
        %v5647 = vadd.f32 0.0, %v5646
        %5648 = vmatprep.mubr.bf16.mxu0 %v2632
        %5649 = vmatmul.mubr.bf16.gmra.mrb[0].mxu0 %v2631
        %v5650 = vpop.f32.mrb[0].mxu0
        %v5651 = vadd.f32 0.0, %v5650
        %v5652 = vpop.f32.mrb[0].mxu0
        %v5653 = vadd.f32 0.0, %v5652
        %v5654 = vpop.f32.mrb[0].mxu0
        %v5655 = vadd.f32 0.0, %v5654
        %v5656 = vpop.f32.mrb[0].mxu0
        %v5657 = vadd.f32 0.0, %v5656
        %5658 = vmatprep.mubr.bf16.mxu0 %v2647
        %5659 = vmatmul.mubr.bf16.gmra.mrb[0].mxu0 %v2646
        %v5660 = vpop.f32.mrb[0].mxu0
        %v5661 = vadd.f32 0.0, %v5660
        %v5662 = vpop.f32.mrb[0].mxu0
        %v5663 = vadd.f32 0.0, %v5662
        %v5664 = vpop.f32.mrb[0].mxu0
        %v5665 = vadd.f32 0.0, %v5664
        %v5666 = vpop.f32.mrb[0].mxu0
        %v5667 = vadd.f32 0.0, %v5666
        %5668 = vmatprep.mubr.bf16.mxu0 %v2662
        %5669 = vmatmul.mubr.bf16.gmra.mrb[0].mxu0 %v2661
        %v5670 = vpop.f32.mrb[0].mxu0
        %v5671 = vadd.f32 0.0, %v5670
        %v5672 = vpop.f32.mrb[0].mxu0
        %v5673 = vadd.f32 0.0, %v5672
        %v5674 = vpop.f32.mrb[0].mxu0
        %v5675 = vadd.f32 0.0, %v5674
        %v5676 = vpop.f32.mrb[0].mxu0
        %v5677 = vadd.f32 0.0, %v5676
        %5678 = vmatprep.mubr.bf16.mxu0 %v2677
        %5679 = vmatmul.mubr.bf16.gmra.mrb[0].mxu0 %v2676
        %v5680 = vpop.f32.mrb[0].mxu0
        %v5681 = vadd.f32 0.0, %v5680
        %v5682 = vpop.f32.mrb[0].mxu0
        %v5683 = vadd.f32 0.0, %v5682
        %v5684 = vpop.f32.mrb[0].mxu0
        %v5685 = vadd.f32 0.0, %v5684
        %v5686 = vpop.f32.mrb[0].mxu0
        %v5687 = vadd.f32 0.0, %v5686
        %5688 = vmatprep.mubr.bf16.mxu0 %v2692
        %5689 = vmatmul.mubr.bf16.gmra.mrb[0].mxu0 %v2691
        %v5690 = vpop.f32.mrb[0].mxu0
        %v5691 = vadd.f32 0.0, %v5690
        %v5692 = vpop.f32.mrb[0].mxu0
        %v5693 = vadd.f32 0.0, %v5692
        %v5694 = vpop.f32.mrb[0].mxu0
        %v5695 = vadd.f32 0.0, %v5694
        %v5696 = vpop.f32.mrb[0].mxu0
        %v5697 = vadd.f32 0.0, %v5696
        %5698 = vdwg.mxu0
        %5699 = vmatprep.subr.bf16.mxu0 %v4691
        %5700 = vmatpush1.bf16.msra.mxu0 %v4690
        %5701 = vmatprep.subr.bf16.mxu0 %v4695
        %5702 = vmatpush1.bf16.msra.mxu0 %v4694
        %5703 = vmatprep.subr.bf16.mxu0 %v4699
        %5704 = vmatpush1.bf16.msra.mxu0 %v4698
        %5705 = vmatprep.subr.bf16.mxu0 %v4703
        %5706 = vmatpush1.bf16.msra.mxu0 %v4702
        %5707 = vmatprep.subr.bf16.mxu0 %v4707
        %5708 = vmatpush1.bf16.msra.mxu0 %v4706
        %5709 = vmatprep.subr.bf16.mxu0 %v4711
        %5710 = vmatpush1.bf16.msra.mxu0 %v4710
        %5711 = vmatprep.subr.bf16.mxu0 %v4715
        %5712 = vmatpush1.bf16.msra.mxu0 %v4714
        %5713 = vmatprep.subr.bf16.mxu0 %v4719
        %5714 = vmatpush1.bf16.msra.mxu0 %v4718
        %5715 = vmatprep.subr.bf16.mxu0 %v4723
        %5716 = vmatpush1.bf16.msra.mxu0 %v4722
        %5717 = vmatprep.subr.bf16.mxu0 %v4727
        %5718 = vmatpush1.bf16.msra.mxu0 %v4726
        %5719 = vmatprep.subr.bf16.mxu0 %v4731
        %5720 = vmatpush1.bf16.msra.mxu0 %v4730
        %5721 = vmatprep.subr.bf16.mxu0 %v4735
        %5722 = vmatpush1.bf16.msra.mxu0 %v4734
        %5723 = vmatprep.subr.bf16.mxu0 %v4739
        %5724 = vmatpush1.bf16.msra.mxu0 %v4738
        %5725 = vmatprep.subr.bf16.mxu0 %v4743
        %5726 = vmatpush1.bf16.msra.mxu0 %v4742
        %5727 = vmatprep.subr.bf16.mxu0 %v4747
        %5728 = vmatpush1.bf16.msra.mxu0 %v4746
        %5729 = vmatprep.subr.bf16.mxu0 %v4751
        %5730 = vmatpush1.bf16.msra.mxu0 %v4750
        %5731 = vmatprep.mubr.bf16.mxu0 %v2589
        %5732 = vmatmul.mubr.bf16.gmra.mrb[0].mxu0 %v2588
        %v5733 = vpop.f32.mrb[0].mxu0
        %v5734 = vadd.f32 %v5621, %v5733
        %v5735 = vpop.f32.mrb[0].mxu0
        %v5736 = vadd.f32 %v5623, %v5735
        %v5737 = vpop.f32.mrb[0].mxu0
        %v5738 = vadd.f32 %v5625, %v5737
        %v5739 = vpop.f32.mrb[0].mxu0
        %v5740 = vadd.f32 %v5627, %v5739
        %5741 = vmatprep.mubr.bf16.mxu0 %v2604
        %5742 = vmatmul.mubr.bf16.gmra.mrb[0].mxu0 %v2603
        %v5743 = vpop.f32.mrb[0].mxu0
        %v5744 = vadd.f32 %v5631, %v5743
        %v5745 = vpop.f32.mrb[0].mxu0
        %v5746 = vadd.f32 %v5633, %v5745
        %v5747 = vpop.f32.mrb[0].mxu0
        %v5748 = vadd.f32 %v5635, %v5747
        %v5749 = vpop.f32.mrb[0].mxu0
        %v5750 = vadd.f32 %v5637, %v5749
        %5751 = vmatprep.mubr.bf16.mxu0 %v2619
        %5752 = vmatmul.mubr.bf16.gmra.mrb[0].mxu0 %v2618
        %v5753 = vpop.f32.mrb[0].mxu0
        %v5754 = vadd.f32 %v5641, %v5753
        %v5755 = vpop.f32.mrb[0].mxu0
        %v5756 = vadd.f32 %v5643, %v5755
        %v5757 = vpop.f32.mrb[0].mxu0
        %v5758 = vadd.f32 %v5645, %v5757
        %v5759 = vpop.f32.mrb[0].mxu0
        %v5760 = vadd.f32 %v5647, %v5759
        %5761 = vmatprep.mubr.bf16.mxu0 %v2634
        %5762 = vmatmul.mubr.bf16.gmra.mrb[0].mxu0 %v2633
        %v5763 = vpop.f32.mrb[0].mxu0
        %v5764 = vadd.f32 %v5651, %v5763
        %v5765 = vpop.f32.mrb[0].mxu0
        %v5766 = vadd.f32 %v5653, %v5765
        %v5767 = vpop.f32.mrb[0].mxu0
        %v5768 = vadd.f32 %v5655, %v5767
        %v5769 = vpop.f32.mrb[0].mxu0
        %v5770 = vadd.f32 %v5657, %v5769
        %5771 = vmatprep.mubr.bf16.mxu0 %v2649
        %5772 = vmatmul.mubr.bf16.gmra.mrb[0].mxu0 %v2648
        %v5773 = vpop.f32.mrb[0].mxu0
        %v5774 = vadd.f32 %v5661, %v5773
        %v5775 = vpop.f32.mrb[0].mxu0
        %v5776 = vadd.f32 %v5663, %v5775
        %v5777 = vpop.f32.mrb[0].mxu0
        %v5778 = vadd.f32 %v5665, %v5777
        %v5779 = vpop.f32.mrb[0].mxu0
        %v5780 = vadd.f32 %v5667, %v5779
        %5781 = vmatprep.mubr.bf16.mxu0 %v2664
        %5782 = vmatmul.mubr.bf16.gmra.mrb[0].mxu0 %v2663
        %v5783 = vpop.f32.mrb[0].mxu0
        %v5784 = vadd.f32 %v5671, %v5783
        %v5785 = vpop.f32.mrb[0].mxu0
        %v5786 = vadd.f32 %v5673, %v5785
        %v5787 = vpop.f32.mrb[0].mxu0
        %v5788 = vadd.f32 %v5675, %v5787
        %v5789 = vpop.f32.mrb[0].mxu0
        %v5790 = vadd.f32 %v5677, %v5789
        %5791 = vmatprep.mubr.bf16.mxu0 %v2679
        %5792 = vmatmul.mubr.bf16.gmra.mrb[0].mxu0 %v2678
        %v5793 = vpop.f32.mrb[0].mxu0
        %v5794 = vadd.f32 %v5681, %v5793
        %v5795 = vpop.f32.mrb[0].mxu0
        %v5796 = vadd.f32 %v5683, %v5795
        %v5797 = vpop.f32.mrb[0].mxu0
        %v5798 = vadd.f32 %v5685, %v5797
        %v5799 = vpop.f32.mrb[0].mxu0
        %v5800 = vadd.f32 %v5687, %v5799
        %5801 = vmatprep.mubr.bf16.mxu0 %v2694
        %5802 = vmatmul.mubr.bf16.gmra.mrb[0].mxu0 %v2693
        %v5803 = vpop.f32.mrb[0].mxu0
        %v5804 = vadd.f32 %v5691, %v5803
        %v5805 = vpop.f32.mrb[0].mxu0
        %v5806 = vadd.f32 %v5693, %v5805
        %v5807 = vpop.f32.mrb[0].mxu0
        %v5808 = vadd.f32 %v5695, %v5807
        %v5809 = vpop.f32.mrb[0].mxu0
        %v5810 = vadd.f32 %v5697, %v5809
        %5811 = vdwg.mxu0
        %5812 = vmatprep.subr.bf16.mxu0 %v4755
        %5813 = vmatpush1.bf16.msra.mxu0 %v4754
        %5814 = vmatprep.subr.bf16.mxu0 %v4759
        %5815 = vmatpush1.bf16.msra.mxu0 %v4758
        %5816 = vmatprep.subr.bf16.mxu0 %v4763
        %5817 = vmatpush1.bf16.msra.mxu0 %v4762
        %5818 = vmatprep.subr.bf16.mxu0 %v4767
        %5819 = vmatpush1.bf16.msra.mxu0 %v4766
        %5820 = vmatprep.subr.bf16.mxu0 %v4771
        %5821 = vmatpush1.bf16.msra.mxu0 %v4770
        %5822 = vmatprep.subr.bf16.mxu0 %v4775
        %5823 = vmatpush1.bf16.msra.mxu0 %v4774
        %5824 = vmatprep.subr.bf16.mxu0 %v4779
        %5825 = vmatpush1.bf16.msra.mxu0 %v4778
        %5826 = vmatprep.subr.bf16.mxu0 %v4783
        %5827 = vmatpush1.bf16.msra.mxu0 %v4782
        %5828 = vmatprep.subr.bf16.mxu0 %v4787
        %5829 = vmatpush1.bf16.msra.mxu0 %v4786
        %5830 = vmatprep.subr.bf16.mxu0 %v4791
        %5831 = vmatpush1.bf16.msra.mxu0 %v4790
        %5832 = vmatprep.subr.bf16.mxu0 %v4795
        %5833 = vmatpush1.bf16.msra.mxu0 %v4794
        %5834 = vmatprep.subr.bf16.mxu0 %v4799
        %5835 = vmatpush1.bf16.msra.mxu0 %v4798
        %5836 = vmatprep.subr.bf16.mxu0 %v4803
        %5837 = vmatpush1.bf16.msra.mxu0 %v4802
        %5838 = vmatprep.subr.bf16.mxu0 %v4807
        %5839 = vmatpush1.bf16.msra.mxu0 %v4806
        %5840 = vmatprep.subr.bf16.mxu0 %v4811
        %5841 = vmatpush1.bf16.msra.mxu0 %v4810
        %5842 = vmatprep.subr.bf16.mxu0 %v4815
        %5843 = vmatpush1.bf16.msra.mxu0 %v4814
        %5844 = vmatprep.mubr.bf16.mxu0 %v2591
        %5845 = vmatmul.mubr.bf16.gmra.mrb[0].mxu0 %v2590
        %v5846 = vpop.f32.mrb[0].mxu0
        %v5847 = vadd.f32 %v5734, %v5846
        %v5848 = vpop.f32.mrb[0].mxu0
        %v5849 = vadd.f32 %v5736, %v5848
        %v5850 = vpop.f32.mrb[0].mxu0
        %v5851 = vadd.f32 %v5738, %v5850
        %v5852 = vpop.f32.mrb[0].mxu0
        %v5853 = vadd.f32 %v5740, %v5852
        %5854 = vmatprep.mubr.bf16.mxu0 %v2606
        %5855 = vmatmul.mubr.bf16.gmra.mrb[0].mxu0 %v2605
        %v5856 = vpop.f32.mrb[0].mxu0
        %v5857 = vadd.f32 %v5744, %v5856
        %v5858 = vpop.f32.mrb[0].mxu0
        %v5859 = vadd.f32 %v5746, %v5858
        %v5860 = vpop.f32.mrb[0].mxu0
        %v5861 = vadd.f32 %v5748, %v5860
        %v5862 = vpop.f32.mrb[0].mxu0
        %v5863 = vadd.f32 %v5750, %v5862
        %5864 = vmatprep.mubr.bf16.mxu0 %v2621
        %5865 = vmatmul.mubr.bf16.gmra.mrb[0].mxu0 %v2620
        %v5866 = vpop.f32.mrb[0].mxu0
        %v5867 = vadd.f32 %v5754, %v5866
        %v5868 = vpop.f32.mrb[0].mxu0
        %v5869 = vadd.f32 %v5756, %v5868
        %v5870 = vpop.f32.mrb[0].mxu0
        %v5871 = vadd.f32 %v5758, %v5870
        %v5872 = vpop.f32.mrb[0].mxu0
        %v5873 = vadd.f32 %v5760, %v5872
        %5874 = vmatprep.mubr.bf16.mxu0 %v2636
        %5875 = vmatmul.mubr.bf16.gmra.mrb[0].mxu0 %v2635
        %v5876 = vpop.f32.mrb[0].mxu0
        %v5877 = vadd.f32 %v5764, %v5876
        %v5878 = vpop.f32.mrb[0].mxu0
        %v5879 = vadd.f32 %v5766, %v5878
        %v5880 = vpop.f32.mrb[0].mxu0
        %v5881 = vadd.f32 %v5768, %v5880
        %v5882 = vpop.f32.mrb[0].mxu0
        %v5883 = vadd.f32 %v5770, %v5882
        %5884 = vmatprep.mubr.bf16.mxu0 %v2651
        %5885 = vmatmul.mubr.bf16.gmra.mrb[0].mxu0 %v2650
        %v5886 = vpop.f32.mrb[0].mxu0
        %v5887 = vadd.f32 %v5774, %v5886
        %v5888 = vpop.f32.mrb[0].mxu0
        %v5889 = vadd.f32 %v5776, %v5888
        %v5890 = vpop.f32.mrb[0].mxu0
        %v5891 = vadd.f32 %v5778, %v5890
        %v5892 = vpop.f32.mrb[0].mxu0
        %v5893 = vadd.f32 %v5780, %v5892
        %5894 = vmatprep.mubr.bf16.mxu0 %v2666
        %5895 = vmatmul.mubr.bf16.gmra.mrb[0].mxu0 %v2665
        %v5896 = vpop.f32.mrb[0].mxu0
        %v5897 = vadd.f32 %v5784, %v5896
        %v5898 = vpop.f32.mrb[0].mxu0
        %v5899 = vadd.f32 %v5786, %v5898
        %v5900 = vpop.f32.mrb[0].mxu0
        %v5901 = vadd.f32 %v5788, %v5900
        %v5902 = vpop.f32.mrb[0].mxu0
        %v5903 = vadd.f32 %v5790, %v5902
        %5904 = vmatprep.mubr.bf16.mxu0 %v2681
        %5905 = vmatmul.mubr.bf16.gmra.mrb[0].mxu0 %v2680
        %v5906 = vpop.f32.mrb[0].mxu0
        %v5907 = vadd.f32 %v5794, %v5906
        %v5908 = vpop.f32.mrb[0].mxu0
        %v5909 = vadd.f32 %v5796, %v5908
        %v5910 = vpop.f32.mrb[0].mxu0
        %v5911 = vadd.f32 %v5798, %v5910
        %v5912 = vpop.f32.mrb[0].mxu0
        %v5913 = vadd.f32 %v5800, %v5912
        %5914 = vmatprep.mubr.bf16.mxu0 %v2696
        %5915 = vmatmul.mubr.bf16.gmra.mrb[0].mxu0 %v2695
        %v5916 = vpop.f32.mrb[0].mxu0
        %v5917 = vadd.f32 %v5804, %v5916
        %v5918 = vpop.f32.mrb[0].mxu0
        %v5919 = vadd.f32 %v5806, %v5918
        %v5920 = vpop.f32.mrb[0].mxu0
        %v5921 = vadd.f32 %v5808, %v5920
        %v5922 = vpop.f32.mrb[0].mxu0
        %v5923 = vadd.f32 %v5810, %v5922
        %5924 = vdwg.mxu0
        %5925 = vmatprep.subr.bf16.mxu0 %v4819
        %5926 = vmatpush1.bf16.msra.mxu0 %v4818
        %5927 = vmatprep.subr.bf16.mxu0 %v4823
        %5928 = vmatpush1.bf16.msra.mxu0 %v4822
        %5929 = vmatprep.subr.bf16.mxu0 %v4827
        %5930 = vmatpush1.bf16.msra.mxu0 %v4826
        %5931 = vmatprep.subr.bf16.mxu0 %v4831
        %5932 = vmatpush1.bf16.msra.mxu0 %v4830
        %5933 = vmatprep.subr.bf16.mxu0 %v4835
        %5934 = vmatpush1.bf16.msra.mxu0 %v4834
        %5935 = vmatprep.subr.bf16.mxu0 %v4839
        %5936 = vmatpush1.bf16.msra.mxu0 %v4838
        %5937 = vmatprep.subr.bf16.mxu0 %v4843
        %5938 = vmatpush1.bf16.msra.mxu0 %v4842
        %5939 = vmatprep.subr.bf16.mxu0 %v4847
        %5940 = vmatpush1.bf16.msra.mxu0 %v4846
        %5941 = vmatprep.subr.bf16.mxu0 %v4851
        %5942 = vmatpush1.bf16.msra.mxu0 %v4850
        %5943 = vmatprep.subr.bf16.mxu0 %v4855
        %5944 = vmatpush1.bf16.msra.mxu0 %v4854
        %5945 = vmatprep.subr.bf16.mxu0 %v4859
        %5946 = vmatpush1.bf16.msra.mxu0 %v4858
        %5947 = vmatprep.subr.bf16.mxu0 %v4863
        %5948 = vmatpush1.bf16.msra.mxu0 %v4862
        %5949 = vmatprep.subr.bf16.mxu0 %v4867
        %5950 = vmatpush1.bf16.msra.mxu0 %v4866
        %5951 = vmatprep.subr.bf16.mxu0 %v4871
        %5952 = vmatpush1.bf16.msra.mxu0 %v4870
        %5953 = vmatprep.subr.bf16.mxu0 %v4875
        %5954 = vmatpush1.bf16.msra.mxu0 %v4874
        %5955 = vmatprep.subr.bf16.mxu0 %v4879
        %5956 = vmatpush1.bf16.msra.mxu0 %v4878
        %5957 = vmatprep.mubr.bf16.mxu0 %v2593
        %5958 = vmatmul.mubr.bf16.gmra.mrb[0].mxu0 %v2592
        %v5959 = vpop.f32.mrb[0].mxu0
        %v5960 = vadd.f32 %v5847, %v5959
        %v5961 = vpop.f32.mrb[0].mxu0
        %v5962 = vadd.f32 %v5849, %v5961
        %v5963 = vpop.f32.mrb[0].mxu0
        %v5964 = vadd.f32 %v5851, %v5963
        %v5965 = vpop.f32.mrb[0].mxu0
        %v5966 = vadd.f32 %v5853, %v5965
        %5967 = vmatprep.mubr.bf16.mxu0 %v2608
        %5968 = vmatmul.mubr.bf16.gmra.mrb[0].mxu0 %v2607
        %v5969 = vpop.f32.mrb[0].mxu0
        %v5970 = vadd.f32 %v5857, %v5969
        %v5971 = vpop.f32.mrb[0].mxu0
        %v5972 = vadd.f32 %v5859, %v5971
        %v5973 = vpop.f32.mrb[0].mxu0
        %v5974 = vadd.f32 %v5861, %v5973
        %v5975 = vpop.f32.mrb[0].mxu0
        %v5976 = vadd.f32 %v5863, %v5975
        %5977 = vmatprep.mubr.bf16.mxu0 %v2623
        %5978 = vmatmul.mubr.bf16.gmra.mrb[0].mxu0 %v2622
        %v5979 = vpop.f32.mrb[0].mxu0
        %v5980 = vadd.f32 %v5867, %v5979
        %v5981 = vpop.f32.mrb[0].mxu0
        %v5982 = vadd.f32 %v5869, %v5981
        %v5983 = vpop.f32.mrb[0].mxu0
        %v5984 = vadd.f32 %v5871, %v5983
        %v5985 = vpop.f32.mrb[0].mxu0
        %v5986 = vadd.f32 %v5873, %v5985
        %5987 = vmatprep.mubr.bf16.mxu0 %v2638
        %5988 = vmatmul.mubr.bf16.gmra.mrb[0].mxu0 %v2637
        %v5989 = vpop.f32.mrb[0].mxu0
        %v5990 = vadd.f32 %v5877, %v5989
        %v5991 = vpop.f32.mrb[0].mxu0
        %v5992 = vadd.f32 %v5879, %v5991
        %v5993 = vpop.f32.mrb[0].mxu0
        %v5994 = vadd.f32 %v5881, %v5993
        %v5995 = vpop.f32.mrb[0].mxu0
        %v5996 = vadd.f32 %v5883, %v5995
        %5997 = vmatprep.mubr.bf16.mxu0 %v2653
        %5998 = vmatmul.mubr.bf16.gmra.mrb[0].mxu0 %v2652
        %v5999 = vpop.f32.mrb[0].mxu0
        %v6000 = vadd.f32 %v5887, %v5999
        %v6001 = vpop.f32.mrb[0].mxu0
        %v6002 = vadd.f32 %v5889, %v6001
        %v6003 = vpop.f32.mrb[0].mxu0
        %v6004 = vadd.f32 %v5891, %v6003
        %v6005 = vpop.f32.mrb[0].mxu0
        %v6006 = vadd.f32 %v5893, %v6005
        %6007 = vmatprep.mubr.bf16.mxu0 %v2668
        %6008 = vmatmul.mubr.bf16.gmra.mrb[0].mxu0 %v2667
        %v6009 = vpop.f32.mrb[0].mxu0
        %v6010 = vadd.f32 %v5897, %v6009
        %v6011 = vpop.f32.mrb[0].mxu0
        %v6012 = vadd.f32 %v5899, %v6011
        %v6013 = vpop.f32.mrb[0].mxu0
        %v6014 = vadd.f32 %v5901, %v6013
        %v6015 = vpop.f32.mrb[0].mxu0
        %v6016 = vadd.f32 %v5903, %v6015
        %6017 = vmatprep.mubr.bf16.mxu0 %v2683
        %6018 = vmatmul.mubr.bf16.gmra.mrb[0].mxu0 %v2682
        %v6019 = vpop.f32.mrb[0].mxu0
        %v6020 = vadd.f32 %v5907, %v6019
        %v6021 = vpop.f32.mrb[0].mxu0
        %v6022 = vadd.f32 %v5909, %v6021
        %v6023 = vpop.f32.mrb[0].mxu0
        %v6024 = vadd.f32 %v5911, %v6023
        %v6025 = vpop.f32.mrb[0].mxu0
        %v6026 = vadd.f32 %v5913, %v6025
        %6027 = vmatprep.mubr.bf16.mxu0 %v2698
        %6028 = vmatmul.mubr.bf16.gmra.mrb[0].mxu0 %v2697
        %v6029 = vpop.f32.mrb[0].mxu0
        %v6030 = vadd.f32 %v5917, %v6029
        %v6031 = vpop.f32.mrb[0].mxu0
        %v6032 = vadd.f32 %v5919, %v6031
        %v6033 = vpop.f32.mrb[0].mxu0
        %v6034 = vadd.f32 %v5921, %v6033
        %v6035 = vpop.f32.mrb[0].mxu0
        %v6036 = vadd.f32 %v5923, %v6035
        %6037 = vdwg.mxu0
        %6038 = vmatprep.subr.bf16.mxu0 %v4883
        %6039 = vmatpush1.bf16.msra.mxu0 %v4882
        %6040 = vmatprep.subr.bf16.mxu0 %v4887
        %6041 = vmatpush1.bf16.msra.mxu0 %v4886
        %6042 = vmatprep.subr.bf16.mxu0 %v4891
        %6043 = vmatpush1.bf16.msra.mxu0 %v4890
        %6044 = vmatprep.subr.bf16.mxu0 %v4895
        %6045 = vmatpush1.bf16.msra.mxu0 %v4894
        %6046 = vmatprep.subr.bf16.mxu0 %v4899
        %6047 = vmatpush1.bf16.msra.mxu0 %v4898
        %6048 = vmatprep.subr.bf16.mxu0 %v4903
        %6049 = vmatpush1.bf16.msra.mxu0 %v4902
        %6050 = vmatprep.subr.bf16.mxu0 %v4907
        %6051 = vmatpush1.bf16.msra.mxu0 %v4906
        %6052 = vmatprep.subr.bf16.mxu0 %v4911
        %6053 = vmatpush1.bf16.msra.mxu0 %v4910
        %6054 = vmatprep.subr.bf16.mxu0 %v4915
        %6055 = vmatpush1.bf16.msra.mxu0 %v4914
        %6056 = vmatprep.subr.bf16.mxu0 %v4919
        %6057 = vmatpush1.bf16.msra.mxu0 %v4918
        %6058 = vmatprep.subr.bf16.mxu0 %v4923
        %6059 = vmatpush1.bf16.msra.mxu0 %v4922
        %6060 = vmatprep.subr.bf16.mxu0 %v4927
        %6061 = vmatpush1.bf16.msra.mxu0 %v4926
        %6062 = vmatprep.subr.bf16.mxu0 %v4931
        %6063 = vmatpush1.bf16.msra.mxu0 %v4930
        %6064 = vmatprep.subr.bf16.mxu0 %v4935
        %6065 = vmatpush1.bf16.msra.mxu0 %v4934
        %6066 = vmatprep.subr.bf16.mxu0 %v4939
        %6067 = vmatpush1.bf16.msra.mxu0 %v4938
        %6068 = vmatprep.subr.bf16.mxu0 %v4943
        %6069 = vmatpush1.bf16.msra.mxu0 %v4942
        %6070 = vmatprep.mubr.bf16.mxu0 %v2595
        %6071 = vmatmul.mubr.bf16.gmra.mrb[0].mxu0 %v2594
        %v6072 = vpop.f32.mrb[0].mxu0
        %v6073 = vadd.f32 %v5960, %v6072
        %v6074 = vpop.f32.mrb[0].mxu0
        %v6075 = vadd.f32 %v5962, %v6074
        %v6076 = vpop.f32.mrb[0].mxu0
        %v6077 = vadd.f32 %v5964, %v6076
        %v6078 = vpop.f32.mrb[0].mxu0
        %v6079 = vadd.f32 %v5966, %v6078
        %6080 = vmatprep.mubr.bf16.mxu0 %v2610
        %6081 = vmatmul.mubr.bf16.gmra.mrb[0].mxu0 %v2609
        %v6082 = vpop.f32.mrb[0].mxu0
        %v6083 = vadd.f32 %v5970, %v6082
        %v6084 = vpop.f32.mrb[0].mxu0
        %v6085 = vadd.f32 %v5972, %v6084
        %v6086 = vpop.f32.mrb[0].mxu0
        %v6087 = vadd.f32 %v5974, %v6086
        %v6088 = vpop.f32.mrb[0].mxu0
        %v6089 = vadd.f32 %v5976, %v6088
        %6090 = vmatprep.mubr.bf16.mxu0 %v2625
        %6091 = vmatmul.mubr.bf16.gmra.mrb[0].mxu0 %v2624
        %v6092 = vpop.f32.mrb[0].mxu0
        %v6093 = vadd.f32 %v5980, %v6092
        %v6094 = vpop.f32.mrb[0].mxu0
        %v6095 = vadd.f32 %v5982, %v6094
        %v6096 = vpop.f32.mrb[0].mxu0
        %v6097 = vadd.f32 %v5984, %v6096
        %v6098 = vpop.f32.mrb[0].mxu0
        %v6099 = vadd.f32 %v5986, %v6098
        %6100 = vmatprep.mubr.bf16.mxu0 %v2640
        %6101 = vmatmul.mubr.bf16.gmra.mrb[0].mxu0 %v2639
        %v6102 = vpop.f32.mrb[0].mxu0
        %v6103 = vadd.f32 %v5990, %v6102
        %v6104 = vpop.f32.mrb[0].mxu0
        %v6105 = vadd.f32 %v5992, %v6104
        %v6106 = vpop.f32.mrb[0].mxu0
        %v6107 = vadd.f32 %v5994, %v6106
        %v6108 = vpop.f32.mrb[0].mxu0
        %v6109 = vadd.f32 %v5996, %v6108
        %6110 = vmatprep.mubr.bf16.mxu0 %v2655
        %6111 = vmatmul.mubr.bf16.gmra.mrb[0].mxu0 %v2654
        %v6112 = vpop.f32.mrb[0].mxu0
        %v6113 = vadd.f32 %v6000, %v6112
        %v6114 = vpop.f32.mrb[0].mxu0
        %v6115 = vadd.f32 %v6002, %v6114
        %v6116 = vpop.f32.mrb[0].mxu0
        %v6117 = vadd.f32 %v6004, %v6116
        %v6118 = vpop.f32.mrb[0].mxu0
        %v6119 = vadd.f32 %v6006, %v6118
        %6120 = vmatprep.mubr.bf16.mxu0 %v2670
        %6121 = vmatmul.mubr.bf16.gmra.mrb[0].mxu0 %v2669
        %v6122 = vpop.f32.mrb[0].mxu0
        %v6123 = vadd.f32 %v6010, %v6122
        %v6124 = vpop.f32.mrb[0].mxu0
        %v6125 = vadd.f32 %v6012, %v6124
        %v6126 = vpop.f32.mrb[0].mxu0
        %v6127 = vadd.f32 %v6014, %v6126
        %v6128 = vpop.f32.mrb[0].mxu0
        %v6129 = vadd.f32 %v6016, %v6128
        %6130 = vmatprep.mubr.bf16.mxu0 %v2685
        %6131 = vmatmul.mubr.bf16.gmra.mrb[0].mxu0 %v2684
        %v6132 = vpop.f32.mrb[0].mxu0
        %v6133 = vadd.f32 %v6020, %v6132
        %v6134 = vpop.f32.mrb[0].mxu0
        %v6135 = vadd.f32 %v6022, %v6134
        %v6136 = vpop.f32.mrb[0].mxu0
        %v6137 = vadd.f32 %v6024, %v6136
        %v6138 = vpop.f32.mrb[0].mxu0
        %v6139 = vadd.f32 %v6026, %v6138
        %6140 = vmatprep.mubr.bf16.mxu0 %v2700
        %6141 = vmatmul.mubr.bf16.gmra.mrb[0].mxu0 %v2699
        %v6142 = vpop.f32.mrb[0].mxu0
        %v6143 = vadd.f32 %v6030, %v6142
        %v6144 = vpop.f32.mrb[0].mxu0
        %v6145 = vadd.f32 %v6032, %v6144
        %v6146 = vpop.f32.mrb[0].mxu0
        %v6147 = vadd.f32 %v6034, %v6146
        %v6148 = vpop.f32.mrb[0].mxu0
        %v6149 = vadd.f32 %v6036, %v6148
        %6150 = vdwg.mxu0
        %6151 = vmatprep.subr.bf16.mxu0 %v4947
        %6152 = vmatpush1.bf16.msra.mxu0 %v4946
        %6153 = vmatprep.subr.bf16.mxu0 %v4951
        %6154 = vmatpush1.bf16.msra.mxu0 %v4950
        %6155 = vmatprep.subr.bf16.mxu0 %v4955
        %6156 = vmatpush1.bf16.msra.mxu0 %v4954
        %6157 = vmatprep.subr.bf16.mxu0 %v4959
        %6158 = vmatpush1.bf16.msra.mxu0 %v4958
        %6159 = vmatprep.subr.bf16.mxu0 %v4963
        %6160 = vmatpush1.bf16.msra.mxu0 %v4962
        %6161 = vmatprep.subr.bf16.mxu0 %v4967
        %6162 = vmatpush1.bf16.msra.mxu0 %v4966
        %6163 = vmatprep.subr.bf16.mxu0 %v4971
        %6164 = vmatpush1.bf16.msra.mxu0 %v4970
        %6165 = vmatprep.subr.bf16.mxu0 %v4975
        %6166 = vmatpush1.bf16.msra.mxu0 %v4974
        %6167 = vmatprep.subr.bf16.mxu0 %v4979
        %6168 = vmatpush1.bf16.msra.mxu0 %v4978
        %6169 = vmatprep.subr.bf16.mxu0 %v4983
        %6170 = vmatpush1.bf16.msra.mxu0 %v4982
        %6171 = vmatprep.subr.bf16.mxu0 %v4987
        %6172 = vmatpush1.bf16.msra.mxu0 %v4986
        %6173 = vmatprep.subr.bf16.mxu0 %v4991
        %6174 = vmatpush1.bf16.msra.mxu0 %v4990
        %6175 = vmatprep.subr.bf16.mxu0 %v4995
        %6176 = vmatpush1.bf16.msra.mxu0 %v4994
        %6177 = vmatprep.subr.bf16.mxu0 %v4999
        %6178 = vmatpush1.bf16.msra.mxu0 %v4998
        %6179 = vmatprep.subr.bf16.mxu0 %v5003
        %6180 = vmatpush1.bf16.msra.mxu0 %v5002
        %6181 = vmatprep.subr.bf16.mxu0 %v5007
        %6182 = vmatpush1.bf16.msra.mxu0 %v5006
        %6183 = vmatprep.mubr.bf16.mxu0 %v2597
        %6184 = vmatmul.mubr.bf16.gmra.mrb[0].mxu0 %v2596
        %v6185 = vpop.f32.mrb[0].mxu0
        %v6186 = vadd.f32 %v6073, %v6185
        %v6187 = vpop.f32.mrb[0].mxu0
        %v6188 = vadd.f32 %v6075, %v6187
        %v6189 = vpop.f32.mrb[0].mxu0
        %v6190 = vadd.f32 %v6077, %v6189
        %v6191 = vpop.f32.mrb[0].mxu0
        %v6192 = vadd.f32 %v6079, %v6191
        %6193 = vmatprep.mubr.bf16.mxu0 %v2612
        %6194 = vmatmul.mubr.bf16.gmra.mrb[0].mxu0 %v2611
        %v6195 = vpop.f32.mrb[0].mxu0
        %v6196 = vadd.f32 %v6083, %v6195
        %v6197 = vpop.f32.mrb[0].mxu0
        %v6198 = vadd.f32 %v6085, %v6197
        %v6199 = vpop.f32.mrb[0].mxu0
        %v6200 = vadd.f32 %v6087, %v6199
        %v6201 = vpop.f32.mrb[0].mxu0
        %v6202 = vadd.f32 %v6089, %v6201
        %6203 = vmatprep.mubr.bf16.mxu0 %v2627
        %6204 = vmatmul.mubr.bf16.gmra.mrb[0].mxu0 %v2626
        %v6205 = vpop.f32.mrb[0].mxu0
        %v6206 = vadd.f32 %v6093, %v6205
        %v6207 = vpop.f32.mrb[0].mxu0
        %v6208 = vadd.f32 %v6095, %v6207
        %v6209 = vpop.f32.mrb[0].mxu0
        %v6210 = vadd.f32 %v6097, %v6209
        %v6211 = vpop.f32.mrb[0].mxu0
        %v6212 = vadd.f32 %v6099, %v6211
        %6213 = vmatprep.mubr.bf16.mxu0 %v2642
        %6214 = vmatmul.mubr.bf16.gmra.mrb[0].mxu0 %v2641
        %v6215 = vpop.f32.mrb[0].mxu0
        %v6216 = vadd.f32 %v6103, %v6215
        %v6217 = vpop.f32.mrb[0].mxu0
        %v6218 = vadd.f32 %v6105, %v6217
        %v6219 = vpop.f32.mrb[0].mxu0
        %v6220 = vadd.f32 %v6107, %v6219
        %v6221 = vpop.f32.mrb[0].mxu0
        %v6222 = vadd.f32 %v6109, %v6221
        %6223 = vmatprep.mubr.bf16.mxu0 %v2657
        %6224 = vmatmul.mubr.bf16.gmra.mrb[0].mxu0 %v2656
        %v6225 = vpop.f32.mrb[0].mxu0
        %v6226 = vadd.f32 %v6113, %v6225
        %v6227 = vpop.f32.mrb[0].mxu0
        %v6228 = vadd.f32 %v6115, %v6227
        %v6229 = vpop.f32.mrb[0].mxu0
        %v6230 = vadd.f32 %v6117, %v6229
        %v6231 = vpop.f32.mrb[0].mxu0
        %v6232 = vadd.f32 %v6119, %v6231
        %6233 = vmatprep.mubr.bf16.mxu0 %v2672
        %6234 = vmatmul.mubr.bf16.gmra.mrb[0].mxu0 %v2671
        %v6235 = vpop.f32.mrb[0].mxu0
        %v6236 = vadd.f32 %v6123, %v6235
        %v6237 = vpop.f32.mrb[0].mxu0
        %v6238 = vadd.f32 %v6125, %v6237
        %v6239 = vpop.f32.mrb[0].mxu0
        %v6240 = vadd.f32 %v6127, %v6239
        %v6241 = vpop.f32.mrb[0].mxu0
        %v6242 = vadd.f32 %v6129, %v6241
        %6243 = vmatprep.mubr.bf16.mxu0 %v2687
        %6244 = vmatmul.mubr.bf16.gmra.mrb[0].mxu0 %v2686
        %v6245 = vpop.f32.mrb[0].mxu0
        %v6246 = vadd.f32 %v6133, %v6245
        %v6247 = vpop.f32.mrb[0].mxu0
        %v6248 = vadd.f32 %v6135, %v6247
        %v6249 = vpop.f32.mrb[0].mxu0
        %v6250 = vadd.f32 %v6137, %v6249
        %v6251 = vpop.f32.mrb[0].mxu0
        %v6252 = vadd.f32 %v6139, %v6251
        %6253 = vmatprep.mubr.bf16.mxu0 %v2702
        %6254 = vmatmul.mubr.bf16.gmra.mrb[0].mxu0 %v2701
        %v6255 = vpop.f32.mrb[0].mxu0
        %v6256 = vadd.f32 %v6143, %v6255
        %v6257 = vpop.f32.mrb[0].mxu0
        %v6258 = vadd.f32 %v6145, %v6257
        %v6259 = vpop.f32.mrb[0].mxu0
        %v6260 = vadd.f32 %v6147, %v6259
        %v6261 = vpop.f32.mrb[0].mxu0
        %v6262 = vadd.f32 %v6149, %v6261
        %6263 = vdwg.mxu0
        %6264 = vmatprep.subr.bf16.mxu0 %v5011
        %6265 = vmatpush1.bf16.msra.mxu0 %v5010
        %6266 = vmatprep.subr.bf16.mxu0 %v5015
        %6267 = vmatpush1.bf16.msra.mxu0 %v5014
        %6268 = vmatprep.subr.bf16.mxu0 %v5019
        %6269 = vmatpush1.bf16.msra.mxu0 %v5018
        %6270 = vmatprep.subr.bf16.mxu0 %v5023
        %6271 = vmatpush1.bf16.msra.mxu0 %v5022
        %6272 = vmatprep.subr.bf16.mxu0 %v5027
        %6273 = vmatpush1.bf16.msra.mxu0 %v5026
        %6274 = vmatprep.subr.bf16.mxu0 %v5031
        %6275 = vmatpush1.bf16.msra.mxu0 %v5030
        %6276 = vmatprep.subr.bf16.mxu0 %v5035
        %6277 = vmatpush1.bf16.msra.mxu0 %v5034
        %6278 = vmatprep.subr.bf16.mxu0 %v5039
        %6279 = vmatpush1.bf16.msra.mxu0 %v5038
        %6280 = vmatprep.subr.bf16.mxu0 %v5043
        %6281 = vmatpush1.bf16.msra.mxu0 %v5042
        %6282 = vmatprep.subr.bf16.mxu0 %v5047
        %6283 = vmatpush1.bf16.msra.mxu0 %v5046
        %6284 = vmatprep.subr.bf16.mxu0 %v5051
        %6285 = vmatpush1.bf16.msra.mxu0 %v5050
        %6286 = vmatprep.subr.bf16.mxu0 %v5055
        %6287 = vmatpush1.bf16.msra.mxu0 %v5054
        %6288 = vmatprep.subr.bf16.mxu0 %v5059
        %6289 = vmatpush1.bf16.msra.mxu0 %v5058
        %6290 = vmatprep.subr.bf16.mxu0 %v5063
        %6291 = vmatpush1.bf16.msra.mxu0 %v5062
        %6292 = vmatprep.subr.bf16.mxu0 %v5067
        %6293 = vmatpush1.bf16.msra.mxu0 %v5066
        %6294 = vmatprep.subr.bf16.mxu0 %v5071
        %6295 = vmatpush1.bf16.msra.mxu0 %v5070
        %6296 = vmatprep.mubr.bf16.mxu0 %v2599
        %6297 = vmatmul.mubr.bf16.gmra.mrb[0].mxu0 %v2598
        %v6298 = vpop.f32.mrb[0].mxu0
        %v6299 = vadd.f32 %v6186, %v6298
        %v6300 = vpop.f32.mrb[0].mxu0
        %v6301 = vadd.f32 %v6188, %v6300
        %v6302 = vpop.f32.mrb[0].mxu0
        %v6303 = vadd.f32 %v6190, %v6302
        %v6304 = vpop.f32.mrb[0].mxu0
        %v6305 = vadd.f32 %v6192, %v6304
        %6306 = vmatprep.mubr.bf16.mxu0 %v2614
        %6307 = vmatmul.mubr.bf16.gmra.mrb[0].mxu0 %v2613
        %v6308 = vpop.f32.mrb[0].mxu0
        %v6309 = vadd.f32 %v6196, %v6308
        %v6310 = vpop.f32.mrb[0].mxu0
        %v6311 = vadd.f32 %v6198, %v6310
        %v6312 = vpop.f32.mrb[0].mxu0
        %v6313 = vadd.f32 %v6200, %v6312
        %v6314 = vpop.f32.mrb[0].mxu0
        %v6315 = vadd.f32 %v6202, %v6314
        %6316 = vmatprep.mubr.bf16.mxu0 %v2629
        %6317 = vmatmul.mubr.bf16.gmra.mrb[0].mxu0 %v2628
        %v6318 = vpop.f32.mrb[0].mxu0
        %v6319 = vadd.f32 %v6206, %v6318
        %v6320 = vpop.f32.mrb[0].mxu0
        %v6321 = vadd.f32 %v6208, %v6320
        %v6322 = vpop.f32.mrb[0].mxu0
        %v6323 = vadd.f32 %v6210, %v6322
        %v6324 = vpop.f32.mrb[0].mxu0
        %v6325 = vadd.f32 %v6212, %v6324
        %6326 = vmatprep.mubr.bf16.mxu0 %v2644
        %6327 = vmatmul.mubr.bf16.gmra.mrb[0].mxu0 %v2643
        %v6328 = vpop.f32.mrb[0].mxu0
        %v6329 = vadd.f32 %v6216, %v6328
        %v6330 = vpop.f32.mrb[0].mxu0
        %v6331 = vadd.f32 %v6218, %v6330
        %v6332 = vpop.f32.mrb[0].mxu0
        %v6333 = vadd.f32 %v6220, %v6332
        %v6334 = vpop.f32.mrb[0].mxu0
        %v6335 = vadd.f32 %v6222, %v6334
        %6336 = vmatprep.mubr.bf16.mxu0 %v2659
        %6337 = vmatmul.mubr.bf16.gmra.mrb[0].mxu0 %v2658
        %v6338 = vpop.f32.mrb[0].mxu0
        %v6339 = vadd.f32 %v6226, %v6338
        %v6340 = vpop.f32.mrb[0].mxu0
        %v6341 = vadd.f32 %v6228, %v6340
        %v6342 = vpop.f32.mrb[0].mxu0
        %v6343 = vadd.f32 %v6230, %v6342
        %v6344 = vpop.f32.mrb[0].mxu0
        %v6345 = vadd.f32 %v6232, %v6344
        %6346 = vmatprep.mubr.bf16.mxu0 %v2674
        %6347 = vmatmul.mubr.bf16.gmra.mrb[0].mxu0 %v2673
        %v6348 = vpop.f32.mrb[0].mxu0
        %v6349 = vadd.f32 %v6236, %v6348
        %v6350 = vpop.f32.mrb[0].mxu0
        %v6351 = vadd.f32 %v6238, %v6350
        %v6352 = vpop.f32.mrb[0].mxu0
        %v6353 = vadd.f32 %v6240, %v6352
        %v6354 = vpop.f32.mrb[0].mxu0
        %v6355 = vadd.f32 %v6242, %v6354
        %6356 = vmatprep.mubr.bf16.mxu0 %v2689
        %6357 = vmatmul.mubr.bf16.gmra.mrb[0].mxu0 %v2688
        %v6358 = vpop.f32.mrb[0].mxu0
        %v6359 = vadd.f32 %v6246, %v6358
        %v6360 = vpop.f32.mrb[0].mxu0
        %v6361 = vadd.f32 %v6248, %v6360
        %v6362 = vpop.f32.mrb[0].mxu0
        %v6363 = vadd.f32 %v6250, %v6362
        %v6364 = vpop.f32.mrb[0].mxu0
        %v6365 = vadd.f32 %v6252, %v6364
        %6366 = vmatprep.mubr.bf16.mxu0 %v2704
        %6367 = vmatmul.mubr.bf16.gmra.mrb[0].mxu0 %v2703
        %v6368 = vpop.f32.mrb[0].mxu0
        %v6369 = vadd.f32 %v6256, %v6368
        %v6370 = vpop.f32.mrb[0].mxu0
        %v6371 = vadd.f32 %v6258, %v6370
        %v6372 = vpop.f32.mrb[0].mxu0
        %v6373 = vadd.f32 %v6260, %v6372
        %v6374 = vpop.f32.mrb[0].mxu0
        %v6375 = vadd.f32 %v6262, %v6374
        %6376 = vdwg.mxu0
        %6377 = vmatprep.subr.bf16.mxu0 %v5075
        %6378 = vmatpush1.bf16.msra.mxu0 %v5074
        %6379 = vmatprep.subr.bf16.mxu0 %v5079
        %6380 = vmatpush1.bf16.msra.mxu0 %v5078
        %6381 = vmatprep.subr.bf16.mxu0 %v5083
        %6382 = vmatpush1.bf16.msra.mxu0 %v5082
        %6383 = vmatprep.subr.bf16.mxu0 %v5087
        %6384 = vmatpush1.bf16.msra.mxu0 %v5086
        %6385 = vmatprep.subr.bf16.mxu0 %v5091
        %6386 = vmatpush1.bf16.msra.mxu0 %v5090
        %6387 = vmatprep.subr.bf16.mxu0 %v5095
        %6388 = vmatpush1.bf16.msra.mxu0 %v5094
        %6389 = vmatprep.subr.bf16.mxu0 %v5099
        %6390 = vmatpush1.bf16.msra.mxu0 %v5098
        %6391 = vmatprep.subr.bf16.mxu0 %v5103
        %6392 = vmatpush1.bf16.msra.mxu0 %v5102
        %6393 = vmatprep.subr.bf16.mxu0 0
        %6394 = vmatpush1.bf16.msra.mxu0 0
        %6395 = vmatprep.subr.bf16.mxu0 0
        %6396 = vmatpush1.bf16.msra.mxu0 0
        %6397 = vmatprep.subr.bf16.mxu0 0
        %6398 = vmatpush1.bf16.msra.mxu0 0
        %6399 = vmatprep.subr.bf16.mxu0 0
        %6400 = vmatpush1.bf16.msra.mxu0 0
        %6401 = vmatprep.subr.bf16.mxu0 0
        %6402 = vmatpush1.bf16.msra.mxu0 0
        %6403 = vmatprep.subr.bf16.mxu0 0
        %6404 = vmatpush1.bf16.msra.mxu0 0
        %6405 = vmatprep.subr.bf16.mxu0 0
        %6406 = vmatpush1.bf16.msra.mxu0 0
        %6407 = vmatprep.subr.bf16.mxu0 0
        %6408 = vmatpush1.bf16.msra.mxu0 0
        %6409 = vmatprep.mubr.bf16.mxu0 0
        %6410 = vmatmul.mubr.bf16.gmra.mrb[0].mxu0 %v2600
        %v6411 = vpop.f32.mrb[0].mxu0
        %v6412 = vadd.f32 %v6299, %v6411
        %v6413 = vpop.f32.mrb[0].mxu0
        %v6414 = vadd.f32 %v6301, %v6413
        %v6415 = vpop.f32.mrb[0].mxu0
        %v6416 = vadd.f32 %v6303, %v6415
        %v6417 = vpop.f32.mrb[0].mxu0
        %v6418 = vadd.f32 %v6305, %v6417
        %6419 = vmatprep.mubr.bf16.mxu0 0
        %6420 = vmatmul.mubr.bf16.gmra.mrb[0].mxu0 %v2615
        %v6421 = vpop.f32.mrb[0].mxu0
        %v6422 = vadd.f32 %v6309, %v6421
        %v6423 = vpop.f32.mrb[0].mxu0
        %v6424 = vadd.f32 %v6311, %v6423
        %v6425 = vpop.f32.mrb[0].mxu0
        %v6426 = vadd.f32 %v6313, %v6425
        %v6427 = vpop.f32.mrb[0].mxu0
        %v6428 = vadd.f32 %v6315, %v6427
        %6429 = vmatprep.mubr.bf16.mxu0 0
        %6430 = vmatmul.mubr.bf16.gmra.mrb[0].mxu0 %v2630
        %v6431 = vpop.f32.mrb[0].mxu0
        %v6432 = vadd.f32 %v6319, %v6431
        %v6433 = vpop.f32.mrb[0].mxu0
        %v6434 = vadd.f32 %v6321, %v6433
        %v6435 = vpop.f32.mrb[0].mxu0
        %v6436 = vadd.f32 %v6323, %v6435
        %v6437 = vpop.f32.mrb[0].mxu0
        %v6438 = vadd.f32 %v6325, %v6437
        %6439 = vmatprep.mubr.bf16.mxu0 0
        %6440 = vmatmul.mubr.bf16.gmra.mrb[0].mxu0 %v2645
        %v6441 = vpop.f32.mrb[0].mxu0
        %v6442 = vadd.f32 %v6329, %v6441
        %v6443 = vpop.f32.mrb[0].mxu0
        %v6444 = vadd.f32 %v6331, %v6443
        %v6445 = vpop.f32.mrb[0].mxu0
        %v6446 = vadd.f32 %v6333, %v6445
        %v6447 = vpop.f32.mrb[0].mxu0
        %v6448 = vadd.f32 %v6335, %v6447
        %6449 = vmatprep.mubr.bf16.mxu0 0
        %6450 = vmatmul.mubr.bf16.gmra.mrb[0].mxu0 %v2660
        %v6451 = vpop.f32.mrb[0].mxu0
        %v6452 = vadd.f32 %v6339, %v6451
        %v6453 = vpop.f32.mrb[0].mxu0
        %v6454 = vadd.f32 %v6341, %v6453
        %v6455 = vpop.f32.mrb[0].mxu0
        %v6456 = vadd.f32 %v6343, %v6455
        %v6457 = vpop.f32.mrb[0].mxu0
        %v6458 = vadd.f32 %v6345, %v6457
        %6459 = vmatprep.mubr.bf16.mxu0 0
        %6460 = vmatmul.mubr.bf16.gmra.mrb[0].mxu0 %v2675
        %v6461 = vpop.f32.mrb[0].mxu0
        %v6462 = vadd.f32 %v6349, %v6461
        %v6463 = vpop.f32.mrb[0].mxu0
        %v6464 = vadd.f32 %v6351, %v6463
        %v6465 = vpop.f32.mrb[0].mxu0
        %v6466 = vadd.f32 %v6353, %v6465
        %v6467 = vpop.f32.mrb[0].mxu0
        %v6468 = vadd.f32 %v6355, %v6467
        %6469 = vmatprep.mubr.bf16.mxu0 0
        %6470 = vmatmul.mubr.bf16.gmra.mrb[0].mxu0 %v2690
        %v6471 = vpop.f32.mrb[0].mxu0
        %v6472 = vadd.f32 %v6359, %v6471
        %v6473 = vpop.f32.mrb[0].mxu0
        %v6474 = vadd.f32 %v6361, %v6473
        %v6475 = vpop.f32.mrb[0].mxu0
        %v6476 = vadd.f32 %v6363, %v6475
        %v6477 = vpop.f32.mrb[0].mxu0
        %v6478 = vadd.f32 %v6365, %v6477
        %6479 = vmatprep.mubr.bf16.mxu0 0
        %6480 = vmatmul.mubr.bf16.gmra.mrb[0].mxu0 %v2705
        %v6481 = vpop.f32.mrb[0].mxu0
        %v6482 = vadd.f32 %v6369, %v6481
        %v6483 = vpop.f32.mrb[0].mxu0
        %v6484 = vadd.f32 %v6371, %v6483
        %v6485 = vpop.f32.mrb[0].mxu0
        %v6486 = vadd.f32 %v6373, %v6485
        %v6487 = vpop.f32.mrb[0].mxu0
        %v6488 = vadd.f32 %v6375, %v6487
        %6489 = vdwg.mxu0
        %6490 = vmatprep.subr.bf16.mxu0 %v4629
        %6491 = vmatpush1.bf16.msra.mxu0 %v4628
        %6492 = vmatprep.subr.bf16.mxu0 %v4633
        %6493 = vmatpush1.bf16.msra.mxu0 %v4632
        %6494 = vmatprep.subr.bf16.mxu0 %v4637
        %6495 = vmatpush1.bf16.msra.mxu0 %v4636
        %6496 = vmatprep.subr.bf16.mxu0 %v4641
        %6497 = vmatpush1.bf16.msra.mxu0 %v4640
        %6498 = vmatprep.subr.bf16.mxu0 %v4645
        %6499 = vmatpush1.bf16.msra.mxu0 %v4644
        %6500 = vmatprep.subr.bf16.mxu0 %v4649
        %6501 = vmatpush1.bf16.msra.mxu0 %v4648
        %6502 = vmatprep.subr.bf16.mxu0 %v4653
        %6503 = vmatpush1.bf16.msra.mxu0 %v4652
        %6504 = vmatprep.subr.bf16.mxu0 %v4657
        %6505 = vmatpush1.bf16.msra.mxu0 %v4656
        %6506 = vmatprep.subr.bf16.mxu0 %v4661
        %6507 = vmatpush1.bf16.msra.mxu0 %v4660
        %6508 = vmatprep.subr.bf16.mxu0 %v4665
        %6509 = vmatpush1.bf16.msra.mxu0 %v4664
        %6510 = vmatprep.subr.bf16.mxu0 %v4669
        %6511 = vmatpush1.bf16.msra.mxu0 %v4668
        %6512 = vmatprep.subr.bf16.mxu0 %v4673
        %6513 = vmatpush1.bf16.msra.mxu0 %v4672
        %6514 = vmatprep.subr.bf16.mxu0 %v4677
        %6515 = vmatpush1.bf16.msra.mxu0 %v4676
        %6516 = vmatprep.subr.bf16.mxu0 %v4681
        %6517 = vmatpush1.bf16.msra.mxu0 %v4680
        %6518 = vmatprep.subr.bf16.mxu0 %v4685
        %6519 = vmatpush1.bf16.msra.mxu0 %v4684
        %6520 = vmatprep.subr.bf16.mxu0 %v4689
        %6521 = vmatpush1.bf16.msra.mxu0 %v4688
        %6522 = vmatprep.mubr.bf16.mxu0 %v2587
        %6523 = vmatmul.mubr.bf16.gmra.mrb[0].mxu0 %v2586
        %v6524 = vpop.f32.mrb[0].mxu0
        %v6525 = vadd.f32 0.0, %v6524
        %v6526 = vpop.f32.mrb[0].mxu0
        %v6527 = vadd.f32 0.0, %v6526
        %v6528 = vpop.f32.mrb[0].mxu0
        %v6529 = vadd.f32 0.0, %v6528
        %v6530 = vpop.f32.mrb[0].mxu0
        %v6531 = vadd.f32 0.0, %v6530
        %6532 = vmatprep.mubr.bf16.mxu0 %v2602
        %6533 = vmatmul.mubr.bf16.gmra.mrb[0].mxu0 %v2601
        %v6534 = vpop.f32.mrb[0].mxu0
        %v6535 = vadd.f32 0.0, %v6534
        %v6536 = vpop.f32.mrb[0].mxu0
        %v6537 = vadd.f32 0.0, %v6536
        %v6538 = vpop.f32.mrb[0].mxu0
        %v6539 = vadd.f32 0.0, %v6538
        %v6540 = vpop.f32.mrb[0].mxu0
        %v6541 = vadd.f32 0.0, %v6540
        %6542 = vmatprep.mubr.bf16.mxu0 %v2617
        %6543 = vmatmul.mubr.bf16.gmra.mrb[0].mxu0 %v2616
        %v6544 = vpop.f32.mrb[0].mxu0
        %v6545 = vadd.f32 0.0, %v6544
        %v6546 = vpop.f32.mrb[0].mxu0
        %v6547 = vadd.f32 0.0, %v6546
        %v6548 = vpop.f32.mrb[0].mxu0
        %v6549 = vadd.f32 0.0, %v6548
        %v6550 = vpop.f32.mrb[0].mxu0
        %v6551 = vadd.f32 0.0, %v6550
        %6552 = vmatprep.mubr.bf16.mxu0 %v2632
        %6553 = vmatmul.mubr.bf16.gmra.mrb[0].mxu0 %v2631
        %v6554 = vpop.f32.mrb[0].mxu0
        %v6555 = vadd.f32 0.0, %v6554
        %v6556 = vpop.f32.mrb[0].mxu0
        %v6557 = vadd.f32 0.0, %v6556
        %v6558 = vpop.f32.mrb[0].mxu0
        %v6559 = vadd.f32 0.0, %v6558
        %v6560 = vpop.f32.mrb[0].mxu0
        %v6561 = vadd.f32 0.0, %v6560
        %6562 = vmatprep.mubr.bf16.mxu0 %v2647
        %6563 = vmatmul.mubr.bf16.gmra.mrb[0].mxu0 %v2646
        %v6564 = vpop.f32.mrb[0].mxu0
        %v6565 = vadd.f32 0.0, %v6564
        %v6566 = vpop.f32.mrb[0].mxu0
        %v6567 = vadd.f32 0.0, %v6566
        %v6568 = vpop.f32.mrb[0].mxu0
        %v6569 = vadd.f32 0.0, %v6568
        %v6570 = vpop.f32.mrb[0].mxu0
        %v6571 = vadd.f32 0.0, %v6570
        %6572 = vmatprep.mubr.bf16.mxu0 %v2662
        %6573 = vmatmul.mubr.bf16.gmra.mrb[0].mxu0 %v2661
        %v6574 = vpop.f32.mrb[0].mxu0
        %v6575 = vadd.f32 0.0, %v6574
        %v6576 = vpop.f32.mrb[0].mxu0
        %v6577 = vadd.f32 0.0, %v6576
        %v6578 = vpop.f32.mrb[0].mxu0
        %v6579 = vadd.f32 0.0, %v6578
        %v6580 = vpop.f32.mrb[0].mxu0
        %v6581 = vadd.f32 0.0, %v6580
        %6582 = vmatprep.mubr.bf16.mxu0 %v2677
        %6583 = vmatmul.mubr.bf16.gmra.mrb[0].mxu0 %v2676
        %v6584 = vpop.f32.mrb[0].mxu0
        %v6585 = vadd.f32 0.0, %v6584
        %v6586 = vpop.f32.mrb[0].mxu0
        %v6587 = vadd.f32 0.0, %v6586
        %v6588 = vpop.f32.mrb[0].mxu0
        %v6589 = vadd.f32 0.0, %v6588
        %v6590 = vpop.f32.mrb[0].mxu0
        %v6591 = vadd.f32 0.0, %v6590
        %6592 = vmatprep.mubr.bf16.mxu0 %v2692
        %6593 = vmatmul.mubr.bf16.gmra.mrb[0].mxu0 %v2691
        %v6594 = vpop.f32.mrb[0].mxu0
        %v6595 = vadd.f32 0.0, %v6594
        %v6596 = vpop.f32.mrb[0].mxu0
        %v6597 = vadd.f32 0.0, %v6596
        %v6598 = vpop.f32.mrb[0].mxu0
        %v6599 = vadd.f32 0.0, %v6598
        %v6600 = vpop.f32.mrb[0].mxu0
        %v6601 = vadd.f32 0.0, %v6600
        %6602 = vdwg.mxu0
        %6603 = vmatprep.subr.bf16.mxu0 %v4693
        %6604 = vmatpush1.bf16.msra.mxu0 %v4692
        %6605 = vmatprep.subr.bf16.mxu0 %v4697
        %6606 = vmatpush1.bf16.msra.mxu0 %v4696
        %6607 = vmatprep.subr.bf16.mxu0 %v4701
        %6608 = vmatpush1.bf16.msra.mxu0 %v4700
        %6609 = vmatprep.subr.bf16.mxu0 %v4705
        %6610 = vmatpush1.bf16.msra.mxu0 %v4704
        %6611 = vmatprep.subr.bf16.mxu0 %v4709
        %6612 = vmatpush1.bf16.msra.mxu0 %v4708
        %6613 = vmatprep.subr.bf16.mxu0 %v4713
        %6614 = vmatpush1.bf16.msra.mxu0 %v4712
        %6615 = vmatprep.subr.bf16.mxu0 %v4717
        %6616 = vmatpush1.bf16.msra.mxu0 %v4716
        %6617 = vmatprep.subr.bf16.mxu0 %v4721
        %6618 = vmatpush1.bf16.msra.mxu0 %v4720
        %6619 = vmatprep.subr.bf16.mxu0 %v4725
        %6620 = vmatpush1.bf16.msra.mxu0 %v4724
        %6621 = vmatprep.subr.bf16.mxu0 %v4729
        %6622 = vmatpush1.bf16.msra.mxu0 %v4728
        %6623 = vmatprep.subr.bf16.mxu0 %v4733
        %6624 = vmatpush1.bf16.msra.mxu0 %v4732
        %6625 = vmatprep.subr.bf16.mxu0 %v4737
        %6626 = vmatpush1.bf16.msra.mxu0 %v4736
        %6627 = vmatprep.subr.bf16.mxu0 %v4741
        %6628 = vmatpush1.bf16.msra.mxu0 %v4740
        %6629 = vmatprep.subr.bf16.mxu0 %v4745
        %6630 = vmatpush1.bf16.msra.mxu0 %v4744
        %6631 = vmatprep.subr.bf16.mxu0 %v4749
        %6632 = vmatpush1.bf16.msra.mxu0 %v4748
        %6633 = vmatprep.subr.bf16.mxu0 %v4753
        %6634 = vmatpush1.bf16.msra.mxu0 %v4752
        %6635 = vmatprep.mubr.bf16.mxu0 %v2589
        %6636 = vmatmul.mubr.bf16.gmra.mrb[0].mxu0 %v2588
        %v6637 = vpop.f32.mrb[0].mxu0
        %v6638 = vadd.f32 %v6525, %v6637
        %v6639 = vpop.f32.mrb[0].mxu0
        %v6640 = vadd.f32 %v6527, %v6639
        %v6641 = vpop.f32.mrb[0].mxu0
        %v6642 = vadd.f32 %v6529, %v6641
        %v6643 = vpop.f32.mrb[0].mxu0
        %v6644 = vadd.f32 %v6531, %v6643
        %6645 = vmatprep.mubr.bf16.mxu0 %v2604
        %6646 = vmatmul.mubr.bf16.gmra.mrb[0].mxu0 %v2603
        %v6647 = vpop.f32.mrb[0].mxu0
        %v6648 = vadd.f32 %v6535, %v6647
        %v6649 = vpop.f32.mrb[0].mxu0
        %v6650 = vadd.f32 %v6537, %v6649
        %v6651 = vpop.f32.mrb[0].mxu0
        %v6652 = vadd.f32 %v6539, %v6651
        %v6653 = vpop.f32.mrb[0].mxu0
        %v6654 = vadd.f32 %v6541, %v6653
        %6655 = vmatprep.mubr.bf16.mxu0 %v2619
        %6656 = vmatmul.mubr.bf16.gmra.mrb[0].mxu0 %v2618
        %v6657 = vpop.f32.mrb[0].mxu0
        %v6658 = vadd.f32 %v6545, %v6657
        %v6659 = vpop.f32.mrb[0].mxu0
        %v6660 = vadd.f32 %v6547, %v6659
        %v6661 = vpop.f32.mrb[0].mxu0
        %v6662 = vadd.f32 %v6549, %v6661
        %v6663 = vpop.f32.mrb[0].mxu0
        %v6664 = vadd.f32 %v6551, %v6663
        %6665 = vmatprep.mubr.bf16.mxu0 %v2634
        %6666 = vmatmul.mubr.bf16.gmra.mrb[0].mxu0 %v2633
        %v6667 = vpop.f32.mrb[0].mxu0
        %v6668 = vadd.f32 %v6555, %v6667
        %v6669 = vpop.f32.mrb[0].mxu0
        %v6670 = vadd.f32 %v6557, %v6669
        %v6671 = vpop.f32.mrb[0].mxu0
        %v6672 = vadd.f32 %v6559, %v6671
        %v6673 = vpop.f32.mrb[0].mxu0
        %v6674 = vadd.f32 %v6561, %v6673
        %6675 = vmatprep.mubr.bf16.mxu0 %v2649
        %6676 = vmatmul.mubr.bf16.gmra.mrb[0].mxu0 %v2648
        %v6677 = vpop.f32.mrb[0].mxu0
        %v6678 = vadd.f32 %v6565, %v6677
        %v6679 = vpop.f32.mrb[0].mxu0
        %v6680 = vadd.f32 %v6567, %v6679
        %v6681 = vpop.f32.mrb[0].mxu0
        %v6682 = vadd.f32 %v6569, %v6681
        %v6683 = vpop.f32.mrb[0].mxu0
        %v6684 = vadd.f32 %v6571, %v6683
        %6685 = vmatprep.mubr.bf16.mxu0 %v2664
        %6686 = vmatmul.mubr.bf16.gmra.mrb[0].mxu0 %v2663
        %v6687 = vpop.f32.mrb[0].mxu0
        %v6688 = vadd.f32 %v6575, %v6687
        %v6689 = vpop.f32.mrb[0].mxu0
        %v6690 = vadd.f32 %v6577, %v6689
        %v6691 = vpop.f32.mrb[0].mxu0
        %v6692 = vadd.f32 %v6579, %v6691
        %v6693 = vpop.f32.mrb[0].mxu0
        %v6694 = vadd.f32 %v6581, %v6693
        %6695 = vmatprep.mubr.bf16.mxu0 %v2679
        %6696 = vmatmul.mubr.bf16.gmra.mrb[0].mxu0 %v2678
        %v6697 = vpop.f32.mrb[0].mxu0
        %v6698 = vadd.f32 %v6585, %v6697
        %v6699 = vpop.f32.mrb[0].mxu0
        %v6700 = vadd.f32 %v6587, %v6699
        %v6701 = vpop.f32.mrb[0].mxu0
        %v6702 = vadd.f32 %v6589, %v6701
        %v6703 = vpop.f32.mrb[0].mxu0
        %v6704 = vadd.f32 %v6591, %v6703
        %6705 = vmatprep.mubr.bf16.mxu0 %v2694
        %6706 = vmatmul.mubr.bf16.gmra.mrb[0].mxu0 %v2693
        %v6707 = vpop.f32.mrb[0].mxu0
        %v6708 = vadd.f32 %v6595, %v6707
        %v6709 = vpop.f32.mrb[0].mxu0
        %v6710 = vadd.f32 %v6597, %v6709
        %v6711 = vpop.f32.mrb[0].mxu0
        %v6712 = vadd.f32 %v6599, %v6711
        %v6713 = vpop.f32.mrb[0].mxu0
        %v6714 = vadd.f32 %v6601, %v6713
        %6715 = vdwg.mxu0
        %6716 = vmatprep.subr.bf16.mxu0 %v4757
        %6717 = vmatpush1.bf16.msra.mxu0 %v4756
        %6718 = vmatprep.subr.bf16.mxu0 %v4761
        %6719 = vmatpush1.bf16.msra.mxu0 %v4760
        %6720 = vmatprep.subr.bf16.mxu0 %v4765
        %6721 = vmatpush1.bf16.msra.mxu0 %v4764
        %6722 = vmatprep.subr.bf16.mxu0 %v4769
        %6723 = vmatpush1.bf16.msra.mxu0 %v4768
        %6724 = vmatprep.subr.bf16.mxu0 %v4773
        %6725 = vmatpush1.bf16.msra.mxu0 %v4772
        %6726 = vmatprep.subr.bf16.mxu0 %v4777
        %6727 = vmatpush1.bf16.msra.mxu0 %v4776
        %6728 = vmatprep.subr.bf16.mxu0 %v4781
        %6729 = vmatpush1.bf16.msra.mxu0 %v4780
        %6730 = vmatprep.subr.bf16.mxu0 %v4785
        %6731 = vmatpush1.bf16.msra.mxu0 %v4784
        %6732 = vmatprep.subr.bf16.mxu0 %v4789
        %6733 = vmatpush1.bf16.msra.mxu0 %v4788
        %6734 = vmatprep.subr.bf16.mxu0 %v4793
        %6735 = vmatpush1.bf16.msra.mxu0 %v4792
        %6736 = vmatprep.subr.bf16.mxu0 %v4797
        %6737 = vmatpush1.bf16.msra.mxu0 %v4796
        %6738 = vmatprep.subr.bf16.mxu0 %v4801
        %6739 = vmatpush1.bf16.msra.mxu0 %v4800
        %6740 = vmatprep.subr.bf16.mxu0 %v4805
        %6741 = vmatpush1.bf16.msra.mxu0 %v4804
        %6742 = vmatprep.subr.bf16.mxu0 %v4809
        %6743 = vmatpush1.bf16.msra.mxu0 %v4808
        %6744 = vmatprep.subr.bf16.mxu0 %v4813
        %6745 = vmatpush1.bf16.msra.mxu0 %v4812
        %6746 = vmatprep.subr.bf16.mxu0 %v4817
        %6747 = vmatpush1.bf16.msra.mxu0 %v4816
        %6748 = vmatprep.mubr.bf16.mxu0 %v2591
        %6749 = vmatmul.mubr.bf16.gmra.mrb[0].mxu0 %v2590
        %v6750 = vpop.f32.mrb[0].mxu0
        %v6751 = vadd.f32 %v6638, %v6750
        %v6752 = vpop.f32.mrb[0].mxu0
        %v6753 = vadd.f32 %v6640, %v6752
        %v6754 = vpop.f32.mrb[0].mxu0
        %v6755 = vadd.f32 %v6642, %v6754
        %v6756 = vpop.f32.mrb[0].mxu0
        %v6757 = vadd.f32 %v6644, %v6756
        %6758 = vmatprep.mubr.bf16.mxu0 %v2606
        %6759 = vmatmul.mubr.bf16.gmra.mrb[0].mxu0 %v2605
        %v6760 = vpop.f32.mrb[0].mxu0
        %v6761 = vadd.f32 %v6648, %v6760
        %v6762 = vpop.f32.mrb[0].mxu0
        %v6763 = vadd.f32 %v6650, %v6762
        %v6764 = vpop.f32.mrb[0].mxu0
        %v6765 = vadd.f32 %v6652, %v6764
        %v6766 = vpop.f32.mrb[0].mxu0
        %v6767 = vadd.f32 %v6654, %v6766
        %6768 = vmatprep.mubr.bf16.mxu0 %v2621
        %6769 = vmatmul.mubr.bf16.gmra.mrb[0].mxu0 %v2620
        %v6770 = vpop.f32.mrb[0].mxu0
        %v6771 = vadd.f32 %v6658, %v6770
        %v6772 = vpop.f32.mrb[0].mxu0
        %v6773 = vadd.f32 %v6660, %v6772
        %v6774 = vpop.f32.mrb[0].mxu0
        %v6775 = vadd.f32 %v6662, %v6774
        %v6776 = vpop.f32.mrb[0].mxu0
        %v6777 = vadd.f32 %v6664, %v6776
        %6778 = vmatprep.mubr.bf16.mxu0 %v2636
        %6779 = vmatmul.mubr.bf16.gmra.mrb[0].mxu0 %v2635
        %v6780 = vpop.f32.mrb[0].mxu0
        %v6781 = vadd.f32 %v6668, %v6780
        %v6782 = vpop.f32.mrb[0].mxu0
        %v6783 = vadd.f32 %v6670, %v6782
        %v6784 = vpop.f32.mrb[0].mxu0
        %v6785 = vadd.f32 %v6672, %v6784
        %v6786 = vpop.f32.mrb[0].mxu0
        %v6787 = vadd.f32 %v6674, %v6786
        %6788 = vmatprep.mubr.bf16.mxu0 %v2651
        %6789 = vmatmul.mubr.bf16.gmra.mrb[0].mxu0 %v2650
        %v6790 = vpop.f32.mrb[0].mxu0
        %v6791 = vadd.f32 %v6678, %v6790
        %v6792 = vpop.f32.mrb[0].mxu0
        %v6793 = vadd.f32 %v6680, %v6792
        %v6794 = vpop.f32.mrb[0].mxu0
        %v6795 = vadd.f32 %v6682, %v6794
        %v6796 = vpop.f32.mrb[0].mxu0
        %v6797 = vadd.f32 %v6684, %v6796
        %6798 = vmatprep.mubr.bf16.mxu0 %v2666
        %6799 = vmatmul.mubr.bf16.gmra.mrb[0].mxu0 %v2665
        %v6800 = vpop.f32.mrb[0].mxu0
        %v6801 = vadd.f32 %v6688, %v6800
        %v6802 = vpop.f32.mrb[0].mxu0
        %v6803 = vadd.f32 %v6690, %v6802
        %v6804 = vpop.f32.mrb[0].mxu0
        %v6805 = vadd.f32 %v6692, %v6804
        %v6806 = vpop.f32.mrb[0].mxu0
        %v6807 = vadd.f32 %v6694, %v6806
        %6808 = vmatprep.mubr.bf16.mxu0 %v2681
        %6809 = vmatmul.mubr.bf16.gmra.mrb[0].mxu0 %v2680
        %v6810 = vpop.f32.mrb[0].mxu0
        %v6811 = vadd.f32 %v6698, %v6810
        %v6812 = vpop.f32.mrb[0].mxu0
        %v6813 = vadd.f32 %v6700, %v6812
        %v6814 = vpop.f32.mrb[0].mxu0
        %v6815 = vadd.f32 %v6702, %v6814
        %v6816 = vpop.f32.mrb[0].mxu0
        %v6817 = vadd.f32 %v6704, %v6816
        %6818 = vmatprep.mubr.bf16.mxu0 %v2696
        %6819 = vmatmul.mubr.bf16.gmra.mrb[0].mxu0 %v2695
        %v6820 = vpop.f32.mrb[0].mxu0
        %v6821 = vadd.f32 %v6708, %v6820
        %v6822 = vpop.f32.mrb[0].mxu0
        %v6823 = vadd.f32 %v6710, %v6822
        %v6824 = vpop.f32.mrb[0].mxu0
        %v6825 = vadd.f32 %v6712, %v6824
        %v6826 = vpop.f32.mrb[0].mxu0
        %v6827 = vadd.f32 %v6714, %v6826
        %6828 = vdwg.mxu0
        %6829 = vmatprep.subr.bf16.mxu0 %v4821
        %6830 = vmatpush1.bf16.msra.mxu0 %v4820
        %6831 = vmatprep.subr.bf16.mxu0 %v4825
        %6832 = vmatpush1.bf16.msra.mxu0 %v4824
        %6833 = vmatprep.subr.bf16.mxu0 %v4829
        %6834 = vmatpush1.bf16.msra.mxu0 %v4828
        %6835 = vmatprep.subr.bf16.mxu0 %v4833
        %6836 = vmatpush1.bf16.msra.mxu0 %v4832
        %6837 = vmatprep.subr.bf16.mxu0 %v4837
        %6838 = vmatpush1.bf16.msra.mxu0 %v4836
        %6839 = vmatprep.subr.bf16.mxu0 %v4841
        %6840 = vmatpush1.bf16.msra.mxu0 %v4840
        %6841 = vmatprep.subr.bf16.mxu0 %v4845
        %6842 = vmatpush1.bf16.msra.mxu0 %v4844
        %6843 = vmatprep.subr.bf16.mxu0 %v4849
        %6844 = vmatpush1.bf16.msra.mxu0 %v4848
        %6845 = vmatprep.subr.bf16.mxu0 %v4853
        %6846 = vmatpush1.bf16.msra.mxu0 %v4852
        %6847 = vmatprep.subr.bf16.mxu0 %v4857
        %6848 = vmatpush1.bf16.msra.mxu0 %v4856
        %6849 = vmatprep.subr.bf16.mxu0 %v4861
        %6850 = vmatpush1.bf16.msra.mxu0 %v4860
        %6851 = vmatprep.subr.bf16.mxu0 %v4865
        %6852 = vmatpush1.bf16.msra.mxu0 %v4864
        %6853 = vmatprep.subr.bf16.mxu0 %v4869
        %6854 = vmatpush1.bf16.msra.mxu0 %v4868
        %6855 = vmatprep.subr.bf16.mxu0 %v4873
        %6856 = vmatpush1.bf16.msra.mxu0 %v4872
        %6857 = vmatprep.subr.bf16.mxu0 %v4877
        %6858 = vmatpush1.bf16.msra.mxu0 %v4876
        %6859 = vmatprep.subr.bf16.mxu0 %v4881
        %6860 = vmatpush1.bf16.msra.mxu0 %v4880
        %6861 = vmatprep.mubr.bf16.mxu0 %v2593
        %6862 = vmatmul.mubr.bf16.gmra.mrb[0].mxu0 %v2592
        %v6863 = vpop.f32.mrb[0].mxu0
        %v6864 = vadd.f32 %v6751, %v6863
        %v6865 = vpop.f32.mrb[0].mxu0
        %v6866 = vadd.f32 %v6753, %v6865
        %v6867 = vpop.f32.mrb[0].mxu0
        %v6868 = vadd.f32 %v6755, %v6867
        %v6869 = vpop.f32.mrb[0].mxu0
        %v6870 = vadd.f32 %v6757, %v6869
        %6871 = vmatprep.mubr.bf16.mxu0 %v2608
        %6872 = vmatmul.mubr.bf16.gmra.mrb[0].mxu0 %v2607
        %v6873 = vpop.f32.mrb[0].mxu0
        %v6874 = vadd.f32 %v6761, %v6873
        %v6875 = vpop.f32.mrb[0].mxu0
        %v6876 = vadd.f32 %v6763, %v6875
        %v6877 = vpop.f32.mrb[0].mxu0
        %v6878 = vadd.f32 %v6765, %v6877
        %v6879 = vpop.f32.mrb[0].mxu0
        %v6880 = vadd.f32 %v6767, %v6879
        %6881 = vmatprep.mubr.bf16.mxu0 %v2623
        %6882 = vmatmul.mubr.bf16.gmra.mrb[0].mxu0 %v2622
        %v6883 = vpop.f32.mrb[0].mxu0
        %v6884 = vadd.f32 %v6771, %v6883
        %v6885 = vpop.f32.mrb[0].mxu0
        %v6886 = vadd.f32 %v6773, %v6885
        %v6887 = vpop.f32.mrb[0].mxu0
        %v6888 = vadd.f32 %v6775, %v6887
        %v6889 = vpop.f32.mrb[0].mxu0
        %v6890 = vadd.f32 %v6777, %v6889
        %6891 = vmatprep.mubr.bf16.mxu0 %v2638
        %6892 = vmatmul.mubr.bf16.gmra.mrb[0].mxu0 %v2637
        %v6893 = vpop.f32.mrb[0].mxu0
        %v6894 = vadd.f32 %v6781, %v6893
        %v6895 = vpop.f32.mrb[0].mxu0
        %v6896 = vadd.f32 %v6783, %v6895
        %v6897 = vpop.f32.mrb[0].mxu0
        %v6898 = vadd.f32 %v6785, %v6897
        %v6899 = vpop.f32.mrb[0].mxu0
        %v6900 = vadd.f32 %v6787, %v6899
        %6901 = vmatprep.mubr.bf16.mxu0 %v2653
        %6902 = vmatmul.mubr.bf16.gmra.mrb[0].mxu0 %v2652
        %v6903 = vpop.f32.mrb[0].mxu0
        %v6904 = vadd.f32 %v6791, %v6903
        %v6905 = vpop.f32.mrb[0].mxu0
        %v6906 = vadd.f32 %v6793, %v6905
        %v6907 = vpop.f32.mrb[0].mxu0
        %v6908 = vadd.f32 %v6795, %v6907
        %v6909 = vpop.f32.mrb[0].mxu0
        %v6910 = vadd.f32 %v6797, %v6909
        %6911 = vmatprep.mubr.bf16.mxu0 %v2668
        %6912 = vmatmul.mubr.bf16.gmra.mrb[0].mxu0 %v2667
        %v6913 = vpop.f32.mrb[0].mxu0
        %v6914 = vadd.f32 %v6801, %v6913
        %v6915 = vpop.f32.mrb[0].mxu0
        %v6916 = vadd.f32 %v6803, %v6915
        %v6917 = vpop.f32.mrb[0].mxu0
        %v6918 = vadd.f32 %v6805, %v6917
        %v6919 = vpop.f32.mrb[0].mxu0
        %v6920 = vadd.f32 %v6807, %v6919
        %6921 = vmatprep.mubr.bf16.mxu0 %v2683
        %6922 = vmatmul.mubr.bf16.gmra.mrb[0].mxu0 %v2682
        %v6923 = vpop.f32.mrb[0].mxu0
        %v6924 = vadd.f32 %v6811, %v6923
        %v6925 = vpop.f32.mrb[0].mxu0
        %v6926 = vadd.f32 %v6813, %v6925
        %v6927 = vpop.f32.mrb[0].mxu0
        %v6928 = vadd.f32 %v6815, %v6927
        %v6929 = vpop.f32.mrb[0].mxu0
        %v6930 = vadd.f32 %v6817, %v6929
        %6931 = vmatprep.mubr.bf16.mxu0 %v2698
        %6932 = vmatmul.mubr.bf16.gmra.mrb[0].mxu0 %v2697
        %v6933 = vpop.f32.mrb[0].mxu0
        %v6934 = vadd.f32 %v6821, %v6933
        %v6935 = vpop.f32.mrb[0].mxu0
        %v6936 = vadd.f32 %v6823, %v6935
        %v6937 = vpop.f32.mrb[0].mxu0
        %v6938 = vadd.f32 %v6825, %v6937
        %v6939 = vpop.f32.mrb[0].mxu0
        %v6940 = vadd.f32 %v6827, %v6939
        %6941 = vdwg.mxu0
        %6942 = vmatprep.subr.bf16.mxu0 %v4885
        %6943 = vmatpush1.bf16.msra.mxu0 %v4884
        %6944 = vmatprep.subr.bf16.mxu0 %v4889
        %6945 = vmatpush1.bf16.msra.mxu0 %v4888
        %6946 = vmatprep.subr.bf16.mxu0 %v4893
        %6947 = vmatpush1.bf16.msra.mxu0 %v4892
        %6948 = vmatprep.subr.bf16.mxu0 %v4897
        %6949 = vmatpush1.bf16.msra.mxu0 %v4896
        %6950 = vmatprep.subr.bf16.mxu0 %v4901
        %6951 = vmatpush1.bf16.msra.mxu0 %v4900
        %6952 = vmatprep.subr.bf16.mxu0 %v4905
        %6953 = vmatpush1.bf16.msra.mxu0 %v4904
        %6954 = vmatprep.subr.bf16.mxu0 %v4909
        %6955 = vmatpush1.bf16.msra.mxu0 %v4908
        %6956 = vmatprep.subr.bf16.mxu0 %v4913
        %6957 = vmatpush1.bf16.msra.mxu0 %v4912
        %6958 = vmatprep.subr.bf16.mxu0 %v4917
        %6959 = vmatpush1.bf16.msra.mxu0 %v4916
        %6960 = vmatprep.subr.bf16.mxu0 %v4921
        %6961 = vmatpush1.bf16.msra.mxu0 %v4920
        %6962 = vmatprep.subr.bf16.mxu0 %v4925
        %6963 = vmatpush1.bf16.msra.mxu0 %v4924
        %6964 = vmatprep.subr.bf16.mxu0 %v4929
        %6965 = vmatpush1.bf16.msra.mxu0 %v4928
        %6966 = vmatprep.subr.bf16.mxu0 %v4933
        %6967 = vmatpush1.bf16.msra.mxu0 %v4932
        %6968 = vmatprep.subr.bf16.mxu0 %v4937
        %6969 = vmatpush1.bf16.msra.mxu0 %v4936
        %6970 = vmatprep.subr.bf16.mxu0 %v4941
        %6971 = vmatpush1.bf16.msra.mxu0 %v4940
        %6972 = vmatprep.subr.bf16.mxu0 %v4945
        %6973 = vmatpush1.bf16.msra.mxu0 %v4944
        %6974 = vmatprep.mubr.bf16.mxu0 %v2595
        %6975 = vmatmul.mubr.bf16.gmra.mrb[0].mxu0 %v2594
        %v6976 = vpop.f32.mrb[0].mxu0
        %v6977 = vadd.f32 %v6864, %v6976
        %v6978 = vpop.f32.mrb[0].mxu0
        %v6979 = vadd.f32 %v6866, %v6978
        %v6980 = vpop.f32.mrb[0].mxu0
        %v6981 = vadd.f32 %v6868, %v6980
        %v6982 = vpop.f32.mrb[0].mxu0
        %v6983 = vadd.f32 %v6870, %v6982
        %6984 = vmatprep.mubr.bf16.mxu0 %v2610
        %6985 = vmatmul.mubr.bf16.gmra.mrb[0].mxu0 %v2609
        %v6986 = vpop.f32.mrb[0].mxu0
        %v6987 = vadd.f32 %v6874, %v6986
        %v6988 = vpop.f32.mrb[0].mxu0
        %v6989 = vadd.f32 %v6876, %v6988
        %v6990 = vpop.f32.mrb[0].mxu0
        %v6991 = vadd.f32 %v6878, %v6990
        %v6992 = vpop.f32.mrb[0].mxu0
        %v6993 = vadd.f32 %v6880, %v6992
        %6994 = vmatprep.mubr.bf16.mxu0 %v2625
        %6995 = vmatmul.mubr.bf16.gmra.mrb[0].mxu0 %v2624
        %v6996 = vpop.f32.mrb[0].mxu0
        %v6997 = vadd.f32 %v6884, %v6996
        %v6998 = vpop.f32.mrb[0].mxu0
        %v6999 = vadd.f32 %v6886, %v6998
        %v7000 = vpop.f32.mrb[0].mxu0
        %v7001 = vadd.f32 %v6888, %v7000
        %v7002 = vpop.f32.mrb[0].mxu0
        %v7003 = vadd.f32 %v6890, %v7002
        %7004 = vmatprep.mubr.bf16.mxu0 %v2640
        %7005 = vmatmul.mubr.bf16.gmra.mrb[0].mxu0 %v2639
        %v7006 = vpop.f32.mrb[0].mxu0
        %v7007 = vadd.f32 %v6894, %v7006
        %v7008 = vpop.f32.mrb[0].mxu0
        %v7009 = vadd.f32 %v6896, %v7008
        %v7010 = vpop.f32.mrb[0].mxu0
        %v7011 = vadd.f32 %v6898, %v7010
        %v7012 = vpop.f32.mrb[0].mxu0
        %v7013 = vadd.f32 %v6900, %v7012
        %7014 = vmatprep.mubr.bf16.mxu0 %v2655
        %7015 = vmatmul.mubr.bf16.gmra.mrb[0].mxu0 %v2654
        %v7016 = vpop.f32.mrb[0].mxu0
        %v7017 = vadd.f32 %v6904, %v7016
        %v7018 = vpop.f32.mrb[0].mxu0
        %v7019 = vadd.f32 %v6906, %v7018
        %v7020 = vpop.f32.mrb[0].mxu0
        %v7021 = vadd.f32 %v6908, %v7020
        %v7022 = vpop.f32.mrb[0].mxu0
        %v7023 = vadd.f32 %v6910, %v7022
        %7024 = vmatprep.mubr.bf16.mxu0 %v2670
        %7025 = vmatmul.mubr.bf16.gmra.mrb[0].mxu0 %v2669
        %v7026 = vpop.f32.mrb[0].mxu0
        %v7027 = vadd.f32 %v6914, %v7026
        %v7028 = vpop.f32.mrb[0].mxu0
        %v7029 = vadd.f32 %v6916, %v7028
        %v7030 = vpop.f32.mrb[0].mxu0
        %v7031 = vadd.f32 %v6918, %v7030
        %v7032 = vpop.f32.mrb[0].mxu0
        %v7033 = vadd.f32 %v6920, %v7032
        %7034 = vmatprep.mubr.bf16.mxu0 %v2685
        %7035 = vmatmul.mubr.bf16.gmra.mrb[0].mxu0 %v2684
        %v7036 = vpop.f32.mrb[0].mxu0
        %v7037 = vadd.f32 %v6924, %v7036
        %v7038 = vpop.f32.mrb[0].mxu0
        %v7039 = vadd.f32 %v6926, %v7038
        %v7040 = vpop.f32.mrb[0].mxu0
        %v7041 = vadd.f32 %v6928, %v7040
        %v7042 = vpop.f32.mrb[0].mxu0
        %v7043 = vadd.f32 %v6930, %v7042
        %7044 = vmatprep.mubr.bf16.mxu0 %v2700
        %7045 = vmatmul.mubr.bf16.gmra.mrb[0].mxu0 %v2699
        %v7046 = vpop.f32.mrb[0].mxu0
        %v7047 = vadd.f32 %v6934, %v7046
        %v7048 = vpop.f32.mrb[0].mxu0
        %v7049 = vadd.f32 %v6936, %v7048
        %v7050 = vpop.f32.mrb[0].mxu0
        %v7051 = vadd.f32 %v6938, %v7050
        %v7052 = vpop.f32.mrb[0].mxu0
        %v7053 = vadd.f32 %v6940, %v7052
        %7054 = vdwg.mxu0
        %7055 = vmatprep.subr.bf16.mxu0 %v4949
        %7056 = vmatpush1.bf16.msra.mxu0 %v4948
        %7057 = vmatprep.subr.bf16.mxu0 %v4953
        %7058 = vmatpush1.bf16.msra.mxu0 %v4952
        %7059 = vmatprep.subr.bf16.mxu0 %v4957
        %7060 = vmatpush1.bf16.msra.mxu0 %v4956
        %7061 = vmatprep.subr.bf16.mxu0 %v4961
        %7062 = vmatpush1.bf16.msra.mxu0 %v4960
        %7063 = vmatprep.subr.bf16.mxu0 %v4965
        %7064 = vmatpush1.bf16.msra.mxu0 %v4964
        %7065 = vmatprep.subr.bf16.mxu0 %v4969
        %7066 = vmatpush1.bf16.msra.mxu0 %v4968
        %7067 = vmatprep.subr.bf16.mxu0 %v4973
        %7068 = vmatpush1.bf16.msra.mxu0 %v4972
        %7069 = vmatprep.subr.bf16.mxu0 %v4977
        %7070 = vmatpush1.bf16.msra.mxu0 %v4976
        %7071 = vmatprep.subr.bf16.mxu0 %v4981
        %7072 = vmatpush1.bf16.msra.mxu0 %v4980
        %7073 = vmatprep.subr.bf16.mxu0 %v4985
        %7074 = vmatpush1.bf16.msra.mxu0 %v4984
        %7075 = vmatprep.subr.bf16.mxu0 %v4989
        %7076 = vmatpush1.bf16.msra.mxu0 %v4988
        %7077 = vmatprep.subr.bf16.mxu0 %v4993
        %7078 = vmatpush1.bf16.msra.mxu0 %v4992
        %7079 = vmatprep.subr.bf16.mxu0 %v4997
        %7080 = vmatpush1.bf16.msra.mxu0 %v4996
        %7081 = vmatprep.subr.bf16.mxu0 %v5001
        %7082 = vmatpush1.bf16.msra.mxu0 %v5000
        %7083 = vmatprep.subr.bf16.mxu0 %v5005
        %7084 = vmatpush1.bf16.msra.mxu0 %v5004
        %7085 = vmatprep.subr.bf16.mxu0 %v5009
        %7086 = vmatpush1.bf16.msra.mxu0 %v5008
        %7087 = vmatprep.mubr.bf16.mxu0 %v2597
        %7088 = vmatmul.mubr.bf16.gmra.mrb[0].mxu0 %v2596
        %v7089 = vpop.f32.mrb[0].mxu0
        %v7090 = vadd.f32 %v6977, %v7089
        %v7091 = vpop.f32.mrb[0].mxu0
        %v7092 = vadd.f32 %v6979, %v7091
        %v7093 = vpop.f32.mrb[0].mxu0
        %v7094 = vadd.f32 %v6981, %v7093
        %v7095 = vpop.f32.mrb[0].mxu0
        %v7096 = vadd.f32 %v6983, %v7095
        %7097 = vmatprep.mubr.bf16.mxu0 %v2612
        %7098 = vmatmul.mubr.bf16.gmra.mrb[0].mxu0 %v2611
        %v7099 = vpop.f32.mrb[0].mxu0
        %v7100 = vadd.f32 %v6987, %v7099
        %v7101 = vpop.f32.mrb[0].mxu0
        %v7102 = vadd.f32 %v6989, %v7101
        %v7103 = vpop.f32.mrb[0].mxu0
        %v7104 = vadd.f32 %v6991, %v7103
        %v7105 = vpop.f32.mrb[0].mxu0
        %v7106 = vadd.f32 %v6993, %v7105
        %7107 = vmatprep.mubr.bf16.mxu0 %v2627
        %7108 = vmatmul.mubr.bf16.gmra.mrb[0].mxu0 %v2626
        %v7109 = vpop.f32.mrb[0].mxu0
        %v7110 = vadd.f32 %v6997, %v7109
        %v7111 = vpop.f32.mrb[0].mxu0
        %v7112 = vadd.f32 %v6999, %v7111
        %v7113 = vpop.f32.mrb[0].mxu0
        %v7114 = vadd.f32 %v7001, %v7113
        %v7115 = vpop.f32.mrb[0].mxu0
        %v7116 = vadd.f32 %v7003, %v7115
        %7117 = vmatprep.mubr.bf16.mxu0 %v2642
        %7118 = vmatmul.mubr.bf16.gmra.mrb[0].mxu0 %v2641
        %v7119 = vpop.f32.mrb[0].mxu0
        %v7120 = vadd.f32 %v7007, %v7119
        %v7121 = vpop.f32.mrb[0].mxu0
        %v7122 = vadd.f32 %v7009, %v7121
        %v7123 = vpop.f32.mrb[0].mxu0
        %v7124 = vadd.f32 %v7011, %v7123
        %v7125 = vpop.f32.mrb[0].mxu0
        %v7126 = vadd.f32 %v7013, %v7125
        %7127 = vmatprep.mubr.bf16.mxu0 %v2657
        %7128 = vmatmul.mubr.bf16.gmra.mrb[0].mxu0 %v2656
        %v7129 = vpop.f32.mrb[0].mxu0
        %v7130 = vadd.f32 %v7017, %v7129
        %v7131 = vpop.f32.mrb[0].mxu0
        %v7132 = vadd.f32 %v7019, %v7131
        %v7133 = vpop.f32.mrb[0].mxu0
        %v7134 = vadd.f32 %v7021, %v7133
        %v7135 = vpop.f32.mrb[0].mxu0
        %v7136 = vadd.f32 %v7023, %v7135
        %7137 = vmatprep.mubr.bf16.mxu0 %v2672
        %7138 = vmatmul.mubr.bf16.gmra.mrb[0].mxu0 %v2671
        %v7139 = vpop.f32.mrb[0].mxu0
        %v7140 = vadd.f32 %v7027, %v7139
        %v7141 = vpop.f32.mrb[0].mxu0
        %v7142 = vadd.f32 %v7029, %v7141
        %v7143 = vpop.f32.mrb[0].mxu0
        %v7144 = vadd.f32 %v7031, %v7143
        %v7145 = vpop.f32.mrb[0].mxu0
        %v7146 = vadd.f32 %v7033, %v7145
        %7147 = vmatprep.mubr.bf16.mxu0 %v2687
        %7148 = vmatmul.mubr.bf16.gmra.mrb[0].mxu0 %v2686
        %v7149 = vpop.f32.mrb[0].mxu0
        %v7150 = vadd.f32 %v7037, %v7149
        %v7151 = vpop.f32.mrb[0].mxu0
        %v7152 = vadd.f32 %v7039, %v7151
        %v7153 = vpop.f32.mrb[0].mxu0
        %v7154 = vadd.f32 %v7041, %v7153
        %v7155 = vpop.f32.mrb[0].mxu0
        %v7156 = vadd.f32 %v7043, %v7155
        %7157 = vmatprep.mubr.bf16.mxu0 %v2702
        %7158 = vmatmul.mubr.bf16.gmra.mrb[0].mxu0 %v2701
        %v7159 = vpop.f32.mrb[0].mxu0
        %v7160 = vadd.f32 %v7047, %v7159
        %v7161 = vpop.f32.mrb[0].mxu0
        %v7162 = vadd.f32 %v7049, %v7161
        %v7163 = vpop.f32.mrb[0].mxu0
        %v7164 = vadd.f32 %v7051, %v7163
        %v7165 = vpop.f32.mrb[0].mxu0
        %v7166 = vadd.f32 %v7053, %v7165
        %7167 = vdwg.mxu0
        %7168 = vmatprep.subr.bf16.mxu0 %v5013
        %7169 = vmatpush1.bf16.msra.mxu0 %v5012
        %7170 = vmatprep.subr.bf16.mxu0 %v5017
        %7171 = vmatpush1.bf16.msra.mxu0 %v5016
        %7172 = vmatprep.subr.bf16.mxu0 %v5021
        %7173 = vmatpush1.bf16.msra.mxu0 %v5020
        %7174 = vmatprep.subr.bf16.mxu0 %v5025
        %7175 = vmatpush1.bf16.msra.mxu0 %v5024
        %7176 = vmatprep.subr.bf16.mxu0 %v5029
        %7177 = vmatpush1.bf16.msra.mxu0 %v5028
        %7178 = vmatprep.subr.bf16.mxu0 %v5033
        %7179 = vmatpush1.bf16.msra.mxu0 %v5032
        %7180 = vmatprep.subr.bf16.mxu0 %v5037
        %7181 = vmatpush1.bf16.msra.mxu0 %v5036
        %7182 = vmatprep.subr.bf16.mxu0 %v5041
        %7183 = vmatpush1.bf16.msra.mxu0 %v5040
        %7184 = vmatprep.subr.bf16.mxu0 %v5045
        %7185 = vmatpush1.bf16.msra.mxu0 %v5044
        %7186 = vmatprep.subr.bf16.mxu0 %v5049
        %7187 = vmatpush1.bf16.msra.mxu0 %v5048
        %7188 = vmatprep.subr.bf16.mxu0 %v5053
        %7189 = vmatpush1.bf16.msra.mxu0 %v5052
        %7190 = vmatprep.subr.bf16.mxu0 %v5057
        %7191 = vmatpush1.bf16.msra.mxu0 %v5056
        %7192 = vmatprep.subr.bf16.mxu0 %v5061
        %7193 = vmatpush1.bf16.msra.mxu0 %v5060
        %7194 = vmatprep.subr.bf16.mxu0 %v5065
        %7195 = vmatpush1.bf16.msra.mxu0 %v5064
        %7196 = vmatprep.subr.bf16.mxu0 %v5069
        %7197 = vmatpush1.bf16.msra.mxu0 %v5068
        %7198 = vmatprep.subr.bf16.mxu0 %v5073
        %7199 = vmatpush1.bf16.msra.mxu0 %v5072
        %7200 = vmatprep.mubr.bf16.mxu0 %v2599
        %7201 = vmatmul.mubr.bf16.gmra.mrb[0].mxu0 %v2598
        %v7202 = vpop.f32.mrb[0].mxu0
        %v7203 = vadd.f32 %v7090, %v7202
        %v7204 = vpop.f32.mrb[0].mxu0
        %v7205 = vadd.f32 %v7092, %v7204
        %v7206 = vpop.f32.mrb[0].mxu0
        %v7207 = vadd.f32 %v7094, %v7206
        %v7208 = vpop.f32.mrb[0].mxu0
        %v7209 = vadd.f32 %v7096, %v7208
        %7210 = vmatprep.mubr.bf16.mxu0 %v2614
        %7211 = vmatmul.mubr.bf16.gmra.mrb[0].mxu0 %v2613
        %v7212 = vpop.f32.mrb[0].mxu0
        %v7213 = vadd.f32 %v7100, %v7212
        %v7214 = vpop.f32.mrb[0].mxu0
        %v7215 = vadd.f32 %v7102, %v7214
        %v7216 = vpop.f32.mrb[0].mxu0
        %v7217 = vadd.f32 %v7104, %v7216
        %v7218 = vpop.f32.mrb[0].mxu0
        %v7219 = vadd.f32 %v7106, %v7218
        %7220 = vmatprep.mubr.bf16.mxu0 %v2629
        %7221 = vmatmul.mubr.bf16.gmra.mrb[0].mxu0 %v2628
        %v7222 = vpop.f32.mrb[0].mxu0
        %v7223 = vadd.f32 %v7110, %v7222
        %v7224 = vpop.f32.mrb[0].mxu0
        %v7225 = vadd.f32 %v7112, %v7224
        %v7226 = vpop.f32.mrb[0].mxu0
        %v7227 = vadd.f32 %v7114, %v7226
        %v7228 = vpop.f32.mrb[0].mxu0
        %v7229 = vadd.f32 %v7116, %v7228
        %7230 = vmatprep.mubr.bf16.mxu0 %v2644
        %7231 = vmatmul.mubr.bf16.gmra.mrb[0].mxu0 %v2643
        %v7232 = vpop.f32.mrb[0].mxu0
        %v7233 = vadd.f32 %v7120, %v7232
        %v7234 = vpop.f32.mrb[0].mxu0
        %v7235 = vadd.f32 %v7122, %v7234
        %v7236 = vpop.f32.mrb[0].mxu0
        %v7237 = vadd.f32 %v7124, %v7236
        %v7238 = vpop.f32.mrb[0].mxu0
        %v7239 = vadd.f32 %v7126, %v7238
        %7240 = vmatprep.mubr.bf16.mxu0 %v2659
        %7241 = vmatmul.mubr.bf16.gmra.mrb[0].mxu0 %v2658
        %v7242 = vpop.f32.mrb[0].mxu0
        %v7243 = vadd.f32 %v7130, %v7242
        %v7244 = vpop.f32.mrb[0].mxu0
        %v7245 = vadd.f32 %v7132, %v7244
        %v7246 = vpop.f32.mrb[0].mxu0
        %v7247 = vadd.f32 %v7134, %v7246
        %v7248 = vpop.f32.mrb[0].mxu0
        %v7249 = vadd.f32 %v7136, %v7248
        %7250 = vmatprep.mubr.bf16.mxu0 %v2674
        %7251 = vmatmul.mubr.bf16.gmra.mrb[0].mxu0 %v2673
        %v7252 = vpop.f32.mrb[0].mxu0
        %v7253 = vadd.f32 %v7140, %v7252
        %v7254 = vpop.f32.mrb[0].mxu0
        %v7255 = vadd.f32 %v7142, %v7254
        %v7256 = vpop.f32.mrb[0].mxu0
        %v7257 = vadd.f32 %v7144, %v7256
        %v7258 = vpop.f32.mrb[0].mxu0
        %v7259 = vadd.f32 %v7146, %v7258
        %7260 = vmatprep.mubr.bf16.mxu0 %v2689
        %7261 = vmatmul.mubr.bf16.gmra.mrb[0].mxu0 %v2688
        %v7262 = vpop.f32.mrb[0].mxu0
        %v7263 = vadd.f32 %v7150, %v7262
        %v7264 = vpop.f32.mrb[0].mxu0
        %v7265 = vadd.f32 %v7152, %v7264
        %v7266 = vpop.f32.mrb[0].mxu0
        %v7267 = vadd.f32 %v7154, %v7266
        %v7268 = vpop.f32.mrb[0].mxu0
        %v7269 = vadd.f32 %v7156, %v7268
        %7270 = vmatprep.mubr.bf16.mxu0 %v2704
        %7271 = vmatmul.mubr.bf16.gmra.mrb[0].mxu0 %v2703
        %v7272 = vpop.f32.mrb[0].mxu0
        %v7273 = vadd.f32 %v7160, %v7272
        %v7274 = vpop.f32.mrb[0].mxu0
        %v7275 = vadd.f32 %v7162, %v7274
        %v7276 = vpop.f32.mrb[0].mxu0
        %v7277 = vadd.f32 %v7164, %v7276
        %v7278 = vpop.f32.mrb[0].mxu0
        %v7279 = vadd.f32 %v7166, %v7278
        %7280 = vdwg.mxu0
        %7281 = vmatprep.subr.bf16.mxu0 %v5077
        %7282 = vmatpush1.bf16.msra.mxu0 %v5076
        %7283 = vmatprep.subr.bf16.mxu0 %v5081
        %7284 = vmatpush1.bf16.msra.mxu0 %v5080
        %7285 = vmatprep.subr.bf16.mxu0 %v5085
        %7286 = vmatpush1.bf16.msra.mxu0 %v5084
        %7287 = vmatprep.subr.bf16.mxu0 %v5089
        %7288 = vmatpush1.bf16.msra.mxu0 %v5088
        %7289 = vmatprep.subr.bf16.mxu0 %v5093
        %7290 = vmatpush1.bf16.msra.mxu0 %v5092
        %7291 = vmatprep.subr.bf16.mxu0 %v5097
        %7292 = vmatpush1.bf16.msra.mxu0 %v5096
        %7293 = vmatprep.subr.bf16.mxu0 %v5101
        %7294 = vmatpush1.bf16.msra.mxu0 %v5100
        %7295 = vmatprep.subr.bf16.mxu0 %v5105
        %7296 = vmatpush1.bf16.msra.mxu0 %v5104
        %7297 = vmatprep.subr.bf16.mxu0 0
        %7298 = vmatpush1.bf16.msra.mxu0 0
        %7299 = vmatprep.subr.bf16.mxu0 0
        %7300 = vmatpush1.bf16.msra.mxu0 0
        %7301 = vmatprep.subr.bf16.mxu0 0
        %7302 = vmatpush1.bf16.msra.mxu0 0
        %7303 = vmatprep.subr.bf16.mxu0 0
        %7304 = vmatpush1.bf16.msra.mxu0 0
        %7305 = vmatprep.subr.bf16.mxu0 0
        %7306 = vmatpush1.bf16.msra.mxu0 0
        %7307 = vmatprep.subr.bf16.mxu0 0
        %7308 = vmatpush1.bf16.msra.mxu0 0
        %7309 = vmatprep.subr.bf16.mxu0 0
        %7310 = vmatpush1.bf16.msra.mxu0 0
        %7311 = vmatprep.subr.bf16.mxu0 0
        %7312 = vmatpush1.bf16.msra.mxu0 0
        %7313 = vmatprep.mubr.bf16.mxu0 0
        %7314 = vmatmul.mubr.bf16.gmra.mrb[0].mxu0 %v2600
        %v7315 = vpop.f32.mrb[0].mxu0
        %v7316 = vadd.f32 %v7203, %v7315
        %v7317 = vpop.f32.mrb[0].mxu0
        %v7318 = vadd.f32 %v7205, %v7317
        %v7319 = vpop.f32.mrb[0].mxu0
        %v7320 = vadd.f32 %v7207, %v7319
        %v7321 = vpop.f32.mrb[0].mxu0
        %v7322 = vadd.f32 %v7209, %v7321
        %7323 = vmatprep.mubr.bf16.mxu0 0
        %7324 = vmatmul.mubr.bf16.gmra.mrb[0].mxu0 %v2615
        %v7325 = vpop.f32.mrb[0].mxu0
        %v7326 = vadd.f32 %v7213, %v7325
        %v7327 = vpop.f32.mrb[0].mxu0
        %v7328 = vadd.f32 %v7215, %v7327
        %v7329 = vpop.f32.mrb[0].mxu0
        %v7330 = vadd.f32 %v7217, %v7329
        %v7331 = vpop.f32.mrb[0].mxu0
        %v7332 = vadd.f32 %v7219, %v7331
        %7333 = vmatprep.mubr.bf16.mxu0 0
        %7334 = vmatmul.mubr.bf16.gmra.mrb[0].mxu0 %v2630
        %v7335 = vpop.f32.mrb[0].mxu0
        %v7336 = vadd.f32 %v7223, %v7335
        %v7337 = vpop.f32.mrb[0].mxu0
        %v7338 = vadd.f32 %v7225, %v7337
        %v7339 = vpop.f32.mrb[0].mxu0
        %v7340 = vadd.f32 %v7227, %v7339
        %v7341 = vpop.f32.mrb[0].mxu0
        %v7342 = vadd.f32 %v7229, %v7341
        %7343 = vmatprep.mubr.bf16.mxu0 0
        %7344 = vmatmul.mubr.bf16.gmra.mrb[0].mxu0 %v2645
        %v7345 = vpop.f32.mrb[0].mxu0
        %v7346 = vadd.f32 %v7233, %v7345
        %v7347 = vpop.f32.mrb[0].mxu0
        %v7348 = vadd.f32 %v7235, %v7347
        %v7349 = vpop.f32.mrb[0].mxu0
        %v7350 = vadd.f32 %v7237, %v7349
        %v7351 = vpop.f32.mrb[0].mxu0
        %v7352 = vadd.f32 %v7239, %v7351
        %7353 = vmatprep.mubr.bf16.mxu0 0
        %7354 = vmatmul.mubr.bf16.gmra.mrb[0].mxu0 %v2660
        %v7355 = vpop.f32.mrb[0].mxu0
        %v7356 = vadd.f32 %v7243, %v7355
        %v7357 = vpop.f32.mrb[0].mxu0
        %v7358 = vadd.f32 %v7245, %v7357
        %v7359 = vpop.f32.mrb[0].mxu0
        %v7360 = vadd.f32 %v7247, %v7359
        %v7361 = vpop.f32.mrb[0].mxu0
        %v7362 = vadd.f32 %v7249, %v7361
        %7363 = vmatprep.mubr.bf16.mxu0 0
        %7364 = vmatmul.mubr.bf16.gmra.mrb[0].mxu0 %v2675
        %v7365 = vpop.f32.mrb[0].mxu0
        %v7366 = vadd.f32 %v7253, %v7365
        %v7367 = vpop.f32.mrb[0].mxu0
        %v7368 = vadd.f32 %v7255, %v7367
        %v7369 = vpop.f32.mrb[0].mxu0
        %v7370 = vadd.f32 %v7257, %v7369
        %v7371 = vpop.f32.mrb[0].mxu0
        %v7372 = vadd.f32 %v7259, %v7371
        %7373 = vmatprep.mubr.bf16.mxu0 0
        %7374 = vmatmul.mubr.bf16.gmra.mrb[0].mxu0 %v2690
        %v7375 = vpop.f32.mrb[0].mxu0
        %v7376 = vadd.f32 %v7263, %v7375
        %v7377 = vpop.f32.mrb[0].mxu0
        %v7378 = vadd.f32 %v7265, %v7377
        %v7379 = vpop.f32.mrb[0].mxu0
        %v7380 = vadd.f32 %v7267, %v7379
        %v7381 = vpop.f32.mrb[0].mxu0
        %v7382 = vadd.f32 %v7269, %v7381
        %7383 = vmatprep.mubr.bf16.mxu0 0
        %7384 = vmatmul.mubr.bf16.gmra.mrb[0].mxu0 %v2705
        %v7385 = vpop.f32.mrb[0].mxu0
        %v7386 = vadd.f32 %v7273, %v7385
        %v7387 = vpop.f32.mrb[0].mxu0
        %v7388 = vadd.f32 %v7275, %v7387
        %v7389 = vpop.f32.mrb[0].mxu0
        %v7390 = vadd.f32 %v7277, %v7389
        %v7391 = vpop.f32.mrb[0].mxu0
        %v7392 = vadd.f32 %v7279, %v7391
        %7393 = vdwg.mxu0
        %v7394 = vmax.f32 %v6412, %v6422
        %v7395 = vmax.f32 %v6414, %v6424
        %v7396 = vmax.f32 %v7316, %v7326
        %v7397 = vmax.f32 %v7318, %v7328
        %v7398 = vmax.f32 %v6416, %v6426
        %v7399 = vmax.f32 %v6418, %v6428
        %v7400 = vmax.f32 %v7320, %v7330
        %v7401 = vmax.f32 %v7322, %v7332
        %v7402 = vmax.f32 %v6432, %v6442
        %v7403 = vmax.f32 %v6434, %v6444
        %v7404 = vmax.f32 %v7336, %v7346
        %v7405 = vmax.f32 %v7338, %v7348
        %v7406 = vmax.f32 %v6436, %v6446
        %v7407 = vmax.f32 %v6438, %v6448
        %v7408 = vmax.f32 %v7340, %v7350
        %v7409 = vmax.f32 %v7342, %v7352
        %v7410 = vmax.f32 %v6452, %v6462
        %v7411 = vmax.f32 %v6454, %v6464
        %v7412 = vmax.f32 %v7356, %v7366
        %v7413 = vmax.f32 %v7358, %v7368
        %v7414 = vmax.f32 %v6456, %v6466
        %v7415 = vmax.f32 %v6458, %v6468
        %v7416 = vmax.f32 %v7360, %v7370
        %v7417 = vmax.f32 %v7362, %v7372
        %v7418 = vmax.f32 %v6472, %v6482
        %v7419 = vmax.f32 %v6474, %v6484
        %v7420 = vmax.f32 %v7376, %v7386
        %v7421 = vmax.f32 %v7378, %v7388
        %v7422 = vmax.f32 %v6476, %v6486
        %v7423 = vmax.f32 %v6478, %v6488
        %v7424 = vmax.f32 %v7380, %v7390
        %v7425 = vmax.f32 %v7382, %v7392
        %v7426 = vmax.f32 %v7394, %v7396
        %v7427 = vmax.f32 %v7395, %v7397
        %v7428 = vmax.f32 %v7398, %v7400
        %v7429 = vmax.f32 %v7399, %v7401
        %v7430 = vmax.f32 %v7402, %v7404
        %v7431 = vmax.f32 %v7403, %v7405
        %v7432 = vmax.f32 %v7406, %v7408
        %v7433 = vmax.f32 %v7407, %v7409
        %v7434 = vmax.f32 %v7410, %v7412
        %v7435 = vmax.f32 %v7411, %v7413
        %v7436 = vmax.f32 %v7414, %v7416
        %v7437 = vmax.f32 %v7415, %v7417
        %v7438 = vmax.f32 %v7418, %v7420
        %v7439 = vmax.f32 %v7419, %v7421
        %v7440 = vmax.f32 %v7422, %v7424
        %v7441 = vmax.f32 %v7423, %v7425
        %v7442 = vld [vmem:[%s4] sm:$0x3]
        %v7444 = vlaneseq
        %v7445 = vshrl.u32 %v7444, 7
        %v7446 = vsub.s32 0, %v7445
        %v7447 = vrot.slane %v7442, %v7446
        %v7448 = vlaneseq
        %v7449 = vshrl.u32 %v7448, 7
        %v7450 = vsub.s32 1, %v7449
        %v7451 = vrot.slane %v7442, %v7450
        %v7454 = vadd.f32 %v7426, %v7447
        %v7455 = vadd.f32 %v7427, %v7451
        %v7456 = vadd.f32 %v7428, %v7447
        %v7457 = vadd.f32 %v7429, %v7451
        %v7458 = vadd.f32 %v7430, %v7447
        %v7459 = vadd.f32 %v7431, %v7451
        %v7460 = vadd.f32 %v7432, %v7447
        %v7461 = vadd.f32 %v7433, %v7451
        %v7462 = vadd.f32 %v7434, %v7447
        %v7463 = vadd.f32 %v7435, %v7451
        %v7464 = vadd.f32 %v7436, %v7447
        %v7465 = vadd.f32 %v7437, %v7451
        %v7466 = vadd.f32 %v7438, %v7447
        %v7467 = vadd.f32 %v7439, %v7451
        %v7468 = vadd.f32 %v7440, %v7447
        %v7469 = vadd.f32 %v7441, %v7451
        %v7470 = vmax.f32 %v7454, 0.0
        %v7471 = vmax.f32 %v7455, 0.0
        %v7472 = vmax.f32 %v7456, 0.0
        %v7473 = vmax.f32 %v7457, 0.0
        %v7474 = vmax.f32 %v7458, 0.0
        %v7475 = vmax.f32 %v7459, 0.0
        %v7476 = vmax.f32 %v7460, 0.0
        %v7477 = vmax.f32 %v7461, 0.0
        %v7478 = vmax.f32 %v7462, 0.0
        %v7479 = vmax.f32 %v7463, 0.0
        %v7480 = vmax.f32 %v7464, 0.0
        %v7481 = vmax.f32 %v7465, 0.0
        %v7482 = vmax.f32 %v7466, 0.0
        %v7483 = vmax.f32 %v7467, 0.0
        %v7484 = vmax.f32 %v7468, 0.0
        %v7485 = vmax.f32 %v7469, 0.0
        %v7486 = vpack.c.bf16 %v7472, %v7470
        %v7487 = vpack.c.bf16 %v7473, %v7471
        %v7488 = vpack.c.bf16 %v7476, %v7474
        %v7489 = vpack.c.bf16 %v7477, %v7475
        %v7490 = vpack.c.bf16 %v7480, %v7478
        %v7491 = vpack.c.bf16 %v7481, %v7479
        %v7492 = vpack.c.bf16 %v7484, %v7482
        %v7493 = vpack.c.bf16 %v7485, %v7483
        %v7494 = vld [vmem:[%s5] sm:$0xf]
        %v7495 = vld [vmem:[%s5 + $0x4] sm:$0xf]
        %v7496 = vld [vmem:[%s5 + $0x8] sm:$0xf]
        %v7497 = vld [vmem:[%s5 + $0xc] sm:$0xf]
        %v7498 = vld [vmem:[%s5 + $0x10] sm:$0xf]
        %v7499 = vld [vmem:[%s5 + $0x14] sm:$0xf]
        %v7500 = vld [vmem:[%s5 + $0x18] sm:$0xf]
        %v7501 = vld [vmem:[%s5 + $0x1c] sm:$0xf]
        %v7502 = vld [vmem:[%s5 + $0x20] sm:$0xf]
        %v7503 = vld [vmem:[%s5 + $0x24] sm:$0xf]
        %v7504 = vld [vmem:[%s5 + $0x28] sm:$0xf]
        %v7505 = vld [vmem:[%s5 + $0x2c] sm:$0xf]
        %v7506 = vld [vmem:[%s5 + $0x30] sm:$0xf]
        %v7507 = vld [vmem:[%s5 + $0x34] sm:$0xf]
        %v7508 = vld [vmem:[%s5 + $0x38] sm:$0xf]
        %v7509 = vld [vmem:[%s5 + $0x3c] sm:$0xf]
        %v7510 = vld [vmem:[%s5 + $0x40] sm:$0xf]
        %v7511 = vld [vmem:[%s5 + $0x44] sm:$0xf]
        %v7512 = vld [vmem:[%s5 + $0x48] sm:$0xf]
        %v7513 = vld [vmem:[%s5 + $0x4c] sm:$0xf]
        %v7514 = vld [vmem:[%s5 + $0x50] sm:$0xf]
        %v7515 = vld [vmem:[%s5 + $0x54] sm:$0xf]
        %v7516 = vld [vmem:[%s5 + $0x58] sm:$0xf]
        %v7517 = vld [vmem:[%s5 + $0x5c] sm:$0xf]
        %v7518 = vld [vmem:[%s5 + $0x60] sm:$0xf]
        %v7519 = vld [vmem:[%s5 + $0x64] sm:$0xf]
        %v7520 = vld [vmem:[%s5 + $0x68] sm:$0xf]
        %v7521 = vld [vmem:[%s5 + $0x6c] sm:$0xf]
        %v7522 = vld [vmem:[%s5 + $0x70] sm:$0xf]
        %v7523 = vld [vmem:[%s5 + $0x74] sm:$0xf]
        %v7524 = vld [vmem:[%s5 + $0x78] sm:$0xf]
        %v7525 = vld [vmem:[%s5 + $0x7c] sm:$0xf]
        %s7526 = scalar_lea.vmem %s5, 128
        %v7527 = vld [vmem:[%s7526] sm:$0xf]
        %v7528 = vld [vmem:[%s7526 + $0x4] sm:$0xf]
        %v7529 = vld [vmem:[%s7526 + $0x8] sm:$0xf]
        %v7530 = vld [vmem:[%s7526 + $0xc] sm:$0xf]
        %v7531 = vld [vmem:[%s7526 + $0x10] sm:$0xf]
        %v7532 = vld [vmem:[%s7526 + $0x14] sm:$0xf]
        %v7533 = vld [vmem:[%s7526 + $0x18] sm:$0xf]
        %v7534 = vld [vmem:[%s7526 + $0x1c] sm:$0xf]
        %v7535 = vld [vmem:[%s7526 + $0x20] sm:$0xf]
        %v7536 = vld [vmem:[%s7526 + $0x24] sm:$0xf]
        %v7537 = vld [vmem:[%s7526 + $0x28] sm:$0xf]
        %v7538 = vld [vmem:[%s7526 + $0x2c] sm:$0xf]
        %v7539 = vld [vmem:[%s7526 + $0x30] sm:$0xf]
        %v7540 = vld [vmem:[%s7526 + $0x34] sm:$0xf]
        %v7541 = vld [vmem:[%s7526 + $0x38] sm:$0xf]
        %v7542 = vld [vmem:[%s7526 + $0x3c] sm:$0xf]
        %v7543 = vld [vmem:[%s7526 + $0x40] sm:$0xf]
        %v7544 = vld [vmem:[%s7526 + $0x44] sm:$0xf]
        %v7545 = vld [vmem:[%s7526 + $0x48] sm:$0xf]
        %v7546 = vld [vmem:[%s7526 + $0x4c] sm:$0xf]
        %v7547 = vld [vmem:[%s7526 + $0x50] sm:$0xf]
        %v7548 = vld [vmem:[%s7526 + $0x54] sm:$0xf]
        %v7549 = vld [vmem:[%s7526 + $0x58] sm:$0xf]
        %v7550 = vld [vmem:[%s7526 + $0x5c] sm:$0xf]
        %v7551 = vld [vmem:[%s7526 + $0x60] sm:$0xf]
        %v7552 = vld [vmem:[%s7526 + $0x64] sm:$0xf]
        %v7553 = vld [vmem:[%s7526 + $0x68] sm:$0xf]
        %v7554 = vld [vmem:[%s7526 + $0x6c] sm:$0xf]
        %v7555 = vld [vmem:[%s7526 + $0x70] sm:$0xf]
        %v7556 = vld [vmem:[%s7526 + $0x74] sm:$0xf]
        %v7557 = vld [vmem:[%s7526 + $0x78] sm:$0xf]
        %v7558 = vld [vmem:[%s7526 + $0x7c] sm:$0xf]
        %v7591 = vunpack.c.l.b16 %v7527
        %v7592 = vunpack.c.l.b16 %v7528
        %v7593 = vunpack.c.l.b16 %v7529
        %v7594 = vunpack.c.l.b16 %v7530
        %v7595 = vunpack.c.l.b16 %v7531
        %v7596 = vunpack.c.l.b16 %v7532
        %v7597 = vunpack.c.l.b16 %v7533
        %v7598 = vunpack.c.l.b16 %v7534
        %v7599 = vunpack.c.l.b16 %v7535
        %v7600 = vunpack.c.l.b16 %v7536
        %v7601 = vunpack.c.l.b16 %v7537
        %v7602 = vunpack.c.l.b16 %v7538
        %v7603 = vunpack.c.l.b16 %v7539
        %v7604 = vunpack.c.l.b16 %v7540
        %v7605 = vunpack.c.l.b16 %v7541
        %v7606 = vunpack.c.l.b16 %v7542
        %v7607 = vunpack.c.l.b16 %v7543
        %v7608 = vunpack.c.l.b16 %v7544
        %v7609 = vunpack.c.l.b16 %v7545
        %v7610 = vunpack.c.l.b16 %v7546
        %v7611 = vunpack.c.l.b16 %v7547
        %v7612 = vunpack.c.l.b16 %v7548
        %v7613 = vunpack.c.l.b16 %v7549
        %v7614 = vunpack.c.l.b16 %v7550
        %v7615 = vunpack.c.l.b16 %v7551
        %v7616 = vunpack.c.l.b16 %v7552
        %v7617 = vunpack.c.l.b16 %v7553
        %v7618 = vunpack.c.l.b16 %v7554
        %v7619 = vunpack.c.l.b16 %v7555
        %v7620 = vunpack.c.l.b16 %v7556
        %v7621 = vunpack.c.l.b16 %v7557
        %v7622 = vunpack.c.l.b16 %v7558
        %v7623 = vpack.c.b16 %v7592, %v7591
        %v7624 = vpack.c.b16 %v7594, %v7593
        %v7625 = vpack.c.b16 %v7596, %v7595
        %v7626 = vpack.c.b16 %v7598, %v7597
        %v7627 = vpack.c.b16 %v7600, %v7599
        %v7628 = vpack.c.b16 %v7602, %v7601
        %v7629 = vpack.c.b16 %v7604, %v7603
        %v7630 = vpack.c.b16 %v7606, %v7605
        %v7631 = vpack.c.b16 %v7608, %v7607
        %v7632 = vpack.c.b16 %v7610, %v7609
        %v7633 = vpack.c.b16 %v7612, %v7611
        %v7634 = vpack.c.b16 %v7614, %v7613
        %v7635 = vpack.c.b16 %v7616, %v7615
        %v7636 = vpack.c.b16 %v7618, %v7617
        %v7637 = vpack.c.b16 %v7620, %v7619
        %v7638 = vpack.c.b16 %v7622, %v7621
        %7655 = vmatprep.subr.bf16.mxu0 0
        %7656 = vmatpush1.bf16.msra.mxu0 %v7623
        %7657 = vmatprep.subr.bf16.mxu0 0
        %7658 = vmatpush1.bf16.msra.mxu0 %v7624
        %7659 = vmatprep.subr.bf16.mxu0 0
        %7660 = vmatpush1.bf16.msra.mxu0 %v7625
        %7661 = vmatprep.subr.bf16.mxu0 0
        %7662 = vmatpush1.bf16.msra.mxu0 %v7626
        %7663 = vmatprep.subr.bf16.mxu0 0
        %7664 = vmatpush1.bf16.msra.mxu0 %v7627
        %7665 = vmatprep.subr.bf16.mxu0 0
        %7666 = vmatpush1.bf16.msra.mxu0 %v7628
        %7667 = vmatprep.subr.bf16.mxu0 0
        %7668 = vmatpush1.bf16.msra.mxu0 %v7629
        %7669 = vmatprep.subr.bf16.mxu0 0
        %7670 = vmatpush1.bf16.msra.mxu0 %v7630
        %7671 = vmatprep.subr.bf16.mxu0 0
        %7672 = vmatpush1.bf16.msra.mxu0 %v7631
        %7673 = vmatprep.subr.bf16.mxu0 0
        %7674 = vmatpush1.bf16.msra.mxu0 %v7632
        %7675 = vmatprep.subr.bf16.mxu0 0
        %7676 = vmatpush1.bf16.msra.mxu0 %v7633
        %7677 = vmatprep.subr.bf16.mxu0 0
        %7678 = vmatpush1.bf16.msra.mxu0 %v7634
        %7679 = vmatprep.subr.bf16.mxu0 0
        %7680 = vmatpush1.bf16.msra.mxu0 %v7635
        %7681 = vmatprep.subr.bf16.mxu0 0
        %7682 = vmatpush1.bf16.msra.mxu0 %v7636
        %7683 = vmatprep.subr.bf16.mxu0 0
        %7684 = vmatpush1.bf16.msra.mxu0 %v7637
        %7685 = vmatprep.subr.bf16.mxu0 0
        %7686 = vmatpush1.bf16.msra.mxu0 %v7638
        %7687 = vmatprep.mubr.bf16.mxu0 %v7489
        %7688 = vmatmul.mubr.bf16.gmra.mrb[0].mxu0 %v7488
        %v7689 = vpop.f32.mrb[0].mxu0
        %v7690 = vadd.f32 0.0, %v7689
        %v7691 = vpop.f32.mrb[0].mxu0
        %v7692 = vpop.f32.mrb[0].mxu0
        %v7693 = vadd.f32 0.0, %v7692
        %v7694 = vpop.f32.mrb[0].mxu0
        %7695 = vdwg.mxu0
        %v7728 = vunpack.c.l.b16 %v7494
        %v7729 = vunpack.c.l.b16 %v7495
        %v7730 = vunpack.c.l.b16 %v7496
        %v7731 = vunpack.c.l.b16 %v7497
        %v7732 = vunpack.c.l.b16 %v7498
        %v7733 = vunpack.c.l.b16 %v7499
        %v7734 = vunpack.c.l.b16 %v7500
        %v7735 = vunpack.c.l.b16 %v7501
        %v7736 = vunpack.c.l.b16 %v7502
        %v7737 = vunpack.c.l.b16 %v7503
        %v7738 = vunpack.c.l.b16 %v7504
        %v7739 = vunpack.c.l.b16 %v7505
        %v7740 = vunpack.c.l.b16 %v7506
        %v7741 = vunpack.c.l.b16 %v7507
        %v7742 = vunpack.c.l.b16 %v7508
        %v7743 = vunpack.c.l.b16 %v7509
        %v7744 = vunpack.c.l.b16 %v7510
        %v7745 = vunpack.c.l.b16 %v7511
        %v7746 = vunpack.c.l.b16 %v7512
        %v7747 = vunpack.c.l.b16 %v7513
        %v7748 = vunpack.c.l.b16 %v7514
        %v7749 = vunpack.c.l.b16 %v7515
        %v7750 = vunpack.c.l.b16 %v7516
        %v7751 = vunpack.c.l.b16 %v7517
        %v7752 = vunpack.c.l.b16 %v7518
        %v7753 = vunpack.c.l.b16 %v7519
        %v7754 = vunpack.c.l.b16 %v7520
        %v7755 = vunpack.c.l.b16 %v7521
        %v7756 = vunpack.c.l.b16 %v7522
        %v7757 = vunpack.c.l.b16 %v7523
        %v7758 = vunpack.c.l.b16 %v7524
        %v7759 = vunpack.c.l.b16 %v7525
        %v7760 = vpack.c.b16 %v7729, %v7728
        %v7761 = vpack.c.b16 %v7731, %v7730
        %v7762 = vpack.c.b16 %v7733, %v7732
        %v7763 = vpack.c.b16 %v7735, %v7734
        %v7764 = vpack.c.b16 %v7737, %v7736
        %v7765 = vpack.c.b16 %v7739, %v7738
        %v7766 = vpack.c.b16 %v7741, %v7740
        %v7767 = vpack.c.b16 %v7743, %v7742
        %v7768 = vpack.c.b16 %v7745, %v7744
        %v7769 = vpack.c.b16 %v7747, %v7746
        %v7770 = vpack.c.b16 %v7749, %v7748
        %v7771 = vpack.c.b16 %v7751, %v7750
        %v7772 = vpack.c.b16 %v7753, %v7752
        %v7773 = vpack.c.b16 %v7755, %v7754
        %v7774 = vpack.c.b16 %v7757, %v7756
        %v7775 = vpack.c.b16 %v7759, %v7758
        %7792 = vmatprep.subr.bf16.mxu0 0
        %7793 = vmatpush1.bf16.msra.mxu0 %v7760
        %7794 = vmatprep.subr.bf16.mxu0 0
        %7795 = vmatpush1.bf16.msra.mxu0 %v7761
        %7796 = vmatprep.subr.bf16.mxu0 0
        %7797 = vmatpush1.bf16.msra.mxu0 %v7762
        %7798 = vmatprep.subr.bf16.mxu0 0
        %7799 = vmatpush1.bf16.msra.mxu0 %v7763
        %7800 = vmatprep.subr.bf16.mxu0 0
        %7801 = vmatpush1.bf16.msra.mxu0 %v7764
        %7802 = vmatprep.subr.bf16.mxu0 0
        %7803 = vmatpush1.bf16.msra.mxu0 %v7765
        %7804 = vmatprep.subr.bf16.mxu0 0
        %7805 = vmatpush1.bf16.msra.mxu0 %v7766
        %7806 = vmatprep.subr.bf16.mxu0 0
        %7807 = vmatpush1.bf16.msra.mxu0 %v7767
        %7808 = vmatprep.subr.bf16.mxu0 0
        %7809 = vmatpush1.bf16.msra.mxu0 %v7768
        %7810 = vmatprep.subr.bf16.mxu0 0
        %7811 = vmatpush1.bf16.msra.mxu0 %v7769
        %7812 = vmatprep.subr.bf16.mxu0 0
        %7813 = vmatpush1.bf16.msra.mxu0 %v7770
        %7814 = vmatprep.subr.bf16.mxu0 0
        %7815 = vmatpush1.bf16.msra.mxu0 %v7771
        %7816 = vmatprep.subr.bf16.mxu0 0
        %7817 = vmatpush1.bf16.msra.mxu0 %v7772
        %7818 = vmatprep.subr.bf16.mxu0 0
        %7819 = vmatpush1.bf16.msra.mxu0 %v7773
        %7820 = vmatprep.subr.bf16.mxu0 0
        %7821 = vmatpush1.bf16.msra.mxu0 %v7774
        %7822 = vmatprep.subr.bf16.mxu0 0
        %7823 = vmatpush1.bf16.msra.mxu0 %v7775
        %7824 = vmatprep.mubr.bf16.mxu0 %v7487
        %7825 = vmatmul.mubr.bf16.gmra.mrb[0].mxu0 %v7486
        %v7826 = vpop.f32.mrb[0].mxu0
        %v7827 = vadd.f32 %v7690, %v7826
        %v7828 = vpop.f32.mrb[0].mxu0
        %v7829 = vpop.f32.mrb[0].mxu0
        %v7830 = vadd.f32 %v7693, %v7829
        %v7831 = vpop.f32.mrb[0].mxu0
        %7832 = vdwg.mxu0
        %s7833 = scalar_lea.vmem %s5, 256
        %v7834 = vld [vmem:[%s7833] sm:$0xf]
        %v7835 = vld [vmem:[%s7833 + $0x4] sm:$0xf]
        %v7836 = vld [vmem:[%s7833 + $0x8] sm:$0xf]
        %v7837 = vld [vmem:[%s7833 + $0xc] sm:$0xf]
        %v7838 = vld [vmem:[%s7833 + $0x10] sm:$0xf]
        %v7839 = vld [vmem:[%s7833 + $0x14] sm:$0xf]
        %v7840 = vld [vmem:[%s7833 + $0x18] sm:$0xf]
        %v7841 = vld [vmem:[%s7833 + $0x1c] sm:$0xf]
        %v7842 = vld [vmem:[%s7833 + $0x20] sm:$0xf]
        %v7843 = vld [vmem:[%s7833 + $0x24] sm:$0xf]
        %v7844 = vld [vmem:[%s7833 + $0x28] sm:$0xf]
        %v7845 = vld [vmem:[%s7833 + $0x2c] sm:$0xf]
        %v7846 = vld [vmem:[%s7833 + $0x30] sm:$0xf]
        %v7847 = vld [vmem:[%s7833 + $0x34] sm:$0xf]
        %v7848 = vld [vmem:[%s7833 + $0x38] sm:$0xf]
        %v7849 = vld [vmem:[%s7833 + $0x3c] sm:$0xf]
        %v7850 = vld [vmem:[%s7833 + $0x40] sm:$0xf]
        %v7851 = vld [vmem:[%s7833 + $0x44] sm:$0xf]
        %v7852 = vld [vmem:[%s7833 + $0x48] sm:$0xf]
        %v7853 = vld [vmem:[%s7833 + $0x4c] sm:$0xf]
        %v7854 = vld [vmem:[%s7833 + $0x50] sm:$0xf]
        %v7855 = vld [vmem:[%s7833 + $0x54] sm:$0xf]
        %v7856 = vld [vmem:[%s7833 + $0x58] sm:$0xf]
        %v7857 = vld [vmem:[%s7833 + $0x5c] sm:$0xf]
        %v7858 = vld [vmem:[%s7833 + $0x60] sm:$0xf]
        %v7859 = vld [vmem:[%s7833 + $0x64] sm:$0xf]
        %v7860 = vld [vmem:[%s7833 + $0x68] sm:$0xf]
        %v7861 = vld [vmem:[%s7833 + $0x6c] sm:$0xf]
        %v7862 = vld [vmem:[%s7833 + $0x70] sm:$0xf]
        %v7863 = vld [vmem:[%s7833 + $0x74] sm:$0xf]
        %v7864 = vld [vmem:[%s7833 + $0x78] sm:$0xf]
        %v7865 = vld [vmem:[%s7833 + $0x7c] sm:$0xf]
        %v7898 = vunpack.c.l.b16 %v7834
        %v7899 = vunpack.c.l.b16 %v7835
        %v7900 = vunpack.c.l.b16 %v7836
        %v7901 = vunpack.c.l.b16 %v7837
        %v7902 = vunpack.c.l.b16 %v7838
        %v7903 = vunpack.c.l.b16 %v7839
        %v7904 = vunpack.c.l.b16 %v7840
        %v7905 = vunpack.c.l.b16 %v7841
        %v7906 = vunpack.c.l.b16 %v7842
        %v7907 = vunpack.c.l.b16 %v7843
        %v7908 = vunpack.c.l.b16 %v7844
        %v7909 = vunpack.c.l.b16 %v7845
        %v7910 = vunpack.c.l.b16 %v7846
        %v7911 = vunpack.c.l.b16 %v7847
        %v7912 = vunpack.c.l.b16 %v7848
        %v7913 = vunpack.c.l.b16 %v7849
        %v7914 = vunpack.c.l.b16 %v7850
        %v7915 = vunpack.c.l.b16 %v7851
        %v7916 = vunpack.c.l.b16 %v7852
        %v7917 = vunpack.c.l.b16 %v7853
        %v7918 = vunpack.c.l.b16 %v7854
        %v7919 = vunpack.c.l.b16 %v7855
        %v7920 = vunpack.c.l.b16 %v7856
        %v7921 = vunpack.c.l.b16 %v7857
        %v7922 = vunpack.c.l.b16 %v7858
        %v7923 = vunpack.c.l.b16 %v7859
        %v7924 = vunpack.c.l.b16 %v7860
        %v7925 = vunpack.c.l.b16 %v7861
        %v7926 = vunpack.c.l.b16 %v7862
        %v7927 = vunpack.c.l.b16 %v7863
        %v7928 = vunpack.c.l.b16 %v7864
        %v7929 = vunpack.c.l.b16 %v7865
        %v7930 = vpack.c.b16 %v7899, %v7898
        %v7931 = vpack.c.b16 %v7901, %v7900
        %v7932 = vpack.c.b16 %v7903, %v7902
        %v7933 = vpack.c.b16 %v7905, %v7904
        %v7934 = vpack.c.b16 %v7907, %v7906
        %v7935 = vpack.c.b16 %v7909, %v7908
        %v7936 = vpack.c.b16 %v7911, %v7910
        %v7937 = vpack.c.b16 %v7913, %v7912
        %v7938 = vpack.c.b16 %v7915, %v7914
        %v7939 = vpack.c.b16 %v7917, %v7916
        %v7940 = vpack.c.b16 %v7919, %v7918
        %v7941 = vpack.c.b16 %v7921, %v7920
        %v7942 = vpack.c.b16 %v7923, %v7922
        %v7943 = vpack.c.b16 %v7925, %v7924
        %v7944 = vpack.c.b16 %v7927, %v7926
        %v7945 = vpack.c.b16 %v7929, %v7928
        %7962 = vmatprep.subr.bf16.mxu0 0
        %7963 = vmatpush1.bf16.msra.mxu0 %v7930
        %7964 = vmatprep.subr.bf16.mxu0 0
        %7965 = vmatpush1.bf16.msra.mxu0 %v7931
        %7966 = vmatprep.subr.bf16.mxu0 0
        %7967 = vmatpush1.bf16.msra.mxu0 %v7932
        %7968 = vmatprep.subr.bf16.mxu0 0
        %7969 = vmatpush1.bf16.msra.mxu0 %v7933
        %7970 = vmatprep.subr.bf16.mxu0 0
        %7971 = vmatpush1.bf16.msra.mxu0 %v7934
        %7972 = vmatprep.subr.bf16.mxu0 0
        %7973 = vmatpush1.bf16.msra.mxu0 %v7935
        %7974 = vmatprep.subr.bf16.mxu0 0
        %7975 = vmatpush1.bf16.msra.mxu0 %v7936
        %7976 = vmatprep.subr.bf16.mxu0 0
        %7977 = vmatpush1.bf16.msra.mxu0 %v7937
        %7978 = vmatprep.subr.bf16.mxu0 0
        %7979 = vmatpush1.bf16.msra.mxu0 %v7938
        %7980 = vmatprep.subr.bf16.mxu0 0
        %7981 = vmatpush1.bf16.msra.mxu0 %v7939
        %7982 = vmatprep.subr.bf16.mxu0 0
        %7983 = vmatpush1.bf16.msra.mxu0 %v7940
        %7984 = vmatprep.subr.bf16.mxu0 0
        %7985 = vmatpush1.bf16.msra.mxu0 %v7941
        %7986 = vmatprep.subr.bf16.mxu0 0
        %7987 = vmatpush1.bf16.msra.mxu0 %v7942
        %7988 = vmatprep.subr.bf16.mxu0 0
        %7989 = vmatpush1.bf16.msra.mxu0 %v7943
        %7990 = vmatprep.subr.bf16.mxu0 0
        %7991 = vmatpush1.bf16.msra.mxu0 %v7944
        %7992 = vmatprep.subr.bf16.mxu0 0
        %7993 = vmatpush1.bf16.msra.mxu0 %v7945
        %7994 = vmatprep.mubr.bf16.mxu0 %v7491
        %7995 = vmatmul.mubr.bf16.gmra.mrb[0].mxu0 %v7490
        %v7996 = vpop.f32.mrb[0].mxu0
        %v7997 = vadd.f32 0.0, %v7996
        %v7998 = vpop.f32.mrb[0].mxu0
        %v7999 = vpop.f32.mrb[0].mxu0
        %v8000 = vadd.f32 0.0, %v7999
        %v8001 = vpop.f32.mrb[0].mxu0
        %8002 = vdwg.mxu0
        %v8003 = vadd.f32 %v7827, %v7997
        %v8004 = vadd.f32 %v7830, %v8000
        %s8005 = scalar_lea.vmem %s5, 384
        %v8006 = vld [vmem:[%s8005] sm:$0xf]
        %v8007 = vld [vmem:[%s8005 + $0x4] sm:$0xf]
        %v8008 = vld [vmem:[%s8005 + $0x8] sm:$0xf]
        %v8009 = vld [vmem:[%s8005 + $0xc] sm:$0xf]
        %v8010 = vld [vmem:[%s8005 + $0x10] sm:$0xf]
        %v8011 = vld [vmem:[%s8005 + $0x14] sm:$0xf]
        %v8012 = vld [vmem:[%s8005 + $0x18] sm:$0xf]
        %v8013 = vld [vmem:[%s8005 + $0x1c] sm:$0xf]
        %v8014 = vld [vmem:[%s8005 + $0x20] sm:$0xf]
        %v8015 = vld [vmem:[%s8005 + $0x24] sm:$0xf]
        %v8016 = vld [vmem:[%s8005 + $0x28] sm:$0xf]
        %v8017 = vld [vmem:[%s8005 + $0x2c] sm:$0xf]
        %v8018 = vld [vmem:[%s8005 + $0x30] sm:$0xf]
        %v8019 = vld [vmem:[%s8005 + $0x34] sm:$0xf]
        %v8020 = vld [vmem:[%s8005 + $0x38] sm:$0xf]
        %v8021 = vld [vmem:[%s8005 + $0x3c] sm:$0xf]
        %v8022 = vld [vmem:[%s8005 + $0x40] sm:$0xf]
        %v8023 = vld [vmem:[%s8005 + $0x44] sm:$0xf]
        %v8024 = vld [vmem:[%s8005 + $0x48] sm:$0xf]
        %v8025 = vld [vmem:[%s8005 + $0x4c] sm:$0xf]
        %v8026 = vld [vmem:[%s8005 + $0x50] sm:$0xf]
        %v8027 = vld [vmem:[%s8005 + $0x54] sm:$0xf]
        %v8028 = vld [vmem:[%s8005 + $0x58] sm:$0xf]
        %v8029 = vld [vmem:[%s8005 + $0x5c] sm:$0xf]
        %v8030 = vld [vmem:[%s8005 + $0x60] sm:$0xf]
        %v8031 = vld [vmem:[%s8005 + $0x64] sm:$0xf]
        %v8032 = vld [vmem:[%s8005 + $0x68] sm:$0xf]
        %v8033 = vld [vmem:[%s8005 + $0x6c] sm:$0xf]
        %v8034 = vld [vmem:[%s8005 + $0x70] sm:$0xf]
        %v8035 = vld [vmem:[%s8005 + $0x74] sm:$0xf]
        %v8036 = vld [vmem:[%s8005 + $0x78] sm:$0xf]
        %v8037 = vld [vmem:[%s8005 + $0x7c] sm:$0xf]
        %v8070 = vunpack.c.l.b16 %v8006
        %v8071 = vunpack.c.l.b16 %v8007
        %v8072 = vunpack.c.l.b16 %v8008
        %v8073 = vunpack.c.l.b16 %v8009
        %v8074 = vunpack.c.l.b16 %v8010
        %v8075 = vunpack.c.l.b16 %v8011
        %v8076 = vunpack.c.l.b16 %v8012
        %v8077 = vunpack.c.l.b16 %v8013
        %v8078 = vunpack.c.l.b16 %v8014
        %v8079 = vunpack.c.l.b16 %v8015
        %v8080 = vunpack.c.l.b16 %v8016
        %v8081 = vunpack.c.l.b16 %v8017
        %v8082 = vunpack.c.l.b16 %v8018
        %v8083 = vunpack.c.l.b16 %v8019
        %v8084 = vunpack.c.l.b16 %v8020
        %v8085 = vunpack.c.l.b16 %v8021
        %v8086 = vunpack.c.l.b16 %v8022
        %v8087 = vunpack.c.l.b16 %v8023
        %v8088 = vunpack.c.l.b16 %v8024
        %v8089 = vunpack.c.l.b16 %v8025
        %v8090 = vunpack.c.l.b16 %v8026
        %v8091 = vunpack.c.l.b16 %v8027
        %v8092 = vunpack.c.l.b16 %v8028
        %v8093 = vunpack.c.l.b16 %v8029
        %v8094 = vunpack.c.l.b16 %v8030
        %v8095 = vunpack.c.l.b16 %v8031
        %v8096 = vunpack.c.l.b16 %v8032
        %v8097 = vunpack.c.l.b16 %v8033
        %v8098 = vunpack.c.l.b16 %v8034
        %v8099 = vunpack.c.l.b16 %v8035
        %v8100 = vunpack.c.l.b16 %v8036
        %v8101 = vunpack.c.l.b16 %v8037
        %v8102 = vpack.c.b16 %v8071, %v8070
        %v8103 = vpack.c.b16 %v8073, %v8072
        %v8104 = vpack.c.b16 %v8075, %v8074
        %v8105 = vpack.c.b16 %v8077, %v8076
        %v8106 = vpack.c.b16 %v8079, %v8078
        %v8107 = vpack.c.b16 %v8081, %v8080
        %v8108 = vpack.c.b16 %v8083, %v8082
        %v8109 = vpack.c.b16 %v8085, %v8084
        %v8110 = vpack.c.b16 %v8087, %v8086
        %v8111 = vpack.c.b16 %v8089, %v8088
        %v8112 = vpack.c.b16 %v8091, %v8090
        %v8113 = vpack.c.b16 %v8093, %v8092
        %v8114 = vpack.c.b16 %v8095, %v8094
        %v8115 = vpack.c.b16 %v8097, %v8096
        %v8116 = vpack.c.b16 %v8099, %v8098
        %v8117 = vpack.c.b16 %v8101, %v8100
        %8134 = vmatprep.subr.bf16.mxu0 0
        %8135 = vmatpush1.bf16.msra.mxu0 %v8102
        %8136 = vmatprep.subr.bf16.mxu0 0
        %8137 = vmatpush1.bf16.msra.mxu0 %v8103
        %8138 = vmatprep.subr.bf16.mxu0 0
        %8139 = vmatpush1.bf16.msra.mxu0 %v8104
        %8140 = vmatprep.subr.bf16.mxu0 0
        %8141 = vmatpush1.bf16.msra.mxu0 %v8105
        %8142 = vmatprep.subr.bf16.mxu0 0
        %8143 = vmatpush1.bf16.msra.mxu0 %v8106
        %8144 = vmatprep.subr.bf16.mxu0 0
        %8145 = vmatpush1.bf16.msra.mxu0 %v8107
        %8146 = vmatprep.subr.bf16.mxu0 0
        %8147 = vmatpush1.bf16.msra.mxu0 %v8108
        %8148 = vmatprep.subr.bf16.mxu0 0
        %8149 = vmatpush1.bf16.msra.mxu0 %v8109
        %8150 = vmatprep.subr.bf16.mxu0 0
        %8151 = vmatpush1.bf16.msra.mxu0 %v8110
        %8152 = vmatprep.subr.bf16.mxu0 0
        %8153 = vmatpush1.bf16.msra.mxu0 %v8111
        %8154 = vmatprep.subr.bf16.mxu0 0
        %8155 = vmatpush1.bf16.msra.mxu0 %v8112
        %8156 = vmatprep.subr.bf16.mxu0 0
        %8157 = vmatpush1.bf16.msra.mxu0 %v8113
        %8158 = vmatprep.subr.bf16.mxu0 0
        %8159 = vmatpush1.bf16.msra.mxu0 %v8114
        %8160 = vmatprep.subr.bf16.mxu0 0
        %8161 = vmatpush1.bf16.msra.mxu0 %v8115
        %8162 = vmatprep.subr.bf16.mxu0 0
        %8163 = vmatpush1.bf16.msra.mxu0 %v8116
        %8164 = vmatprep.subr.bf16.mxu0 0
        %8165 = vmatpush1.bf16.msra.mxu0 %v8117
        %8166 = vmatprep.mubr.bf16.mxu0 %v7493
        %8167 = vmatmul.mubr.bf16.gmra.mrb[0].mxu0 %v7492
        %v8168 = vpop.f32.mrb[0].mxu0
        %v8169 = vadd.f32 0.0, %v8168
        %v8170 = vpop.f32.mrb[0].mxu0
        %v8171 = vpop.f32.mrb[0].mxu0
        %v8172 = vadd.f32 0.0, %v8171
        %v8173 = vpop.f32.mrb[0].mxu0
        %8174 = vdwg.mxu0
        %v8175 = vadd.f32 %v8003, %v8169
        %v8176 = vadd.f32 %v8004, %v8172
        %v8177 = vld [vmem:[%s6] sm:$0x1]
        %v8179 = vlaneseq
        %v8180 = vshrl.u32 %v8179, 7
        %v8181 = vsub.s32 0, %v8180
        %v8182 = vrot.slane %v8177, %v8181
        %v8184 = vadd.f32 %v8175, %v8182
        %v8185 = vadd.f32 %v8176, %v8182
        %v8186 = vmax.f32 %v8184, 0.0
        %v8187 = vmax.f32 %v8185, 0.0
        %v8188 = vpack.c.bf16 %v8187, %v8186
        %v8189 = vld [vmem:[%s7] sm:$0xf]
        %v8190 = vld [vmem:[%s7 + $0x4] sm:$0xf]
        %v8191 = vld [vmem:[%s7 + $0x8] sm:$0xf]
        %v8192 = vld [vmem:[%s7 + $0xc] sm:$0xf]
        %v8193 = vld [vmem:[%s7 + $0x10] sm:$0xf]
        %v8194 = vld [vmem:[%s7 + $0x14] sm:$0xf]
        %v8195 = vld [vmem:[%s7 + $0x18] sm:$0xf]
        %v8196 = vld [vmem:[%s7 + $0x1c] sm:$0xf]
        %v8197 = vld [vmem:[%s7 + $0x20] sm:$0xf]
        %v8198 = vld [vmem:[%s7 + $0x24] sm:$0xf]
        %v8199 = vld [vmem:[%s7 + $0x28] sm:$0xf]
        %v8200 = vld [vmem:[%s7 + $0x2c] sm:$0xf]
        %v8201 = vld [vmem:[%s7 + $0x30] sm:$0xf]
        %v8202 = vld [vmem:[%s7 + $0x34] sm:$0xf]
        %v8203 = vld [vmem:[%s7 + $0x38] sm:$0xf]
        %v8204 = vld [vmem:[%s7 + $0x3c] sm:$0xf]
        %v8205 = vld [vmem:[%s8] sm:$0x1]
        %v8207 = vlaneseq
        %v8208 = vshrl.u32 %v8207, 7
        %v8209 = vsub.s32 0, %v8208
        %v8210 = vrot.slane %v8205, %v8209
        %v8228 = vunpack.c.l.b16 %v8189
        %v8229 = vunpack.c.l.b16 %v8190
        %v8230 = vunpack.c.l.b16 %v8191
        %v8231 = vunpack.c.l.b16 %v8192
        %v8232 = vunpack.c.l.b16 %v8193
        %v8233 = vunpack.c.l.b16 %v8194
        %v8234 = vunpack.c.l.b16 %v8195
        %v8235 = vunpack.c.l.b16 %v8196
        %v8236 = vunpack.c.l.b16 %v8197
        %v8237 = vunpack.c.l.b16 %v8198
        %v8238 = vunpack.c.l.b16 %v8199
        %v8239 = vunpack.c.l.b16 %v8200
        %v8240 = vunpack.c.l.b16 %v8201
        %v8241 = vunpack.c.l.b16 %v8202
        %v8242 = vunpack.c.l.b16 %v8203
        %v8243 = vunpack.c.l.b16 %v8204
        %v8244 = vpack.c.b16 %v8229, %v8228
        %v8245 = vpack.c.b16 %v8231, %v8230
        %v8246 = vpack.c.b16 %v8233, %v8232
        %v8247 = vpack.c.b16 %v8235, %v8234
        %v8248 = vpack.c.b16 %v8237, %v8236
        %v8249 = vpack.c.b16 %v8239, %v8238
        %v8250 = vpack.c.b16 %v8241, %v8240
        %v8251 = vpack.c.b16 %v8243, %v8242
        %8260 = vmatprep.subr.bf16.mxu0 0
        %8261 = vmatpush1.bf16.msra.mxu0 %v8244
        %8262 = vmatprep.subr.bf16.mxu0 0
        %8263 = vmatpush1.bf16.msra.mxu0 %v8245
        %8264 = vmatprep.subr.bf16.mxu0 0
        %8265 = vmatpush1.bf16.msra.mxu0 %v8246
        %8266 = vmatprep.subr.bf16.mxu0 0
        %8267 = vmatpush1.bf16.msra.mxu0 %v8247
        %8268 = vmatprep.subr.bf16.mxu0 0
        %8269 = vmatpush1.bf16.msra.mxu0 %v8248
        %8270 = vmatprep.subr.bf16.mxu0 0
        %8271 = vmatpush1.bf16.msra.mxu0 %v8249
        %8272 = vmatprep.subr.bf16.mxu0 0
        %8273 = vmatpush1.bf16.msra.mxu0 %v8250
        %8274 = vmatprep.subr.bf16.mxu0 0
        %8275 = vmatpush1.bf16.msra.mxu0 %v8251
        %8276 = vmatprep.subr.bf16.mxu0 0
        %8277 = vmatpush1.bf16.msra.mxu0 0
        %8278 = vmatprep.subr.bf16.mxu0 0
        %8279 = vmatpush1.bf16.msra.mxu0 0
        %8280 = vmatprep.subr.bf16.mxu0 0
        %8281 = vmatpush1.bf16.msra.mxu0 0
        %8282 = vmatprep.subr.bf16.mxu0 0
        %8283 = vmatpush1.bf16.msra.mxu0 0
        %8284 = vmatprep.subr.bf16.mxu0 0
        %8285 = vmatpush1.bf16.msra.mxu0 0
        %8286 = vmatprep.subr.bf16.mxu0 0
        %8287 = vmatpush1.bf16.msra.mxu0 0
        %8288 = vmatprep.subr.bf16.mxu0 0
        %8289 = vmatpush1.bf16.msra.mxu0 0
        %8290 = vmatprep.subr.bf16.mxu0 0
        %8291 = vmatpush1.bf16.msra.mxu0 0
        %8292 = vmatprep.mubr.bf16.mxu0 0
        %8293 = vmatmul.mubr.bf16.gmra.mrb[0].mxu0 %v8188
        %v8294 = vpop.f32.mrb[0].mxu0
        %v8295 = vadd.f32 %v8210, %v8294
        %v8296 = vpop.f32.mrb[0].mxu0
        %v8297 = vpop.f32.mrb[0].mxu0
        %v8298 = vadd.f32 %v8210, %v8297
        %v8299 = vpop.f32.mrb[0].mxu0
        %8300 = vdwg.mxu0
        %8301 = vst [vmem:[%s557] sm:$0xff] %v8295
        %8302 = vst [vmem:[%s557 + $0x8] sm:$0xff] %v8298
        %s8303 = smul.u32 2, %s20
        %p8304 = scmp.lt.s32.totalorder %s8303, 3
        %s8305 = scalar_select %p8304, %s8303, 3
        %s8306 = smul.addr %s8305, 8
        %s8307 = scalar_lea.vmem %s9, %s8306
        // Predicated region
        $region95: #{convnet_forward.1} parent=89 // pred_check
          %p8308 = pneg %p232
        $region96: #{convnet_forward.1} parent=89 // pred_check_branch
          %8310 = sbr.rel (%p8308) target = $region98
        $region97: #{convnet_forward.1} parent=89 // pred_region
          %s8311 = smul.u32 2, %s20
        $region98: #{convnet_forward.1} parent=89 // pred_fallthru
          _
      $region90: #{convnet_forward.1} parent=5 // pred_fallthru
        _
      %p8312 = scmp.le.s32.totalorder 2, %s15
      // Predicated region
      $region99: #{convnet_forward.1} parent=5 // pred_check
        %p8313 = pneg %p8312
      $region100: #{convnet_forward.1} parent=5 // pred_check_branch
        %8315 = sbr.rel (%p8313) target = $region102
      $region101: #{convnet_forward.1} parent=5 // pred_region
        %s8316 = ssub.s32 %s15, 2
        // Predicated region
        $region103: #{convnet_forward.1} parent=101 // pred_check
          %p8317 = pneg %p238
        $region104: #{convnet_forward.1} parent=101 // pred_check_branch
          %8319 = sbr.rel (%p8317) target = $region106
        $region105: #{convnet_forward.1} parent=101 // pred_region
          %s8320 = smul.u32 2, %s21
          %p8321 = scmp.lt.s32.totalorder %s8320, 3
          %s8322 = scalar_select %p8321, %s8320, 3
          %s8323 = smul.addr %s8322, 8
          %s8324 = scalar_lea.vmem %s9, %s8323
        $region106: #{convnet_forward.1} parent=101 // pred_fallthru
          _
      $region102: #{convnet_forward.1} parent=5 // pred_fallthru
        _
    $region6: #{convnet_forward.1} parent=1 // loop_footer
      %s19 = sadd.s32 1, %s15
    $region7: #{convnet_forward.1} parent=1 // loop_footer_branch
      %14 = sbr.rel target = $region3
    $region8: #{convnet_forward.1} parent=1 // loop_exit
      _

</llo_original>
